<compile_context>
chip_gen: v7x
topology: tpu7x:2x2x1
jax: 0.10.0
libtpu: 0.0.40
codegen_flags: <defaults>
</compile_context>

<pallas_src>
import functools
import math

import jax
import jax.numpy as jnp
from jax import lax
from jax.experimental import pallas as pl
from jax.experimental.pallas import tpu as pltpu

_BN_EPS = 1e-5
_PRE = 1.0 / math.sqrt(1.0 + _BN_EPS)   # eval-mode BN with default stats
_PRELU_ALPHA = 0.25                     # nn.PReLU default init


def _round_up(v, m):
    return ((v + m - 1) // m) * m


# ----------------------------------------------------------------------------
# Pallas kernels: fused (bf16 patches @ bf16 weight) + bias [+ residual] + act
# ----------------------------------------------------------------------------
def _apply_act(y, act):
    if act == "relu":
        return jnp.maximum(y, 0.0)
    if act == "prelu":
        return jnp.where(y >= 0.0, y, _PRELU_ALPHA * y)
    return y


def _mm_bias_act_kernel(a_ref, b_ref, bi_ref, o_ref, *, act):
    y = jnp.dot(a_ref[...], b_ref[...], preferred_element_type=jnp.float32)
    o_ref[...] = _apply_act(y + bi_ref[...], act).astype(o_ref.dtype)


def _mm_bias_res_act_kernel(a_ref, b_ref, bi_ref, r_ref, o_ref, *, act):
    y = jnp.dot(a_ref[...], b_ref[...], preferred_element_type=jnp.float32)
    o_ref[...] = _apply_act(y + bi_ref[...] + r_ref[...], act).astype(o_ref.dtype)


def pallas_mm_bias_act(a, b, bias, residual=None, act="none"):
    """(M,K) @ (K,N) + bias(N) [+ residual(M,N)] -> (M,N) f32, fused epilogue."""
    M, K = a.shape
    N = b.shape[1]
    # >= 2 blocks along M where possible (both v7x TensorCores get work),
    # tiles up to 256 rows for v5e/v6e; ragged tail handled by Pallas masking
    # (no host-side jnp.pad copy of the im2col matrix).
    if M >= 16:
        TM = min(256, _round_up((M + 1) // 2, 8))
    else:
        TM = _round_up(max(M, 1), 8)
    grid = pl.cdiv(M, TM)

    a = a.astype(jnp.bfloat16)
    b = b.astype(jnp.bfloat16)
    bias2 = bias.reshape(1, N).astype(jnp.float32)

    in_specs = [
        pl.BlockSpec((TM, K), lambda i: (i, 0)),
        pl.BlockSpec((K, N), lambda i: (0, 0)),
        pl.BlockSpec((1, N), lambda i: (0, 0)),
    ]
    args = [a, b, bias2]
    if residual is None:
        kern = functools.partial(_mm_bias_act_kernel, act=act)
    else:
        kern = functools.partial(_mm_bias_res_act_kernel, act=act)
        in_specs.append(pl.BlockSpec((TM, N), lambda i: (i, 0)))
        args.append(residual.astype(jnp.float32))

    return pl.pallas_call(
        kern,
        out_shape=jax.ShapeDtypeStruct((M, N), jnp.float32),
        grid_spec=pltpu.PrefetchScalarGridSpec(
            num_scalar_prefetch=0,
            grid=(grid,),
            in_specs=in_specs,
            out_specs=pl.BlockSpec((TM, N), lambda i: (i, 0)),
        ),
        compiler_params=pltpu.CompilerParams(
            dimension_semantics=("parallel",)),
    )(*args)


# ----------------------------------------------------------------------------
# JAX glue: im2col, pooling, bilinear resize
# ----------------------------------------------------------------------------
def _im2col(x, kh, kw, stride, pad):
    # x: (B, H, W, C) -> (B, Ho, Wo, kh*kw*C)
    B, H, W, C = x.shape
    xp = jnp.pad(x, ((0, 0), (pad, pad), (pad, pad), (0, 0)))
    Ho = (H + 2 * pad - kh) // stride + 1
    Wo = (W + 2 * pad - kw) // stride + 1
    cols = []
    for i in range(kh):
        for j in range(kw):
            cols.append(xp[:, i:i + stride * (Ho - 1) + 1:stride,
                           j:j + stride * (Wo - 1) + 1:stride, :])
    return jnp.concatenate(cols, axis=-1), Ho, Wo


def conv_bn_act(x, p, *, stride=1, act="none", residual=None):
    """Fused Conv2d(+BN)(+act)(+residual) via the Pallas matmul kernel."""
    kh, kw, cin, cout = p["w"].shape
    # bf16 patches: halves the im2col HBM traffic and feeds the MXU natively.
    cols, Ho, Wo = _im2col(x.astype(jnp.bfloat16), kh, kw, stride, p["pad"])
    B = x.shape[0]
    a = cols.reshape(B * Ho * Wo, kh * kw * cin)
    res = None
    if residual is not None:
        res = residual.reshape(B * Ho * Wo, cout)
    y = pallas_mm_bias_act(a, p["w"].reshape(kh * kw * cin, cout),
                           p["bias"], res, act)
    return y.reshape(B, Ho, Wo, cout)


def avg_pool(x, k, s, pad):
    # PyTorch AvgPool2d default: count_include_pad=True
    y = lax.reduce_window(x, 0.0, lax.add, (1, k, k, 1), (1, s, s, 1),
                          [(0, 0), (pad, pad), (pad, pad), (0, 0)])
    return y / float(k * k)


def bilinear_resize(x, H, W):
    # matches F.interpolate(mode='bilinear', align_corners=False)
    return jax.image.resize(x, (x.shape[0], H, W, x.shape[3]),
                            method="bilinear")


# ----------------------------------------------------------------------------
# Deterministic parameter construction (kaiming fan_out for conv weights).
# BN scale (and any pre-activation BN scale) is folded into the bf16 weights.
# ----------------------------------------------------------------------------
def make_conv_bn(key, cin, cout, k, pad, conv_bias=False, has_bn=True,
                 pre_scale=1.0):
    kw_key, kb_key = jax.random.split(key)
    std = math.sqrt(2.0 / (cout * k * k))          # kaiming_normal_, fan_out
    w = std * jax.random.normal(kw_key, (k, k, cin, cout), jnp.float32)
    if conv_bias:
        bound = 1.0 / math.sqrt(cin * k * k)
        cb = jax.random.uniform(kb_key, (cout,), jnp.float32, -bound, bound)
    else:
        cb = jnp.zeros((cout,), jnp.float32)
    if has_bn:
        scale = 1.0 / math.sqrt(1.0 + _BN_EPS)     # eval BN, default stats
        bias = cb * scale                           # (cb - mean)*scale + beta
    else:
        scale = 1.0
        bias = cb
    w = (w * (scale * pre_scale)).astype(jnp.bfloat16)
    return {"w": w, "bias": bias, "pad": pad}


# TODO(synk): ResidualBlock definition not supplied; standard basic block
# (conv3x3-bn-relu, conv3x3-bn, identity shortcut, relu) assumed.
def init_resblock(key, cin, cout, stride=1):
    k1, k2, k3 = jax.random.split(key, 3)
    p = {"conv1": make_conv_bn(k1, cin, cout, 3, pad=1),
         "conv2": make_conv_bn(k2, cout, cout, 3, pad=1),
         "stride": stride}
    if stride != 1 or cin != cout:
        p["down"] = make_conv_bn(k3, cin, cout, 1, pad=0)
    return p


def resblock_fwd(x, p):
    s = p["stride"]
    sc = x if "down" not in p else conv_bn_act(x, p["down"], stride=s)
    h = conv_bn_act(x, p["conv1"], stride=s, act="relu")
    return conv_bn_act(h, p["conv2"], stride=1, act="relu", residual=sc)


# TODO(synk): ResidualBottleneck definition not supplied; 1x1 / 3x3 / 1x1
# bottleneck with 1x1 projection shortcut (stride 1) assumed.
def init_bottleneck(key, cin, mid, cout):
    k1, k2, k3, k4 = jax.random.split(key, 4)
    p = {"conv1": make_conv_bn(k1, cin, mid, 1, pad=0),
         "conv2": make_conv_bn(k2, mid, mid, 3, pad=1),
         "conv3": make_conv_bn(k3, mid, cout, 1, pad=0)}
    if cin != cout:
        p["down"] = make_conv_bn(k4, cin, cout, 1, pad=0)
    return p


def bottleneck_fwd(x, p):
    sc = x if "down" not in p else conv_bn_act(x, p["down"])
    h = conv_bn_act(x, p["conv1"], act="relu")
    h = conv_bn_act(h, p["conv2"], act="relu")
    return conv_bn_act(h, p["conv3"], act="relu", residual=sc)


# TODO(synk): DAPPM definition not supplied; standard DDRNet DAPPM assumed
# (avg-pool pyramid 5/9/17 + global, pre-BN-ReLU 1x1 scale convs, 3x3 process
# convs, compression and shortcut 1x1 convs).  Pre-activation BN is folded
# into the conv weights (pre_scale=_PRE); the ReLU stays as XLA glue.
def init_dappm(key, inp, branch, outp):
    ks = jax.random.split(key, 11)
    p = {"branch": branch}
    scale0 = make_conv_bn(ks[0], inp, branch, 1, pad=0,
                          has_bn=False, pre_scale=_PRE)
    for i in range(1, 5):
        p[f"scale{i}"] = make_conv_bn(ks[i], inp, branch, 1, pad=0,
                                      has_bn=False, pre_scale=_PRE)
    for i in range(1, 5):
        p[f"process{i}"] = make_conv_bn(ks[4 + i], branch, branch, 3, pad=1,
                                        has_bn=False, pre_scale=_PRE)
    p["compression"] = make_conv_bn(ks[9], 5 * branch, outp, 1, pad=0,
                                    has_bn=False, pre_scale=_PRE)
    shortcut = make_conv_bn(ks[10], inp, outp, 1, pad=0,
                            has_bn=False, pre_scale=_PRE)
    # scale0 and shortcut share the same relu(x) input and have no activation:
    # batch them along N into one pallas_call (wider, lane-denser output).
    p["scale0_shortcut"] = {
        "w": jnp.concatenate([scale0["w"], shortcut["w"]], axis=-1),
        "bias": jnp.concatenate([scale0["bias"], shortcut["bias"]]),
        "pad": 0,
    }
    return p


def dappm_fwd(x, p):
    B, H, W, _ = x.shape
    branch = p["branch"]
    up = lambda y: bilinear_resize(y, H, W)
    rx = jnp.maximum(x, 0.0)                      # BN(_PRE) folded into weights
    s0sc = conv_bn_act(rx, p["scale0_shortcut"])  # batched scale0 || shortcut
    x0, short = s0sc[..., :branch], s0sc[..., branch:]
    y1 = up(conv_bn_act(jnp.maximum(avg_pool(x, 5, 2, 2), 0.0), p["scale1"]))
    x1 = conv_bn_act(jnp.maximum(y1 + x0, 0.0), p["process1"])
    y2 = up(conv_bn_act(jnp.maximum(avg_pool(x, 9, 4, 4), 0.0), p["scale2"]))
    x2 = conv_bn_act(jnp.maximum(y2 + x1, 0.0), p["process2"])
    y3 = up(conv_bn_act(jnp.maximum(avg_pool(x, 17, 8, 8), 0.0), p["scale3"]))
    x3 = conv_bn_act(jnp.maximum(y3 + x2, 0.0), p["process3"])
    gp = jnp.mean(x, axis=(1, 2), keepdims=True)
    y4 = up(conv_bn_act(jnp.maximum(gp, 0.0), p["scale4"]))
    x4 = conv_bn_act(jnp.maximum(y4 + x3, 0.0), p["process4"])
    cat = jnp.concatenate([x0, x1, x2, x3, x4], axis=-1)
    return conv_bn_act(jnp.maximum(cat, 0.0), p["compression"]) + short


# ----------------------------------------------------------------------------
# FusionLayer_4
# ----------------------------------------------------------------------------
def init_fusion_layer(key, in_chn, in_chn_):
    keys = iter(jax.random.split(key, 64))
    c, c_ = in_chn, in_chn_                 # all channel multipliers are 1
    P = {}
    for s in (1, 2, 3, 4):
        P[f"layer{s}"] = [init_resblock(next(keys), c, c),
                          init_resblock(next(keys), c, c)]
        P[f"layer{s}_"] = [init_resblock(next(keys), c_, c_),
                           init_resblock(next(keys), c_, c_)]
        # from* = nn.Conv2d(bias=True) + BatchNorm2d  (BN folded into weight)
        P[f"from{s}"] = make_conv_bn(next(keys), c, c_, 1, pad=0,
                                     conv_bias=True)
        P[f"from{s}_"] = make_conv_bn(next(keys), c_, c, 3, pad=1,
                                      conv_bias=True)
    c5, c5_ = 2 * in_chn, 2 * in_chn_
    P["layer5"] = init_bottleneck(next(keys), c, c, c5)
    P["layer5_"] = init_bottleneck(next(keys), c_, c_, c5_)
    P["spp"] = init_dappm(next(keys), c5, c5_ // 2, c5_)
    # TODO(synk): ConvBnPRelu definition not supplied; conv3x3+BN+PReLU(0.25)
    # assumed for merge.
    P["merge"] = make_conv_bn(next(keys), c5_, 256, 3, pad=1)
    return P


def fusion_forward(P, x, x_):
    # x  : (B, h/2, w/2, in_chn)   NHWC  (low-resolution branch)
    # x_ : (B, h,   w,   in_chn_)  NHWC  (high-resolution branch)
    h, w = x_.shape[1], x_.shape[2]
    for s in (1, 2, 3, 4):
        for blk in P[f"layer{s}"]:
            x = resblock_fwd(x, blk)
        prev = x
        for blk in P[f"layer{s}_"]:
            x_ = resblock_fwd(x_, blk)
        x = x + conv_bn_act(x_, P[f"from{s}_"], stride=2)
        x_ = x_ + bilinear_resize(conv_bn_act(prev, P[f"from{s}"]), h, w)
    x = dappm_fwd(bottleneck_fwd(x, P["layer5"]), P["spp"])
    x = bilinear_resize(x, h, w)
    x_ = bottleneck_fwd(x_, P["layer5_"])
    f = conv_bn_act(x + x_, P["merge"], act="prelu")
    return f


if __name__ == "__main__":
    key = jax.random.PRNGKey(0)
    kp, kx, kx_ = jax.random.split(key, 3)

    in_chn, in_chn_ = 8, 4
    B, h, w = 2, 16, 16
    # PyTorch-style NCHW inputs
    x_nchw = jax.random.normal(kx, (B, in_chn, h // 2, w // 2), jnp.float32)
    x__nchw = jax.random.normal(kx_, (B, in_chn_, h, w), jnp.float32)

    params = init_fusion_layer(kp, in_chn, in_chn_)

    x = jnp.transpose(x_nchw, (0, 2, 3, 1))     # -> NHWC
    x_ = jnp.transpose(x__nchw, (0, 2, 3, 1))   # -> NHWC

    # jit the whole forward so the XLA glue (im2col slices, resize, pooling,
    # concats) fuses around the pallas_calls; params are closed over so the
    # Python ints (pad / stride / branch) stay static.
    fwd = jax.jit(lambda a, b: fusion_forward(params, a, b))
    f = fwd(x, x_)
    f_nchw = jnp.transpose(f, (0, 3, 1, 2))     # back to NCHW
    jax.block_until_ready(f_nchw)
    assert f_nchw.shape == (B, 256, h, w), f_nchw.shape
    assert bool(jnp.all(jnp.isfinite(f_nchw)))
    print("KERNEL_OK")
</pallas_src>

<mosaic_0001>
module attributes {stable_mosaic.version = 11 : i64} {
  func.func @_mm_bias_act_kernel(%arg0: i32, %arg1: memref<256x36xbf16, #tpu.memory_space<vmem>>, %arg2: memref<36x4xbf16, #tpu.memory_space<vmem>>, %arg3: memref<1x4xf32, #tpu.memory_space<vmem>>, %arg4: memref<256x4xf32, #tpu.memory_space<vmem>>) attributes {dimension_semantics = [#tpu.dimension_semantics<parallel>], iteration_bounds = array<i64: 2>, scalar_prefetch = 0 : i64, scratch_operands = 0 : i64, tpu.core_type = #tpu.core_type<tc>, window_params = [{transform_indices = @transform_0, window_bounds = array<i64: 256, 36>}, {pipeline_mode = #tpu.pipeline_mode<synchronous>, transform_indices = @transform_1, window_bounds = array<i64: 36, 4>}, {pipeline_mode = #tpu.pipeline_mode<synchronous>, transform_indices = @transform_2, window_bounds = array<i64: 1, 4>}, {transform_indices = @transform_3, window_bounds = array<i64: 256, 4>}]} {
    %c0 = arith.constant 0 : index
    %c0_0 = arith.constant 0 : index
    %0 = vector.load %arg1[%c0, %c0_0] : memref<256x36xbf16, #tpu.memory_space<vmem>>, vector<256x36xbf16>
    %c0_1 = arith.constant 0 : index
    %c0_2 = arith.constant 0 : index
    %1 = vector.load %arg2[%c0_1, %c0_2] : memref<36x4xbf16, #tpu.memory_space<vmem>>, vector<36x4xbf16>
    %cst = arith.constant dense<0.000000e+00> : vector<256x4xf32>
    %2 = tpu.matmul %0, %1, %cst {dimension_numbers = #tpu.dot_dimension_numbers<[1], [0], [0], [1], [0, 0, 1, 1], [], []>} : vector<256x36xbf16>, vector<36x4xbf16>, vector<256x4xf32> -> vector<256x4xf32>
    %c0_3 = arith.constant 0 : index
    %c0_4 = arith.constant 0 : index
    %3 = vector.load %arg3[%c0_3, %c0_4] : memref<1x4xf32, #tpu.memory_space<vmem>>, vector<1x4xf32>
    %4 = vector.broadcast %3 : vector<1x4xf32> to vector<256x4xf32>
    %5 = arith.addf %2, %4 : vector<256x4xf32>
    %cst_5 = arith.constant 0.000000e+00 : f32
    %6 = vector.broadcast %cst_5 : f32 to vector<256x4xf32>
    %7 = arith.maximumf %5, %6 : vector<256x4xf32>
    %c0_6 = arith.constant 0 : index
    %c0_7 = arith.constant 0 : index
    %8 = vector.load %arg4[%c0_6, %c0_7] : memref<256x4xf32, #tpu.memory_space<vmem>>, vector<256x4xf32>
    tpu.vector_store %arg4[%c0_6, %c0_7], %7 {strides = array<i32>} : memref<256x4xf32, #tpu.memory_space<vmem>>, vector<256x4xf32>,
    return
  }
  func.func @transform_0(%arg0: i32) -> (i32, i32) {
    %c0_i32 = arith.constant 0 : i32
    %c0_i32_0 = arith.constant 0 : i32
    return %arg0, %c0_i32 : i32, i32
  }
  func.func @transform_1(%arg0: i32) -> (i32, i32) {
    %c0_i32 = arith.constant 0 : i32
    %c0_i32_0 = arith.constant 0 : i32
    %c0_i32_1 = arith.constant 0 : i32
    return %c0_i32, %c0_i32_0 : i32, i32
  }
  func.func @transform_2(%arg0: i32) -> (i32, i32) {
    %c0_i32 = arith.constant 0 : i32
    %c0_i32_0 = arith.constant 0 : i32
    %c0_i32_1 = arith.constant 0 : i32
    return %c0_i32, %c0_i32_0 : i32, i32
  }
  func.func @transform_3(%arg0: i32) -> (i32, i32) {
    %c0_i32 = arith.constant 0 : i32
    %c0_i32_0 = arith.constant 0 : i32
    return %arg0, %c0_i32 : i32, i32
  }
}

module attributes {stable_mosaic.version = 11 : i64} {
  func.func @_mm_bias_res_act_kernel(%arg0: i32, %arg1: memref<256x36xbf16, #tpu.memory_space<vmem>>, %arg2: memref<36x4xbf16, #tpu.memory_space<vmem>>, %arg3: memref<1x4xf32, #tpu.memory_space<vmem>>, %arg4: memref<256x4xf32, #tpu.memory_space<vmem>>, %arg5: memref<256x4xf32, #tpu.memory_space<vmem>>) attributes {dimension_semantics = [#tpu.dimension_semantics<parallel>], iteration_bounds = array<i64: 2>, scalar_prefetch = 0 : i64, scratch_operands = 0 : i64, tpu.core_type = #tpu.core_type<tc>, window_params = [{transform_indices = @transform_0, window_bounds = array<i64: 256, 36>}, {pipeline_mode = #tpu.pipeline_mode<synchronous>, transform_indices = @transform_1, window_bounds = array<i64: 36, 4>}, {pipeline_mode = #tpu.pipeline_mode<synchronous>, transform_indices = @transform_2, window_bounds = array<i64: 1, 4>}, {transform_indices = @transform_3, window_bounds = array<i64: 256, 4>}, {transform_indices = @transform_4, window_bounds = array<i64: 256, 4>}]} {
    %c0 = arith.constant 0 : index
    %c0_0 = arith.constant 0 : index
    %0 = vector.load %arg1[%c0, %c0_0] : memref<256x36xbf16, #tpu.memory_space<vmem>>, vector<256x36xbf16>
    %c0_1 = arith.constant 0 : index
    %c0_2 = arith.constant 0 : index
    %1 = vector.load %arg2[%c0_1, %c0_2] : memref<36x4xbf16, #tpu.memory_space<vmem>>, vector<36x4xbf16>
    %cst = arith.constant dense<0.000000e+00> : vector<256x4xf32>
    %2 = tpu.matmul %0, %1, %cst {dimension_numbers = #tpu.dot_dimension_numbers<[1], [0], [0], [1], [0, 0, 1, 1], [], []>} : vector<256x36xbf16>, vector<36x4xbf16>, vector<256x4xf32> -> vector<256x4xf32>
    %c0_3 = arith.constant 0 : index
    %c0_4 = arith.constant 0 : index
    %3 = vector.load %arg3[%c0_3, %c0_4] : memref<1x4xf32, #tpu.memory_space<vmem>>, vector<1x4xf32>
    %4 = vector.broadcast %3 : vector<1x4xf32> to vector<256x4xf32>
    %5 = arith.addf %2, %4 : vector<256x4xf32>
    %c0_5 = arith.constant 0 : index
    %c0_6 = arith.constant 0 : index
    %6 = vector.load %arg4[%c0_5, %c0_6] : memref<256x4xf32, #tpu.memory_space<vmem>>, vector<256x4xf32>
    %7 = arith.addf %5, %6 : vector<256x4xf32>
    %cst_7 = arith.constant 0.000000e+00 : f32
    %8 = vector.broadcast %cst_7 : f32 to vector<256x4xf32>
    %9 = arith.maximumf %7, %8 : vector<256x4xf32>
    %c0_8 = arith.constant 0 : index
    %c0_9 = arith.constant 0 : index
    %10 = vector.load %arg5[%c0_8, %c0_9] : memref<256x4xf32, #tpu.memory_space<vmem>>, vector<256x4xf32>
    tpu.vector_store %arg5[%c0_8, %c0_9], %9 {strides = array<i32>} : memref<256x4xf32, #tpu.memory_space<vmem>>, vector<256x4xf32>,
    return
  }
  func.func @transform_0(%arg0: i32) -> (i32, i32) {
    %c0_i32 = arith.constant 0 : i32
    %c0_i32_0 = arith.constant 0 : i32
    return %arg0, %c0_i32 : i32, i32
  }
  func.func @transform_1(%arg0: i32) -> (i32, i32) {
    %c0_i32 = arith.constant 0 : i32
    %c0_i32_0 = arith.constant 0 : i32
    %c0_i32_1 = arith.constant 0 : i32
    return %c0_i32, %c0_i32_0 : i32, i32
  }
  func.func @transform_2(%arg0: i32) -> (i32, i32) {
    %c0_i32 = arith.constant 0 : i32
    %c0_i32_0 = arith.constant 0 : i32
    %c0_i32_1 = arith.constant 0 : i32
    return %c0_i32, %c0_i32_0 : i32, i32
  }
  func.func @transform_3(%arg0: i32) -> (i32, i32) {
    %c0_i32 = arith.constant 0 : i32
    %c0_i32_0 = arith.constant 0 : i32
    return %arg0, %c0_i32 : i32, i32
  }
  func.func @transform_4(%arg0: i32) -> (i32, i32) {
    %c0_i32 = arith.constant 0 : i32
    %c0_i32_0 = arith.constant 0 : i32
    return %arg0, %c0_i32 : i32, i32
  }
}

module attributes {stable_mosaic.version = 11 : i64} {
  func.func @_mm_bias_act_kernel(%arg0: i32, %arg1: memref<64x36xbf16, #tpu.memory_space<vmem>>, %arg2: memref<36x8xbf16, #tpu.memory_space<vmem>>, %arg3: memref<1x8xf32, #tpu.memory_space<vmem>>, %arg4: memref<64x8xf32, #tpu.memory_space<vmem>>) attributes {dimension_semantics = [#tpu.dimension_semantics<parallel>], iteration_bounds = array<i64: 2>, scalar_prefetch = 0 : i64, scratch_operands = 0 : i64, tpu.core_type = #tpu.core_type<tc>, window_params = [{transform_indices = @transform_0, window_bounds = array<i64: 64, 36>}, {pipeline_mode = #tpu.pipeline_mode<synchronous>, transform_indices = @transform_1, window_bounds = array<i64: 36, 8>}, {pipeline_mode = #tpu.pipeline_mode<synchronous>, transform_indices = @transform_2, window_bounds = array<i64: 1, 8>}, {transform_indices = @transform_3, window_bounds = array<i64: 64, 8>}]} {
    %c0 = arith.constant 0 : index
    %c0_0 = arith.constant 0 : index
    %0 = vector.load %arg1[%c0, %c0_0] : memref<64x36xbf16, #tpu.memory_space<vmem>>, vector<64x36xbf16>
    %c0_1 = arith.constant 0 : index
    %c0_2 = arith.constant 0 : index
    %1 = vector.load %arg2[%c0_1, %c0_2] : memref<36x8xbf16, #tpu.memory_space<vmem>>, vector<36x8xbf16>
    %cst = arith.constant dense<0.000000e+00> : vector<64x8xf32>
    %2 = tpu.matmul %0, %1, %cst {dimension_numbers = #tpu.dot_dimension_numbers<[1], [0], [0], [1], [0, 0, 1, 1], [], []>} : vector<64x36xbf16>, vector<36x8xbf16>, vector<64x8xf32> -> vector<64x8xf32>
    %c0_3 = arith.constant 0 : index
    %c0_4 = arith.constant 0 : index
    %3 = vector.load %arg3[%c0_3, %c0_4] : memref<1x8xf32, #tpu.memory_space<vmem>>, vector<1x8xf32>
    %4 = vector.broadcast %3 : vector<1x8xf32> to vector<64x8xf32>
    %5 = arith.addf %2, %4 : vector<64x8xf32>
    %c0_5 = arith.constant 0 : index
    %c0_6 = arith.constant 0 : index
    %6 = vector.load %arg4[%c0_5, %c0_6] : memref<64x8xf32, #tpu.memory_space<vmem>>, vector<64x8xf32>
    tpu.vector_store %arg4[%c0_5, %c0_6], %5 {strides = array<i32>} : memref<64x8xf32, #tpu.memory_space<vmem>>, vector<64x8xf32>,
    return
  }
  func.func @transform_0(%arg0: i32) -> (i32, i32) {
    %c0_i32 = arith.constant 0 : i32
    %c0_i32_0 = arith.constant 0 : i32
    return %arg0, %c0_i32 : i32, i32
  }
  func.func @transform_1(%arg0: i32) -> (i32, i32) {
    %c0_i32 = arith.constant 0 : i32
    %c0_i32_0 = arith.constant 0 : i32
    %c0_i32_1 = arith.constant 0 : i32
    return %c0_i32, %c0_i32_0 : i32, i32
  }
  func.func @transform_2(%arg0: i32) -> (i32, i32) {
    %c0_i32 = arith.constant 0 : i32
    %c0_i32_0 = arith.constant 0 : i32
    %c0_i32_1 = arith.constant 0 : i32
    return %c0_i32, %c0_i32_0 : i32, i32
  }
  func.func @transform_3(%arg0: i32) -> (i32, i32) {
    %c0_i32 = arith.constant 0 : i32
    %c0_i32_0 = arith.constant 0 : i32
    return %arg0, %c0_i32 : i32, i32
  }
}

module attributes {stable_mosaic.version = 11 : i64} {
  func.func @_mm_bias_act_kernel(%arg0: i32, %arg1: memref<64x72xbf16, #tpu.memory_space<vmem>>, %arg2: memref<72x8xbf16, #tpu.memory_space<vmem>>, %arg3: memref<1x8xf32, #tpu.memory_space<vmem>>, %arg4: memref<64x8xf32, #tpu.memory_space<vmem>>) attributes {dimension_semantics = [#tpu.dimension_semantics<parallel>], iteration_bounds = array<i64: 2>, scalar_prefetch = 0 : i64, scratch_operands = 0 : i64, tpu.core_type = #tpu.core_type<tc>, window_params = [{transform_indices = @transform_0, window_bounds = array<i64: 64, 72>}, {pipeline_mode = #tpu.pipeline_mode<synchronous>, transform_indices = @transform_1, window_bounds = array<i64: 72, 8>}, {pipeline_mode = #tpu.pipeline_mode<synchronous>, transform_indices = @transform_2, window_bounds = array<i64: 1, 8>}, {transform_indices = @transform_3, window_bounds = array<i64: 64, 8>}]} {
    %c0 = arith.constant 0 : index
    %c0_0 = arith.constant 0 : index
    %0 = vector.load %arg1[%c0, %c0_0] : memref<64x72xbf16, #tpu.memory_space<vmem>>, vector<64x72xbf16>
    %c0_1 = arith.constant 0 : index
    %c0_2 = arith.constant 0 : index
    %1 = vector.load %arg2[%c0_1, %c0_2] : memref<72x8xbf16, #tpu.memory_space<vmem>>, vector<72x8xbf16>
    %cst = arith.constant dense<0.000000e+00> : vector<64x8xf32>
    %2 = tpu.matmul %0, %1, %cst {dimension_numbers = #tpu.dot_dimension_numbers<[1], [0], [0], [1], [0, 0, 1, 1], [], []>} : vector<64x72xbf16>, vector<72x8xbf16>, vector<64x8xf32> -> vector<64x8xf32>
    %c0_3 = arith.constant 0 : index
    %c0_4 = arith.constant 0 : index
    %3 = vector.load %arg3[%c0_3, %c0_4] : memref<1x8xf32, #tpu.memory_space<vmem>>, vector<1x8xf32>
    %4 = vector.broadcast %3 : vector<1x8xf32> to vector<64x8xf32>
    %5 = arith.addf %2, %4 : vector<64x8xf32>
    %cst_5 = arith.constant 0.000000e+00 : f32
    %6 = vector.broadcast %cst_5 : f32 to vector<64x8xf32>
    %7 = arith.maximumf %5, %6 : vector<64x8xf32>
    %c0_6 = arith.constant 0 : index
    %c0_7 = arith.constant 0 : index
    %8 = vector.load %arg4[%c0_6, %c0_7] : memref<64x8xf32, #tpu.memory_space<vmem>>, vector<64x8xf32>
    tpu.vector_store %arg4[%c0_6, %c0_7], %7 {strides = array<i32>} : memref<64x8xf32, #tpu.memory_space<vmem>>, vector<64x8xf32>,
    return
  }
  func.func @transform_0(%arg0: i32) -> (i32, i32) {
    %c0_i32 = arith.constant 0 : i32
    %c0_i32_0 = arith.constant 0 : i32
    return %arg0, %c0_i32 : i32, i32
  }
  func.func @transform_1(%arg0: i32) -> (i32, i32) {
    %c0_i32 = arith.constant 0 : i32
    %c0_i32_0 = arith.constant 0 : i32
    %c0_i32_1 = arith.constant 0 : i32
    return %c0_i32, %c0_i32_0 : i32, i32
  }
  func.func @transform_2(%arg0: i32) -> (i32, i32) {
    %c0_i32 = arith.constant 0 : i32
    %c0_i32_0 = arith.constant 0 : i32
    %c0_i32_1 = arith.constant 0 : i32
    return %c0_i32, %c0_i32_0 : i32, i32
  }
  func.func @transform_3(%arg0: i32) -> (i32, i32) {
    %c0_i32 = arith.constant 0 : i32
    %c0_i32_0 = arith.constant 0 : i32
    return %arg0, %c0_i32 : i32, i32
  }
}

module attributes {stable_mosaic.version = 11 : i64} {
  func.func @_mm_bias_res_act_kernel(%arg0: i32, %arg1: memref<64x72xbf16, #tpu.memory_space<vmem>>, %arg2: memref<72x8xbf16, #tpu.memory_space<vmem>>, %arg3: memref<1x8xf32, #tpu.memory_space<vmem>>, %arg4: memref<64x8xf32, #tpu.memory_space<vmem>>, %arg5: memref<64x8xf32, #tpu.memory_space<vmem>>) attributes {dimension_semantics = [#tpu.dimension_semantics<parallel>], iteration_bounds = array<i64: 2>, scalar_prefetch = 0 : i64, scratch_operands = 0 : i64, tpu.core_type = #tpu.core_type<tc>, window_params = [{transform_indices = @transform_0, window_bounds = array<i64: 64, 72>}, {pipeline_mode = #tpu.pipeline_mode<synchronous>, transform_indices = @transform_1, window_bounds = array<i64: 72, 8>}, {pipeline_mode = #tpu.pipeline_mode<synchronous>, transform_indices = @transform_2, window_bounds = array<i64: 1, 8>}, {transform_indices = @transform_3, window_bounds = array<i64: 64, 8>}, {transform_indices = @transform_4, window_bounds = array<i64: 64, 8>}]} {
    %c0 = arith.constant 0 : index
    %c0_0 = arith.constant 0 : index
    %0 = vector.load %arg1[%c0, %c0_0] : memref<64x72xbf16, #tpu.memory_space<vmem>>, vector<64x72xbf16>
    %c0_1 = arith.constant 0 : index
    %c0_2 = arith.constant 0 : index
    %1 = vector.load %arg2[%c0_1, %c0_2] : memref<72x8xbf16, #tpu.memory_space<vmem>>, vector<72x8xbf16>
    %cst = arith.constant dense<0.000000e+00> : vector<64x8xf32>
    %2 = tpu.matmul %0, %1, %cst {dimension_numbers = #tpu.dot_dimension_numbers<[1], [0], [0], [1], [0, 0, 1, 1], [], []>} : vector<64x72xbf16>, vector<72x8xbf16>, vector<64x8xf32> -> vector<64x8xf32>
    %c0_3 = arith.constant 0 : index
    %c0_4 = arith.constant 0 : index
    %3 = vector.load %arg3[%c0_3, %c0_4] : memref<1x8xf32, #tpu.memory_space<vmem>>, vector<1x8xf32>
    %4 = vector.broadcast %3 : vector<1x8xf32> to vector<64x8xf32>
    %5 = arith.addf %2, %4 : vector<64x8xf32>
    %c0_5 = arith.constant 0 : index
    %c0_6 = arith.constant 0 : index
    %6 = vector.load %arg4[%c0_5, %c0_6] : memref<64x8xf32, #tpu.memory_space<vmem>>, vector<64x8xf32>
    %7 = arith.addf %5, %6 : vector<64x8xf32>
    %cst_7 = arith.constant 0.000000e+00 : f32
    %8 = vector.broadcast %cst_7 : f32 to vector<64x8xf32>
    %9 = arith.maximumf %7, %8 : vector<64x8xf32>
    %c0_8 = arith.constant 0 : index
    %c0_9 = arith.constant 0 : index
    %10 = vector.load %arg5[%c0_8, %c0_9] : memref<64x8xf32, #tpu.memory_space<vmem>>, vector<64x8xf32>
    tpu.vector_store %arg5[%c0_8, %c0_9], %9 {strides = array<i32>} : memref<64x8xf32, #tpu.memory_space<vmem>>, vector<64x8xf32>,
    return
  }
  func.func @transform_0(%arg0: i32) -> (i32, i32) {
    %c0_i32 = arith.constant 0 : i32
    %c0_i32_0 = arith.constant 0 : i32
    return %arg0, %c0_i32 : i32, i32
  }
  func.func @transform_1(%arg0: i32) -> (i32, i32) {
    %c0_i32 = arith.constant 0 : i32
    %c0_i32_0 = arith.constant 0 : i32
    %c0_i32_1 = arith.constant 0 : i32
    return %c0_i32, %c0_i32_0 : i32, i32
  }
  func.func @transform_2(%arg0: i32) -> (i32, i32) {
    %c0_i32 = arith.constant 0 : i32
    %c0_i32_0 = arith.constant 0 : i32
    %c0_i32_1 = arith.constant 0 : i32
    return %c0_i32, %c0_i32_0 : i32, i32
  }
  func.func @transform_3(%arg0: i32) -> (i32, i32) {
    %c0_i32 = arith.constant 0 : i32
    %c0_i32_0 = arith.constant 0 : i32
    return %arg0, %c0_i32 : i32, i32
  }
  func.func @transform_4(%arg0: i32) -> (i32, i32) {
    %c0_i32 = arith.constant 0 : i32
    %c0_i32_0 = arith.constant 0 : i32
    return %arg0, %c0_i32 : i32, i32
  }
}

module attributes {stable_mosaic.version = 11 : i64} {
  func.func @_mm_bias_act_kernel(%arg0: i32, %arg1: memref<64x8xbf16, #tpu.memory_space<vmem>>, %arg2: memref<8x4xbf16, #tpu.memory_space<vmem>>, %arg3: memref<1x4xf32, #tpu.memory_space<vmem>>, %arg4: memref<64x4xf32, #tpu.memory_space<vmem>>) attributes {dimension_semantics = [#tpu.dimension_semantics<parallel>], iteration_bounds = array<i64: 2>, scalar_prefetch = 0 : i64, scratch_operands = 0 : i64, tpu.core_type = #tpu.core_type<tc>, window_params = [{transform_indices = @transform_0, window_bounds = array<i64: 64, 8>}, {pipeline_mode = #tpu.pipeline_mode<synchronous>, transform_indices = @transform_1, window_bounds = array<i64: 8, 4>}, {pipeline_mode = #tpu.pipeline_mode<synchronous>, transform_indices = @transform_2, window_bounds = array<i64: 1, 4>}, {transform_indices = @transform_3, window_bounds = array<i64: 64, 4>}]} {
    %c0 = arith.constant 0 : index
    %c0_0 = arith.constant 0 : index
    %0 = vector.load %arg1[%c0, %c0_0] : memref<64x8xbf16, #tpu.memory_space<vmem>>, vector<64x8xbf16>
    %c0_1 = arith.constant 0 : index
    %c0_2 = arith.constant 0 : index
    %1 = vector.load %arg2[%c0_1, %c0_2] : memref<8x4xbf16, #tpu.memory_space<vmem>>, vector<8x4xbf16>
    %cst = arith.constant dense<0.000000e+00> : vector<64x4xf32>
    %2 = tpu.matmul %0, %1, %cst {dimension_numbers = #tpu.dot_dimension_numbers<[1], [0], [0], [1], [0, 0, 1, 1], [], []>} : vector<64x8xbf16>, vector<8x4xbf16>, vector<64x4xf32> -> vector<64x4xf32>
    %c0_3 = arith.constant 0 : index
    %c0_4 = arith.constant 0 : index
    %3 = vector.load %arg3[%c0_3, %c0_4] : memref<1x4xf32, #tpu.memory_space<vmem>>, vector<1x4xf32>
    %4 = vector.broadcast %3 : vector<1x4xf32> to vector<64x4xf32>
    %5 = arith.addf %2, %4 : vector<64x4xf32>
    %c0_5 = arith.constant 0 : index
    %c0_6 = arith.constant 0 : index
    %6 = vector.load %arg4[%c0_5, %c0_6] : memref<64x4xf32, #tpu.memory_space<vmem>>, vector<64x4xf32>
    tpu.vector_store %arg4[%c0_5, %c0_6], %5 {strides = array<i32>} : memref<64x4xf32, #tpu.memory_space<vmem>>, vector<64x4xf32>,
    return
  }
  func.func @transform_0(%arg0: i32) -> (i32, i32) {
    %c0_i32 = arith.constant 0 : i32
    %c0_i32_0 = arith.constant 0 : i32
    return %arg0, %c0_i32 : i32, i32
  }
  func.func @transform_1(%arg0: i32) -> (i32, i32) {
    %c0_i32 = arith.constant 0 : i32
    %c0_i32_0 = arith.constant 0 : i32
    %c0_i32_1 = arith.constant 0 : i32
    return %c0_i32, %c0_i32_0 : i32, i32
  }
  func.func @transform_2(%arg0: i32) -> (i32, i32) {
    %c0_i32 = arith.constant 0 : i32
    %c0_i32_0 = arith.constant 0 : i32
    %c0_i32_1 = arith.constant 0 : i32
    return %c0_i32, %c0_i32_0 : i32, i32
  }
  func.func @transform_3(%arg0: i32) -> (i32, i32) {
    %c0_i32 = arith.constant 0 : i32
    %c0_i32_0 = arith.constant 0 : i32
    return %arg0, %c0_i32 : i32, i32
  }
}

module attributes {stable_mosaic.version = 11 : i64} {
  func.func @_mm_bias_res_act_kernel(%arg0: i32, %arg1: memref<64x8xbf16, #tpu.memory_space<vmem>>, %arg2: memref<8x16xbf16, #tpu.memory_space<vmem>>, %arg3: memref<1x16xf32, #tpu.memory_space<vmem>>, %arg4: memref<64x16xf32, #tpu.memory_space<vmem>>, %arg5: memref<64x16xf32, #tpu.memory_space<vmem>>) attributes {dimension_semantics = [#tpu.dimension_semantics<parallel>], iteration_bounds = array<i64: 2>, scalar_prefetch = 0 : i64, scratch_operands = 0 : i64, tpu.core_type = #tpu.core_type<tc>, window_params = [{transform_indices = @transform_0, window_bounds = array<i64: 64, 8>}, {pipeline_mode = #tpu.pipeline_mode<synchronous>, transform_indices = @transform_1, window_bounds = array<i64: 8, 16>}, {pipeline_mode = #tpu.pipeline_mode<synchronous>, transform_indices = @transform_2, window_bounds = array<i64: 1, 16>}, {transform_indices = @transform_3, window_bounds = array<i64: 64, 16>}, {transform_indices = @transform_4, window_bounds = array<i64: 64, 16>}]} {
    %c0 = arith.constant 0 : index
    %c0_0 = arith.constant 0 : index
    %0 = vector.load %arg1[%c0, %c0_0] : memref<64x8xbf16, #tpu.memory_space<vmem>>, vector<64x8xbf16>
    %c0_1 = arith.constant 0 : index
    %c0_2 = arith.constant 0 : index
    %1 = vector.load %arg2[%c0_1, %c0_2] : memref<8x16xbf16, #tpu.memory_space<vmem>>, vector<8x16xbf16>
    %cst = arith.constant dense<0.000000e+00> : vector<64x16xf32>
    %2 = tpu.matmul %0, %1, %cst {dimension_numbers = #tpu.dot_dimension_numbers<[1], [0], [0], [1], [0, 0, 1, 1], [], []>} : vector<64x8xbf16>, vector<8x16xbf16>, vector<64x16xf32> -> vector<64x16xf32>
    %c0_3 = arith.constant 0 : index
    %c0_4 = arith.constant 0 : index
    %3 = vector.load %arg3[%c0_3, %c0_4] : memref<1x16xf32, #tpu.memory_space<vmem>>, vector<1x16xf32>
    %4 = vector.broadcast %3 : vector<1x16xf32> to vector<64x16xf32>
    %5 = arith.addf %2, %4 : vector<64x16xf32>
    %c0_5 = arith.constant 0 : index
    %c0_6 = arith.constant 0 : index
    %6 = vector.load %arg4[%c0_5, %c0_6] : memref<64x16xf32, #tpu.memory_space<vmem>>, vector<64x16xf32>
    %7 = arith.addf %5, %6 : vector<64x16xf32>
    %cst_7 = arith.constant 0.000000e+00 : f32
    %8 = vector.broadcast %cst_7 : f32 to vector<64x16xf32>
    %9 = arith.maximumf %7, %8 : vector<64x16xf32>
    %c0_8 = arith.constant 0 : index
    %c0_9 = arith.constant 0 : index
    %10 = vector.load %arg5[%c0_8, %c0_9] : memref<64x16xf32, #tpu.memory_space<vmem>>, vector<64x16xf32>
    tpu.vector_store %arg5[%c0_8, %c0_9], %9 {strides = array<i32>} : memref<64x16xf32, #tpu.memory_space<vmem>>, vector<64x16xf32>,
    return
  }
  func.func @transform_0(%arg0: i32) -> (i32, i32) {
    %c0_i32 = arith.constant 0 : i32
    %c0_i32_0 = arith.constant 0 : i32
    return %arg0, %c0_i32 : i32, i32
  }
  func.func @transform_1(%arg0: i32) -> (i32, i32) {
    %c0_i32 = arith.constant 0 : i32
    %c0_i32_0 = arith.constant 0 : i32
    %c0_i32_1 = arith.constant 0 : i32
    return %c0_i32, %c0_i32_0 : i32, i32
  }
  func.func @transform_2(%arg0: i32) -> (i32, i32) {
    %c0_i32 = arith.constant 0 : i32
    %c0_i32_0 = arith.constant 0 : i32
    %c0_i32_1 = arith.constant 0 : i32
    return %c0_i32, %c0_i32_0 : i32, i32
  }
  func.func @transform_3(%arg0: i32) -> (i32, i32) {
    %c0_i32 = arith.constant 0 : i32
    %c0_i32_0 = arith.constant 0 : i32
    return %arg0, %c0_i32 : i32, i32
  }
  func.func @transform_4(%arg0: i32) -> (i32, i32) {
    %c0_i32 = arith.constant 0 : i32
    %c0_i32_0 = arith.constant 0 : i32
    return %arg0, %c0_i32 : i32, i32
  }
}

module attributes {stable_mosaic.version = 11 : i64} {
  func.func @_mm_bias_act_kernel(%arg0: i32, %arg1: memref<64x8xbf16, #tpu.memory_space<vmem>>, %arg2: memref<8x8xbf16, #tpu.memory_space<vmem>>, %arg3: memref<1x8xf32, #tpu.memory_space<vmem>>, %arg4: memref<64x8xf32, #tpu.memory_space<vmem>>) attributes {dimension_semantics = [#tpu.dimension_semantics<parallel>], iteration_bounds = array<i64: 2>, scalar_prefetch = 0 : i64, scratch_operands = 0 : i64, tpu.core_type = #tpu.core_type<tc>, window_params = [{transform_indices = @transform_0, window_bounds = array<i64: 64, 8>}, {pipeline_mode = #tpu.pipeline_mode<synchronous>, transform_indices = @transform_1, window_bounds = array<i64: 8, 8>}, {pipeline_mode = #tpu.pipeline_mode<synchronous>, transform_indices = @transform_2, window_bounds = array<i64: 1, 8>}, {transform_indices = @transform_3, window_bounds = array<i64: 64, 8>}]} {
    %c0 = arith.constant 0 : index
    %c0_0 = arith.constant 0 : index
    %0 = vector.load %arg1[%c0, %c0_0] : memref<64x8xbf16, #tpu.memory_space<vmem>>, vector<64x8xbf16>
    %c0_1 = arith.constant 0 : index
    %c0_2 = arith.constant 0 : index
    %1 = vector.load %arg2[%c0_1, %c0_2] : memref<8x8xbf16, #tpu.memory_space<vmem>>, vector<8x8xbf16>
    %cst = arith.constant dense<0.000000e+00> : vector<64x8xf32>
    %2 = tpu.matmul %0, %1, %cst {dimension_numbers = #tpu.dot_dimension_numbers<[1], [0], [0], [1], [0, 0, 1, 1], [], []>} : vector<64x8xbf16>, vector<8x8xbf16>, vector<64x8xf32> -> vector<64x8xf32>
    %c0_3 = arith.constant 0 : index
    %c0_4 = arith.constant 0 : index
    %3 = vector.load %arg3[%c0_3, %c0_4] : memref<1x8xf32, #tpu.memory_space<vmem>>, vector<1x8xf32>
    %4 = vector.broadcast %3 : vector<1x8xf32> to vector<64x8xf32>
    %5 = arith.addf %2, %4 : vector<64x8xf32>
    %cst_5 = arith.constant 0.000000e+00 : f32
    %6 = vector.broadcast %cst_5 : f32 to vector<64x8xf32>
    %7 = arith.maximumf %5, %6 : vector<64x8xf32>
    %c0_6 = arith.constant 0 : index
    %c0_7 = arith.constant 0 : index
    %8 = vector.load %arg4[%c0_6, %c0_7] : memref<64x8xf32, #tpu.memory_space<vmem>>, vector<64x8xf32>
    tpu.vector_store %arg4[%c0_6, %c0_7], %7 {strides = array<i32>} : memref<64x8xf32, #tpu.memory_space<vmem>>, vector<64x8xf32>,
    return
  }
  func.func @transform_0(%arg0: i32) -> (i32, i32) {
    %c0_i32 = arith.constant 0 : i32
    %c0_i32_0 = arith.constant 0 : i32
    return %arg0, %c0_i32 : i32, i32
  }
  func.func @transform_1(%arg0: i32) -> (i32, i32) {
    %c0_i32 = arith.constant 0 : i32
    %c0_i32_0 = arith.constant 0 : i32
    %c0_i32_1 = arith.constant 0 : i32
    return %c0_i32, %c0_i32_0 : i32, i32
  }
  func.func @transform_2(%arg0: i32) -> (i32, i32) {
    %c0_i32 = arith.constant 0 : i32
    %c0_i32_0 = arith.constant 0 : i32
    %c0_i32_1 = arith.constant 0 : i32
    return %c0_i32, %c0_i32_0 : i32, i32
  }
  func.func @transform_3(%arg0: i32) -> (i32, i32) {
    %c0_i32 = arith.constant 0 : i32
    %c0_i32_0 = arith.constant 0 : i32
    return %arg0, %c0_i32 : i32, i32
  }
}

module attributes {stable_mosaic.version = 11 : i64} {
  func.func @_mm_bias_act_kernel(%arg0: i32, %arg1: memref<64x8xbf16, #tpu.memory_space<vmem>>, %arg2: memref<8x16xbf16, #tpu.memory_space<vmem>>, %arg3: memref<1x16xf32, #tpu.memory_space<vmem>>, %arg4: memref<64x16xf32, #tpu.memory_space<vmem>>) attributes {dimension_semantics = [#tpu.dimension_semantics<parallel>], iteration_bounds = array<i64: 2>, scalar_prefetch = 0 : i64, scratch_operands = 0 : i64, tpu.core_type = #tpu.core_type<tc>, window_params = [{transform_indices = @transform_0, window_bounds = array<i64: 64, 8>}, {pipeline_mode = #tpu.pipeline_mode<synchronous>, transform_indices = @transform_1, window_bounds = array<i64: 8, 16>}, {pipeline_mode = #tpu.pipeline_mode<synchronous>, transform_indices = @transform_2, window_bounds = array<i64: 1, 16>}, {transform_indices = @transform_3, window_bounds = array<i64: 64, 16>}]} {
    %c0 = arith.constant 0 : index
    %c0_0 = arith.constant 0 : index
    %0 = vector.load %arg1[%c0, %c0_0] : memref<64x8xbf16, #tpu.memory_space<vmem>>, vector<64x8xbf16>
    %c0_1 = arith.constant 0 : index
    %c0_2 = arith.constant 0 : index
    %1 = vector.load %arg2[%c0_1, %c0_2] : memref<8x16xbf16, #tpu.memory_space<vmem>>, vector<8x16xbf16>
    %cst = arith.constant dense<0.000000e+00> : vector<64x16xf32>
    %2 = tpu.matmul %0, %1, %cst {dimension_numbers = #tpu.dot_dimension_numbers<[1], [0], [0], [1], [0, 0, 1, 1], [], []>} : vector<64x8xbf16>, vector<8x16xbf16>, vector<64x16xf32> -> vector<64x16xf32>
    %c0_3 = arith.constant 0 : index
    %c0_4 = arith.constant 0 : index
    %3 = vector.load %arg3[%c0_3, %c0_4] : memref<1x16xf32, #tpu.memory_space<vmem>>, vector<1x16xf32>
    %4 = vector.broadcast %3 : vector<1x16xf32> to vector<64x16xf32>
    %5 = arith.addf %2, %4 : vector<64x16xf32>
    %c0_5 = arith.constant 0 : index
    %c0_6 = arith.constant 0 : index
    %6 = vector.load %arg4[%c0_5, %c0_6] : memref<64x16xf32, #tpu.memory_space<vmem>>, vector<64x16xf32>
    tpu.vector_store %arg4[%c0_5, %c0_6], %5 {strides = array<i32>} : memref<64x16xf32, #tpu.memory_space<vmem>>, vector<64x16xf32>,
    return
  }
  func.func @transform_0(%arg0: i32) -> (i32, i32) {
    %c0_i32 = arith.constant 0 : i32
    %c0_i32_0 = arith.constant 0 : i32
    return %arg0, %c0_i32 : i32, i32
  }
  func.func @transform_1(%arg0: i32) -> (i32, i32) {
    %c0_i32 = arith.constant 0 : i32
    %c0_i32_0 = arith.constant 0 : i32
    %c0_i32_1 = arith.constant 0 : i32
    return %c0_i32, %c0_i32_0 : i32, i32
  }
  func.func @transform_2(%arg0: i32) -> (i32, i32) {
    %c0_i32 = arith.constant 0 : i32
    %c0_i32_0 = arith.constant 0 : i32
    %c0_i32_1 = arith.constant 0 : i32
    return %c0_i32, %c0_i32_0 : i32, i32
  }
  func.func @transform_3(%arg0: i32) -> (i32, i32) {
    %c0_i32 = arith.constant 0 : i32
    %c0_i32_0 = arith.constant 0 : i32
    return %arg0, %c0_i32 : i32, i32
  }
}

module attributes {stable_mosaic.version = 11 : i64} {
  func.func @_mm_bias_act_kernel(%arg0: i32, %arg1: memref<64x16xbf16, #tpu.memory_space<vmem>>, %arg2: memref<16x12xbf16, #tpu.memory_space<vmem>>, %arg3: memref<1x12xf32, #tpu.memory_space<vmem>>, %arg4: memref<64x12xf32, #tpu.memory_space<vmem>>) attributes {dimension_semantics = [#tpu.dimension_semantics<parallel>], iteration_bounds = array<i64: 2>, scalar_prefetch = 0 : i64, scratch_operands = 0 : i64, tpu.core_type = #tpu.core_type<tc>, window_params = [{transform_indices = @transform_0, window_bounds = array<i64: 64, 16>}, {pipeline_mode = #tpu.pipeline_mode<synchronous>, transform_indices = @transform_1, window_bounds = array<i64: 16, 12>}, {pipeline_mode = #tpu.pipeline_mode<synchronous>, transform_indices = @transform_2, window_bounds = array<i64: 1, 12>}, {transform_indices = @transform_3, window_bounds = array<i64: 64, 12>}]} {
    %c0 = arith.constant 0 : index
    %c0_0 = arith.constant 0 : index
    %0 = vector.load %arg1[%c0, %c0_0] : memref<64x16xbf16, #tpu.memory_space<vmem>>, vector<64x16xbf16>
    %c0_1 = arith.constant 0 : index
    %c0_2 = arith.constant 0 : index
    %1 = vector.load %arg2[%c0_1, %c0_2] : memref<16x12xbf16, #tpu.memory_space<vmem>>, vector<16x12xbf16>
    %cst = arith.constant dense<0.000000e+00> : vector<64x12xf32>
    %2 = tpu.matmul %0, %1, %cst {dimension_numbers = #tpu.dot_dimension_numbers<[1], [0], [0], [1], [0, 0, 1, 1], [], []>} : vector<64x16xbf16>, vector<16x12xbf16>, vector<64x12xf32> -> vector<64x12xf32>
    %c0_3 = arith.constant 0 : index
    %c0_4 = arith.constant 0 : index
    %3 = vector.load %arg3[%c0_3, %c0_4] : memref<1x12xf32, #tpu.memory_space<vmem>>, vector<1x12xf32>
    %4 = vector.broadcast %3 : vector<1x12xf32> to vector<64x12xf32>
    %5 = arith.addf %2, %4 : vector<64x12xf32>
    %c0_5 = arith.constant 0 : index
    %c0_6 = arith.constant 0 : index
    %6 = vector.load %arg4[%c0_5, %c0_6] : memref<64x12xf32, #tpu.memory_space<vmem>>, vector<64x12xf32>
    tpu.vector_store %arg4[%c0_5, %c0_6], %5 {strides = array<i32>} : memref<64x12xf32, #tpu.memory_space<vmem>>, vector<64x12xf32>,
    return
  }
  func.func @transform_0(%arg0: i32) -> (i32, i32) {
    %c0_i32 = arith.constant 0 : i32
    %c0_i32_0 = arith.constant 0 : i32
    return %arg0, %c0_i32 : i32, i32
  }
  func.func @transform_1(%arg0: i32) -> (i32, i32) {
    %c0_i32 = arith.constant 0 : i32
    %c0_i32_0 = arith.constant 0 : i32
    %c0_i32_1 = arith.constant 0 : i32
    return %c0_i32, %c0_i32_0 : i32, i32
  }
  func.func @transform_2(%arg0: i32) -> (i32, i32) {
    %c0_i32 = arith.constant 0 : i32
    %c0_i32_0 = arith.constant 0 : i32
    %c0_i32_1 = arith.constant 0 : i32
    return %c0_i32, %c0_i32_0 : i32, i32
  }
  func.func @transform_3(%arg0: i32) -> (i32, i32) {
    %c0_i32 = arith.constant 0 : i32
    %c0_i32_0 = arith.constant 0 : i32
    return %arg0, %c0_i32 : i32, i32
  }
}

module attributes {stable_mosaic.version = 11 : i64} {
  func.func @_mm_bias_act_kernel(%arg0: i32, %arg1: memref<16x16xbf16, #tpu.memory_space<vmem>>, %arg2: memref<16x4xbf16, #tpu.memory_space<vmem>>, %arg3: memref<1x4xf32, #tpu.memory_space<vmem>>, %arg4: memref<16x4xf32, #tpu.memory_space<vmem>>) attributes {dimension_semantics = [#tpu.dimension_semantics<parallel>], iteration_bounds = array<i64: 2>, scalar_prefetch = 0 : i64, scratch_operands = 0 : i64, tpu.core_type = #tpu.core_type<tc>, window_params = [{transform_indices = @transform_0, window_bounds = array<i64: 16, 16>}, {pipeline_mode = #tpu.pipeline_mode<synchronous>, transform_indices = @transform_1, window_bounds = array<i64: 16, 4>}, {pipeline_mode = #tpu.pipeline_mode<synchronous>, transform_indices = @transform_2, window_bounds = array<i64: 1, 4>}, {transform_indices = @transform_3, window_bounds = array<i64: 16, 4>}]} {
    %c0 = arith.constant 0 : index
    %c0_0 = arith.constant 0 : index
    %0 = vector.load %arg1[%c0, %c0_0] : memref<16x16xbf16, #tpu.memory_space<vmem>>, vector<16x16xbf16>
    %c0_1 = arith.constant 0 : index
    %c0_2 = arith.constant 0 : index
    %1 = vector.load %arg2[%c0_1, %c0_2] : memref<16x4xbf16, #tpu.memory_space<vmem>>, vector<16x4xbf16>
    %cst = arith.constant dense<0.000000e+00> : vector<16x4xf32>
    %2 = tpu.matmul %0, %1, %cst {dimension_numbers = #tpu.dot_dimension_numbers<[1], [0], [0], [1], [0, 0, 1, 1], [], []>} : vector<16x16xbf16>, vector<16x4xbf16>, vector<16x4xf32> -> vector<16x4xf32>
    %c0_3 = arith.constant 0 : index
    %c0_4 = arith.constant 0 : index
    %3 = vector.load %arg3[%c0_3, %c0_4] : memref<1x4xf32, #tpu.memory_space<vmem>>, vector<1x4xf32>
    %4 = vector.broadcast %3 : vector<1x4xf32> to vector<16x4xf32>
    %5 = arith.addf %2, %4 : vector<16x4xf32>
    %c0_5 = arith.constant 0 : index
    %c0_6 = arith.constant 0 : index
    %6 = vector.load %arg4[%c0_5, %c0_6] : memref<16x4xf32, #tpu.memory_space<vmem>>, vector<16x4xf32>
    tpu.vector_store %arg4[%c0_5, %c0_6], %5 {strides = array<i32>} : memref<16x4xf32, #tpu.memory_space<vmem>>, vector<16x4xf32>,
    return
  }
  func.func @transform_0(%arg0: i32) -> (i32, i32) {
    %c0_i32 = arith.constant 0 : i32
    %c0_i32_0 = arith.constant 0 : i32
    return %arg0, %c0_i32 : i32, i32
  }
  func.func @transform_1(%arg0: i32) -> (i32, i32) {
    %c0_i32 = arith.constant 0 : i32
    %c0_i32_0 = arith.constant 0 : i32
    %c0_i32_1 = arith.constant 0 : i32
    return %c0_i32, %c0_i32_0 : i32, i32
  }
  func.func @transform_2(%arg0: i32) -> (i32, i32) {
    %c0_i32 = arith.constant 0 : i32
    %c0_i32_0 = arith.constant 0 : i32
    %c0_i32_1 = arith.constant 0 : i32
    return %c0_i32, %c0_i32_0 : i32, i32
  }
  func.func @transform_3(%arg0: i32) -> (i32, i32) {
    %c0_i32 = arith.constant 0 : i32
    %c0_i32_0 = arith.constant 0 : i32
    return %arg0, %c0_i32 : i32, i32
  }
}

module attributes {stable_mosaic.version = 11 : i64} {
  func.func @_mm_bias_act_kernel(%arg0: i32, %arg1: memref<64x36xbf16, #tpu.memory_space<vmem>>, %arg2: memref<36x4xbf16, #tpu.memory_space<vmem>>, %arg3: memref<1x4xf32, #tpu.memory_space<vmem>>, %arg4: memref<64x4xf32, #tpu.memory_space<vmem>>) attributes {dimension_semantics = [#tpu.dimension_semantics<parallel>], iteration_bounds = array<i64: 2>, scalar_prefetch = 0 : i64, scratch_operands = 0 : i64, tpu.core_type = #tpu.core_type<tc>, window_params = [{transform_indices = @transform_0, window_bounds = array<i64: 64, 36>}, {pipeline_mode = #tpu.pipeline_mode<synchronous>, transform_indices = @transform_1, window_bounds = array<i64: 36, 4>}, {pipeline_mode = #tpu.pipeline_mode<synchronous>, transform_indices = @transform_2, window_bounds = array<i64: 1, 4>}, {transform_indices = @transform_3, window_bounds = array<i64: 64, 4>}]} {
    %c0 = arith.constant 0 : index
    %c0_0 = arith.constant 0 : index
    %0 = vector.load %arg1[%c0, %c0_0] : memref<64x36xbf16, #tpu.memory_space<vmem>>, vector<64x36xbf16>
    %c0_1 = arith.constant 0 : index
    %c0_2 = arith.constant 0 : index
    %1 = vector.load %arg2[%c0_1, %c0_2] : memref<36x4xbf16, #tpu.memory_space<vmem>>, vector<36x4xbf16>
    %cst = arith.constant dense<0.000000e+00> : vector<64x4xf32>
    %2 = tpu.matmul %0, %1, %cst {dimension_numbers = #tpu.dot_dimension_numbers<[1], [0], [0], [1], [0, 0, 1, 1], [], []>} : vector<64x36xbf16>, vector<36x4xbf16>, vector<64x4xf32> -> vector<64x4xf32>
    %c0_3 = arith.constant 0 : index
    %c0_4 = arith.constant 0 : index
    %3 = vector.load %arg3[%c0_3, %c0_4] : memref<1x4xf32, #tpu.memory_space<vmem>>, vector<1x4xf32>
    %4 = vector.broadcast %3 : vector<1x4xf32> to vector<64x4xf32>
    %5 = arith.addf %2, %4 : vector<64x4xf32>
    %c0_5 = arith.constant 0 : index
    %c0_6 = arith.constant 0 : index
    %6 = vector.load %arg4[%c0_5, %c0_6] : memref<64x4xf32, #tpu.memory_space<vmem>>, vector<64x4xf32>
    tpu.vector_store %arg4[%c0_5, %c0_6], %5 {strides = array<i32>} : memref<64x4xf32, #tpu.memory_space<vmem>>, vector<64x4xf32>,
    return
  }
  func.func @transform_0(%arg0: i32) -> (i32, i32) {
    %c0_i32 = arith.constant 0 : i32
    %c0_i32_0 = arith.constant 0 : i32
    return %arg0, %c0_i32 : i32, i32
  }
  func.func @transform_1(%arg0: i32) -> (i32, i32) {
    %c0_i32 = arith.constant 0 : i32
    %c0_i32_0 = arith.constant 0 : i32
    %c0_i32_1 = arith.constant 0 : i32
    return %c0_i32, %c0_i32_0 : i32, i32
  }
  func.func @transform_2(%arg0: i32) -> (i32, i32) {
    %c0_i32 = arith.constant 0 : i32
    %c0_i32_0 = arith.constant 0 : i32
    %c0_i32_1 = arith.constant 0 : i32
    return %c0_i32, %c0_i32_0 : i32, i32
  }
  func.func @transform_3(%arg0: i32) -> (i32, i32) {
    %c0_i32 = arith.constant 0 : i32
    %c0_i32_0 = arith.constant 0 : i32
    return %arg0, %c0_i32 : i32, i32
  }
}

module attributes {stable_mosaic.version = 11 : i64} {
  func.func @_mm_bias_act_kernel(%arg0: i32, %arg1: memref<8x16xbf16, #tpu.memory_space<vmem>>, %arg2: memref<16x4xbf16, #tpu.memory_space<vmem>>, %arg3: memref<1x4xf32, #tpu.memory_space<vmem>>, %arg4: memref<8x4xf32, #tpu.memory_space<vmem>>) attributes {dimension_semantics = [#tpu.dimension_semantics<parallel>], iteration_bounds = array<i64: 1>, scalar_prefetch = 0 : i64, scratch_operands = 0 : i64, tpu.core_type = #tpu.core_type<tc>, window_params = [{transform_indices = @transform_0, window_bounds = array<i64: 8, 16>}, {pipeline_mode = #tpu.pipeline_mode<synchronous>, transform_indices = @transform_1, window_bounds = array<i64: 16, 4>}, {pipeline_mode = #tpu.pipeline_mode<synchronous>, transform_indices = @transform_2, window_bounds = array<i64: 1, 4>}, {transform_indices = @transform_3, window_bounds = array<i64: 8, 4>}]} {
    %c0 = arith.constant 0 : index
    %c0_0 = arith.constant 0 : index
    %0 = vector.load %arg1[%c0, %c0_0] : memref<8x16xbf16, #tpu.memory_space<vmem>>, vector<8x16xbf16>
    %c0_1 = arith.constant 0 : index
    %c0_2 = arith.constant 0 : index
    %1 = vector.load %arg2[%c0_1, %c0_2] : memref<16x4xbf16, #tpu.memory_space<vmem>>, vector<16x4xbf16>
    %cst = arith.constant dense<0.000000e+00> : vector<8x4xf32>
    %2 = tpu.matmul %0, %1, %cst {dimension_numbers = #tpu.dot_dimension_numbers<[1], [0], [0], [1], [0, 0, 1, 1], [], []>} : vector<8x16xbf16>, vector<16x4xbf16>, vector<8x4xf32> -> vector<8x4xf32>
    %c0_3 = arith.constant 0 : index
    %c0_4 = arith.constant 0 : index
    %3 = vector.load %arg3[%c0_3, %c0_4] : memref<1x4xf32, #tpu.memory_space<vmem>>, vector<1x4xf32>
    %4 = vector.broadcast %3 : vector<1x4xf32> to vector<8x4xf32>
    %5 = arith.addf %2, %4 : vector<8x4xf32>
    %c0_5 = arith.constant 0 : index
    %c0_6 = arith.constant 0 : index
    %6 = vector.load %arg4[%c0_5, %c0_6] : memref<8x4xf32, #tpu.memory_space<vmem>>, vector<8x4xf32>
    tpu.vector_store %arg4[%c0_5, %c0_6], %5 {strides = array<i32>} : memref<8x4xf32, #tpu.memory_space<vmem>>, vector<8x4xf32>,
    return
  }
  func.func @transform_0(%arg0: i32) -> (i32, i32) {
    %c0_i32 = arith.constant 0 : i32
    %c0_i32_0 = arith.constant 0 : i32
    return %arg0, %c0_i32 : i32, i32
  }
  func.func @transform_1(%arg0: i32) -> (i32, i32) {
    %c0_i32 = arith.constant 0 : i32
    %c0_i32_0 = arith.constant 0 : i32
    %c0_i32_1 = arith.constant 0 : i32
    return %c0_i32, %c0_i32_0 : i32, i32
  }
  func.func @transform_2(%arg0: i32) -> (i32, i32) {
    %c0_i32 = arith.constant 0 : i32
    %c0_i32_0 = arith.constant 0 : i32
    %c0_i32_1 = arith.constant 0 : i32
    return %c0_i32, %c0_i32_0 : i32, i32
  }
  func.func @transform_3(%arg0: i32) -> (i32, i32) {
    %c0_i32 = arith.constant 0 : i32
    %c0_i32_0 = arith.constant 0 : i32
    return %arg0, %c0_i32 : i32, i32
  }
}

module attributes {stable_mosaic.version = 11 : i64} {
  func.func @_mm_bias_act_kernel(%arg0: i32, %arg1: memref<64x20xbf16, #tpu.memory_space<vmem>>, %arg2: memref<20x8xbf16, #tpu.memory_space<vmem>>, %arg3: memref<1x8xf32, #tpu.memory_space<vmem>>, %arg4: memref<64x8xf32, #tpu.memory_space<vmem>>) attributes {dimension_semantics = [#tpu.dimension_semantics<parallel>], iteration_bounds = array<i64: 2>, scalar_prefetch = 0 : i64, scratch_operands = 0 : i64, tpu.core_type = #tpu.core_type<tc>, window_params = [{transform_indices = @transform_0, window_bounds = array<i64: 64, 20>}, {pipeline_mode = #tpu.pipeline_mode<synchronous>, transform_indices = @transform_1, window_bounds = array<i64: 20, 8>}, {pipeline_mode = #tpu.pipeline_mode<synchronous>, transform_indices = @transform_2, window_bounds = array<i64: 1, 8>}, {transform_indices = @transform_3, window_bounds = array<i64: 64, 8>}]} {
    %c0 = arith.constant 0 : index
    %c0_0 = arith.constant 0 : index
    %0 = vector.load %arg1[%c0, %c0_0] : memref<64x20xbf16, #tpu.memory_space<vmem>>, vector<64x20xbf16>
    %c0_1 = arith.constant 0 : index
    %c0_2 = arith.constant 0 : index
    %1 = vector.load %arg2[%c0_1, %c0_2] : memref<20x8xbf16, #tpu.memory_space<vmem>>, vector<20x8xbf16>
    %cst = arith.constant dense<0.000000e+00> : vector<64x8xf32>
    %2 = tpu.matmul %0, %1, %cst {dimension_numbers = #tpu.dot_dimension_numbers<[1], [0], [0], [1], [0, 0, 1, 1], [], []>} : vector<64x20xbf16>, vector<20x8xbf16>, vector<64x8xf32> -> vector<64x8xf32>
    %c0_3 = arith.constant 0 : index
    %c0_4 = arith.constant 0 : index
    %3 = vector.load %arg3[%c0_3, %c0_4] : memref<1x8xf32, #tpu.memory_space<vmem>>, vector<1x8xf32>
    %4 = vector.broadcast %3 : vector<1x8xf32> to vector<64x8xf32>
    %5 = arith.addf %2, %4 : vector<64x8xf32>
    %c0_5 = arith.constant 0 : index
    %c0_6 = arith.constant 0 : index
    %6 = vector.load %arg4[%c0_5, %c0_6] : memref<64x8xf32, #tpu.memory_space<vmem>>, vector<64x8xf32>
    tpu.vector_store %arg4[%c0_5, %c0_6], %5 {strides = array<i32>} : memref<64x8xf32, #tpu.memory_space<vmem>>, vector<64x8xf32>,
    return
  }
  func.func @transform_0(%arg0: i32) -> (i32, i32) {
    %c0_i32 = arith.constant 0 : i32
    %c0_i32_0 = arith.constant 0 : i32
    return %arg0, %c0_i32 : i32, i32
  }
  func.func @transform_1(%arg0: i32) -> (i32, i32) {
    %c0_i32 = arith.constant 0 : i32
    %c0_i32_0 = arith.constant 0 : i32
    %c0_i32_1 = arith.constant 0 : i32
    return %c0_i32, %c0_i32_0 : i32, i32
  }
  func.func @transform_2(%arg0: i32) -> (i32, i32) {
    %c0_i32 = arith.constant 0 : i32
    %c0_i32_0 = arith.constant 0 : i32
    %c0_i32_1 = arith.constant 0 : i32
    return %c0_i32, %c0_i32_0 : i32, i32
  }
  func.func @transform_3(%arg0: i32) -> (i32, i32) {
    %c0_i32 = arith.constant 0 : i32
    %c0_i32_0 = arith.constant 0 : i32
    return %arg0, %c0_i32 : i32, i32
  }
}

module attributes {stable_mosaic.version = 11 : i64} {
  func.func @_mm_bias_act_kernel(%arg0: i32, %arg1: memref<8x16xbf16, #tpu.memory_space<vmem>>, %arg2: memref<16x4xbf16, #tpu.memory_space<vmem>>, %arg3: memref<1x4xf32, #tpu.memory_space<vmem>>, %arg4: memref<8x4xf32, #tpu.memory_space<vmem>>) attributes {dimension_semantics = [#tpu.dimension_semantics<parallel>], iteration_bounds = array<i64: 1>, scalar_prefetch = 0 : i64, scratch_operands = 0 : i64, tpu.core_type = #tpu.core_type<tc>, window_params = [{transform_indices = @transform_0, window_bounds = array<i64: 8, 16>}, {pipeline_mode = #tpu.pipeline_mode<synchronous>, transform_indices = @transform_1, window_bounds = array<i64: 16, 4>}, {pipeline_mode = #tpu.pipeline_mode<synchronous>, transform_indices = @transform_2, window_bounds = array<i64: 1, 4>}, {transform_indices = @transform_3, window_bounds = array<i64: 8, 4>}]} {
    %c0 = arith.constant 0 : index
    %c0_0 = arith.constant 0 : index
    %0 = vector.load %arg1[%c0, %c0_0] : memref<8x16xbf16, #tpu.memory_space<vmem>>, vector<8x16xbf16>
    %c0_1 = arith.constant 0 : index
    %c0_2 = arith.constant 0 : index
    %1 = vector.load %arg2[%c0_1, %c0_2] : memref<16x4xbf16, #tpu.memory_space<vmem>>, vector<16x4xbf16>
    %cst = arith.constant dense<0.000000e+00> : vector<8x4xf32>
    %2 = tpu.matmul %0, %1, %cst {dimension_numbers = #tpu.dot_dimension_numbers<[1], [0], [0], [1], [0, 0, 1, 1], [], []>} : vector<8x16xbf16>, vector<16x4xbf16>, vector<8x4xf32> -> vector<8x4xf32>
    %c0_3 = arith.constant 0 : index
    %c0_4 = arith.constant 0 : index
    %3 = vector.load %arg3[%c0_3, %c0_4] : memref<1x4xf32, #tpu.memory_space<vmem>>, vector<1x4xf32>
    %4 = vector.broadcast %3 : vector<1x4xf32> to vector<8x4xf32>
    %5 = arith.addf %2, %4 : vector<8x4xf32>
    %c0_5 = arith.constant 0 : index
    %c0_6 = arith.constant 0 : index
    %6 = vector.load %arg4[%c0_5, %c0_6] : memref<8x4xf32, #tpu.memory_space<vmem>>, vector<8x4xf32>
    tpu.vector_store %arg4[%c0_5, %c0_6], %5 {strides = array<i32>} : memref<8x4xf32, #tpu.memory_space<vmem>>, vector<8x4xf32>,
    return
  }
  func.func @transform_0(%arg0: i32) -> (i32, i32) {
    %c0_i32 = arith.constant 0 : i32
    %c0_i32_0 = arith.constant 0 : i32
    return %arg0, %c0_i32 : i32, i32
  }
  func.func @transform_1(%arg0: i32) -> (i32, i32) {
    %c0_i32 = arith.constant 0 : i32
    %c0_i32_0 = arith.constant 0 : i32
    %c0_i32_1 = arith.constant 0 : i32
    return %c0_i32, %c0_i32_0 : i32, i32
  }
  func.func @transform_2(%arg0: i32) -> (i32, i32) {
    %c0_i32 = arith.constant 0 : i32
    %c0_i32_0 = arith.constant 0 : i32
    %c0_i32_1 = arith.constant 0 : i32
    return %c0_i32, %c0_i32_0 : i32, i32
  }
  func.func @transform_3(%arg0: i32) -> (i32, i32) {
    %c0_i32 = arith.constant 0 : i32
    %c0_i32_0 = arith.constant 0 : i32
    return %arg0, %c0_i32 : i32, i32
  }
}

module attributes {stable_mosaic.version = 11 : i64} {
  func.func @_mm_bias_act_kernel(%arg0: i32, %arg1: memref<256x4xbf16, #tpu.memory_space<vmem>>, %arg2: memref<4x4xbf16, #tpu.memory_space<vmem>>, %arg3: memref<1x4xf32, #tpu.memory_space<vmem>>, %arg4: memref<256x4xf32, #tpu.memory_space<vmem>>) attributes {dimension_semantics = [#tpu.dimension_semantics<parallel>], iteration_bounds = array<i64: 2>, scalar_prefetch = 0 : i64, scratch_operands = 0 : i64, tpu.core_type = #tpu.core_type<tc>, window_params = [{transform_indices = @transform_0, window_bounds = array<i64: 256, 4>}, {pipeline_mode = #tpu.pipeline_mode<synchronous>, transform_indices = @transform_1, window_bounds = array<i64: 4, 4>}, {pipeline_mode = #tpu.pipeline_mode<synchronous>, transform_indices = @transform_2, window_bounds = array<i64: 1, 4>}, {transform_indices = @transform_3, window_bounds = array<i64: 256, 4>}]} {
    %c0 = arith.constant 0 : index
    %c0_0 = arith.constant 0 : index
    %0 = vector.load %arg1[%c0, %c0_0] : memref<256x4xbf16, #tpu.memory_space<vmem>>, vector<256x4xbf16>
    %c0_1 = arith.constant 0 : index
    %c0_2 = arith.constant 0 : index
    %1 = vector.load %arg2[%c0_1, %c0_2] : memref<4x4xbf16, #tpu.memory_space<vmem>>, vector<4x4xbf16>
    %cst = arith.constant dense<0.000000e+00> : vector<256x4xf32>
    %2 = tpu.matmul %0, %1, %cst {dimension_numbers = #tpu.dot_dimension_numbers<[1], [0], [0], [1], [0, 0, 1, 1], [], []>} : vector<256x4xbf16>, vector<4x4xbf16>, vector<256x4xf32> -> vector<256x4xf32>
    %c0_3 = arith.constant 0 : index
    %c0_4 = arith.constant 0 : index
    %3 = vector.load %arg3[%c0_3, %c0_4] : memref<1x4xf32, #tpu.memory_space<vmem>>, vector<1x4xf32>
    %4 = vector.broadcast %3 : vector<1x4xf32> to vector<256x4xf32>
    %5 = arith.addf %2, %4 : vector<256x4xf32>
    %cst_5 = arith.constant 0.000000e+00 : f32
    %6 = vector.broadcast %cst_5 : f32 to vector<256x4xf32>
    %7 = arith.maximumf %5, %6 : vector<256x4xf32>
    %c0_6 = arith.constant 0 : index
    %c0_7 = arith.constant 0 : index
    %8 = vector.load %arg4[%c0_6, %c0_7] : memref<256x4xf32, #tpu.memory_space<vmem>>, vector<256x4xf32>
    tpu.vector_store %arg4[%c0_6, %c0_7], %7 {strides = array<i32>} : memref<256x4xf32, #tpu.memory_space<vmem>>, vector<256x4xf32>,
    return
  }
  func.func @transform_0(%arg0: i32) -> (i32, i32) {
    %c0_i32 = arith.constant 0 : i32
    %c0_i32_0 = arith.constant 0 : i32
    return %arg0, %c0_i32 : i32, i32
  }
  func.func @transform_1(%arg0: i32) -> (i32, i32) {
    %c0_i32 = arith.constant 0 : i32
    %c0_i32_0 = arith.constant 0 : i32
    %c0_i32_1 = arith.constant 0 : i32
    return %c0_i32, %c0_i32_0 : i32, i32
  }
  func.func @transform_2(%arg0: i32) -> (i32, i32) {
    %c0_i32 = arith.constant 0 : i32
    %c0_i32_0 = arith.constant 0 : i32
    %c0_i32_1 = arith.constant 0 : i32
    return %c0_i32, %c0_i32_0 : i32, i32
  }
  func.func @transform_3(%arg0: i32) -> (i32, i32) {
    %c0_i32 = arith.constant 0 : i32
    %c0_i32_0 = arith.constant 0 : i32
    return %arg0, %c0_i32 : i32, i32
  }
}

module attributes {stable_mosaic.version = 11 : i64} {
  func.func @_mm_bias_act_kernel(%arg0: i32, %arg1: memref<256x4xbf16, #tpu.memory_space<vmem>>, %arg2: memref<4x8xbf16, #tpu.memory_space<vmem>>, %arg3: memref<1x8xf32, #tpu.memory_space<vmem>>, %arg4: memref<256x8xf32, #tpu.memory_space<vmem>>) attributes {dimension_semantics = [#tpu.dimension_semantics<parallel>], iteration_bounds = array<i64: 2>, scalar_prefetch = 0 : i64, scratch_operands = 0 : i64, tpu.core_type = #tpu.core_type<tc>, window_params = [{transform_indices = @transform_0, window_bounds = array<i64: 256, 4>}, {pipeline_mode = #tpu.pipeline_mode<synchronous>, transform_indices = @transform_1, window_bounds = array<i64: 4, 8>}, {pipeline_mode = #tpu.pipeline_mode<synchronous>, transform_indices = @transform_2, window_bounds = array<i64: 1, 8>}, {transform_indices = @transform_3, window_bounds = array<i64: 256, 8>}]} {
    %c0 = arith.constant 0 : index
    %c0_0 = arith.constant 0 : index
    %0 = vector.load %arg1[%c0, %c0_0] : memref<256x4xbf16, #tpu.memory_space<vmem>>, vector<256x4xbf16>
    %c0_1 = arith.constant 0 : index
    %c0_2 = arith.constant 0 : index
    %1 = vector.load %arg2[%c0_1, %c0_2] : memref<4x8xbf16, #tpu.memory_space<vmem>>, vector<4x8xbf16>
    %cst = arith.constant dense<0.000000e+00> : vector<256x8xf32>
    %2 = tpu.matmul %0, %1, %cst {dimension_numbers = #tpu.dot_dimension_numbers<[1], [0], [0], [1], [0, 0, 1, 1], [], []>} : vector<256x4xbf16>, vector<4x8xbf16>, vector<256x8xf32> -> vector<256x8xf32>
    %c0_3 = arith.constant 0 : index
    %c0_4 = arith.constant 0 : index
    %3 = vector.load %arg3[%c0_3, %c0_4] : memref<1x8xf32, #tpu.memory_space<vmem>>, vector<1x8xf32>
    %4 = vector.broadcast %3 : vector<1x8xf32> to vector<256x8xf32>
    %5 = arith.addf %2, %4 : vector<256x8xf32>
    %c0_5 = arith.constant 0 : index
    %c0_6 = arith.constant 0 : index
    %6 = vector.load %arg4[%c0_5, %c0_6] : memref<256x8xf32, #tpu.memory_space<vmem>>, vector<256x8xf32>
    tpu.vector_store %arg4[%c0_5, %c0_6], %5 {strides = array<i32>} : memref<256x8xf32, #tpu.memory_space<vmem>>, vector<256x8xf32>,
    return
  }
  func.func @transform_0(%arg0: i32) -> (i32, i32) {
    %c0_i32 = arith.constant 0 : i32
    %c0_i32_0 = arith.constant 0 : i32
    return %arg0, %c0_i32 : i32, i32
  }
  func.func @transform_1(%arg0: i32) -> (i32, i32) {
    %c0_i32 = arith.constant 0 : i32
    %c0_i32_0 = arith.constant 0 : i32
    %c0_i32_1 = arith.constant 0 : i32
    return %c0_i32, %c0_i32_0 : i32, i32
  }
  func.func @transform_2(%arg0: i32) -> (i32, i32) {
    %c0_i32 = arith.constant 0 : i32
    %c0_i32_0 = arith.constant 0 : i32
    %c0_i32_1 = arith.constant 0 : i32
    return %c0_i32, %c0_i32_0 : i32, i32
  }
  func.func @transform_3(%arg0: i32) -> (i32, i32) {
    %c0_i32 = arith.constant 0 : i32
    %c0_i32_0 = arith.constant 0 : i32
    return %arg0, %c0_i32 : i32, i32
  }
}

module attributes {stable_mosaic.version = 11 : i64} {
  func.func @_mm_bias_res_act_kernel(%arg0: i32, %arg1: memref<256x4xbf16, #tpu.memory_space<vmem>>, %arg2: memref<4x8xbf16, #tpu.memory_space<vmem>>, %arg3: memref<1x8xf32, #tpu.memory_space<vmem>>, %arg4: memref<256x8xf32, #tpu.memory_space<vmem>>, %arg5: memref<256x8xf32, #tpu.memory_space<vmem>>) attributes {dimension_semantics = [#tpu.dimension_semantics<parallel>], iteration_bounds = array<i64: 2>, scalar_prefetch = 0 : i64, scratch_operands = 0 : i64, tpu.core_type = #tpu.core_type<tc>, window_params = [{transform_indices = @transform_0, window_bounds = array<i64: 256, 4>}, {pipeline_mode = #tpu.pipeline_mode<synchronous>, transform_indices = @transform_1, window_bounds = array<i64: 4, 8>}, {pipeline_mode = #tpu.pipeline_mode<synchronous>, transform_indices = @transform_2, window_bounds = array<i64: 1, 8>}, {transform_indices = @transform_3, window_bounds = array<i64: 256, 8>}, {transform_indices = @transform_4, window_bounds = array<i64: 256, 8>}]} {
    %c0 = arith.constant 0 : index
    %c0_0 = arith.constant 0 : index
    %0 = vector.load %arg1[%c0, %c0_0] : memref<256x4xbf16, #tpu.memory_space<vmem>>, vector<256x4xbf16>
    %c0_1 = arith.constant 0 : index
    %c0_2 = arith.constant 0 : index
    %1 = vector.load %arg2[%c0_1, %c0_2] : memref<4x8xbf16, #tpu.memory_space<vmem>>, vector<4x8xbf16>
    %cst = arith.constant dense<0.000000e+00> : vector<256x8xf32>
    %2 = tpu.matmul %0, %1, %cst {dimension_numbers = #tpu.dot_dimension_numbers<[1], [0], [0], [1], [0, 0, 1, 1], [], []>} : vector<256x4xbf16>, vector<4x8xbf16>, vector<256x8xf32> -> vector<256x8xf32>
    %c0_3 = arith.constant 0 : index
    %c0_4 = arith.constant 0 : index
    %3 = vector.load %arg3[%c0_3, %c0_4] : memref<1x8xf32, #tpu.memory_space<vmem>>, vector<1x8xf32>
    %4 = vector.broadcast %3 : vector<1x8xf32> to vector<256x8xf32>
    %5 = arith.addf %2, %4 : vector<256x8xf32>
    %c0_5 = arith.constant 0 : index
    %c0_6 = arith.constant 0 : index
    %6 = vector.load %arg4[%c0_5, %c0_6] : memref<256x8xf32, #tpu.memory_space<vmem>>, vector<256x8xf32>
    %7 = arith.addf %5, %6 : vector<256x8xf32>
    %cst_7 = arith.constant 0.000000e+00 : f32
    %8 = vector.broadcast %cst_7 : f32 to vector<256x8xf32>
    %9 = arith.maximumf %7, %8 : vector<256x8xf32>
    %c0_8 = arith.constant 0 : index
    %c0_9 = arith.constant 0 : index
    %10 = vector.load %arg5[%c0_8, %c0_9] : memref<256x8xf32, #tpu.memory_space<vmem>>, vector<256x8xf32>
    tpu.vector_store %arg5[%c0_8, %c0_9], %9 {strides = array<i32>} : memref<256x8xf32, #tpu.memory_space<vmem>>, vector<256x8xf32>,
    return
  }
  func.func @transform_0(%arg0: i32) -> (i32, i32) {
    %c0_i32 = arith.constant 0 : i32
    %c0_i32_0 = arith.constant 0 : i32
    return %arg0, %c0_i32 : i32, i32
  }
  func.func @transform_1(%arg0: i32) -> (i32, i32) {
    %c0_i32 = arith.constant 0 : i32
    %c0_i32_0 = arith.constant 0 : i32
    %c0_i32_1 = arith.constant 0 : i32
    return %c0_i32, %c0_i32_0 : i32, i32
  }
  func.func @transform_2(%arg0: i32) -> (i32, i32) {
    %c0_i32 = arith.constant 0 : i32
    %c0_i32_0 = arith.constant 0 : i32
    %c0_i32_1 = arith.constant 0 : i32
    return %c0_i32, %c0_i32_0 : i32, i32
  }
  func.func @transform_3(%arg0: i32) -> (i32, i32) {
    %c0_i32 = arith.constant 0 : i32
    %c0_i32_0 = arith.constant 0 : i32
    return %arg0, %c0_i32 : i32, i32
  }
  func.func @transform_4(%arg0: i32) -> (i32, i32) {
    %c0_i32 = arith.constant 0 : i32
    %c0_i32_0 = arith.constant 0 : i32
    return %arg0, %c0_i32 : i32, i32
  }
}

module attributes {stable_mosaic.version = 11 : i64} {
  func.func @_mm_bias_act_kernel(%arg0: i32, %arg1: memref<256x72xbf16, #tpu.memory_space<vmem>>, %arg2: memref<72x256xbf16, #tpu.memory_space<vmem>>, %arg3: memref<1x256xf32, #tpu.memory_space<vmem>>, %arg4: memref<256x256xf32, #tpu.memory_space<vmem>>) attributes {dimension_semantics = [#tpu.dimension_semantics<parallel>], iteration_bounds = array<i64: 2>, scalar_prefetch = 0 : i64, scratch_operands = 0 : i64, tpu.core_type = #tpu.core_type<tc>, window_params = [{transform_indices = @transform_0, window_bounds = array<i64: 256, 72>}, {pipeline_mode = #tpu.pipeline_mode<synchronous>, transform_indices = @transform_1, window_bounds = array<i64: 72, 256>}, {pipeline_mode = #tpu.pipeline_mode<synchronous>, transform_indices = @transform_2, window_bounds = array<i64: 1, 256>}, {transform_indices = @transform_3, window_bounds = array<i64: 256, 256>}]} {
    %c0 = arith.constant 0 : index
    %c0_0 = arith.constant 0 : index
    %0 = vector.load %arg1[%c0, %c0_0] : memref<256x72xbf16, #tpu.memory_space<vmem>>, vector<256x72xbf16>
    %c0_1 = arith.constant 0 : index
    %c0_2 = arith.constant 0 : index
    %1 = vector.load %arg2[%c0_1, %c0_2] : memref<72x256xbf16, #tpu.memory_space<vmem>>, vector<72x256xbf16>
    %cst = arith.constant dense<0.000000e+00> : vector<256x256xf32>
    %2 = tpu.matmul %0, %1, %cst {dimension_numbers = #tpu.dot_dimension_numbers<[1], [0], [0], [1], [0, 0, 1, 1], [], []>} : vector<256x72xbf16>, vector<72x256xbf16>, vector<256x256xf32> -> vector<256x256xf32>
    %c0_3 = arith.constant 0 : index
    %c0_4 = arith.constant 0 : index
    %3 = vector.load %arg3[%c0_3, %c0_4] : memref<1x256xf32, #tpu.memory_space<vmem>>, vector<1x256xf32>
    %4 = vector.broadcast %3 : vector<1x256xf32> to vector<256x256xf32>
    %5 = arith.addf %2, %4 : vector<256x256xf32>
    %cst_5 = arith.constant 0.000000e+00 : f32
    %6 = vector.broadcast %cst_5 : f32 to vector<256x256xf32>
    %7 = arith.cmpf oge, %5, %6 : vector<256x256xf32>
    %cst_6 = arith.constant 2.500000e-01 : f32
    %8 = vector.broadcast %cst_6 : f32 to vector<256x256xf32>
    %9 = arith.mulf %8, %5 : vector<256x256xf32>
    %10 = arith.select %7, %5, %9 : vector<256x256xi1>, vector<256x256xf32>
    %c0_7 = arith.constant 0 : index
    %c0_8 = arith.constant 0 : index
    %11 = vector.load %arg4[%c0_7, %c0_8] : memref<256x256xf32, #tpu.memory_space<vmem>>, vector<256x256xf32>
    tpu.vector_store %arg4[%c0_7, %c0_8], %10 {strides = array<i32>} : memref<256x256xf32, #tpu.memory_space<vmem>>, vector<256x256xf32>,
    return
  }
  func.func @transform_0(%arg0: i32) -> (i32, i32) {
    %c0_i32 = arith.constant 0 : i32
    %c0_i32_0 = arith.constant 0 : i32
    return %arg0, %c0_i32 : i32, i32
  }
  func.func @transform_1(%arg0: i32) -> (i32, i32) {
    %c0_i32 = arith.constant 0 : i32
    %c0_i32_0 = arith.constant 0 : i32
    %c0_i32_1 = arith.constant 0 : i32
    return %c0_i32, %c0_i32_0 : i32, i32
  }
  func.func @transform_2(%arg0: i32) -> (i32, i32) {
    %c0_i32 = arith.constant 0 : i32
    %c0_i32_0 = arith.constant 0 : i32
    %c0_i32_1 = arith.constant 0 : i32
    return %c0_i32, %c0_i32_0 : i32, i32
  }
  func.func @transform_3(%arg0: i32) -> (i32, i32) {
    %c0_i32 = arith.constant 0 : i32
    %c0_i32_0 = arith.constant 0 : i32
    return %arg0, %c0_i32 : i32, i32
  }
}

</mosaic_0001>

<llo_original>
// kernel: _lambda_.63
$region0: #{_lambda_.63}
  #allocation0 [shape = 'u32[]', space=smem, size = 0x4, offset = 0x4, fixed_abs, tag = 'smem constant byte address 0x4 - core index']
  #allocation1 [shape = 'u32[144,128]{1,0:T(1,128)}', space=vmem, size = 0x12000, scoped, tag = 'internal scratch']
  %s0 = inlined_call_operand.vmem [shape: bf16[512,36], index: 0, kind: input, shape index: {}]
  %s1 = inlined_call_operand.vmem [shape: bf16[36,4], index: 1, kind: input, shape index: {}]
  %s2 = inlined_call_operand.vmem [shape: f32[1,4], index: 2, kind: input, shape index: {}]
  %s3 = inlined_call_operand.vmem [shape: f32[512,4], index: 3, kind: output, shape index: {}]
  %s4 = sld [smem:[#allocation0]]
  $region45: #{_lambda_.63} parent=0
    _
  %s6 = ssub.s32 1, %s4
  %s7 = scalar_select 0, %s6, %s4
  loop: start=0, step=1, limit=4
  $region2: #{_lambda_.63} parent=0 // loop_pre_header
    _
  $region3: #{_lambda_.63} parent=0 // loop_header
    %s9 = sphi 0, %s13
    %p10 = scmp.ge.s32.totalorder %s9, 4
    %s19 = sphi 0, %s21
    %s22 = sphi 0, %s19
    %s23 = sphi 0, %s22
    %s39 = sphi 0, %s23
    %s43 = sphi 0, %s43
    %s45 = sphi 0, %s43
    %s46 = sphi 0, %s45
    %s60 = sphi 0, %s46
    %s64 = sphi 0, %s64
    %s66 = sphi 0, %s64
    %s67 = sphi 0, %s66
    %s81 = sphi 0, %s67
    %s87 = sphi 0, %s89
    %s90 = sphi 0, %s87
    %s91 = sphi 0, %s90
    %s107 = sphi 0, %s91
  $region4: #{_lambda_.63} parent=0 // loop_header_branch
    %12 = sbr.rel (%p10) target = $region8
  $region5: #{_lambda_.63} parent=0 // loop_body
    %s14 = ssub.s32 %s9, 1
    %s15 = ssub.s32 %s9, 2
    %s16 = sadd.s32 %s9, 1
    %s17 = ssub.s32 %s9, %s16
    %p18 = scmp.eq.s32.totalorder %s17, 0
    %s20 = sadd.s32 %s19, 1
    %s21 = scalar_select %p18, %s19, %s20
    %p24 = pneg %p18
    %p25 = scmp.eq.s32.totalorder %s9, 1
    %p26 = por %p24, %p25
    %p27 = scmp.ne.s32.totalorder %s19, %s22
    %p28 = scmp.eq.s32.totalorder %s9, 0
    %p29 = por %p27, %p28
    %p30 = scmp.ne.s32.totalorder %s19, %s22
    %p31 = scmp.eq.s32.totalorder %s14, 1
    %p32 = por %p30, %p31
    %p33 = scmp.ne.s32.totalorder %s22, %s23
    %p34 = scmp.eq.s32.totalorder %s14, 0
    %p35 = por %p33, %p34
    %p36 = scmp.ne.s32.totalorder %s22, %s23
    %p37 = scmp.eq.s32.totalorder %s15, 1
    %p38 = por %p36, %p37
    %p40 = scmp.ne.s32.totalorder %s23, %s39
    %p41 = scmp.eq.s32.totalorder %s15, 0
    %p42 = por %p40, %p41
    %s44 = sadd.s32 %s43, 1
    %p47 = scmp.eq.s32.totalorder %s9, 1
    %p48 = scmp.ne.s32.totalorder %s43, %s45
    %p49 = scmp.eq.s32.totalorder %s9, 0
    %p50 = por %p48, %p49
    %p51 = scmp.ne.s32.totalorder %s43, %s45
    %p52 = scmp.eq.s32.totalorder %s14, 1
    %p53 = por %p51, %p52
    %p54 = scmp.ne.s32.totalorder %s45, %s46
    %p55 = scmp.eq.s32.totalorder %s14, 0
    %p56 = por %p54, %p55
    %p57 = scmp.ne.s32.totalorder %s45, %s46
    %p58 = scmp.eq.s32.totalorder %s15, 1
    %p59 = por %p57, %p58
    %p61 = scmp.ne.s32.totalorder %s46, %s60
    %p62 = scmp.eq.s32.totalorder %s15, 0
    %p63 = por %p61, %p62
    %s65 = sadd.s32 %s64, 1
    %p68 = scmp.eq.s32.totalorder %s9, 1
    %p69 = scmp.ne.s32.totalorder %s64, %s66
    %p70 = scmp.eq.s32.totalorder %s9, 0
    %p71 = por %p69, %p70
    %p72 = scmp.ne.s32.totalorder %s64, %s66
    %p73 = scmp.eq.s32.totalorder %s14, 1
    %p74 = por %p72, %p73
    %p75 = scmp.ne.s32.totalorder %s66, %s67
    %p76 = scmp.eq.s32.totalorder %s14, 0
    %p77 = por %p75, %p76
    %p78 = scmp.ne.s32.totalorder %s66, %s67
    %p79 = scmp.eq.s32.totalorder %s15, 1
    %p80 = por %p78, %p79
    %p82 = scmp.ne.s32.totalorder %s67, %s81
    %p83 = scmp.eq.s32.totalorder %s15, 0
    %p84 = por %p82, %p83
    %s85 = ssub.s32 %s9, %s16
    %p86 = scmp.eq.s32.totalorder %s85, 0
    %s88 = sadd.s32 %s87, 1
    %s89 = scalar_select %p86, %s87, %s88
    %p92 = pneg %p86
    %p93 = scmp.eq.s32.totalorder %s9, 1
    %p94 = por %p92, %p93
    %p95 = scmp.ne.s32.totalorder %s87, %s90
    %p96 = scmp.eq.s32.totalorder %s9, 0
    %p97 = por %p95, %p96
    %p98 = scmp.ne.s32.totalorder %s87, %s90
    %p99 = scmp.eq.s32.totalorder %s14, 1
    %p100 = por %p98, %p99
    %p101 = scmp.ne.s32.totalorder %s90, %s91
    %p102 = scmp.eq.s32.totalorder %s14, 0
    %p103 = por %p101, %p102
    %p104 = scmp.ne.s32.totalorder %s90, %s91
    %p105 = scmp.eq.s32.totalorder %s15, 1
    %p106 = por %p104, %p105
    %p108 = scmp.ne.s32.totalorder %s91, %s107
    %p109 = scmp.eq.s32.totalorder %s15, 0
    %p110 = por %p108, %p109
    %p111 = scmp.le.s32.totalorder 1, %s9
    %p112 = scmp.lt.s32.totalorder %s9, 3
    %p113 = pnand %p111, %p112
    %p114 = pneg %p113
    // Predicated region
    $region9: #{_lambda_.63} parent=5 // pred_check
      _
    $region10: #{_lambda_.63} parent=5 // pred_check_branch
      %116 = sbr.rel (%p113) target = $region12
    $region11: #{_lambda_.63} parent=5 // pred_region
      %s117 = ssub.s32 %s9, 1
      // Predicated region
      $region13: #{_lambda_.63} parent=11 // pred_check
        %p118 = pneg %p56
      $region14: #{_lambda_.63} parent=11 // pred_check_branch
        %120 = sbr.rel (%p118) target = $region16
      $region15: #{_lambda_.63} parent=11 // pred_region
        _
      $region16: #{_lambda_.63} parent=11 // pred_fallthru
        _
      // Predicated region
      $region17: #{_lambda_.63} parent=11 // pred_check
        %p121 = pneg %p77
      $region18: #{_lambda_.63} parent=11 // pred_check_branch
        %123 = sbr.rel (%p121) target = $region20
      $region19: #{_lambda_.63} parent=11 // pred_region
        _
      $region20: #{_lambda_.63} parent=11 // pred_fallthru
        _
    $region12: #{_lambda_.63} parent=5 // pred_fallthru
      _
    %p124 = scmp.lt.s32.totalorder %s9, 2
    // Predicated region
    $region21: #{_lambda_.63} parent=5 // pred_check
      %p125 = pneg %p124
    $region22: #{_lambda_.63} parent=5 // pred_check_branch
      %127 = sbr.rel (%p125) target = $region24
    $region23: #{_lambda_.63} parent=5 // pred_region
      // Predicated region
      $region25: #{_lambda_.63} parent=23 // pred_check
        %p128 = pneg %p29
      $region26: #{_lambda_.63} parent=23 // pred_check_branch
        %130 = sbr.rel (%p128) target = $region28
      $region27: #{_lambda_.63} parent=23 // pred_region
        %s131 = smul.u32 32, %s9
        %p132 = scmp.lt.s32.totalorder %s131, 63
        %s133 = scalar_select %p132, %s131, 63
        %s134 = smul.addr %s133, 4
        %s135 = scalar_lea.vmem %s0, %s134
        %s136 = smul.u32 32, %s9
      $region28: #{_lambda_.63} parent=23 // pred_fallthru
        _
    $region24: #{_lambda_.63} parent=5 // pred_fallthru
      _
    %p137 = scmp.le.s32.totalorder 1, %s9
    %p138 = scmp.lt.s32.totalorder %s9, 3
    %p139 = pnand %p137, %p138
    %p140 = pneg %p139
    // Predicated region
    $region29: #{_lambda_.63} parent=5 // pred_check
      _
    $region30: #{_lambda_.63} parent=5 // pred_check_branch
      %142 = sbr.rel (%p139) target = $region32
    $region31: #{_lambda_.63} parent=5 // pred_region
      %s143 = ssub.s32 %s9, 1
      %s144 = smul.u32 32, %s14
      %p145 = scmp.lt.s32.totalorder %s144, 63
      %s146 = scalar_select %p145, %s144, 63
      %s147 = smul.addr %s146, 4
      %s148 = scalar_lea.vmem %s0, %s147
      %p149 = pneg %p35
      %p150 = pneg %p32
      %p151 = pneg %p56
      %p152 = pneg %p53
      %p153 = pneg %p77
      %p154 = pneg %p74
      %p155 = pneg %p103
      %p156 = pneg %p100
      %s157 = smul.u32 32, %s14
      %p158 = scmp.lt.s32.totalorder %s157, 63
      %s159 = scalar_select %p158, %s157, 63
      %s160 = smul.addr %s159, 8
      %s161 = scalar_lea.vmem %s3, %s160
      %s162 = smul.u32 32, %s14
      %p163 = scmp.lt.s32.totalorder %s162, 63
      %s164 = scalar_select %p163, %s162, 63
      %s165 = smul.addr %s164, 4
      %s166 = scalar_lea.vmem %s0, %s165
      %s167 = smul.u32 32, %s14
      %s168 = smul.u32 32, %s14
      %p169 = scmp.lt.s32.totalorder %s168, 63
      %s170 = scalar_select %p169, %s168, 63
      %s171 = smul.addr %s170, 8
      %s172 = scalar_lea.vmem %s3, %s171
      %s173 = smul.u32 32, %s14
      %v175 = vld [vmem:[%s166] sm:$0xf]
      %v176 = vld [vmem:[%s166 + $0x4] sm:$0xf]
      %v177 = vld [vmem:[%s166 + $0x8] sm:$0xf]
      %v178 = vld [vmem:[%s166 + $0xc] sm:$0xf]
      %v179 = vld [vmem:[%s166 + $0x10] sm:$0xf]
      %v180 = vld [vmem:[%s166 + $0x14] sm:$0xf]
      %v181 = vld [vmem:[%s166 + $0x18] sm:$0xf]
      %v182 = vld [vmem:[%s166 + $0x1c] sm:$0xf]
      %v183 = vld [vmem:[%s166 + $0x20] sm:$0xf]
      %v184 = vld [vmem:[%s166 + $0x24] sm:$0xf]
      %v185 = vld [vmem:[%s166 + $0x28] sm:$0xf]
      %v186 = vld [vmem:[%s166 + $0x2c] sm:$0xf]
      %v187 = vld [vmem:[%s166 + $0x30] sm:$0xf]
      %v188 = vld [vmem:[%s166 + $0x34] sm:$0xf]
      %v189 = vld [vmem:[%s166 + $0x38] sm:$0xf]
      %v190 = vld [vmem:[%s166 + $0x3c] sm:$0xf]
      %v191 = vld [vmem:[%s166 + $0x40] sm:$0xf]
      %v192 = vld [vmem:[%s166 + $0x44] sm:$0xf]
      %v193 = vld [vmem:[%s166 + $0x48] sm:$0xf]
      %v194 = vld [vmem:[%s166 + $0x4c] sm:$0xf]
      %v195 = vld [vmem:[%s166 + $0x50] sm:$0xf]
      %v196 = vld [vmem:[%s166 + $0x54] sm:$0xf]
      %v197 = vld [vmem:[%s166 + $0x58] sm:$0xf]
      %v198 = vld [vmem:[%s166 + $0x5c] sm:$0xf]
      %v199 = vld [vmem:[%s166 + $0x60] sm:$0xf]
      %v200 = vld [vmem:[%s166 + $0x64] sm:$0xf]
      %v201 = vld [vmem:[%s166 + $0x68] sm:$0xf]
      %v202 = vld [vmem:[%s166 + $0x6c] sm:$0xf]
      %v203 = vld [vmem:[%s166 + $0x70] sm:$0xf]
      %v204 = vld [vmem:[%s166 + $0x74] sm:$0xf]
      %v205 = vld [vmem:[%s166 + $0x78] sm:$0xf]
      %v206 = vld [vmem:[%s166 + $0x7c] sm:$0xf]
      %v207 = vld [vmem:[%s1] sm:$0xf]
      %v208 = vld [vmem:[%s1 + $0x4] sm:$0xf]
      %v209 = vld [vmem:[%s1 + $0x8] sm:$0xf]
      %v210 = vld [vmem:[%s1 + $0xc] sm:$0xf]
      %v211 = vld [vmem:[%s1 + $0x10] sm:$0x3]
      %v212 = vld [vmem:[%s2] sm:$0x1]
      %v214 = vlaneseq
      %v215 = vshrl.u32 %v214, 7
      %v216 = vsub.s32 0, %v215
      %v217 = vrot.slane %v212, %v216
      %v251 = vunpack.c.l.b16 %v175
      %v252 = vunpack.c.l.b16 %v176
      %v253 = vunpack.c.l.b16 %v177
      %v254 = vunpack.c.l.b16 %v178
      %v255 = vunpack.c.l.b16 %v179
      %v256 = vunpack.c.l.b16 %v180
      %v257 = vunpack.c.l.b16 %v181
      %v258 = vunpack.c.l.b16 %v182
      %v259 = vunpack.c.l.b16 %v183
      %v260 = vunpack.c.l.b16 %v184
      %v261 = vunpack.c.l.b16 %v185
      %v262 = vunpack.c.l.b16 %v186
      %v263 = vunpack.c.l.b16 %v187
      %v264 = vunpack.c.l.b16 %v188
      %v265 = vunpack.c.l.b16 %v189
      %v266 = vunpack.c.l.b16 %v190
      %v267 = vunpack.c.l.b16 %v191
      %v268 = vunpack.c.l.b16 %v192
      %v269 = vunpack.c.l.b16 %v193
      %v270 = vunpack.c.l.b16 %v194
      %v271 = vunpack.c.l.b16 %v195
      %v272 = vunpack.c.l.b16 %v196
      %v273 = vunpack.c.l.b16 %v197
      %v274 = vunpack.c.l.b16 %v198
      %v275 = vunpack.c.l.b16 %v199
      %v276 = vunpack.c.l.b16 %v200
      %v277 = vunpack.c.l.b16 %v201
      %v278 = vunpack.c.l.b16 %v202
      %v279 = vunpack.c.l.b16 %v203
      %v280 = vunpack.c.l.b16 %v204
      %v281 = vunpack.c.l.b16 %v205
      %v282 = vunpack.c.l.b16 %v206
      %v283 = vpack.c.b16 %v252, %v251
      %v284 = vpack.c.b16 %v254, %v253
      %v285 = vpack.c.b16 %v256, %v255
      %v286 = vpack.c.b16 %v258, %v257
      %v287 = vpack.c.b16 %v260, %v259
      %v288 = vpack.c.b16 %v262, %v261
      %v289 = vpack.c.b16 %v264, %v263
      %v290 = vpack.c.b16 %v266, %v265
      %v291 = vpack.c.b16 %v268, %v267
      %v292 = vpack.c.b16 %v270, %v269
      %v293 = vpack.c.b16 %v272, %v271
      %v294 = vpack.c.b16 %v274, %v273
      %v295 = vpack.c.b16 %v276, %v275
      %v296 = vpack.c.b16 %v278, %v277
      %v297 = vpack.c.b16 %v280, %v279
      %v298 = vpack.c.b16 %v282, %v281
      %v304 = vunpack.c.l.b16 %v207
      %v305 = vunpack.c.l.b16 %v208
      %v306 = vunpack.c.l.b16 %v209
      %v307 = vunpack.c.l.b16 %v210
      %v308 = vunpack.c.l.b16 %v211
      %v309 = vpack.c.b16 %v305, %v304
      %v310 = vpack.c.b16 %v307, %v306
      %v311 = vpack.c.b16 %v308, %v308
      %vm314 = vcmask 293888
      %v316 = vsel %vm314, %v283, 0
      %v319 = vsel %vm314, %v284, 0
      %v322 = vsel %vm314, %v285, 0
      %v325 = vsel %vm314, %v286, 0
      %v328 = vsel %vm314, %v287, 0
      %v331 = vsel %vm314, %v288, 0
      %v334 = vsel %vm314, %v289, 0
      %v337 = vsel %vm314, %v290, 0
      %v340 = vsel %vm314, %v291, 0
      %v343 = vsel %vm314, %v292, 0
      %v346 = vsel %vm314, %v293, 0
      %v349 = vsel %vm314, %v294, 0
      %v352 = vsel %vm314, %v295, 0
      %v355 = vsel %vm314, %v296, 0
      %v358 = vsel %vm314, %v297, 0
      %v361 = vsel %vm314, %v298, 0
      %vm363 = vcmask 1041408
      %v365 = vsel %vm363, %v311, 0
      %367 = vmatprep.subr.bf16.mxu0 0
      %368 = vmatpush1.bf16.msra.mxu0 %v309
      %369 = vmatprep.subr.bf16.mxu0 0
      %370 = vmatpush1.bf16.msra.mxu0 %v310
      %371 = vmatprep.subr.bf16.mxu0 0
      %372 = vmatpush1.bf16.msra.mxu0 %v365
      %373 = vmatprep.subr.bf16.mxu0 0
      %374 = vmatpush1.bf16.msra.mxu0 0
      %375 = vmatprep.subr.bf16.mxu0 0
      %376 = vmatpush1.bf16.msra.mxu0 0
      %377 = vmatprep.subr.bf16.mxu0 0
      %378 = vmatpush1.bf16.msra.mxu0 0
      %379 = vmatprep.subr.bf16.mxu0 0
      %380 = vmatpush1.bf16.msra.mxu0 0
      %381 = vmatprep.subr.bf16.mxu0 0
      %382 = vmatpush1.bf16.msra.mxu0 0
      %383 = vmatprep.subr.bf16.mxu0 0
      %384 = vmatpush1.bf16.msra.mxu0 0
      %385 = vmatprep.subr.bf16.mxu0 0
      %386 = vmatpush1.bf16.msra.mxu0 0
      %387 = vmatprep.subr.bf16.mxu0 0
      %388 = vmatpush1.bf16.msra.mxu0 0
      %389 = vmatprep.subr.bf16.mxu0 0
      %390 = vmatpush1.bf16.msra.mxu0 0
      %391 = vmatprep.subr.bf16.mxu0 0
      %392 = vmatpush1.bf16.msra.mxu0 0
      %393 = vmatprep.subr.bf16.mxu0 0
      %394 = vmatpush1.bf16.msra.mxu0 0
      %395 = vmatprep.subr.bf16.mxu0 0
      %396 = vmatpush1.bf16.msra.mxu0 0
      %397 = vmatprep.subr.bf16.mxu0 0
      %398 = vmatpush1.bf16.msra.mxu0 0
      %399 = vmatprep.mubr.bf16.mxu0 0
      %400 = vmatmul.mubr.bf16.gmra.mrb[0].mxu0 %v316
      %v401 = vpop.f32.mrb[0].mxu0
      %v402 = vadd.f32 %v217, %v401
      %v403 = vpop.f32.mrb[0].mxu0
      %v404 = vpop.f32.mrb[0].mxu0
      %v405 = vadd.f32 %v217, %v404
      %v406 = vpop.f32.mrb[0].mxu0
      %407 = vmatprep.mubr.bf16.mxu0 0
      %408 = vmatmul.mubr.bf16.gmra.mrb[0].mxu0 %v319
      %v409 = vpop.f32.mrb[0].mxu0
      %v410 = vadd.f32 %v217, %v409
      %v411 = vpop.f32.mrb[0].mxu0
      %v412 = vpop.f32.mrb[0].mxu0
      %v413 = vadd.f32 %v217, %v412
      %v414 = vpop.f32.mrb[0].mxu0
      %415 = vmatprep.mubr.bf16.mxu0 0
      %416 = vmatmul.mubr.bf16.gmra.mrb[0].mxu0 %v322
      %v417 = vpop.f32.mrb[0].mxu0
      %v418 = vadd.f32 %v217, %v417
      %v419 = vpop.f32.mrb[0].mxu0
      %v420 = vpop.f32.mrb[0].mxu0
      %v421 = vadd.f32 %v217, %v420
      %v422 = vpop.f32.mrb[0].mxu0
      %423 = vmatprep.mubr.bf16.mxu0 0
      %424 = vmatmul.mubr.bf16.gmra.mrb[0].mxu0 %v325
      %v425 = vpop.f32.mrb[0].mxu0
      %v426 = vadd.f32 %v217, %v425
      %v427 = vpop.f32.mrb[0].mxu0
      %v428 = vpop.f32.mrb[0].mxu0
      %v429 = vadd.f32 %v217, %v428
      %v430 = vpop.f32.mrb[0].mxu0
      %431 = vmatprep.mubr.bf16.mxu0 0
      %432 = vmatmul.mubr.bf16.gmra.mrb[0].mxu0 %v328
      %v433 = vpop.f32.mrb[0].mxu0
      %v434 = vadd.f32 %v217, %v433
      %v435 = vpop.f32.mrb[0].mxu0
      %v436 = vpop.f32.mrb[0].mxu0
      %v437 = vadd.f32 %v217, %v436
      %v438 = vpop.f32.mrb[0].mxu0
      %439 = vmatprep.mubr.bf16.mxu0 0
      %440 = vmatmul.mubr.bf16.gmra.mrb[0].mxu0 %v331
      %v441 = vpop.f32.mrb[0].mxu0
      %v442 = vadd.f32 %v217, %v441
      %v443 = vpop.f32.mrb[0].mxu0
      %v444 = vpop.f32.mrb[0].mxu0
      %v445 = vadd.f32 %v217, %v444
      %v446 = vpop.f32.mrb[0].mxu0
      %447 = vmatprep.mubr.bf16.mxu0 0
      %448 = vmatmul.mubr.bf16.gmra.mrb[0].mxu0 %v334
      %v449 = vpop.f32.mrb[0].mxu0
      %v450 = vadd.f32 %v217, %v449
      %v451 = vpop.f32.mrb[0].mxu0
      %v452 = vpop.f32.mrb[0].mxu0
      %v453 = vadd.f32 %v217, %v452
      %v454 = vpop.f32.mrb[0].mxu0
      %455 = vmatprep.mubr.bf16.mxu0 0
      %456 = vmatmul.mubr.bf16.gmra.mrb[0].mxu0 %v337
      %v457 = vpop.f32.mrb[0].mxu0
      %v458 = vadd.f32 %v217, %v457
      %v459 = vpop.f32.mrb[0].mxu0
      %v460 = vpop.f32.mrb[0].mxu0
      %v461 = vadd.f32 %v217, %v460
      %v462 = vpop.f32.mrb[0].mxu0
      %463 = vmatprep.mubr.bf16.mxu0 0
      %464 = vmatmul.mubr.bf16.gmra.mrb[0].mxu0 %v340
      %v465 = vpop.f32.mrb[0].mxu0
      %v466 = vadd.f32 %v217, %v465
      %v467 = vpop.f32.mrb[0].mxu0
      %v468 = vpop.f32.mrb[0].mxu0
      %v469 = vadd.f32 %v217, %v468
      %v470 = vpop.f32.mrb[0].mxu0
      %471 = vmatprep.mubr.bf16.mxu0 0
      %472 = vmatmul.mubr.bf16.gmra.mrb[0].mxu0 %v343
      %v473 = vpop.f32.mrb[0].mxu0
      %v474 = vadd.f32 %v217, %v473
      %v475 = vpop.f32.mrb[0].mxu0
      %v476 = vpop.f32.mrb[0].mxu0
      %v477 = vadd.f32 %v217, %v476
      %v478 = vpop.f32.mrb[0].mxu0
      %479 = vmatprep.mubr.bf16.mxu0 0
      %480 = vmatmul.mubr.bf16.gmra.mrb[0].mxu0 %v346
      %v481 = vpop.f32.mrb[0].mxu0
      %v482 = vadd.f32 %v217, %v481
      %v483 = vpop.f32.mrb[0].mxu0
      %v484 = vpop.f32.mrb[0].mxu0
      %v485 = vadd.f32 %v217, %v484
      %v486 = vpop.f32.mrb[0].mxu0
      %487 = vmatprep.mubr.bf16.mxu0 0
      %488 = vmatmul.mubr.bf16.gmra.mrb[0].mxu0 %v349
      %v489 = vpop.f32.mrb[0].mxu0
      %v490 = vadd.f32 %v217, %v489
      %v491 = vpop.f32.mrb[0].mxu0
      %v492 = vpop.f32.mrb[0].mxu0
      %v493 = vadd.f32 %v217, %v492
      %v494 = vpop.f32.mrb[0].mxu0
      %495 = vmatprep.mubr.bf16.mxu0 0
      %496 = vmatmul.mubr.bf16.gmra.mrb[0].mxu0 %v352
      %v497 = vpop.f32.mrb[0].mxu0
      %v498 = vadd.f32 %v217, %v497
      %v499 = vpop.f32.mrb[0].mxu0
      %v500 = vpop.f32.mrb[0].mxu0
      %v501 = vadd.f32 %v217, %v500
      %v502 = vpop.f32.mrb[0].mxu0
      %503 = vmatprep.mubr.bf16.mxu0 0
      %504 = vmatmul.mubr.bf16.gmra.mrb[0].mxu0 %v355
      %v505 = vpop.f32.mrb[0].mxu0
      %v506 = vadd.f32 %v217, %v505
      %v507 = vpop.f32.mrb[0].mxu0
      %v508 = vpop.f32.mrb[0].mxu0
      %v509 = vadd.f32 %v217, %v508
      %v510 = vpop.f32.mrb[0].mxu0
      %511 = vmatprep.mubr.bf16.mxu0 0
      %512 = vmatmul.mubr.bf16.gmra.mrb[0].mxu0 %v358
      %v513 = vpop.f32.mrb[0].mxu0
      %v514 = vadd.f32 %v217, %v513
      %v515 = vpop.f32.mrb[0].mxu0
      %v516 = vpop.f32.mrb[0].mxu0
      %v517 = vadd.f32 %v217, %v516
      %v518 = vpop.f32.mrb[0].mxu0
      %519 = vmatprep.mubr.bf16.mxu0 0
      %520 = vmatmul.mubr.bf16.gmra.mrb[0].mxu0 %v361
      %v521 = vpop.f32.mrb[0].mxu0
      %v522 = vadd.f32 %v217, %v521
      %v523 = vpop.f32.mrb[0].mxu0
      %v524 = vpop.f32.mrb[0].mxu0
      %v525 = vadd.f32 %v217, %v524
      %v526 = vpop.f32.mrb[0].mxu0
      %527 = vdwg.mxu0
      %v528 = vmax.f32 %v402, 0.0
      %v529 = vmax.f32 %v405, 0.0
      %v530 = vmax.f32 %v410, 0.0
      %v531 = vmax.f32 %v413, 0.0
      %v532 = vmax.f32 %v418, 0.0
      %v533 = vmax.f32 %v421, 0.0
      %v534 = vmax.f32 %v426, 0.0
      %v535 = vmax.f32 %v429, 0.0
      %v536 = vmax.f32 %v434, 0.0
      %v537 = vmax.f32 %v437, 0.0
      %v538 = vmax.f32 %v442, 0.0
      %v539 = vmax.f32 %v445, 0.0
      %v540 = vmax.f32 %v450, 0.0
      %v541 = vmax.f32 %v453, 0.0
      %v542 = vmax.f32 %v458, 0.0
      %v543 = vmax.f32 %v461, 0.0
      %v544 = vmax.f32 %v466, 0.0
      %v545 = vmax.f32 %v469, 0.0
      %v546 = vmax.f32 %v474, 0.0
      %v547 = vmax.f32 %v477, 0.0
      %v548 = vmax.f32 %v482, 0.0
      %v549 = vmax.f32 %v485, 0.0
      %v550 = vmax.f32 %v490, 0.0
      %v551 = vmax.f32 %v493, 0.0
      %v552 = vmax.f32 %v498, 0.0
      %v553 = vmax.f32 %v501, 0.0
      %v554 = vmax.f32 %v506, 0.0
      %v555 = vmax.f32 %v509, 0.0
      %v556 = vmax.f32 %v514, 0.0
      %v557 = vmax.f32 %v517, 0.0
      %v558 = vmax.f32 %v522, 0.0
      %v559 = vmax.f32 %v525, 0.0
      %vm560 = vcmask 31744
      %561 = vst.msk [vmem:[%s172] sm:$0xff] %vm560, %v528
      %562 = vst.msk [vmem:[%s172 + $0x8] sm:$0xff] %vm560, %v529
      %563 = vst.msk [vmem:[%s172 + $0x10] sm:$0xff] %vm560, %v530
      %564 = vst.msk [vmem:[%s172 + $0x18] sm:$0xff] %vm560, %v531
      %565 = vst.msk [vmem:[%s172 + $0x20] sm:$0xff] %vm560, %v532
      %566 = vst.msk [vmem:[%s172 + $0x28] sm:$0xff] %vm560, %v533
      %567 = vst.msk [vmem:[%s172 + $0x30] sm:$0xff] %vm560, %v534
      %568 = vst.msk [vmem:[%s172 + $0x38] sm:$0xff] %vm560, %v535
      %569 = vst.msk [vmem:[%s172 + $0x40] sm:$0xff] %vm560, %v536
      %570 = vst.msk [vmem:[%s172 + $0x48] sm:$0xff] %vm560, %v537
      %571 = vst.msk [vmem:[%s172 + $0x50] sm:$0xff] %vm560, %v538
      %572 = vst.msk [vmem:[%s172 + $0x58] sm:$0xff] %vm560, %v539
      %573 = vst.msk [vmem:[%s172 + $0x60] sm:$0xff] %vm560, %v540
      %574 = vst.msk [vmem:[%s172 + $0x68] sm:$0xff] %vm560, %v541
      %575 = vst.msk [vmem:[%s172 + $0x70] sm:$0xff] %vm560, %v542
      %576 = vst.msk [vmem:[%s172 + $0x78] sm:$0xff] %vm560, %v543
      %577 = vst.msk [vmem:[%s172 + $0x80] sm:$0xff] %vm560, %v544
      %578 = vst.msk [vmem:[%s172 + $0x88] sm:$0xff] %vm560, %v545
      %579 = vst.msk [vmem:[%s172 + $0x90] sm:$0xff] %vm560, %v546
      %580 = vst.msk [vmem:[%s172 + $0x98] sm:$0xff] %vm560, %v547
      %581 = vst.msk [vmem:[%s172 + $0xa0] sm:$0xff] %vm560, %v548
      %582 = vst.msk [vmem:[%s172 + $0xa8] sm:$0xff] %vm560, %v549
      %583 = vst.msk [vmem:[%s172 + $0xb0] sm:$0xff] %vm560, %v550
      %584 = vst.msk [vmem:[%s172 + $0xb8] sm:$0xff] %vm560, %v551
      %585 = vst.msk [vmem:[%s172 + $0xc0] sm:$0xff] %vm560, %v552
      %586 = vst.msk [vmem:[%s172 + $0xc8] sm:$0xff] %vm560, %v553
      %587 = vst.msk [vmem:[%s172 + $0xd0] sm:$0xff] %vm560, %v554
      %588 = vst.msk [vmem:[%s172 + $0xd8] sm:$0xff] %vm560, %v555
      %589 = vst.msk [vmem:[%s172 + $0xe0] sm:$0xff] %vm560, %v556
      %590 = vst.msk [vmem:[%s172 + $0xe8] sm:$0xff] %vm560, %v557
      %591 = vst.msk [vmem:[%s172 + $0xf0] sm:$0xff] %vm560, %v558
      %592 = vst.msk [vmem:[%s172 + $0xf8] sm:$0xff] %vm560, %v559
      %s593 = smul.u32 32, %s14
      %p594 = scmp.lt.s32.totalorder %s593, 63
      %s595 = scalar_select %p594, %s593, 63
      %s596 = smul.addr %s595, 8
      %s597 = scalar_lea.vmem %s3, %s596
      // Predicated region
      $region33: #{_lambda_.63} parent=31 // pred_check
        %p598 = pneg %p100
      $region34: #{_lambda_.63} parent=31 // pred_check_branch
        %600 = sbr.rel (%p598) target = $region36
      $region35: #{_lambda_.63} parent=31 // pred_region
        %s601 = smul.u32 32, %s14
      $region36: #{_lambda_.63} parent=31 // pred_fallthru
        _
    $region32: #{_lambda_.63} parent=5 // pred_fallthru
      _
    %p602 = scmp.le.s32.totalorder 2, %s9
    // Predicated region
    $region37: #{_lambda_.63} parent=5 // pred_check
      %p603 = pneg %p602
    $region38: #{_lambda_.63} parent=5 // pred_check_branch
      %605 = sbr.rel (%p603) target = $region40
    $region39: #{_lambda_.63} parent=5 // pred_region
      %s606 = ssub.s32 %s9, 2
      // Predicated region
      $region41: #{_lambda_.63} parent=39 // pred_check
        %p607 = pneg %p106
      $region42: #{_lambda_.63} parent=39 // pred_check_branch
        %609 = sbr.rel (%p607) target = $region44
      $region43: #{_lambda_.63} parent=39 // pred_region
        %s610 = smul.u32 32, %s15
        %p611 = scmp.lt.s32.totalorder %s610, 63
        %s612 = scalar_select %p611, %s610, 63
        %s613 = smul.addr %s612, 8
        %s614 = scalar_lea.vmem %s3, %s613
      $region44: #{_lambda_.63} parent=39 // pred_fallthru
        _
    $region40: #{_lambda_.63} parent=5 // pred_fallthru
      _
  $region6: #{_lambda_.63} parent=0 // loop_footer
    %s13 = sadd.s32 1, %s9
  $region7: #{_lambda_.63} parent=0 // loop_footer_branch
    %8 = sbr.rel target = $region3
  $region8: #{_lambda_.63} parent=0 // loop_exit
    _

// kernel: _lambda_.64
$region0: #{_lambda_.64}
  #allocation0 [shape = 'u32[]', space=smem, size = 0x4, offset = 0x4, fixed_abs, tag = 'smem constant byte address 0x4 - core index']
  #allocation1 [shape = 'u32[144,128]{1,0:T(1,128)}', space=vmem, size = 0x12000, scoped, tag = 'internal scratch']
  %s0 = inlined_call_operand.vmem [shape: bf16[512,36], index: 0, kind: input, shape index: {}]
  %s1 = inlined_call_operand.vmem [shape: bf16[36,4], index: 1, kind: input, shape index: {}]
  %s2 = inlined_call_operand.vmem [shape: f32[1,4], index: 2, kind: input, shape index: {}]
  %s3 = inlined_call_operand.vmem [shape: f32[512,4], index: 3, kind: input, shape index: {}]
  %s4 = inlined_call_operand.vmem [shape: f32[512,4], index: 4, kind: output, shape index: {}]
  %s5 = sld [smem:[#allocation0]]
  $region49: #{_lambda_.64} parent=0
    _
  %s7 = ssub.s32 1, %s5
  %s8 = scalar_select 0, %s7, %s5
  loop: start=0, step=1, limit=4
  $region2: #{_lambda_.64} parent=0 // loop_pre_header
    _
  $region3: #{_lambda_.64} parent=0 // loop_header
    %s10 = sphi 0, %s14
    %p11 = scmp.ge.s32.totalorder %s10, 4
    %s20 = sphi 0, %s22
    %s23 = sphi 0, %s20
    %s24 = sphi 0, %s23
    %s40 = sphi 0, %s24
    %s44 = sphi 0, %s44
    %s46 = sphi 0, %s44
    %s47 = sphi 0, %s46
    %s61 = sphi 0, %s47
    %s65 = sphi 0, %s65
    %s67 = sphi 0, %s65
    %s68 = sphi 0, %s67
    %s82 = sphi 0, %s68
    %s88 = sphi 0, %s90
    %s91 = sphi 0, %s88
    %s92 = sphi 0, %s91
    %s108 = sphi 0, %s92
    %s114 = sphi 0, %s116
    %s117 = sphi 0, %s114
    %s118 = sphi 0, %s117
    %s134 = sphi 0, %s118
  $region4: #{_lambda_.64} parent=0 // loop_header_branch
    %13 = sbr.rel (%p11) target = $region8
  $region5: #{_lambda_.64} parent=0 // loop_body
    %s15 = ssub.s32 %s10, 1
    %s16 = ssub.s32 %s10, 2
    %s17 = sadd.s32 %s10, 1
    %s18 = ssub.s32 %s10, %s17
    %p19 = scmp.eq.s32.totalorder %s18, 0
    %s21 = sadd.s32 %s20, 1
    %s22 = scalar_select %p19, %s20, %s21
    %p25 = pneg %p19
    %p26 = scmp.eq.s32.totalorder %s10, 1
    %p27 = por %p25, %p26
    %p28 = scmp.ne.s32.totalorder %s20, %s23
    %p29 = scmp.eq.s32.totalorder %s10, 0
    %p30 = por %p28, %p29
    %p31 = scmp.ne.s32.totalorder %s20, %s23
    %p32 = scmp.eq.s32.totalorder %s15, 1
    %p33 = por %p31, %p32
    %p34 = scmp.ne.s32.totalorder %s23, %s24
    %p35 = scmp.eq.s32.totalorder %s15, 0
    %p36 = por %p34, %p35
    %p37 = scmp.ne.s32.totalorder %s23, %s24
    %p38 = scmp.eq.s32.totalorder %s16, 1
    %p39 = por %p37, %p38
    %p41 = scmp.ne.s32.totalorder %s24, %s40
    %p42 = scmp.eq.s32.totalorder %s16, 0
    %p43 = por %p41, %p42
    %s45 = sadd.s32 %s44, 1
    %p48 = scmp.eq.s32.totalorder %s10, 1
    %p49 = scmp.ne.s32.totalorder %s44, %s46
    %p50 = scmp.eq.s32.totalorder %s10, 0
    %p51 = por %p49, %p50
    %p52 = scmp.ne.s32.totalorder %s44, %s46
    %p53 = scmp.eq.s32.totalorder %s15, 1
    %p54 = por %p52, %p53
    %p55 = scmp.ne.s32.totalorder %s46, %s47
    %p56 = scmp.eq.s32.totalorder %s15, 0
    %p57 = por %p55, %p56
    %p58 = scmp.ne.s32.totalorder %s46, %s47
    %p59 = scmp.eq.s32.totalorder %s16, 1
    %p60 = por %p58, %p59
    %p62 = scmp.ne.s32.totalorder %s47, %s61
    %p63 = scmp.eq.s32.totalorder %s16, 0
    %p64 = por %p62, %p63
    %s66 = sadd.s32 %s65, 1
    %p69 = scmp.eq.s32.totalorder %s10, 1
    %p70 = scmp.ne.s32.totalorder %s65, %s67
    %p71 = scmp.eq.s32.totalorder %s10, 0
    %p72 = por %p70, %p71
    %p73 = scmp.ne.s32.totalorder %s65, %s67
    %p74 = scmp.eq.s32.totalorder %s15, 1
    %p75 = por %p73, %p74
    %p76 = scmp.ne.s32.totalorder %s67, %s68
    %p77 = scmp.eq.s32.totalorder %s15, 0
    %p78 = por %p76, %p77
    %p79 = scmp.ne.s32.totalorder %s67, %s68
    %p80 = scmp.eq.s32.totalorder %s16, 1
    %p81 = por %p79, %p80
    %p83 = scmp.ne.s32.totalorder %s68, %s82
    %p84 = scmp.eq.s32.totalorder %s16, 0
    %p85 = por %p83, %p84
    %s86 = ssub.s32 %s10, %s17
    %p87 = scmp.eq.s32.totalorder %s86, 0
    %s89 = sadd.s32 %s88, 1
    %s90 = scalar_select %p87, %s88, %s89
    %p93 = pneg %p87
    %p94 = scmp.eq.s32.totalorder %s10, 1
    %p95 = por %p93, %p94
    %p96 = scmp.ne.s32.totalorder %s88, %s91
    %p97 = scmp.eq.s32.totalorder %s10, 0
    %p98 = por %p96, %p97
    %p99 = scmp.ne.s32.totalorder %s88, %s91
    %p100 = scmp.eq.s32.totalorder %s15, 1
    %p101 = por %p99, %p100
    %p102 = scmp.ne.s32.totalorder %s91, %s92
    %p103 = scmp.eq.s32.totalorder %s15, 0
    %p104 = por %p102, %p103
    %p105 = scmp.ne.s32.totalorder %s91, %s92
    %p106 = scmp.eq.s32.totalorder %s16, 1
    %p107 = por %p105, %p106
    %p109 = scmp.ne.s32.totalorder %s92, %s108
    %p110 = scmp.eq.s32.totalorder %s16, 0
    %p111 = por %p109, %p110
    %s112 = ssub.s32 %s10, %s17
    %p113 = scmp.eq.s32.totalorder %s112, 0
    %s115 = sadd.s32 %s114, 1
    %s116 = scalar_select %p113, %s114, %s115
    %p119 = pneg %p113
    %p120 = scmp.eq.s32.totalorder %s10, 1
    %p121 = por %p119, %p120
    %p122 = scmp.ne.s32.totalorder %s114, %s117
    %p123 = scmp.eq.s32.totalorder %s10, 0
    %p124 = por %p122, %p123
    %p125 = scmp.ne.s32.totalorder %s114, %s117
    %p126 = scmp.eq.s32.totalorder %s15, 1
    %p127 = por %p125, %p126
    %p128 = scmp.ne.s32.totalorder %s117, %s118
    %p129 = scmp.eq.s32.totalorder %s15, 0
    %p130 = por %p128, %p129
    %p131 = scmp.ne.s32.totalorder %s117, %s118
    %p132 = scmp.eq.s32.totalorder %s16, 1
    %p133 = por %p131, %p132
    %p135 = scmp.ne.s32.totalorder %s118, %s134
    %p136 = scmp.eq.s32.totalorder %s16, 0
    %p137 = por %p135, %p136
    %p138 = scmp.le.s32.totalorder 1, %s10
    %p139 = scmp.lt.s32.totalorder %s10, 3
    %p140 = pnand %p138, %p139
    %p141 = pneg %p140
    // Predicated region
    $region9: #{_lambda_.64} parent=5 // pred_check
      _
    $region10: #{_lambda_.64} parent=5 // pred_check_branch
      %143 = sbr.rel (%p140) target = $region12
    $region11: #{_lambda_.64} parent=5 // pred_region
      %s144 = ssub.s32 %s10, 1
      // Predicated region
      $region13: #{_lambda_.64} parent=11 // pred_check
        %p145 = pneg %p57
      $region14: #{_lambda_.64} parent=11 // pred_check_branch
        %147 = sbr.rel (%p145) target = $region16
      $region15: #{_lambda_.64} parent=11 // pred_region
        _
      $region16: #{_lambda_.64} parent=11 // pred_fallthru
        _
      // Predicated region
      $region17: #{_lambda_.64} parent=11 // pred_check
        %p148 = pneg %p78
      $region18: #{_lambda_.64} parent=11 // pred_check_branch
        %150 = sbr.rel (%p148) target = $region20
      $region19: #{_lambda_.64} parent=11 // pred_region
        _
      $region20: #{_lambda_.64} parent=11 // pred_fallthru
        _
    $region12: #{_lambda_.64} parent=5 // pred_fallthru
      _
    %p151 = scmp.lt.s32.totalorder %s10, 2
    // Predicated region
    $region21: #{_lambda_.64} parent=5 // pred_check
      %p152 = pneg %p151
    $region22: #{_lambda_.64} parent=5 // pred_check_branch
      %154 = sbr.rel (%p152) target = $region24
    $region23: #{_lambda_.64} parent=5 // pred_region
      // Predicated region
      $region25: #{_lambda_.64} parent=23 // pred_check
        %p155 = pneg %p30
      $region26: #{_lambda_.64} parent=23 // pred_check_branch
        %157 = sbr.rel (%p155) target = $region28
      $region27: #{_lambda_.64} parent=23 // pred_region
        %s158 = smul.u32 32, %s10
        %p159 = scmp.lt.s32.totalorder %s158, 63
        %s160 = scalar_select %p159, %s158, 63
        %s161 = smul.addr %s160, 4
        %s162 = scalar_lea.vmem %s0, %s161
        %s163 = smul.u32 32, %s10
      $region28: #{_lambda_.64} parent=23 // pred_fallthru
        _
      // Predicated region
      $region29: #{_lambda_.64} parent=23 // pred_check
        %p164 = pneg %p98
      $region30: #{_lambda_.64} parent=23 // pred_check_branch
        %166 = sbr.rel (%p164) target = $region32
      $region31: #{_lambda_.64} parent=23 // pred_region
        %s167 = smul.u32 32, %s10
        %p168 = scmp.lt.s32.totalorder %s167, 63
        %s169 = scalar_select %p168, %s167, 63
        %s170 = smul.addr %s169, 8
        %s171 = scalar_lea.vmem %s3, %s170
        %s172 = smul.u32 32, %s10
      $region32: #{_lambda_.64} parent=23 // pred_fallthru
        _
    $region24: #{_lambda_.64} parent=5 // pred_fallthru
      _
    %p173 = scmp.le.s32.totalorder 1, %s10
    %p174 = scmp.lt.s32.totalorder %s10, 3
    %p175 = pnand %p173, %p174
    %p176 = pneg %p175
    // Predicated region
    $region33: #{_lambda_.64} parent=5 // pred_check
      _
    $region34: #{_lambda_.64} parent=5 // pred_check_branch
      %178 = sbr.rel (%p175) target = $region36
    $region35: #{_lambda_.64} parent=5 // pred_region
      %s179 = ssub.s32 %s10, 1
      %s180 = smul.u32 32, %s15
      %p181 = scmp.lt.s32.totalorder %s180, 63
      %s182 = scalar_select %p181, %s180, 63
      %s183 = smul.addr %s182, 4
      %s184 = scalar_lea.vmem %s0, %s183
      %p185 = pneg %p36
      %p186 = pneg %p33
      %p187 = pneg %p57
      %p188 = pneg %p54
      %p189 = pneg %p78
      %p190 = pneg %p75
      %s191 = smul.u32 32, %s15
      %p192 = scmp.lt.s32.totalorder %s191, 63
      %s193 = scalar_select %p192, %s191, 63
      %s194 = smul.addr %s193, 8
      %s195 = scalar_lea.vmem %s3, %s194
      %p196 = pneg %p104
      %p197 = pneg %p101
      %p198 = pneg %p130
      %p199 = pneg %p127
      %s200 = smul.u32 32, %s15
      %p201 = scmp.lt.s32.totalorder %s200, 63
      %s202 = scalar_select %p201, %s200, 63
      %s203 = smul.addr %s202, 8
      %s204 = scalar_lea.vmem %s4, %s203
      %s205 = smul.u32 32, %s15
      %p206 = scmp.lt.s32.totalorder %s205, 63
      %s207 = scalar_select %p206, %s205, 63
      %s208 = smul.addr %s207, 4
      %s209 = scalar_lea.vmem %s0, %s208
      %s210 = smul.u32 32, %s15
      %s211 = smul.u32 32, %s15
      %p212 = scmp.lt.s32.totalorder %s211, 63
      %s213 = scalar_select %p212, %s211, 63
      %s214 = smul.addr %s213, 8
      %s215 = scalar_lea.vmem %s3, %s214
      %s216 = smul.u32 32, %s15
      %s217 = smul.u32 32, %s15
      %p218 = scmp.lt.s32.totalorder %s217, 63
      %s219 = scalar_select %p218, %s217, 63
      %s220 = smul.addr %s219, 8
      %s221 = scalar_lea.vmem %s4, %s220
      %s222 = smul.u32 32, %s15
      %v224 = vld [vmem:[%s209] sm:$0xf]
      %v225 = vld [vmem:[%s209 + $0x4] sm:$0xf]
      %v226 = vld [vmem:[%s209 + $0x8] sm:$0xf]
      %v227 = vld [vmem:[%s209 + $0xc] sm:$0xf]
      %v228 = vld [vmem:[%s209 + $0x10] sm:$0xf]
      %v229 = vld [vmem:[%s209 + $0x14] sm:$0xf]
      %v230 = vld [vmem:[%s209 + $0x18] sm:$0xf]
      %v231 = vld [vmem:[%s209 + $0x1c] sm:$0xf]
      %v232 = vld [vmem:[%s209 + $0x20] sm:$0xf]
      %v233 = vld [vmem:[%s209 + $0x24] sm:$0xf]
      %v234 = vld [vmem:[%s209 + $0x28] sm:$0xf]
      %v235 = vld [vmem:[%s209 + $0x2c] sm:$0xf]
      %v236 = vld [vmem:[%s209 + $0x30] sm:$0xf]
      %v237 = vld [vmem:[%s209 + $0x34] sm:$0xf]
      %v238 = vld [vmem:[%s209 + $0x38] sm:$0xf]
      %v239 = vld [vmem:[%s209 + $0x3c] sm:$0xf]
      %v240 = vld [vmem:[%s209 + $0x40] sm:$0xf]
      %v241 = vld [vmem:[%s209 + $0x44] sm:$0xf]
      %v242 = vld [vmem:[%s209 + $0x48] sm:$0xf]
      %v243 = vld [vmem:[%s209 + $0x4c] sm:$0xf]
      %v244 = vld [vmem:[%s209 + $0x50] sm:$0xf]
      %v245 = vld [vmem:[%s209 + $0x54] sm:$0xf]
      %v246 = vld [vmem:[%s209 + $0x58] sm:$0xf]
      %v247 = vld [vmem:[%s209 + $0x5c] sm:$0xf]
      %v248 = vld [vmem:[%s209 + $0x60] sm:$0xf]
      %v249 = vld [vmem:[%s209 + $0x64] sm:$0xf]
      %v250 = vld [vmem:[%s209 + $0x68] sm:$0xf]
      %v251 = vld [vmem:[%s209 + $0x6c] sm:$0xf]
      %v252 = vld [vmem:[%s209 + $0x70] sm:$0xf]
      %v253 = vld [vmem:[%s209 + $0x74] sm:$0xf]
      %v254 = vld [vmem:[%s209 + $0x78] sm:$0xf]
      %v255 = vld [vmem:[%s209 + $0x7c] sm:$0xf]
      %v256 = vld [vmem:[%s1] sm:$0xf]
      %v257 = vld [vmem:[%s1 + $0x4] sm:$0xf]
      %v258 = vld [vmem:[%s1 + $0x8] sm:$0xf]
      %v259 = vld [vmem:[%s1 + $0xc] sm:$0xf]
      %v260 = vld [vmem:[%s1 + $0x10] sm:$0x3]
      %v261 = vld [vmem:[%s2] sm:$0x1]
      %v263 = vlaneseq
      %v264 = vshrl.u32 %v263, 7
      %v265 = vsub.s32 0, %v264
      %v266 = vrot.slane %v261, %v265
      %v300 = vunpack.c.l.b16 %v224
      %v301 = vunpack.c.l.b16 %v225
      %v302 = vunpack.c.l.b16 %v226
      %v303 = vunpack.c.l.b16 %v227
      %v304 = vunpack.c.l.b16 %v228
      %v305 = vunpack.c.l.b16 %v229
      %v306 = vunpack.c.l.b16 %v230
      %v307 = vunpack.c.l.b16 %v231
      %v308 = vunpack.c.l.b16 %v232
      %v309 = vunpack.c.l.b16 %v233
      %v310 = vunpack.c.l.b16 %v234
      %v311 = vunpack.c.l.b16 %v235
      %v312 = vunpack.c.l.b16 %v236
      %v313 = vunpack.c.l.b16 %v237
      %v314 = vunpack.c.l.b16 %v238
      %v315 = vunpack.c.l.b16 %v239
      %v316 = vunpack.c.l.b16 %v240
      %v317 = vunpack.c.l.b16 %v241
      %v318 = vunpack.c.l.b16 %v242
      %v319 = vunpack.c.l.b16 %v243
      %v320 = vunpack.c.l.b16 %v244
      %v321 = vunpack.c.l.b16 %v245
      %v322 = vunpack.c.l.b16 %v246
      %v323 = vunpack.c.l.b16 %v247
      %v324 = vunpack.c.l.b16 %v248
      %v325 = vunpack.c.l.b16 %v249
      %v326 = vunpack.c.l.b16 %v250
      %v327 = vunpack.c.l.b16 %v251
      %v328 = vunpack.c.l.b16 %v252
      %v329 = vunpack.c.l.b16 %v253
      %v330 = vunpack.c.l.b16 %v254
      %v331 = vunpack.c.l.b16 %v255
      %v332 = vpack.c.b16 %v301, %v300
      %v333 = vpack.c.b16 %v303, %v302
      %v334 = vpack.c.b16 %v305, %v304
      %v335 = vpack.c.b16 %v307, %v306
      %v336 = vpack.c.b16 %v309, %v308
      %v337 = vpack.c.b16 %v311, %v310
      %v338 = vpack.c.b16 %v313, %v312
      %v339 = vpack.c.b16 %v315, %v314
      %v340 = vpack.c.b16 %v317, %v316
      %v341 = vpack.c.b16 %v319, %v318
      %v342 = vpack.c.b16 %v321, %v320
      %v343 = vpack.c.b16 %v323, %v322
      %v344 = vpack.c.b16 %v325, %v324
      %v345 = vpack.c.b16 %v327, %v326
      %v346 = vpack.c.b16 %v329, %v328
      %v347 = vpack.c.b16 %v331, %v330
      %v353 = vunpack.c.l.b16 %v256
      %v354 = vunpack.c.l.b16 %v257
      %v355 = vunpack.c.l.b16 %v258
      %v356 = vunpack.c.l.b16 %v259
      %v357 = vunpack.c.l.b16 %v260
      %v358 = vpack.c.b16 %v354, %v353
      %v359 = vpack.c.b16 %v356, %v355
      %v360 = vpack.c.b16 %v357, %v357
      %vm363 = vcmask 293888
      %v365 = vsel %vm363, %v332, 0
      %v368 = vsel %vm363, %v333, 0
      %v371 = vsel %vm363, %v334, 0
      %v374 = vsel %vm363, %v335, 0
      %v377 = vsel %vm363, %v336, 0
      %v380 = vsel %vm363, %v337, 0
      %v383 = vsel %vm363, %v338, 0
      %v386 = vsel %vm363, %v339, 0
      %v389 = vsel %vm363, %v340, 0
      %v392 = vsel %vm363, %v341, 0
      %v395 = vsel %vm363, %v342, 0
      %v398 = vsel %vm363, %v343, 0
      %v401 = vsel %vm363, %v344, 0
      %v404 = vsel %vm363, %v345, 0
      %v407 = vsel %vm363, %v346, 0
      %v410 = vsel %vm363, %v347, 0
      %vm412 = vcmask 1041408
      %v414 = vsel %vm412, %v360, 0
      %416 = vmatprep.subr.bf16.mxu0 0
      %417 = vmatpush1.bf16.msra.mxu0 %v358
      %418 = vmatprep.subr.bf16.mxu0 0
      %419 = vmatpush1.bf16.msra.mxu0 %v359
      %420 = vmatprep.subr.bf16.mxu0 0
      %421 = vmatpush1.bf16.msra.mxu0 %v414
      %422 = vmatprep.subr.bf16.mxu0 0
      %423 = vmatpush1.bf16.msra.mxu0 0
      %424 = vmatprep.subr.bf16.mxu0 0
      %425 = vmatpush1.bf16.msra.mxu0 0
      %426 = vmatprep.subr.bf16.mxu0 0
      %427 = vmatpush1.bf16.msra.mxu0 0
      %428 = vmatprep.subr.bf16.mxu0 0
      %429 = vmatpush1.bf16.msra.mxu0 0
      %430 = vmatprep.subr.bf16.mxu0 0
      %431 = vmatpush1.bf16.msra.mxu0 0
      %432 = vmatprep.subr.bf16.mxu0 0
      %433 = vmatpush1.bf16.msra.mxu0 0
      %434 = vmatprep.subr.bf16.mxu0 0
      %435 = vmatpush1.bf16.msra.mxu0 0
      %436 = vmatprep.subr.bf16.mxu0 0
      %437 = vmatpush1.bf16.msra.mxu0 0
      %438 = vmatprep.subr.bf16.mxu0 0
      %439 = vmatpush1.bf16.msra.mxu0 0
      %440 = vmatprep.subr.bf16.mxu0 0
      %441 = vmatpush1.bf16.msra.mxu0 0
      %442 = vmatprep.subr.bf16.mxu0 0
      %443 = vmatpush1.bf16.msra.mxu0 0
      %444 = vmatprep.subr.bf16.mxu0 0
      %445 = vmatpush1.bf16.msra.mxu0 0
      %446 = vmatprep.subr.bf16.mxu0 0
      %447 = vmatpush1.bf16.msra.mxu0 0
      %448 = vmatprep.mubr.bf16.mxu0 0
      %449 = vmatmul.mubr.bf16.gmra.mrb[0].mxu0 %v365
      %v450 = vpop.f32.mrb[0].mxu0
      %v451 = vadd.f32 %v266, %v450
      %v452 = vpop.f32.mrb[0].mxu0
      %v453 = vpop.f32.mrb[0].mxu0
      %v454 = vadd.f32 %v266, %v453
      %v455 = vpop.f32.mrb[0].mxu0
      %456 = vmatprep.mubr.bf16.mxu0 0
      %457 = vmatmul.mubr.bf16.gmra.mrb[0].mxu0 %v368
      %v458 = vpop.f32.mrb[0].mxu0
      %v459 = vadd.f32 %v266, %v458
      %v460 = vpop.f32.mrb[0].mxu0
      %v461 = vpop.f32.mrb[0].mxu0
      %v462 = vadd.f32 %v266, %v461
      %v463 = vpop.f32.mrb[0].mxu0
      %464 = vmatprep.mubr.bf16.mxu0 0
      %465 = vmatmul.mubr.bf16.gmra.mrb[0].mxu0 %v371
      %v466 = vpop.f32.mrb[0].mxu0
      %v467 = vadd.f32 %v266, %v466
      %v468 = vpop.f32.mrb[0].mxu0
      %v469 = vpop.f32.mrb[0].mxu0
      %v470 = vadd.f32 %v266, %v469
      %v471 = vpop.f32.mrb[0].mxu0
      %472 = vmatprep.mubr.bf16.mxu0 0
      %473 = vmatmul.mubr.bf16.gmra.mrb[0].mxu0 %v374
      %v474 = vpop.f32.mrb[0].mxu0
      %v475 = vadd.f32 %v266, %v474
      %v476 = vpop.f32.mrb[0].mxu0
      %v477 = vpop.f32.mrb[0].mxu0
      %v478 = vadd.f32 %v266, %v477
      %v479 = vpop.f32.mrb[0].mxu0
      %480 = vmatprep.mubr.bf16.mxu0 0
      %481 = vmatmul.mubr.bf16.gmra.mrb[0].mxu0 %v377
      %v482 = vpop.f32.mrb[0].mxu0
      %v483 = vadd.f32 %v266, %v482
      %v484 = vpop.f32.mrb[0].mxu0
      %v485 = vpop.f32.mrb[0].mxu0
      %v486 = vadd.f32 %v266, %v485
      %v487 = vpop.f32.mrb[0].mxu0
      %488 = vmatprep.mubr.bf16.mxu0 0
      %489 = vmatmul.mubr.bf16.gmra.mrb[0].mxu0 %v380
      %v490 = vpop.f32.mrb[0].mxu0
      %v491 = vadd.f32 %v266, %v490
      %v492 = vpop.f32.mrb[0].mxu0
      %v493 = vpop.f32.mrb[0].mxu0
      %v494 = vadd.f32 %v266, %v493
      %v495 = vpop.f32.mrb[0].mxu0
      %496 = vmatprep.mubr.bf16.mxu0 0
      %497 = vmatmul.mubr.bf16.gmra.mrb[0].mxu0 %v383
      %v498 = vpop.f32.mrb[0].mxu0
      %v499 = vadd.f32 %v266, %v498
      %v500 = vpop.f32.mrb[0].mxu0
      %v501 = vpop.f32.mrb[0].mxu0
      %v502 = vadd.f32 %v266, %v501
      %v503 = vpop.f32.mrb[0].mxu0
      %504 = vmatprep.mubr.bf16.mxu0 0
      %505 = vmatmul.mubr.bf16.gmra.mrb[0].mxu0 %v386
      %v506 = vpop.f32.mrb[0].mxu0
      %v507 = vadd.f32 %v266, %v506
      %v508 = vpop.f32.mrb[0].mxu0
      %v509 = vpop.f32.mrb[0].mxu0
      %v510 = vadd.f32 %v266, %v509
      %v511 = vpop.f32.mrb[0].mxu0
      %512 = vmatprep.mubr.bf16.mxu0 0
      %513 = vmatmul.mubr.bf16.gmra.mrb[0].mxu0 %v389
      %v514 = vpop.f32.mrb[0].mxu0
      %v515 = vadd.f32 %v266, %v514
      %v516 = vpop.f32.mrb[0].mxu0
      %v517 = vpop.f32.mrb[0].mxu0
      %v518 = vadd.f32 %v266, %v517
      %v519 = vpop.f32.mrb[0].mxu0
      %520 = vmatprep.mubr.bf16.mxu0 0
      %521 = vmatmul.mubr.bf16.gmra.mrb[0].mxu0 %v392
      %v522 = vpop.f32.mrb[0].mxu0
      %v523 = vadd.f32 %v266, %v522
      %v524 = vpop.f32.mrb[0].mxu0
      %v525 = vpop.f32.mrb[0].mxu0
      %v526 = vadd.f32 %v266, %v525
      %v527 = vpop.f32.mrb[0].mxu0
      %528 = vmatprep.mubr.bf16.mxu0 0
      %529 = vmatmul.mubr.bf16.gmra.mrb[0].mxu0 %v395
      %v530 = vpop.f32.mrb[0].mxu0
      %v531 = vadd.f32 %v266, %v530
      %v532 = vpop.f32.mrb[0].mxu0
      %v533 = vpop.f32.mrb[0].mxu0
      %v534 = vadd.f32 %v266, %v533
      %v535 = vpop.f32.mrb[0].mxu0
      %536 = vmatprep.mubr.bf16.mxu0 0
      %537 = vmatmul.mubr.bf16.gmra.mrb[0].mxu0 %v398
      %v538 = vpop.f32.mrb[0].mxu0
      %v539 = vadd.f32 %v266, %v538
      %v540 = vpop.f32.mrb[0].mxu0
      %v541 = vpop.f32.mrb[0].mxu0
      %v542 = vadd.f32 %v266, %v541
      %v543 = vpop.f32.mrb[0].mxu0
      %544 = vmatprep.mubr.bf16.mxu0 0
      %545 = vmatmul.mubr.bf16.gmra.mrb[0].mxu0 %v401
      %v546 = vpop.f32.mrb[0].mxu0
      %v547 = vadd.f32 %v266, %v546
      %v548 = vpop.f32.mrb[0].mxu0
      %v549 = vpop.f32.mrb[0].mxu0
      %v550 = vadd.f32 %v266, %v549
      %v551 = vpop.f32.mrb[0].mxu0
      %552 = vmatprep.mubr.bf16.mxu0 0
      %553 = vmatmul.mubr.bf16.gmra.mrb[0].mxu0 %v404
      %v554 = vpop.f32.mrb[0].mxu0
      %v555 = vadd.f32 %v266, %v554
      %v556 = vpop.f32.mrb[0].mxu0
      %v557 = vpop.f32.mrb[0].mxu0
      %v558 = vadd.f32 %v266, %v557
      %v559 = vpop.f32.mrb[0].mxu0
      %560 = vmatprep.mubr.bf16.mxu0 0
      %561 = vmatmul.mubr.bf16.gmra.mrb[0].mxu0 %v407
      %v562 = vpop.f32.mrb[0].mxu0
      %v563 = vadd.f32 %v266, %v562
      %v564 = vpop.f32.mrb[0].mxu0
      %v565 = vpop.f32.mrb[0].mxu0
      %v566 = vadd.f32 %v266, %v565
      %v567 = vpop.f32.mrb[0].mxu0
      %568 = vmatprep.mubr.bf16.mxu0 0
      %569 = vmatmul.mubr.bf16.gmra.mrb[0].mxu0 %v410
      %v570 = vpop.f32.mrb[0].mxu0
      %v571 = vadd.f32 %v266, %v570
      %v572 = vpop.f32.mrb[0].mxu0
      %v573 = vpop.f32.mrb[0].mxu0
      %v574 = vadd.f32 %v266, %v573
      %v575 = vpop.f32.mrb[0].mxu0
      %576 = vdwg.mxu0
      %v577 = vld [vmem:[%s215] sm:$0xff]
      %v578 = vld [vmem:[%s215 + $0x8] sm:$0xff]
      %v579 = vld [vmem:[%s215 + $0x10] sm:$0xff]
      %v580 = vld [vmem:[%s215 + $0x18] sm:$0xff]
      %v581 = vld [vmem:[%s215 + $0x20] sm:$0xff]
      %v582 = vld [vmem:[%s215 + $0x28] sm:$0xff]
      %v583 = vld [vmem:[%s215 + $0x30] sm:$0xff]
      %v584 = vld [vmem:[%s215 + $0x38] sm:$0xff]
      %v585 = vld [vmem:[%s215 + $0x40] sm:$0xff]
      %v586 = vld [vmem:[%s215 + $0x48] sm:$0xff]
      %v587 = vld [vmem:[%s215 + $0x50] sm:$0xff]
      %v588 = vld [vmem:[%s215 + $0x58] sm:$0xff]
      %v589 = vld [vmem:[%s215 + $0x60] sm:$0xff]
      %v590 = vld [vmem:[%s215 + $0x68] sm:$0xff]
      %v591 = vld [vmem:[%s215 + $0x70] sm:$0xff]
      %v592 = vld [vmem:[%s215 + $0x78] sm:$0xff]
      %v593 = vld [vmem:[%s215 + $0x80] sm:$0xff]
      %v594 = vld [vmem:[%s215 + $0x88] sm:$0xff]
      %v595 = vld [vmem:[%s215 + $0x90] sm:$0xff]
      %v596 = vld [vmem:[%s215 + $0x98] sm:$0xff]
      %v597 = vld [vmem:[%s215 + $0xa0] sm:$0xff]
      %v598 = vld [vmem:[%s215 + $0xa8] sm:$0xff]
      %v599 = vld [vmem:[%s215 + $0xb0] sm:$0xff]
      %v600 = vld [vmem:[%s215 + $0xb8] sm:$0xff]
      %v601 = vld [vmem:[%s215 + $0xc0] sm:$0xff]
      %v602 = vld [vmem:[%s215 + $0xc8] sm:$0xff]
      %v603 = vld [vmem:[%s215 + $0xd0] sm:$0xff]
      %v604 = vld [vmem:[%s215 + $0xd8] sm:$0xff]
      %v605 = vld [vmem:[%s215 + $0xe0] sm:$0xff]
      %v606 = vld [vmem:[%s215 + $0xe8] sm:$0xff]
      %v607 = vld [vmem:[%s215 + $0xf0] sm:$0xff]
      %v608 = vld [vmem:[%s215 + $0xf8] sm:$0xff]
      %v609 = vadd.f32 %v451, %v577
      %v610 = vadd.f32 %v454, %v578
      %v611 = vadd.f32 %v459, %v579
      %v612 = vadd.f32 %v462, %v580
      %v613 = vadd.f32 %v467, %v581
      %v614 = vadd.f32 %v470, %v582
      %v615 = vadd.f32 %v475, %v583
      %v616 = vadd.f32 %v478, %v584
      %v617 = vadd.f32 %v483, %v585
      %v618 = vadd.f32 %v486, %v586
      %v619 = vadd.f32 %v491, %v587
      %v620 = vadd.f32 %v494, %v588
      %v621 = vadd.f32 %v499, %v589
      %v622 = vadd.f32 %v502, %v590
      %v623 = vadd.f32 %v507, %v591
      %v624 = vadd.f32 %v510, %v592
      %v625 = vadd.f32 %v515, %v593
      %v626 = vadd.f32 %v518, %v594
      %v627 = vadd.f32 %v523, %v595
      %v628 = vadd.f32 %v526, %v596
      %v629 = vadd.f32 %v531, %v597
      %v630 = vadd.f32 %v534, %v598
      %v631 = vadd.f32 %v539, %v599
      %v632 = vadd.f32 %v542, %v600
      %v633 = vadd.f32 %v547, %v601
      %v634 = vadd.f32 %v550, %v602
      %v635 = vadd.f32 %v555, %v603
      %v636 = vadd.f32 %v558, %v604
      %v637 = vadd.f32 %v563, %v605
      %v638 = vadd.f32 %v566, %v606
      %v639 = vadd.f32 %v571, %v607
      %v640 = vadd.f32 %v574, %v608
      %v641 = vmax.f32 %v609, 0.0
      %v642 = vmax.f32 %v610, 0.0
      %v643 = vmax.f32 %v611, 0.0
      %v644 = vmax.f32 %v612, 0.0
      %v645 = vmax.f32 %v613, 0.0
      %v646 = vmax.f32 %v614, 0.0
      %v647 = vmax.f32 %v615, 0.0
      %v648 = vmax.f32 %v616, 0.0
      %v649 = vmax.f32 %v617, 0.0
      %v650 = vmax.f32 %v618, 0.0
      %v651 = vmax.f32 %v619, 0.0
      %v652 = vmax.f32 %v620, 0.0
      %v653 = vmax.f32 %v621, 0.0
      %v654 = vmax.f32 %v622, 0.0
      %v655 = vmax.f32 %v623, 0.0
      %v656 = vmax.f32 %v624, 0.0
      %v657 = vmax.f32 %v625, 0.0
      %v658 = vmax.f32 %v626, 0.0
      %v659 = vmax.f32 %v627, 0.0
      %v660 = vmax.f32 %v628, 0.0
      %v661 = vmax.f32 %v629, 0.0
      %v662 = vmax.f32 %v630, 0.0
      %v663 = vmax.f32 %v631, 0.0
      %v664 = vmax.f32 %v632, 0.0
      %v665 = vmax.f32 %v633, 0.0
      %v666 = vmax.f32 %v634, 0.0
      %v667 = vmax.f32 %v635, 0.0
      %v668 = vmax.f32 %v636, 0.0
      %v669 = vmax.f32 %v637, 0.0
      %v670 = vmax.f32 %v638, 0.0
      %v671 = vmax.f32 %v639, 0.0
      %v672 = vmax.f32 %v640, 0.0
      %vm673 = vcmask 31744
      %674 = vst.msk [vmem:[%s221] sm:$0xff] %vm673, %v641
      %675 = vst.msk [vmem:[%s221 + $0x8] sm:$0xff] %vm673, %v642
      %676 = vst.msk [vmem:[%s221 + $0x10] sm:$0xff] %vm673, %v643
      %677 = vst.msk [vmem:[%s221 + $0x18] sm:$0xff] %vm673, %v644
      %678 = vst.msk [vmem:[%s221 + $0x20] sm:$0xff] %vm673, %v645
      %679 = vst.msk [vmem:[%s221 + $0x28] sm:$0xff] %vm673, %v646
      %680 = vst.msk [vmem:[%s221 + $0x30] sm:$0xff] %vm673, %v647
      %681 = vst.msk [vmem:[%s221 + $0x38] sm:$0xff] %vm673, %v648
      %682 = vst.msk [vmem:[%s221 + $0x40] sm:$0xff] %vm673, %v649
      %683 = vst.msk [vmem:[%s221 + $0x48] sm:$0xff] %vm673, %v650
      %684 = vst.msk [vmem:[%s221 + $0x50] sm:$0xff] %vm673, %v651
      %685 = vst.msk [vmem:[%s221 + $0x58] sm:$0xff] %vm673, %v652
      %686 = vst.msk [vmem:[%s221 + $0x60] sm:$0xff] %vm673, %v653
      %687 = vst.msk [vmem:[%s221 + $0x68] sm:$0xff] %vm673, %v654
      %688 = vst.msk [vmem:[%s221 + $0x70] sm:$0xff] %vm673, %v655
      %689 = vst.msk [vmem:[%s221 + $0x78] sm:$0xff] %vm673, %v656
      %690 = vst.msk [vmem:[%s221 + $0x80] sm:$0xff] %vm673, %v657
      %691 = vst.msk [vmem:[%s221 + $0x88] sm:$0xff] %vm673, %v658
      %692 = vst.msk [vmem:[%s221 + $0x90] sm:$0xff] %vm673, %v659
      %693 = vst.msk [vmem:[%s221 + $0x98] sm:$0xff] %vm673, %v660
      %694 = vst.msk [vmem:[%s221 + $0xa0] sm:$0xff] %vm673, %v661
      %695 = vst.msk [vmem:[%s221 + $0xa8] sm:$0xff] %vm673, %v662
      %696 = vst.msk [vmem:[%s221 + $0xb0] sm:$0xff] %vm673, %v663
      %697 = vst.msk [vmem:[%s221 + $0xb8] sm:$0xff] %vm673, %v664
      %698 = vst.msk [vmem:[%s221 + $0xc0] sm:$0xff] %vm673, %v665
      %699 = vst.msk [vmem:[%s221 + $0xc8] sm:$0xff] %vm673, %v666
      %700 = vst.msk [vmem:[%s221 + $0xd0] sm:$0xff] %vm673, %v667
      %701 = vst.msk [vmem:[%s221 + $0xd8] sm:$0xff] %vm673, %v668
      %702 = vst.msk [vmem:[%s221 + $0xe0] sm:$0xff] %vm673, %v669
      %703 = vst.msk [vmem:[%s221 + $0xe8] sm:$0xff] %vm673, %v670
      %704 = vst.msk [vmem:[%s221 + $0xf0] sm:$0xff] %vm673, %v671
      %705 = vst.msk [vmem:[%s221 + $0xf8] sm:$0xff] %vm673, %v672
      %s706 = smul.u32 32, %s15
      %p707 = scmp.lt.s32.totalorder %s706, 63
      %s708 = scalar_select %p707, %s706, 63
      %s709 = smul.addr %s708, 8
      %s710 = scalar_lea.vmem %s4, %s709
      // Predicated region
      $region37: #{_lambda_.64} parent=35 // pred_check
        %p711 = pneg %p127
      $region38: #{_lambda_.64} parent=35 // pred_check_branch
        %713 = sbr.rel (%p711) target = $region40
      $region39: #{_lambda_.64} parent=35 // pred_region
        %s714 = smul.u32 32, %s15
      $region40: #{_lambda_.64} parent=35 // pred_fallthru
        _
    $region36: #{_lambda_.64} parent=5 // pred_fallthru
      _
    %p715 = scmp.le.s32.totalorder 2, %s10
    // Predicated region
    $region41: #{_lambda_.64} parent=5 // pred_check
      %p716 = pneg %p715
    $region42: #{_lambda_.64} parent=5 // pred_check_branch
      %718 = sbr.rel (%p716) target = $region44
    $region43: #{_lambda_.64} parent=5 // pred_region
      %s719 = ssub.s32 %s10, 2
      // Predicated region
      $region45: #{_lambda_.64} parent=43 // pred_check
        %p720 = pneg %p133
      $region46: #{_lambda_.64} parent=43 // pred_check_branch
        %722 = sbr.rel (%p720) target = $region48
      $region47: #{_lambda_.64} parent=43 // pred_region
        %s723 = smul.u32 32, %s16
        %p724 = scmp.lt.s32.totalorder %s723, 63
        %s725 = scalar_select %p724, %s723, 63
        %s726 = smul.addr %s725, 8
        %s727 = scalar_lea.vmem %s4, %s726
      $region48: #{_lambda_.64} parent=43 // pred_fallthru
        _
    $region44: #{_lambda_.64} parent=5 // pred_fallthru
      _
  $region6: #{_lambda_.64} parent=0 // loop_footer
    %s14 = sadd.s32 1, %s10
  $region7: #{_lambda_.64} parent=0 // loop_footer_branch
    %9 = sbr.rel target = $region3
  $region8: #{_lambda_.64} parent=0 // loop_exit
    _

// kernel: _lambda_.67
$region0: #{_lambda_.67}
  #allocation0 [shape = 'u32[]', space=smem, size = 0x4, offset = 0x4, fixed_abs, tag = 'smem constant byte address 0x4 - core index']
  #allocation1 [shape = 'u32[144,128]{1,0:T(1,128)}', space=vmem, size = 0x12000, scoped, tag = 'internal scratch']
  %s0 = inlined_call_operand.vmem [shape: bf16[128,36], index: 0, kind: input, shape index: {}]
  %s1 = inlined_call_operand.vmem [shape: bf16[36,8], index: 1, kind: input, shape index: {}]
  %s2 = inlined_call_operand.vmem [shape: f32[1,8], index: 2, kind: input, shape index: {}]
  %s3 = inlined_call_operand.vmem [shape: f32[128,8], index: 3, kind: output, shape index: {}]
  %s4 = sld [smem:[#allocation0]]
  $region45: #{_lambda_.67} parent=0
    _
  %s6 = ssub.s32 1, %s4
  %s7 = scalar_select 0, %s6, %s4
  loop: start=0, step=1, limit=4
  $region2: #{_lambda_.67} parent=0 // loop_pre_header
    _
  $region3: #{_lambda_.67} parent=0 // loop_header
    %s9 = sphi 0, %s13
    %p10 = scmp.ge.s32.totalorder %s9, 4
    %s19 = sphi 0, %s21
    %s22 = sphi 0, %s19
    %s23 = sphi 0, %s22
    %s39 = sphi 0, %s23
    %s43 = sphi 0, %s43
    %s45 = sphi 0, %s43
    %s46 = sphi 0, %s45
    %s60 = sphi 0, %s46
    %s64 = sphi 0, %s64
    %s66 = sphi 0, %s64
    %s67 = sphi 0, %s66
    %s81 = sphi 0, %s67
    %s87 = sphi 0, %s89
    %s90 = sphi 0, %s87
    %s91 = sphi 0, %s90
    %s107 = sphi 0, %s91
  $region4: #{_lambda_.67} parent=0 // loop_header_branch
    %12 = sbr.rel (%p10) target = $region8
  $region5: #{_lambda_.67} parent=0 // loop_body
    %s14 = ssub.s32 %s9, 1
    %s15 = ssub.s32 %s9, 2
    %s16 = sadd.s32 %s9, 1
    %s17 = ssub.s32 %s9, %s16
    %p18 = scmp.eq.s32.totalorder %s17, 0
    %s20 = sadd.s32 %s19, 1
    %s21 = scalar_select %p18, %s19, %s20
    %p24 = pneg %p18
    %p25 = scmp.eq.s32.totalorder %s9, 1
    %p26 = por %p24, %p25
    %p27 = scmp.ne.s32.totalorder %s19, %s22
    %p28 = scmp.eq.s32.totalorder %s9, 0
    %p29 = por %p27, %p28
    %p30 = scmp.ne.s32.totalorder %s19, %s22
    %p31 = scmp.eq.s32.totalorder %s14, 1
    %p32 = por %p30, %p31
    %p33 = scmp.ne.s32.totalorder %s22, %s23
    %p34 = scmp.eq.s32.totalorder %s14, 0
    %p35 = por %p33, %p34
    %p36 = scmp.ne.s32.totalorder %s22, %s23
    %p37 = scmp.eq.s32.totalorder %s15, 1
    %p38 = por %p36, %p37
    %p40 = scmp.ne.s32.totalorder %s23, %s39
    %p41 = scmp.eq.s32.totalorder %s15, 0
    %p42 = por %p40, %p41
    %s44 = sadd.s32 %s43, 1
    %p47 = scmp.eq.s32.totalorder %s9, 1
    %p48 = scmp.ne.s32.totalorder %s43, %s45
    %p49 = scmp.eq.s32.totalorder %s9, 0
    %p50 = por %p48, %p49
    %p51 = scmp.ne.s32.totalorder %s43, %s45
    %p52 = scmp.eq.s32.totalorder %s14, 1
    %p53 = por %p51, %p52
    %p54 = scmp.ne.s32.totalorder %s45, %s46
    %p55 = scmp.eq.s32.totalorder %s14, 0
    %p56 = por %p54, %p55
    %p57 = scmp.ne.s32.totalorder %s45, %s46
    %p58 = scmp.eq.s32.totalorder %s15, 1
    %p59 = por %p57, %p58
    %p61 = scmp.ne.s32.totalorder %s46, %s60
    %p62 = scmp.eq.s32.totalorder %s15, 0
    %p63 = por %p61, %p62
    %s65 = sadd.s32 %s64, 1
    %p68 = scmp.eq.s32.totalorder %s9, 1
    %p69 = scmp.ne.s32.totalorder %s64, %s66
    %p70 = scmp.eq.s32.totalorder %s9, 0
    %p71 = por %p69, %p70
    %p72 = scmp.ne.s32.totalorder %s64, %s66
    %p73 = scmp.eq.s32.totalorder %s14, 1
    %p74 = por %p72, %p73
    %p75 = scmp.ne.s32.totalorder %s66, %s67
    %p76 = scmp.eq.s32.totalorder %s14, 0
    %p77 = por %p75, %p76
    %p78 = scmp.ne.s32.totalorder %s66, %s67
    %p79 = scmp.eq.s32.totalorder %s15, 1
    %p80 = por %p78, %p79
    %p82 = scmp.ne.s32.totalorder %s67, %s81
    %p83 = scmp.eq.s32.totalorder %s15, 0
    %p84 = por %p82, %p83
    %s85 = ssub.s32 %s9, %s16
    %p86 = scmp.eq.s32.totalorder %s85, 0
    %s88 = sadd.s32 %s87, 1
    %s89 = scalar_select %p86, %s87, %s88
    %p92 = pneg %p86
    %p93 = scmp.eq.s32.totalorder %s9, 1
    %p94 = por %p92, %p93
    %p95 = scmp.ne.s32.totalorder %s87, %s90
    %p96 = scmp.eq.s32.totalorder %s9, 0
    %p97 = por %p95, %p96
    %p98 = scmp.ne.s32.totalorder %s87, %s90
    %p99 = scmp.eq.s32.totalorder %s14, 1
    %p100 = por %p98, %p99
    %p101 = scmp.ne.s32.totalorder %s90, %s91
    %p102 = scmp.eq.s32.totalorder %s14, 0
    %p103 = por %p101, %p102
    %p104 = scmp.ne.s32.totalorder %s90, %s91
    %p105 = scmp.eq.s32.totalorder %s15, 1
    %p106 = por %p104, %p105
    %p108 = scmp.ne.s32.totalorder %s91, %s107
    %p109 = scmp.eq.s32.totalorder %s15, 0
    %p110 = por %p108, %p109
    %p111 = scmp.le.s32.totalorder 1, %s9
    %p112 = scmp.lt.s32.totalorder %s9, 3
    %p113 = pnand %p111, %p112
    %p114 = pneg %p113
    // Predicated region
    $region9: #{_lambda_.67} parent=5 // pred_check
      _
    $region10: #{_lambda_.67} parent=5 // pred_check_branch
      %116 = sbr.rel (%p113) target = $region12
    $region11: #{_lambda_.67} parent=5 // pred_region
      %s117 = ssub.s32 %s9, 1
      // Predicated region
      $region13: #{_lambda_.67} parent=11 // pred_check
        %p118 = pneg %p56
      $region14: #{_lambda_.67} parent=11 // pred_check_branch
        %120 = sbr.rel (%p118) target = $region16
      $region15: #{_lambda_.67} parent=11 // pred_region
        _
      $region16: #{_lambda_.67} parent=11 // pred_fallthru
        _
      // Predicated region
      $region17: #{_lambda_.67} parent=11 // pred_check
        %p121 = pneg %p77
      $region18: #{_lambda_.67} parent=11 // pred_check_branch
        %123 = sbr.rel (%p121) target = $region20
      $region19: #{_lambda_.67} parent=11 // pred_region
        _
      $region20: #{_lambda_.67} parent=11 // pred_fallthru
        _
    $region12: #{_lambda_.67} parent=5 // pred_fallthru
      _
    %p124 = scmp.lt.s32.totalorder %s9, 2
    // Predicated region
    $region21: #{_lambda_.67} parent=5 // pred_check
      %p125 = pneg %p124
    $region22: #{_lambda_.67} parent=5 // pred_check_branch
      %127 = sbr.rel (%p125) target = $region24
    $region23: #{_lambda_.67} parent=5 // pred_region
      // Predicated region
      $region25: #{_lambda_.67} parent=23 // pred_check
        %p128 = pneg %p29
      $region26: #{_lambda_.67} parent=23 // pred_check_branch
        %130 = sbr.rel (%p128) target = $region28
      $region27: #{_lambda_.67} parent=23 // pred_region
        %s131 = smul.u32 8, %s9
        %p132 = scmp.lt.s32.totalorder %s131, 15
        %s133 = scalar_select %p132, %s131, 15
        %s134 = smul.addr %s133, 4
        %s135 = scalar_lea.vmem %s0, %s134
        %s136 = smul.u32 8, %s9
      $region28: #{_lambda_.67} parent=23 // pred_fallthru
        _
    $region24: #{_lambda_.67} parent=5 // pred_fallthru
      _
    %p137 = scmp.le.s32.totalorder 1, %s9
    %p138 = scmp.lt.s32.totalorder %s9, 3
    %p139 = pnand %p137, %p138
    %p140 = pneg %p139
    // Predicated region
    $region29: #{_lambda_.67} parent=5 // pred_check
      _
    $region30: #{_lambda_.67} parent=5 // pred_check_branch
      %142 = sbr.rel (%p139) target = $region32
    $region31: #{_lambda_.67} parent=5 // pred_region
      %s143 = ssub.s32 %s9, 1
      %s144 = smul.u32 8, %s14
      %p145 = scmp.lt.s32.totalorder %s144, 15
      %s146 = scalar_select %p145, %s144, 15
      %s147 = smul.addr %s146, 4
      %s148 = scalar_lea.vmem %s0, %s147
      %p149 = pneg %p35
      %p150 = pneg %p32
      %p151 = pneg %p56
      %p152 = pneg %p53
      %p153 = pneg %p77
      %p154 = pneg %p74
      %p155 = pneg %p103
      %p156 = pneg %p100
      %s157 = smul.u32 8, %s14
      %p158 = scmp.lt.s32.totalorder %s157, 15
      %s159 = scalar_select %p158, %s157, 15
      %s160 = smul.addr %s159, 8
      %s161 = scalar_lea.vmem %s3, %s160
      %s162 = smul.u32 8, %s14
      %p163 = scmp.lt.s32.totalorder %s162, 15
      %s164 = scalar_select %p163, %s162, 15
      %s165 = smul.addr %s164, 4
      %s166 = scalar_lea.vmem %s0, %s165
      %s167 = smul.u32 8, %s14
      %s168 = smul.u32 8, %s14
      %p169 = scmp.lt.s32.totalorder %s168, 15
      %s170 = scalar_select %p169, %s168, 15
      %s171 = smul.addr %s170, 8
      %s172 = scalar_lea.vmem %s3, %s171
      %s173 = smul.u32 8, %s14
      %v175 = vld [vmem:[%s166] sm:$0xf]
      %v176 = vld [vmem:[%s166 + $0x4] sm:$0xf]
      %v177 = vld [vmem:[%s166 + $0x8] sm:$0xf]
      %v178 = vld [vmem:[%s166 + $0xc] sm:$0xf]
      %v179 = vld [vmem:[%s166 + $0x10] sm:$0xf]
      %v180 = vld [vmem:[%s166 + $0x14] sm:$0xf]
      %v181 = vld [vmem:[%s166 + $0x18] sm:$0xf]
      %v182 = vld [vmem:[%s166 + $0x1c] sm:$0xf]
      %v183 = vld [vmem:[%s1] sm:$0xf]
      %v184 = vld [vmem:[%s1 + $0x4] sm:$0xf]
      %v185 = vld [vmem:[%s1 + $0x8] sm:$0xf]
      %v186 = vld [vmem:[%s1 + $0xc] sm:$0xf]
      %v187 = vld [vmem:[%s1 + $0x10] sm:$0x3]
      %v188 = vld [vmem:[%s2] sm:$0x1]
      %v190 = vlaneseq
      %v191 = vshrl.u32 %v190, 7
      %v192 = vsub.s32 0, %v191
      %v193 = vrot.slane %v188, %v192
      %v203 = vunpack.c.l.b16 %v175
      %v204 = vunpack.c.l.b16 %v176
      %v205 = vunpack.c.l.b16 %v177
      %v206 = vunpack.c.l.b16 %v178
      %v207 = vunpack.c.l.b16 %v179
      %v208 = vunpack.c.l.b16 %v180
      %v209 = vunpack.c.l.b16 %v181
      %v210 = vunpack.c.l.b16 %v182
      %v211 = vpack.c.b16 %v204, %v203
      %v212 = vpack.c.b16 %v206, %v205
      %v213 = vpack.c.b16 %v208, %v207
      %v214 = vpack.c.b16 %v210, %v209
      %v220 = vunpack.c.l.b16 %v183
      %v221 = vunpack.c.l.b16 %v184
      %v222 = vunpack.c.l.b16 %v185
      %v223 = vunpack.c.l.b16 %v186
      %v224 = vunpack.c.l.b16 %v187
      %v225 = vpack.c.b16 %v221, %v220
      %v226 = vpack.c.b16 %v223, %v222
      %v227 = vpack.c.b16 %v224, %v224
      %vm230 = vcmask 293888
      %v232 = vsel %vm230, %v211, 0
      %v235 = vsel %vm230, %v212, 0
      %v238 = vsel %vm230, %v213, 0
      %v241 = vsel %vm230, %v214, 0
      %vm243 = vcmask 1041408
      %v245 = vsel %vm243, %v227, 0
      %247 = vmatprep.subr.bf16.mxu0 0
      %248 = vmatpush1.bf16.msra.mxu0 %v225
      %249 = vmatprep.subr.bf16.mxu0 0
      %250 = vmatpush1.bf16.msra.mxu0 %v226
      %251 = vmatprep.subr.bf16.mxu0 0
      %252 = vmatpush1.bf16.msra.mxu0 %v245
      %253 = vmatprep.subr.bf16.mxu0 0
      %254 = vmatpush1.bf16.msra.mxu0 0
      %255 = vmatprep.subr.bf16.mxu0 0
      %256 = vmatpush1.bf16.msra.mxu0 0
      %257 = vmatprep.subr.bf16.mxu0 0
      %258 = vmatpush1.bf16.msra.mxu0 0
      %259 = vmatprep.subr.bf16.mxu0 0
      %260 = vmatpush1.bf16.msra.mxu0 0
      %261 = vmatprep.subr.bf16.mxu0 0
      %262 = vmatpush1.bf16.msra.mxu0 0
      %263 = vmatprep.subr.bf16.mxu0 0
      %264 = vmatpush1.bf16.msra.mxu0 0
      %265 = vmatprep.subr.bf16.mxu0 0
      %266 = vmatpush1.bf16.msra.mxu0 0
      %267 = vmatprep.subr.bf16.mxu0 0
      %268 = vmatpush1.bf16.msra.mxu0 0
      %269 = vmatprep.subr.bf16.mxu0 0
      %270 = vmatpush1.bf16.msra.mxu0 0
      %271 = vmatprep.subr.bf16.mxu0 0
      %272 = vmatpush1.bf16.msra.mxu0 0
      %273 = vmatprep.subr.bf16.mxu0 0
      %274 = vmatpush1.bf16.msra.mxu0 0
      %275 = vmatprep.subr.bf16.mxu0 0
      %276 = vmatpush1.bf16.msra.mxu0 0
      %277 = vmatprep.subr.bf16.mxu0 0
      %278 = vmatpush1.bf16.msra.mxu0 0
      %279 = vmatprep.mubr.bf16.mxu0 0
      %280 = vmatmul.mubr.bf16.gmra.mrb[0].mxu0 %v232
      %v281 = vpop.f32.mrb[0].mxu0
      %v282 = vadd.f32 %v193, %v281
      %v283 = vpop.f32.mrb[0].mxu0
      %v284 = vpop.f32.mrb[0].mxu0
      %v285 = vadd.f32 %v193, %v284
      %v286 = vpop.f32.mrb[0].mxu0
      %287 = vmatprep.mubr.bf16.mxu0 0
      %288 = vmatmul.mubr.bf16.gmra.mrb[0].mxu0 %v235
      %v289 = vpop.f32.mrb[0].mxu0
      %v290 = vadd.f32 %v193, %v289
      %v291 = vpop.f32.mrb[0].mxu0
      %v292 = vpop.f32.mrb[0].mxu0
      %v293 = vadd.f32 %v193, %v292
      %v294 = vpop.f32.mrb[0].mxu0
      %295 = vmatprep.mubr.bf16.mxu0 0
      %296 = vmatmul.mubr.bf16.gmra.mrb[0].mxu0 %v238
      %v297 = vpop.f32.mrb[0].mxu0
      %v298 = vadd.f32 %v193, %v297
      %v299 = vpop.f32.mrb[0].mxu0
      %v300 = vpop.f32.mrb[0].mxu0
      %v301 = vadd.f32 %v193, %v300
      %v302 = vpop.f32.mrb[0].mxu0
      %303 = vmatprep.mubr.bf16.mxu0 0
      %304 = vmatmul.mubr.bf16.gmra.mrb[0].mxu0 %v241
      %v305 = vpop.f32.mrb[0].mxu0
      %v306 = vadd.f32 %v193, %v305
      %v307 = vpop.f32.mrb[0].mxu0
      %v308 = vpop.f32.mrb[0].mxu0
      %v309 = vadd.f32 %v193, %v308
      %v310 = vpop.f32.mrb[0].mxu0
      %311 = vdwg.mxu0
      %vm312 = vcmask 64512
      %313 = vst.msk [vmem:[%s172] sm:$0xff] %vm312, %v282
      %314 = vst.msk [vmem:[%s172 + $0x8] sm:$0xff] %vm312, %v285
      %315 = vst.msk [vmem:[%s172 + $0x10] sm:$0xff] %vm312, %v290
      %316 = vst.msk [vmem:[%s172 + $0x18] sm:$0xff] %vm312, %v293
      %317 = vst.msk [vmem:[%s172 + $0x20] sm:$0xff] %vm312, %v298
      %318 = vst.msk [vmem:[%s172 + $0x28] sm:$0xff] %vm312, %v301
      %319 = vst.msk [vmem:[%s172 + $0x30] sm:$0xff] %vm312, %v306
      %320 = vst.msk [vmem:[%s172 + $0x38] sm:$0xff] %vm312, %v309
      %s321 = smul.u32 8, %s14
      %p322 = scmp.lt.s32.totalorder %s321, 15
      %s323 = scalar_select %p322, %s321, 15
      %s324 = smul.addr %s323, 8
      %s325 = scalar_lea.vmem %s3, %s324
      // Predicated region
      $region33: #{_lambda_.67} parent=31 // pred_check
        %p326 = pneg %p100
      $region34: #{_lambda_.67} parent=31 // pred_check_branch
        %328 = sbr.rel (%p326) target = $region36
      $region35: #{_lambda_.67} parent=31 // pred_region
        %s329 = smul.u32 8, %s14
      $region36: #{_lambda_.67} parent=31 // pred_fallthru
        _
    $region32: #{_lambda_.67} parent=5 // pred_fallthru
      _
    %p330 = scmp.le.s32.totalorder 2, %s9
    // Predicated region
    $region37: #{_lambda_.67} parent=5 // pred_check
      %p331 = pneg %p330
    $region38: #{_lambda_.67} parent=5 // pred_check_branch
      %333 = sbr.rel (%p331) target = $region40
    $region39: #{_lambda_.67} parent=5 // pred_region
      %s334 = ssub.s32 %s9, 2
      // Predicated region
      $region41: #{_lambda_.67} parent=39 // pred_check
        %p335 = pneg %p106
      $region42: #{_lambda_.67} parent=39 // pred_check_branch
        %337 = sbr.rel (%p335) target = $region44
      $region43: #{_lambda_.67} parent=39 // pred_region
        %s338 = smul.u32 8, %s15
        %p339 = scmp.lt.s32.totalorder %s338, 15
        %s340 = scalar_select %p339, %s338, 15
        %s341 = smul.addr %s340, 8
        %s342 = scalar_lea.vmem %s3, %s341
      $region44: #{_lambda_.67} parent=39 // pred_fallthru
        _
    $region40: #{_lambda_.67} parent=5 // pred_fallthru
      _
  $region6: #{_lambda_.67} parent=0 // loop_footer
    %s13 = sadd.s32 1, %s9
  $region7: #{_lambda_.67} parent=0 // loop_footer_branch
    %8 = sbr.rel target = $region3
  $region8: #{_lambda_.67} parent=0 // loop_exit
    _

// kernel: _lambda_.59
$region0: #{_lambda_.59}
  #allocation0 [shape = 'u32[]', space=smem, size = 0x4, offset = 0x4, fixed_abs, tag = 'smem constant byte address 0x4 - core index']
  #allocation1 [shape = 'u32[144,128]{1,0:T(1,128)}', space=vmem, size = 0x12000, scoped, tag = 'internal scratch']
  %s0 = inlined_call_operand.vmem [shape: bf16[128,72], index: 0, kind: input, shape index: {}]
  %s1 = inlined_call_operand.vmem [shape: bf16[72,8], index: 1, kind: input, shape index: {}]
  %s2 = inlined_call_operand.vmem [shape: f32[1,8], index: 2, kind: input, shape index: {}]
  %s3 = inlined_call_operand.vmem [shape: f32[128,8], index: 3, kind: output, shape index: {}]
  %s4 = sld [smem:[#allocation0]]
  $region45: #{_lambda_.59} parent=0
    _
  %s6 = ssub.s32 1, %s4
  %s7 = scalar_select 0, %s6, %s4
  loop: start=0, step=1, limit=4
  $region2: #{_lambda_.59} parent=0 // loop_pre_header
    _
  $region3: #{_lambda_.59} parent=0 // loop_header
    %s9 = sphi 0, %s13
    %p10 = scmp.ge.s32.totalorder %s9, 4
    %s19 = sphi 0, %s21
    %s22 = sphi 0, %s19
    %s23 = sphi 0, %s22
    %s39 = sphi 0, %s23
    %s43 = sphi 0, %s43
    %s45 = sphi 0, %s43
    %s46 = sphi 0, %s45
    %s60 = sphi 0, %s46
    %s64 = sphi 0, %s64
    %s66 = sphi 0, %s64
    %s67 = sphi 0, %s66
    %s81 = sphi 0, %s67
    %s87 = sphi 0, %s89
    %s90 = sphi 0, %s87
    %s91 = sphi 0, %s90
    %s107 = sphi 0, %s91
  $region4: #{_lambda_.59} parent=0 // loop_header_branch
    %12 = sbr.rel (%p10) target = $region8
  $region5: #{_lambda_.59} parent=0 // loop_body
    %s14 = ssub.s32 %s9, 1
    %s15 = ssub.s32 %s9, 2
    %s16 = sadd.s32 %s9, 1
    %s17 = ssub.s32 %s9, %s16
    %p18 = scmp.eq.s32.totalorder %s17, 0
    %s20 = sadd.s32 %s19, 1
    %s21 = scalar_select %p18, %s19, %s20
    %p24 = pneg %p18
    %p25 = scmp.eq.s32.totalorder %s9, 1
    %p26 = por %p24, %p25
    %p27 = scmp.ne.s32.totalorder %s19, %s22
    %p28 = scmp.eq.s32.totalorder %s9, 0
    %p29 = por %p27, %p28
    %p30 = scmp.ne.s32.totalorder %s19, %s22
    %p31 = scmp.eq.s32.totalorder %s14, 1
    %p32 = por %p30, %p31
    %p33 = scmp.ne.s32.totalorder %s22, %s23
    %p34 = scmp.eq.s32.totalorder %s14, 0
    %p35 = por %p33, %p34
    %p36 = scmp.ne.s32.totalorder %s22, %s23
    %p37 = scmp.eq.s32.totalorder %s15, 1
    %p38 = por %p36, %p37
    %p40 = scmp.ne.s32.totalorder %s23, %s39
    %p41 = scmp.eq.s32.totalorder %s15, 0
    %p42 = por %p40, %p41
    %s44 = sadd.s32 %s43, 1
    %p47 = scmp.eq.s32.totalorder %s9, 1
    %p48 = scmp.ne.s32.totalorder %s43, %s45
    %p49 = scmp.eq.s32.totalorder %s9, 0
    %p50 = por %p48, %p49
    %p51 = scmp.ne.s32.totalorder %s43, %s45
    %p52 = scmp.eq.s32.totalorder %s14, 1
    %p53 = por %p51, %p52
    %p54 = scmp.ne.s32.totalorder %s45, %s46
    %p55 = scmp.eq.s32.totalorder %s14, 0
    %p56 = por %p54, %p55
    %p57 = scmp.ne.s32.totalorder %s45, %s46
    %p58 = scmp.eq.s32.totalorder %s15, 1
    %p59 = por %p57, %p58
    %p61 = scmp.ne.s32.totalorder %s46, %s60
    %p62 = scmp.eq.s32.totalorder %s15, 0
    %p63 = por %p61, %p62
    %s65 = sadd.s32 %s64, 1
    %p68 = scmp.eq.s32.totalorder %s9, 1
    %p69 = scmp.ne.s32.totalorder %s64, %s66
    %p70 = scmp.eq.s32.totalorder %s9, 0
    %p71 = por %p69, %p70
    %p72 = scmp.ne.s32.totalorder %s64, %s66
    %p73 = scmp.eq.s32.totalorder %s14, 1
    %p74 = por %p72, %p73
    %p75 = scmp.ne.s32.totalorder %s66, %s67
    %p76 = scmp.eq.s32.totalorder %s14, 0
    %p77 = por %p75, %p76
    %p78 = scmp.ne.s32.totalorder %s66, %s67
    %p79 = scmp.eq.s32.totalorder %s15, 1
    %p80 = por %p78, %p79
    %p82 = scmp.ne.s32.totalorder %s67, %s81
    %p83 = scmp.eq.s32.totalorder %s15, 0
    %p84 = por %p82, %p83
    %s85 = ssub.s32 %s9, %s16
    %p86 = scmp.eq.s32.totalorder %s85, 0
    %s88 = sadd.s32 %s87, 1
    %s89 = scalar_select %p86, %s87, %s88
    %p92 = pneg %p86
    %p93 = scmp.eq.s32.totalorder %s9, 1
    %p94 = por %p92, %p93
    %p95 = scmp.ne.s32.totalorder %s87, %s90
    %p96 = scmp.eq.s32.totalorder %s9, 0
    %p97 = por %p95, %p96
    %p98 = scmp.ne.s32.totalorder %s87, %s90
    %p99 = scmp.eq.s32.totalorder %s14, 1
    %p100 = por %p98, %p99
    %p101 = scmp.ne.s32.totalorder %s90, %s91
    %p102 = scmp.eq.s32.totalorder %s14, 0
    %p103 = por %p101, %p102
    %p104 = scmp.ne.s32.totalorder %s90, %s91
    %p105 = scmp.eq.s32.totalorder %s15, 1
    %p106 = por %p104, %p105
    %p108 = scmp.ne.s32.totalorder %s91, %s107
    %p109 = scmp.eq.s32.totalorder %s15, 0
    %p110 = por %p108, %p109
    %p111 = scmp.le.s32.totalorder 1, %s9
    %p112 = scmp.lt.s32.totalorder %s9, 3
    %p113 = pnand %p111, %p112
    %p114 = pneg %p113
    // Predicated region
    $region9: #{_lambda_.59} parent=5 // pred_check
      _
    $region10: #{_lambda_.59} parent=5 // pred_check_branch
      %116 = sbr.rel (%p113) target = $region12
    $region11: #{_lambda_.59} parent=5 // pred_region
      %s117 = ssub.s32 %s9, 1
      // Predicated region
      $region13: #{_lambda_.59} parent=11 // pred_check
        %p118 = pneg %p56
      $region14: #{_lambda_.59} parent=11 // pred_check_branch
        %120 = sbr.rel (%p118) target = $region16
      $region15: #{_lambda_.59} parent=11 // pred_region
        _
      $region16: #{_lambda_.59} parent=11 // pred_fallthru
        _
      // Predicated region
      $region17: #{_lambda_.59} parent=11 // pred_check
        %p121 = pneg %p77
      $region18: #{_lambda_.59} parent=11 // pred_check_branch
        %123 = sbr.rel (%p121) target = $region20
      $region19: #{_lambda_.59} parent=11 // pred_region
        _
      $region20: #{_lambda_.59} parent=11 // pred_fallthru
        _
    $region12: #{_lambda_.59} parent=5 // pred_fallthru
      _
    %p124 = scmp.lt.s32.totalorder %s9, 2
    // Predicated region
    $region21: #{_lambda_.59} parent=5 // pred_check
      %p125 = pneg %p124
    $region22: #{_lambda_.59} parent=5 // pred_check_branch
      %127 = sbr.rel (%p125) target = $region24
    $region23: #{_lambda_.59} parent=5 // pred_region
      // Predicated region
      $region25: #{_lambda_.59} parent=23 // pred_check
        %p128 = pneg %p29
      $region26: #{_lambda_.59} parent=23 // pred_check_branch
        %130 = sbr.rel (%p128) target = $region28
      $region27: #{_lambda_.59} parent=23 // pred_region
        %s131 = smul.u32 8, %s9
        %p132 = scmp.lt.s32.totalorder %s131, 15
        %s133 = scalar_select %p132, %s131, 15
        %s134 = smul.addr %s133, 4
        %s135 = scalar_lea.vmem %s0, %s134
        %s136 = smul.u32 8, %s9
      $region28: #{_lambda_.59} parent=23 // pred_fallthru
        _
    $region24: #{_lambda_.59} parent=5 // pred_fallthru
      _
    %p137 = scmp.le.s32.totalorder 1, %s9
    %p138 = scmp.lt.s32.totalorder %s9, 3
    %p139 = pnand %p137, %p138
    %p140 = pneg %p139
    // Predicated region
    $region29: #{_lambda_.59} parent=5 // pred_check
      _
    $region30: #{_lambda_.59} parent=5 // pred_check_branch
      %142 = sbr.rel (%p139) target = $region32
    $region31: #{_lambda_.59} parent=5 // pred_region
      %s143 = ssub.s32 %s9, 1
      %s144 = smul.u32 8, %s14
      %p145 = scmp.lt.s32.totalorder %s144, 15
      %s146 = scalar_select %p145, %s144, 15
      %s147 = smul.addr %s146, 4
      %s148 = scalar_lea.vmem %s0, %s147
      %p149 = pneg %p35
      %p150 = pneg %p32
      %p151 = pneg %p56
      %p152 = pneg %p53
      %p153 = pneg %p77
      %p154 = pneg %p74
      %p155 = pneg %p103
      %p156 = pneg %p100
      %s157 = smul.u32 8, %s14
      %p158 = scmp.lt.s32.totalorder %s157, 15
      %s159 = scalar_select %p158, %s157, 15
      %s160 = smul.addr %s159, 8
      %s161 = scalar_lea.vmem %s3, %s160
      %s162 = smul.u32 8, %s14
      %p163 = scmp.lt.s32.totalorder %s162, 15
      %s164 = scalar_select %p163, %s162, 15
      %s165 = smul.addr %s164, 4
      %s166 = scalar_lea.vmem %s0, %s165
      %s167 = smul.u32 8, %s14
      %s168 = smul.u32 8, %s14
      %p169 = scmp.lt.s32.totalorder %s168, 15
      %s170 = scalar_select %p169, %s168, 15
      %s171 = smul.addr %s170, 8
      %s172 = scalar_lea.vmem %s3, %s171
      %s173 = smul.u32 8, %s14
      %v175 = vld [vmem:[%s166] sm:$0xf]
      %v176 = vld [vmem:[%s166 + $0x4] sm:$0xf]
      %v177 = vld [vmem:[%s166 + $0x8] sm:$0xf]
      %v178 = vld [vmem:[%s166 + $0xc] sm:$0xf]
      %v179 = vld [vmem:[%s166 + $0x10] sm:$0xf]
      %v180 = vld [vmem:[%s166 + $0x14] sm:$0xf]
      %v181 = vld [vmem:[%s166 + $0x18] sm:$0xf]
      %v182 = vld [vmem:[%s166 + $0x1c] sm:$0xf]
      %v183 = vld [vmem:[%s1] sm:$0xf]
      %v184 = vld [vmem:[%s1 + $0x4] sm:$0xf]
      %v185 = vld [vmem:[%s1 + $0x8] sm:$0xf]
      %v186 = vld [vmem:[%s1 + $0xc] sm:$0xf]
      %v187 = vld [vmem:[%s1 + $0x10] sm:$0xf]
      %v188 = vld [vmem:[%s1 + $0x14] sm:$0xf]
      %v189 = vld [vmem:[%s1 + $0x18] sm:$0xf]
      %v190 = vld [vmem:[%s1 + $0x1c] sm:$0xf]
      %v191 = vld [vmem:[%s1 + $0x20] sm:$0xf]
      %v192 = vld [vmem:[%s2] sm:$0x1]
      %v194 = vlaneseq
      %v195 = vshrl.u32 %v194, 7
      %v196 = vsub.s32 0, %v195
      %v197 = vrot.slane %v192, %v196
      %v207 = vunpack.c.l.b16 %v175
      %v208 = vunpack.c.l.b16 %v176
      %v209 = vunpack.c.l.b16 %v177
      %v210 = vunpack.c.l.b16 %v178
      %v211 = vunpack.c.l.b16 %v179
      %v212 = vunpack.c.l.b16 %v180
      %v213 = vunpack.c.l.b16 %v181
      %v214 = vunpack.c.l.b16 %v182
      %v215 = vpack.c.b16 %v208, %v207
      %v216 = vpack.c.b16 %v210, %v209
      %v217 = vpack.c.b16 %v212, %v211
      %v218 = vpack.c.b16 %v214, %v213
      %v228 = vunpack.c.l.b16 %v183
      %v229 = vunpack.c.l.b16 %v184
      %v230 = vunpack.c.l.b16 %v185
      %v231 = vunpack.c.l.b16 %v186
      %v232 = vunpack.c.l.b16 %v187
      %v233 = vunpack.c.l.b16 %v188
      %v234 = vunpack.c.l.b16 %v189
      %v235 = vunpack.c.l.b16 %v190
      %v236 = vunpack.c.l.b16 %v191
      %v237 = vpack.c.b16 %v229, %v228
      %v238 = vpack.c.b16 %v231, %v230
      %v239 = vpack.c.b16 %v233, %v232
      %v240 = vpack.c.b16 %v235, %v234
      %v241 = vpack.c.b16 %v236, %v236
      %vm246 = vcmask 588800
      %v248 = vsel %vm246, %v215, 0
      %v251 = vsel %vm246, %v216, 0
      %v254 = vsel %vm246, %v217, 0
      %v257 = vsel %vm246, %v218, 0
      %vm259 = vcmask 1043456
      %v261 = vsel %vm259, %v241, 0
      %263 = vmatprep.subr.bf16.mxu0 0
      %264 = vmatpush1.bf16.msra.mxu0 %v237
      %265 = vmatprep.subr.bf16.mxu0 0
      %266 = vmatpush1.bf16.msra.mxu0 %v238
      %267 = vmatprep.subr.bf16.mxu0 0
      %268 = vmatpush1.bf16.msra.mxu0 %v239
      %269 = vmatprep.subr.bf16.mxu0 0
      %270 = vmatpush1.bf16.msra.mxu0 %v240
      %271 = vmatprep.subr.bf16.mxu0 0
      %272 = vmatpush1.bf16.msra.mxu0 %v261
      %273 = vmatprep.subr.bf16.mxu0 0
      %274 = vmatpush1.bf16.msra.mxu0 0
      %275 = vmatprep.subr.bf16.mxu0 0
      %276 = vmatpush1.bf16.msra.mxu0 0
      %277 = vmatprep.subr.bf16.mxu0 0
      %278 = vmatpush1.bf16.msra.mxu0 0
      %279 = vmatprep.subr.bf16.mxu0 0
      %280 = vmatpush1.bf16.msra.mxu0 0
      %281 = vmatprep.subr.bf16.mxu0 0
      %282 = vmatpush1.bf16.msra.mxu0 0
      %283 = vmatprep.subr.bf16.mxu0 0
      %284 = vmatpush1.bf16.msra.mxu0 0
      %285 = vmatprep.subr.bf16.mxu0 0
      %286 = vmatpush1.bf16.msra.mxu0 0
      %287 = vmatprep.subr.bf16.mxu0 0
      %288 = vmatpush1.bf16.msra.mxu0 0
      %289 = vmatprep.subr.bf16.mxu0 0
      %290 = vmatpush1.bf16.msra.mxu0 0
      %291 = vmatprep.subr.bf16.mxu0 0
      %292 = vmatpush1.bf16.msra.mxu0 0
      %293 = vmatprep.subr.bf16.mxu0 0
      %294 = vmatpush1.bf16.msra.mxu0 0
      %295 = vmatprep.mubr.bf16.mxu0 0
      %296 = vmatmul.mubr.bf16.gmra.mrb[0].mxu0 %v248
      %v297 = vpop.f32.mrb[0].mxu0
      %v298 = vadd.f32 %v197, %v297
      %v299 = vpop.f32.mrb[0].mxu0
      %v300 = vpop.f32.mrb[0].mxu0
      %v301 = vadd.f32 %v197, %v300
      %v302 = vpop.f32.mrb[0].mxu0
      %303 = vmatprep.mubr.bf16.mxu0 0
      %304 = vmatmul.mubr.bf16.gmra.mrb[0].mxu0 %v251
      %v305 = vpop.f32.mrb[0].mxu0
      %v306 = vadd.f32 %v197, %v305
      %v307 = vpop.f32.mrb[0].mxu0
      %v308 = vpop.f32.mrb[0].mxu0
      %v309 = vadd.f32 %v197, %v308
      %v310 = vpop.f32.mrb[0].mxu0
      %311 = vmatprep.mubr.bf16.mxu0 0
      %312 = vmatmul.mubr.bf16.gmra.mrb[0].mxu0 %v254
      %v313 = vpop.f32.mrb[0].mxu0
      %v314 = vadd.f32 %v197, %v313
      %v315 = vpop.f32.mrb[0].mxu0
      %v316 = vpop.f32.mrb[0].mxu0
      %v317 = vadd.f32 %v197, %v316
      %v318 = vpop.f32.mrb[0].mxu0
      %319 = vmatprep.mubr.bf16.mxu0 0
      %320 = vmatmul.mubr.bf16.gmra.mrb[0].mxu0 %v257
      %v321 = vpop.f32.mrb[0].mxu0
      %v322 = vadd.f32 %v197, %v321
      %v323 = vpop.f32.mrb[0].mxu0
      %v324 = vpop.f32.mrb[0].mxu0
      %v325 = vadd.f32 %v197, %v324
      %v326 = vpop.f32.mrb[0].mxu0
      %327 = vdwg.mxu0
      %v328 = vmax.f32 %v298, 0.0
      %v329 = vmax.f32 %v301, 0.0
      %v330 = vmax.f32 %v306, 0.0
      %v331 = vmax.f32 %v309, 0.0
      %v332 = vmax.f32 %v314, 0.0
      %v333 = vmax.f32 %v317, 0.0
      %v334 = vmax.f32 %v322, 0.0
      %v335 = vmax.f32 %v325, 0.0
      %vm336 = vcmask 64512
      %337 = vst.msk [vmem:[%s172] sm:$0xff] %vm336, %v328
      %338 = vst.msk [vmem:[%s172 + $0x8] sm:$0xff] %vm336, %v329
      %339 = vst.msk [vmem:[%s172 + $0x10] sm:$0xff] %vm336, %v330
      %340 = vst.msk [vmem:[%s172 + $0x18] sm:$0xff] %vm336, %v331
      %341 = vst.msk [vmem:[%s172 + $0x20] sm:$0xff] %vm336, %v332
      %342 = vst.msk [vmem:[%s172 + $0x28] sm:$0xff] %vm336, %v333
      %343 = vst.msk [vmem:[%s172 + $0x30] sm:$0xff] %vm336, %v334
      %344 = vst.msk [vmem:[%s172 + $0x38] sm:$0xff] %vm336, %v335
      %s345 = smul.u32 8, %s14
      %p346 = scmp.lt.s32.totalorder %s345, 15
      %s347 = scalar_select %p346, %s345, 15
      %s348 = smul.addr %s347, 8
      %s349 = scalar_lea.vmem %s3, %s348
      // Predicated region
      $region33: #{_lambda_.59} parent=31 // pred_check
        %p350 = pneg %p100
      $region34: #{_lambda_.59} parent=31 // pred_check_branch
        %352 = sbr.rel (%p350) target = $region36
      $region35: #{_lambda_.59} parent=31 // pred_region
        %s353 = smul.u32 8, %s14
      $region36: #{_lambda_.59} parent=31 // pred_fallthru
        _
    $region32: #{_lambda_.59} parent=5 // pred_fallthru
      _
    %p354 = scmp.le.s32.totalorder 2, %s9
    // Predicated region
    $region37: #{_lambda_.59} parent=5 // pred_check
      %p355 = pneg %p354
    $region38: #{_lambda_.59} parent=5 // pred_check_branch
      %357 = sbr.rel (%p355) target = $region40
    $region39: #{_lambda_.59} parent=5 // pred_region
      %s358 = ssub.s32 %s9, 2
      // Predicated region
      $region41: #{_lambda_.59} parent=39 // pred_check
        %p359 = pneg %p106
      $region42: #{_lambda_.59} parent=39 // pred_check_branch
        %361 = sbr.rel (%p359) target = $region44
      $region43: #{_lambda_.59} parent=39 // pred_region
        %s362 = smul.u32 8, %s15
        %p363 = scmp.lt.s32.totalorder %s362, 15
        %s364 = scalar_select %p363, %s362, 15
        %s365 = smul.addr %s364, 8
        %s366 = scalar_lea.vmem %s3, %s365
      $region44: #{_lambda_.59} parent=39 // pred_fallthru
        _
    $region40: #{_lambda_.59} parent=5 // pred_fallthru
      _
  $region6: #{_lambda_.59} parent=0 // loop_footer
    %s13 = sadd.s32 1, %s9
  $region7: #{_lambda_.59} parent=0 // loop_footer_branch
    %8 = sbr.rel target = $region3
  $region8: #{_lambda_.59} parent=0 // loop_exit
    _

// kernel: _lambda_.60
$region0: #{_lambda_.60}
  #allocation0 [shape = 'u32[]', space=smem, size = 0x4, offset = 0x4, fixed_abs, tag = 'smem constant byte address 0x4 - core index']
  #allocation1 [shape = 'u32[144,128]{1,0:T(1,128)}', space=vmem, size = 0x12000, scoped, tag = 'internal scratch']
  %s0 = inlined_call_operand.vmem [shape: bf16[128,72], index: 0, kind: input, shape index: {}]
  %s1 = inlined_call_operand.vmem [shape: bf16[72,8], index: 1, kind: input, shape index: {}]
  %s2 = inlined_call_operand.vmem [shape: f32[1,8], index: 2, kind: input, shape index: {}]
  %s3 = inlined_call_operand.vmem [shape: f32[128,8], index: 3, kind: input, shape index: {}]
  %s4 = inlined_call_operand.vmem [shape: f32[128,8], index: 4, kind: output, shape index: {}]
  %s5 = sld [smem:[#allocation0]]
  $region49: #{_lambda_.60} parent=0
    _
  %s7 = ssub.s32 1, %s5
  %s8 = scalar_select 0, %s7, %s5
  loop: start=0, step=1, limit=4
  $region2: #{_lambda_.60} parent=0 // loop_pre_header
    _
  $region3: #{_lambda_.60} parent=0 // loop_header
    %s10 = sphi 0, %s14
    %p11 = scmp.ge.s32.totalorder %s10, 4
    %s20 = sphi 0, %s22
    %s23 = sphi 0, %s20
    %s24 = sphi 0, %s23
    %s40 = sphi 0, %s24
    %s44 = sphi 0, %s44
    %s46 = sphi 0, %s44
    %s47 = sphi 0, %s46
    %s61 = sphi 0, %s47
    %s65 = sphi 0, %s65
    %s67 = sphi 0, %s65
    %s68 = sphi 0, %s67
    %s82 = sphi 0, %s68
    %s88 = sphi 0, %s90
    %s91 = sphi 0, %s88
    %s92 = sphi 0, %s91
    %s108 = sphi 0, %s92
    %s114 = sphi 0, %s116
    %s117 = sphi 0, %s114
    %s118 = sphi 0, %s117
    %s134 = sphi 0, %s118
  $region4: #{_lambda_.60} parent=0 // loop_header_branch
    %13 = sbr.rel (%p11) target = $region8
  $region5: #{_lambda_.60} parent=0 // loop_body
    %s15 = ssub.s32 %s10, 1
    %s16 = ssub.s32 %s10, 2
    %s17 = sadd.s32 %s10, 1
    %s18 = ssub.s32 %s10, %s17
    %p19 = scmp.eq.s32.totalorder %s18, 0
    %s21 = sadd.s32 %s20, 1
    %s22 = scalar_select %p19, %s20, %s21
    %p25 = pneg %p19
    %p26 = scmp.eq.s32.totalorder %s10, 1
    %p27 = por %p25, %p26
    %p28 = scmp.ne.s32.totalorder %s20, %s23
    %p29 = scmp.eq.s32.totalorder %s10, 0
    %p30 = por %p28, %p29
    %p31 = scmp.ne.s32.totalorder %s20, %s23
    %p32 = scmp.eq.s32.totalorder %s15, 1
    %p33 = por %p31, %p32
    %p34 = scmp.ne.s32.totalorder %s23, %s24
    %p35 = scmp.eq.s32.totalorder %s15, 0
    %p36 = por %p34, %p35
    %p37 = scmp.ne.s32.totalorder %s23, %s24
    %p38 = scmp.eq.s32.totalorder %s16, 1
    %p39 = por %p37, %p38
    %p41 = scmp.ne.s32.totalorder %s24, %s40
    %p42 = scmp.eq.s32.totalorder %s16, 0
    %p43 = por %p41, %p42
    %s45 = sadd.s32 %s44, 1
    %p48 = scmp.eq.s32.totalorder %s10, 1
    %p49 = scmp.ne.s32.totalorder %s44, %s46
    %p50 = scmp.eq.s32.totalorder %s10, 0
    %p51 = por %p49, %p50
    %p52 = scmp.ne.s32.totalorder %s44, %s46
    %p53 = scmp.eq.s32.totalorder %s15, 1
    %p54 = por %p52, %p53
    %p55 = scmp.ne.s32.totalorder %s46, %s47
    %p56 = scmp.eq.s32.totalorder %s15, 0
    %p57 = por %p55, %p56
    %p58 = scmp.ne.s32.totalorder %s46, %s47
    %p59 = scmp.eq.s32.totalorder %s16, 1
    %p60 = por %p58, %p59
    %p62 = scmp.ne.s32.totalorder %s47, %s61
    %p63 = scmp.eq.s32.totalorder %s16, 0
    %p64 = por %p62, %p63
    %s66 = sadd.s32 %s65, 1
    %p69 = scmp.eq.s32.totalorder %s10, 1
    %p70 = scmp.ne.s32.totalorder %s65, %s67
    %p71 = scmp.eq.s32.totalorder %s10, 0
    %p72 = por %p70, %p71
    %p73 = scmp.ne.s32.totalorder %s65, %s67
    %p74 = scmp.eq.s32.totalorder %s15, 1
    %p75 = por %p73, %p74
    %p76 = scmp.ne.s32.totalorder %s67, %s68
    %p77 = scmp.eq.s32.totalorder %s15, 0
    %p78 = por %p76, %p77
    %p79 = scmp.ne.s32.totalorder %s67, %s68
    %p80 = scmp.eq.s32.totalorder %s16, 1
    %p81 = por %p79, %p80
    %p83 = scmp.ne.s32.totalorder %s68, %s82
    %p84 = scmp.eq.s32.totalorder %s16, 0
    %p85 = por %p83, %p84
    %s86 = ssub.s32 %s10, %s17
    %p87 = scmp.eq.s32.totalorder %s86, 0
    %s89 = sadd.s32 %s88, 1
    %s90 = scalar_select %p87, %s88, %s89
    %p93 = pneg %p87
    %p94 = scmp.eq.s32.totalorder %s10, 1
    %p95 = por %p93, %p94
    %p96 = scmp.ne.s32.totalorder %s88, %s91
    %p97 = scmp.eq.s32.totalorder %s10, 0
    %p98 = por %p96, %p97
    %p99 = scmp.ne.s32.totalorder %s88, %s91
    %p100 = scmp.eq.s32.totalorder %s15, 1
    %p101 = por %p99, %p100
    %p102 = scmp.ne.s32.totalorder %s91, %s92
    %p103 = scmp.eq.s32.totalorder %s15, 0
    %p104 = por %p102, %p103
    %p105 = scmp.ne.s32.totalorder %s91, %s92
    %p106 = scmp.eq.s32.totalorder %s16, 1
    %p107 = por %p105, %p106
    %p109 = scmp.ne.s32.totalorder %s92, %s108
    %p110 = scmp.eq.s32.totalorder %s16, 0
    %p111 = por %p109, %p110
    %s112 = ssub.s32 %s10, %s17
    %p113 = scmp.eq.s32.totalorder %s112, 0
    %s115 = sadd.s32 %s114, 1
    %s116 = scalar_select %p113, %s114, %s115
    %p119 = pneg %p113
    %p120 = scmp.eq.s32.totalorder %s10, 1
    %p121 = por %p119, %p120
    %p122 = scmp.ne.s32.totalorder %s114, %s117
    %p123 = scmp.eq.s32.totalorder %s10, 0
    %p124 = por %p122, %p123
    %p125 = scmp.ne.s32.totalorder %s114, %s117
    %p126 = scmp.eq.s32.totalorder %s15, 1
    %p127 = por %p125, %p126
    %p128 = scmp.ne.s32.totalorder %s117, %s118
    %p129 = scmp.eq.s32.totalorder %s15, 0
    %p130 = por %p128, %p129
    %p131 = scmp.ne.s32.totalorder %s117, %s118
    %p132 = scmp.eq.s32.totalorder %s16, 1
    %p133 = por %p131, %p132
    %p135 = scmp.ne.s32.totalorder %s118, %s134
    %p136 = scmp.eq.s32.totalorder %s16, 0
    %p137 = por %p135, %p136
    %p138 = scmp.le.s32.totalorder 1, %s10
    %p139 = scmp.lt.s32.totalorder %s10, 3
    %p140 = pnand %p138, %p139
    %p141 = pneg %p140
    // Predicated region
    $region9: #{_lambda_.60} parent=5 // pred_check
      _
    $region10: #{_lambda_.60} parent=5 // pred_check_branch
      %143 = sbr.rel (%p140) target = $region12
    $region11: #{_lambda_.60} parent=5 // pred_region
      %s144 = ssub.s32 %s10, 1
      // Predicated region
      $region13: #{_lambda_.60} parent=11 // pred_check
        %p145 = pneg %p57
      $region14: #{_lambda_.60} parent=11 // pred_check_branch
        %147 = sbr.rel (%p145) target = $region16
      $region15: #{_lambda_.60} parent=11 // pred_region
        _
      $region16: #{_lambda_.60} parent=11 // pred_fallthru
        _
      // Predicated region
      $region17: #{_lambda_.60} parent=11 // pred_check
        %p148 = pneg %p78
      $region18: #{_lambda_.60} parent=11 // pred_check_branch
        %150 = sbr.rel (%p148) target = $region20
      $region19: #{_lambda_.60} parent=11 // pred_region
        _
      $region20: #{_lambda_.60} parent=11 // pred_fallthru
        _
    $region12: #{_lambda_.60} parent=5 // pred_fallthru
      _
    %p151 = scmp.lt.s32.totalorder %s10, 2
    // Predicated region
    $region21: #{_lambda_.60} parent=5 // pred_check
      %p152 = pneg %p151
    $region22: #{_lambda_.60} parent=5 // pred_check_branch
      %154 = sbr.rel (%p152) target = $region24
    $region23: #{_lambda_.60} parent=5 // pred_region
      // Predicated region
      $region25: #{_lambda_.60} parent=23 // pred_check
        %p155 = pneg %p30
      $region26: #{_lambda_.60} parent=23 // pred_check_branch
        %157 = sbr.rel (%p155) target = $region28
      $region27: #{_lambda_.60} parent=23 // pred_region
        %s158 = smul.u32 8, %s10
        %p159 = scmp.lt.s32.totalorder %s158, 15
        %s160 = scalar_select %p159, %s158, 15
        %s161 = smul.addr %s160, 4
        %s162 = scalar_lea.vmem %s0, %s161
        %s163 = smul.u32 8, %s10
      $region28: #{_lambda_.60} parent=23 // pred_fallthru
        _
      // Predicated region
      $region29: #{_lambda_.60} parent=23 // pred_check
        %p164 = pneg %p98
      $region30: #{_lambda_.60} parent=23 // pred_check_branch
        %166 = sbr.rel (%p164) target = $region32
      $region31: #{_lambda_.60} parent=23 // pred_region
        %s167 = smul.u32 8, %s10
        %p168 = scmp.lt.s32.totalorder %s167, 15
        %s169 = scalar_select %p168, %s167, 15
        %s170 = smul.addr %s169, 8
        %s171 = scalar_lea.vmem %s3, %s170
        %s172 = smul.u32 8, %s10
      $region32: #{_lambda_.60} parent=23 // pred_fallthru
        _
    $region24: #{_lambda_.60} parent=5 // pred_fallthru
      _
    %p173 = scmp.le.s32.totalorder 1, %s10
    %p174 = scmp.lt.s32.totalorder %s10, 3
    %p175 = pnand %p173, %p174
    %p176 = pneg %p175
    // Predicated region
    $region33: #{_lambda_.60} parent=5 // pred_check
      _
    $region34: #{_lambda_.60} parent=5 // pred_check_branch
      %178 = sbr.rel (%p175) target = $region36
    $region35: #{_lambda_.60} parent=5 // pred_region
      %s179 = ssub.s32 %s10, 1
      %s180 = smul.u32 8, %s15
      %p181 = scmp.lt.s32.totalorder %s180, 15
      %s182 = scalar_select %p181, %s180, 15
      %s183 = smul.addr %s182, 4
      %s184 = scalar_lea.vmem %s0, %s183
      %p185 = pneg %p36
      %p186 = pneg %p33
      %p187 = pneg %p57
      %p188 = pneg %p54
      %p189 = pneg %p78
      %p190 = pneg %p75
      %s191 = smul.u32 8, %s15
      %p192 = scmp.lt.s32.totalorder %s191, 15
      %s193 = scalar_select %p192, %s191, 15
      %s194 = smul.addr %s193, 8
      %s195 = scalar_lea.vmem %s3, %s194
      %p196 = pneg %p104
      %p197 = pneg %p101
      %p198 = pneg %p130
      %p199 = pneg %p127
      %s200 = smul.u32 8, %s15
      %p201 = scmp.lt.s32.totalorder %s200, 15
      %s202 = scalar_select %p201, %s200, 15
      %s203 = smul.addr %s202, 8
      %s204 = scalar_lea.vmem %s4, %s203
      %s205 = smul.u32 8, %s15
      %p206 = scmp.lt.s32.totalorder %s205, 15
      %s207 = scalar_select %p206, %s205, 15
      %s208 = smul.addr %s207, 4
      %s209 = scalar_lea.vmem %s0, %s208
      %s210 = smul.u32 8, %s15
      %s211 = smul.u32 8, %s15
      %p212 = scmp.lt.s32.totalorder %s211, 15
      %s213 = scalar_select %p212, %s211, 15
      %s214 = smul.addr %s213, 8
      %s215 = scalar_lea.vmem %s3, %s214
      %s216 = smul.u32 8, %s15
      %s217 = smul.u32 8, %s15
      %p218 = scmp.lt.s32.totalorder %s217, 15
      %s219 = scalar_select %p218, %s217, 15
      %s220 = smul.addr %s219, 8
      %s221 = scalar_lea.vmem %s4, %s220
      %s222 = smul.u32 8, %s15
      %v224 = vld [vmem:[%s209] sm:$0xf]
      %v225 = vld [vmem:[%s209 + $0x4] sm:$0xf]
      %v226 = vld [vmem:[%s209 + $0x8] sm:$0xf]
      %v227 = vld [vmem:[%s209 + $0xc] sm:$0xf]
      %v228 = vld [vmem:[%s209 + $0x10] sm:$0xf]
      %v229 = vld [vmem:[%s209 + $0x14] sm:$0xf]
      %v230 = vld [vmem:[%s209 + $0x18] sm:$0xf]
      %v231 = vld [vmem:[%s209 + $0x1c] sm:$0xf]
      %v232 = vld [vmem:[%s1] sm:$0xf]
      %v233 = vld [vmem:[%s1 + $0x4] sm:$0xf]
      %v234 = vld [vmem:[%s1 + $0x8] sm:$0xf]
      %v235 = vld [vmem:[%s1 + $0xc] sm:$0xf]
      %v236 = vld [vmem:[%s1 + $0x10] sm:$0xf]
      %v237 = vld [vmem:[%s1 + $0x14] sm:$0xf]
      %v238 = vld [vmem:[%s1 + $0x18] sm:$0xf]
      %v239 = vld [vmem:[%s1 + $0x1c] sm:$0xf]
      %v240 = vld [vmem:[%s1 + $0x20] sm:$0xf]
      %v241 = vld [vmem:[%s2] sm:$0x1]
      %v243 = vlaneseq
      %v244 = vshrl.u32 %v243, 7
      %v245 = vsub.s32 0, %v244
      %v246 = vrot.slane %v241, %v245
      %v256 = vunpack.c.l.b16 %v224
      %v257 = vunpack.c.l.b16 %v225
      %v258 = vunpack.c.l.b16 %v226
      %v259 = vunpack.c.l.b16 %v227
      %v260 = vunpack.c.l.b16 %v228
      %v261 = vunpack.c.l.b16 %v229
      %v262 = vunpack.c.l.b16 %v230
      %v263 = vunpack.c.l.b16 %v231
      %v264 = vpack.c.b16 %v257, %v256
      %v265 = vpack.c.b16 %v259, %v258
      %v266 = vpack.c.b16 %v261, %v260
      %v267 = vpack.c.b16 %v263, %v262
      %v277 = vunpack.c.l.b16 %v232
      %v278 = vunpack.c.l.b16 %v233
      %v279 = vunpack.c.l.b16 %v234
      %v280 = vunpack.c.l.b16 %v235
      %v281 = vunpack.c.l.b16 %v236
      %v282 = vunpack.c.l.b16 %v237
      %v283 = vunpack.c.l.b16 %v238
      %v284 = vunpack.c.l.b16 %v239
      %v285 = vunpack.c.l.b16 %v240
      %v286 = vpack.c.b16 %v278, %v277
      %v287 = vpack.c.b16 %v280, %v279
      %v288 = vpack.c.b16 %v282, %v281
      %v289 = vpack.c.b16 %v284, %v283
      %v290 = vpack.c.b16 %v285, %v285
      %vm295 = vcmask 588800
      %v297 = vsel %vm295, %v264, 0
      %v300 = vsel %vm295, %v265, 0
      %v303 = vsel %vm295, %v266, 0
      %v306 = vsel %vm295, %v267, 0
      %vm308 = vcmask 1043456
      %v310 = vsel %vm308, %v290, 0
      %312 = vmatprep.subr.bf16.mxu0 0
      %313 = vmatpush1.bf16.msra.mxu0 %v286
      %314 = vmatprep.subr.bf16.mxu0 0
      %315 = vmatpush1.bf16.msra.mxu0 %v287
      %316 = vmatprep.subr.bf16.mxu0 0
      %317 = vmatpush1.bf16.msra.mxu0 %v288
      %318 = vmatprep.subr.bf16.mxu0 0
      %319 = vmatpush1.bf16.msra.mxu0 %v289
      %320 = vmatprep.subr.bf16.mxu0 0
      %321 = vmatpush1.bf16.msra.mxu0 %v310
      %322 = vmatprep.subr.bf16.mxu0 0
      %323 = vmatpush1.bf16.msra.mxu0 0
      %324 = vmatprep.subr.bf16.mxu0 0
      %325 = vmatpush1.bf16.msra.mxu0 0
      %326 = vmatprep.subr.bf16.mxu0 0
      %327 = vmatpush1.bf16.msra.mxu0 0
      %328 = vmatprep.subr.bf16.mxu0 0
      %329 = vmatpush1.bf16.msra.mxu0 0
      %330 = vmatprep.subr.bf16.mxu0 0
      %331 = vmatpush1.bf16.msra.mxu0 0
      %332 = vmatprep.subr.bf16.mxu0 0
      %333 = vmatpush1.bf16.msra.mxu0 0
      %334 = vmatprep.subr.bf16.mxu0 0
      %335 = vmatpush1.bf16.msra.mxu0 0
      %336 = vmatprep.subr.bf16.mxu0 0
      %337 = vmatpush1.bf16.msra.mxu0 0
      %338 = vmatprep.subr.bf16.mxu0 0
      %339 = vmatpush1.bf16.msra.mxu0 0
      %340 = vmatprep.subr.bf16.mxu0 0
      %341 = vmatpush1.bf16.msra.mxu0 0
      %342 = vmatprep.subr.bf16.mxu0 0
      %343 = vmatpush1.bf16.msra.mxu0 0
      %344 = vmatprep.mubr.bf16.mxu0 0
      %345 = vmatmul.mubr.bf16.gmra.mrb[0].mxu0 %v297
      %v346 = vpop.f32.mrb[0].mxu0
      %v347 = vadd.f32 %v246, %v346
      %v348 = vpop.f32.mrb[0].mxu0
      %v349 = vpop.f32.mrb[0].mxu0
      %v350 = vadd.f32 %v246, %v349
      %v351 = vpop.f32.mrb[0].mxu0
      %352 = vmatprep.mubr.bf16.mxu0 0
      %353 = vmatmul.mubr.bf16.gmra.mrb[0].mxu0 %v300
      %v354 = vpop.f32.mrb[0].mxu0
      %v355 = vadd.f32 %v246, %v354
      %v356 = vpop.f32.mrb[0].mxu0
      %v357 = vpop.f32.mrb[0].mxu0
      %v358 = vadd.f32 %v246, %v357
      %v359 = vpop.f32.mrb[0].mxu0
      %360 = vmatprep.mubr.bf16.mxu0 0
      %361 = vmatmul.mubr.bf16.gmra.mrb[0].mxu0 %v303
      %v362 = vpop.f32.mrb[0].mxu0
      %v363 = vadd.f32 %v246, %v362
      %v364 = vpop.f32.mrb[0].mxu0
      %v365 = vpop.f32.mrb[0].mxu0
      %v366 = vadd.f32 %v246, %v365
      %v367 = vpop.f32.mrb[0].mxu0
      %368 = vmatprep.mubr.bf16.mxu0 0
      %369 = vmatmul.mubr.bf16.gmra.mrb[0].mxu0 %v306
      %v370 = vpop.f32.mrb[0].mxu0
      %v371 = vadd.f32 %v246, %v370
      %v372 = vpop.f32.mrb[0].mxu0
      %v373 = vpop.f32.mrb[0].mxu0
      %v374 = vadd.f32 %v246, %v373
      %v375 = vpop.f32.mrb[0].mxu0
      %376 = vdwg.mxu0
      %v377 = vld [vmem:[%s215] sm:$0xff]
      %v378 = vld [vmem:[%s215 + $0x8] sm:$0xff]
      %v379 = vld [vmem:[%s215 + $0x10] sm:$0xff]
      %v380 = vld [vmem:[%s215 + $0x18] sm:$0xff]
      %v381 = vld [vmem:[%s215 + $0x20] sm:$0xff]
      %v382 = vld [vmem:[%s215 + $0x28] sm:$0xff]
      %v383 = vld [vmem:[%s215 + $0x30] sm:$0xff]
      %v384 = vld [vmem:[%s215 + $0x38] sm:$0xff]
      %v385 = vadd.f32 %v347, %v377
      %v386 = vadd.f32 %v350, %v378
      %v387 = vadd.f32 %v355, %v379
      %v388 = vadd.f32 %v358, %v380
      %v389 = vadd.f32 %v363, %v381
      %v390 = vadd.f32 %v366, %v382
      %v391 = vadd.f32 %v371, %v383
      %v392 = vadd.f32 %v374, %v384
      %v393 = vmax.f32 %v385, 0.0
      %v394 = vmax.f32 %v386, 0.0
      %v395 = vmax.f32 %v387, 0.0
      %v396 = vmax.f32 %v388, 0.0
      %v397 = vmax.f32 %v389, 0.0
      %v398 = vmax.f32 %v390, 0.0
      %v399 = vmax.f32 %v391, 0.0
      %v400 = vmax.f32 %v392, 0.0
      %vm401 = vcmask 64512
      %402 = vst.msk [vmem:[%s221] sm:$0xff] %vm401, %v393
      %403 = vst.msk [vmem:[%s221 + $0x8] sm:$0xff] %vm401, %v394
      %404 = vst.msk [vmem:[%s221 + $0x10] sm:$0xff] %vm401, %v395
      %405 = vst.msk [vmem:[%s221 + $0x18] sm:$0xff] %vm401, %v396
      %406 = vst.msk [vmem:[%s221 + $0x20] sm:$0xff] %vm401, %v397
      %407 = vst.msk [vmem:[%s221 + $0x28] sm:$0xff] %vm401, %v398
      %408 = vst.msk [vmem:[%s221 + $0x30] sm:$0xff] %vm401, %v399
      %409 = vst.msk [vmem:[%s221 + $0x38] sm:$0xff] %vm401, %v400
      %s410 = smul.u32 8, %s15
      %p411 = scmp.lt.s32.totalorder %s410, 15
      %s412 = scalar_select %p411, %s410, 15
      %s413 = smul.addr %s412, 8
      %s414 = scalar_lea.vmem %s4, %s413
      // Predicated region
      $region37: #{_lambda_.60} parent=35 // pred_check
        %p415 = pneg %p127
      $region38: #{_lambda_.60} parent=35 // pred_check_branch
        %417 = sbr.rel (%p415) target = $region40
      $region39: #{_lambda_.60} parent=35 // pred_region
        %s418 = smul.u32 8, %s15
      $region40: #{_lambda_.60} parent=35 // pred_fallthru
        _
    $region36: #{_lambda_.60} parent=5 // pred_fallthru
      _
    %p419 = scmp.le.s32.totalorder 2, %s10
    // Predicated region
    $region41: #{_lambda_.60} parent=5 // pred_check
      %p420 = pneg %p419
    $region42: #{_lambda_.60} parent=5 // pred_check_branch
      %422 = sbr.rel (%p420) target = $region44
    $region43: #{_lambda_.60} parent=5 // pred_region
      %s423 = ssub.s32 %s10, 2
      // Predicated region
      $region45: #{_lambda_.60} parent=43 // pred_check
        %p424 = pneg %p133
      $region46: #{_lambda_.60} parent=43 // pred_check_branch
        %426 = sbr.rel (%p424) target = $region48
      $region47: #{_lambda_.60} parent=43 // pred_region
        %s427 = smul.u32 8, %s16
        %p428 = scmp.lt.s32.totalorder %s427, 15
        %s429 = scalar_select %p428, %s427, 15
        %s430 = smul.addr %s429, 8
        %s431 = scalar_lea.vmem %s4, %s430
      $region48: #{_lambda_.60} parent=43 // pred_fallthru
        _
    $region44: #{_lambda_.60} parent=5 // pred_fallthru
      _
  $region6: #{_lambda_.60} parent=0 // loop_footer
    %s14 = sadd.s32 1, %s10
  $region7: #{_lambda_.60} parent=0 // loop_footer_branch
    %9 = sbr.rel target = $region3
  $region8: #{_lambda_.60} parent=0 // loop_exit
    _

// kernel: _lambda_.68
$region0: #{_lambda_.68}
  #allocation0 [shape = 'u32[]', space=smem, size = 0x4, offset = 0x4, fixed_abs, tag = 'smem constant byte address 0x4 - core index']
  #allocation1 [shape = 'u32[144,128]{1,0:T(1,128)}', space=vmem, size = 0x12000, scoped, tag = 'internal scratch']
  %s0 = inlined_call_operand.vmem [shape: bf16[128,8], index: 0, kind: input, shape index: {}]
  %s1 = inlined_call_operand.vmem [shape: bf16[8,4], index: 1, kind: input, shape index: {}]
  %s2 = inlined_call_operand.vmem [shape: f32[1,4], index: 2, kind: input, shape index: {}]
  %s3 = inlined_call_operand.vmem [shape: f32[128,4], index: 3, kind: output, shape index: {}]
  %s4 = sld [smem:[#allocation0]]
  $region45: #{_lambda_.68} parent=0
    _
  %s6 = ssub.s32 1, %s4
  %s7 = scalar_select 0, %s6, %s4
  loop: start=0, step=1, limit=4
  $region2: #{_lambda_.68} parent=0 // loop_pre_header
    _
  $region3: #{_lambda_.68} parent=0 // loop_header
    %s9 = sphi 0, %s13
    %p10 = scmp.ge.s32.totalorder %s9, 4
    %s19 = sphi 0, %s21
    %s22 = sphi 0, %s19
    %s23 = sphi 0, %s22
    %s39 = sphi 0, %s23
    %s43 = sphi 0, %s43
    %s45 = sphi 0, %s43
    %s46 = sphi 0, %s45
    %s60 = sphi 0, %s46
    %s64 = sphi 0, %s64
    %s66 = sphi 0, %s64
    %s67 = sphi 0, %s66
    %s81 = sphi 0, %s67
    %s87 = sphi 0, %s89
    %s90 = sphi 0, %s87
    %s91 = sphi 0, %s90
    %s107 = sphi 0, %s91
  $region4: #{_lambda_.68} parent=0 // loop_header_branch
    %12 = sbr.rel (%p10) target = $region8
  $region5: #{_lambda_.68} parent=0 // loop_body
    %s14 = ssub.s32 %s9, 1
    %s15 = ssub.s32 %s9, 2
    %s16 = sadd.s32 %s9, 1
    %s17 = ssub.s32 %s9, %s16
    %p18 = scmp.eq.s32.totalorder %s17, 0
    %s20 = sadd.s32 %s19, 1
    %s21 = scalar_select %p18, %s19, %s20
    %p24 = pneg %p18
    %p25 = scmp.eq.s32.totalorder %s9, 1
    %p26 = por %p24, %p25
    %p27 = scmp.ne.s32.totalorder %s19, %s22
    %p28 = scmp.eq.s32.totalorder %s9, 0
    %p29 = por %p27, %p28
    %p30 = scmp.ne.s32.totalorder %s19, %s22
    %p31 = scmp.eq.s32.totalorder %s14, 1
    %p32 = por %p30, %p31
    %p33 = scmp.ne.s32.totalorder %s22, %s23
    %p34 = scmp.eq.s32.totalorder %s14, 0
    %p35 = por %p33, %p34
    %p36 = scmp.ne.s32.totalorder %s22, %s23
    %p37 = scmp.eq.s32.totalorder %s15, 1
    %p38 = por %p36, %p37
    %p40 = scmp.ne.s32.totalorder %s23, %s39
    %p41 = scmp.eq.s32.totalorder %s15, 0
    %p42 = por %p40, %p41
    %s44 = sadd.s32 %s43, 1
    %p47 = scmp.eq.s32.totalorder %s9, 1
    %p48 = scmp.ne.s32.totalorder %s43, %s45
    %p49 = scmp.eq.s32.totalorder %s9, 0
    %p50 = por %p48, %p49
    %p51 = scmp.ne.s32.totalorder %s43, %s45
    %p52 = scmp.eq.s32.totalorder %s14, 1
    %p53 = por %p51, %p52
    %p54 = scmp.ne.s32.totalorder %s45, %s46
    %p55 = scmp.eq.s32.totalorder %s14, 0
    %p56 = por %p54, %p55
    %p57 = scmp.ne.s32.totalorder %s45, %s46
    %p58 = scmp.eq.s32.totalorder %s15, 1
    %p59 = por %p57, %p58
    %p61 = scmp.ne.s32.totalorder %s46, %s60
    %p62 = scmp.eq.s32.totalorder %s15, 0
    %p63 = por %p61, %p62
    %s65 = sadd.s32 %s64, 1
    %p68 = scmp.eq.s32.totalorder %s9, 1
    %p69 = scmp.ne.s32.totalorder %s64, %s66
    %p70 = scmp.eq.s32.totalorder %s9, 0
    %p71 = por %p69, %p70
    %p72 = scmp.ne.s32.totalorder %s64, %s66
    %p73 = scmp.eq.s32.totalorder %s14, 1
    %p74 = por %p72, %p73
    %p75 = scmp.ne.s32.totalorder %s66, %s67
    %p76 = scmp.eq.s32.totalorder %s14, 0
    %p77 = por %p75, %p76
    %p78 = scmp.ne.s32.totalorder %s66, %s67
    %p79 = scmp.eq.s32.totalorder %s15, 1
    %p80 = por %p78, %p79
    %p82 = scmp.ne.s32.totalorder %s67, %s81
    %p83 = scmp.eq.s32.totalorder %s15, 0
    %p84 = por %p82, %p83
    %s85 = ssub.s32 %s9, %s16
    %p86 = scmp.eq.s32.totalorder %s85, 0
    %s88 = sadd.s32 %s87, 1
    %s89 = scalar_select %p86, %s87, %s88
    %p92 = pneg %p86
    %p93 = scmp.eq.s32.totalorder %s9, 1
    %p94 = por %p92, %p93
    %p95 = scmp.ne.s32.totalorder %s87, %s90
    %p96 = scmp.eq.s32.totalorder %s9, 0
    %p97 = por %p95, %p96
    %p98 = scmp.ne.s32.totalorder %s87, %s90
    %p99 = scmp.eq.s32.totalorder %s14, 1
    %p100 = por %p98, %p99
    %p101 = scmp.ne.s32.totalorder %s90, %s91
    %p102 = scmp.eq.s32.totalorder %s14, 0
    %p103 = por %p101, %p102
    %p104 = scmp.ne.s32.totalorder %s90, %s91
    %p105 = scmp.eq.s32.totalorder %s15, 1
    %p106 = por %p104, %p105
    %p108 = scmp.ne.s32.totalorder %s91, %s107
    %p109 = scmp.eq.s32.totalorder %s15, 0
    %p110 = por %p108, %p109
    %p111 = scmp.le.s32.totalorder 1, %s9
    %p112 = scmp.lt.s32.totalorder %s9, 3
    %p113 = pnand %p111, %p112
    %p114 = pneg %p113
    // Predicated region
    $region9: #{_lambda_.68} parent=5 // pred_check
      _
    $region10: #{_lambda_.68} parent=5 // pred_check_branch
      %116 = sbr.rel (%p113) target = $region12
    $region11: #{_lambda_.68} parent=5 // pred_region
      %s117 = ssub.s32 %s9, 1
      // Predicated region
      $region13: #{_lambda_.68} parent=11 // pred_check
        %p118 = pneg %p56
      $region14: #{_lambda_.68} parent=11 // pred_check_branch
        %120 = sbr.rel (%p118) target = $region16
      $region15: #{_lambda_.68} parent=11 // pred_region
        _
      $region16: #{_lambda_.68} parent=11 // pred_fallthru
        _
      // Predicated region
      $region17: #{_lambda_.68} parent=11 // pred_check
        %p121 = pneg %p77
      $region18: #{_lambda_.68} parent=11 // pred_check_branch
        %123 = sbr.rel (%p121) target = $region20
      $region19: #{_lambda_.68} parent=11 // pred_region
        _
      $region20: #{_lambda_.68} parent=11 // pred_fallthru
        _
    $region12: #{_lambda_.68} parent=5 // pred_fallthru
      _
    %p124 = scmp.lt.s32.totalorder %s9, 2
    // Predicated region
    $region21: #{_lambda_.68} parent=5 // pred_check
      %p125 = pneg %p124
    $region22: #{_lambda_.68} parent=5 // pred_check_branch
      %127 = sbr.rel (%p125) target = $region24
    $region23: #{_lambda_.68} parent=5 // pred_region
      // Predicated region
      $region25: #{_lambda_.68} parent=23 // pred_check
        %p128 = pneg %p29
      $region26: #{_lambda_.68} parent=23 // pred_check_branch
        %130 = sbr.rel (%p128) target = $region28
      $region27: #{_lambda_.68} parent=23 // pred_region
        %s131 = smul.u32 8, %s9
        %p132 = scmp.lt.s32.totalorder %s131, 15
        %s133 = scalar_select %p132, %s131, 15
        %s134 = smul.addr %s133, 4
        %s135 = scalar_lea.vmem %s0, %s134
        %s136 = smul.u32 8, %s9
      $region28: #{_lambda_.68} parent=23 // pred_fallthru
        _
    $region24: #{_lambda_.68} parent=5 // pred_fallthru
      _
    %p137 = scmp.le.s32.totalorder 1, %s9
    %p138 = scmp.lt.s32.totalorder %s9, 3
    %p139 = pnand %p137, %p138
    %p140 = pneg %p139
    // Predicated region
    $region29: #{_lambda_.68} parent=5 // pred_check
      _
    $region30: #{_lambda_.68} parent=5 // pred_check_branch
      %142 = sbr.rel (%p139) target = $region32
    $region31: #{_lambda_.68} parent=5 // pred_region
      %s143 = ssub.s32 %s9, 1
      %s144 = smul.u32 8, %s14
      %p145 = scmp.lt.s32.totalorder %s144, 15
      %s146 = scalar_select %p145, %s144, 15
      %s147 = smul.addr %s146, 4
      %s148 = scalar_lea.vmem %s0, %s147
      %p149 = pneg %p35
      %p150 = pneg %p32
      %p151 = pneg %p56
      %p152 = pneg %p53
      %p153 = pneg %p77
      %p154 = pneg %p74
      %p155 = pneg %p103
      %p156 = pneg %p100
      %s157 = smul.u32 8, %s14
      %p158 = scmp.lt.s32.totalorder %s157, 15
      %s159 = scalar_select %p158, %s157, 15
      %s160 = smul.addr %s159, 8
      %s161 = scalar_lea.vmem %s3, %s160
      %s162 = smul.u32 8, %s14
      %p163 = scmp.lt.s32.totalorder %s162, 15
      %s164 = scalar_select %p163, %s162, 15
      %s165 = smul.addr %s164, 4
      %s166 = scalar_lea.vmem %s0, %s165
      %s167 = smul.u32 8, %s14
      %s168 = smul.u32 8, %s14
      %p169 = scmp.lt.s32.totalorder %s168, 15
      %s170 = scalar_select %p169, %s168, 15
      %s171 = smul.addr %s170, 8
      %s172 = scalar_lea.vmem %s3, %s171
      %s173 = smul.u32 8, %s14
      %v175 = vld [vmem:[%s166] sm:$0xf]
      %v176 = vld [vmem:[%s166 + $0x4] sm:$0xf]
      %v177 = vld [vmem:[%s166 + $0x8] sm:$0xf]
      %v178 = vld [vmem:[%s166 + $0xc] sm:$0xf]
      %v179 = vld [vmem:[%s166 + $0x10] sm:$0xf]
      %v180 = vld [vmem:[%s166 + $0x14] sm:$0xf]
      %v181 = vld [vmem:[%s166 + $0x18] sm:$0xf]
      %v182 = vld [vmem:[%s166 + $0x1c] sm:$0xf]
      %v183 = vld [vmem:[%s1] sm:$0xf]
      %v184 = vld [vmem:[%s2] sm:$0x1]
      %v186 = vlaneseq
      %v187 = vshrl.u32 %v186, 7
      %v188 = vsub.s32 0, %v187
      %v189 = vrot.slane %v184, %v188
      %v199 = vunpack.c.l.b16 %v175
      %v200 = vunpack.c.l.b16 %v176
      %v201 = vunpack.c.l.b16 %v177
      %v202 = vunpack.c.l.b16 %v178
      %v203 = vunpack.c.l.b16 %v179
      %v204 = vunpack.c.l.b16 %v180
      %v205 = vunpack.c.l.b16 %v181
      %v206 = vunpack.c.l.b16 %v182
      %v207 = vpack.c.b16 %v200, %v199
      %v208 = vpack.c.b16 %v202, %v201
      %v209 = vpack.c.b16 %v204, %v203
      %v210 = vpack.c.b16 %v206, %v205
      %vm211 = vcmask 64512
      %v213 = vsel %vm211, %v207, 0
      %v216 = vsel %vm211, %v208, 0
      %v219 = vsel %vm211, %v209, 0
      %v222 = vsel %vm211, %v210, 0
      %vm224 = vcmask 1043456
      %v226 = vsel %vm224, %v183, 0
      %228 = vmatprep.subr.bf16.mxu0 0
      %229 = vmatpush1.bf16.msra.mxu0 %v226
      %230 = vmatprep.subr.bf16.mxu0 0
      %231 = vmatpush1.bf16.msra.mxu0 0
      %232 = vmatprep.subr.bf16.mxu0 0
      %233 = vmatpush1.bf16.msra.mxu0 0
      %234 = vmatprep.subr.bf16.mxu0 0
      %235 = vmatpush1.bf16.msra.mxu0 0
      %236 = vmatprep.subr.bf16.mxu0 0
      %237 = vmatpush1.bf16.msra.mxu0 0
      %238 = vmatprep.subr.bf16.mxu0 0
      %239 = vmatpush1.bf16.msra.mxu0 0
      %240 = vmatprep.subr.bf16.mxu0 0
      %241 = vmatpush1.bf16.msra.mxu0 0
      %242 = vmatprep.subr.bf16.mxu0 0
      %243 = vmatpush1.bf16.msra.mxu0 0
      %244 = vmatprep.subr.bf16.mxu0 0
      %245 = vmatpush1.bf16.msra.mxu0 0
      %246 = vmatprep.subr.bf16.mxu0 0
      %247 = vmatpush1.bf16.msra.mxu0 0
      %248 = vmatprep.subr.bf16.mxu0 0
      %249 = vmatpush1.bf16.msra.mxu0 0
      %250 = vmatprep.subr.bf16.mxu0 0
      %251 = vmatpush1.bf16.msra.mxu0 0
      %252 = vmatprep.subr.bf16.mxu0 0
      %253 = vmatpush1.bf16.msra.mxu0 0
      %254 = vmatprep.subr.bf16.mxu0 0
      %255 = vmatpush1.bf16.msra.mxu0 0
      %256 = vmatprep.subr.bf16.mxu0 0
      %257 = vmatpush1.bf16.msra.mxu0 0
      %258 = vmatprep.subr.bf16.mxu0 0
      %259 = vmatpush1.bf16.msra.mxu0 0
      %260 = vmatprep.mubr.bf16.mxu0 0
      %261 = vmatmul.mubr.bf16.gmra.mrb[0].mxu0 %v213
      %v262 = vpop.f32.mrb[0].mxu0
      %v263 = vadd.f32 %v189, %v262
      %v264 = vpop.f32.mrb[0].mxu0
      %v265 = vpop.f32.mrb[0].mxu0
      %v266 = vadd.f32 %v189, %v265
      %v267 = vpop.f32.mrb[0].mxu0
      %268 = vmatprep.mubr.bf16.mxu0 0
      %269 = vmatmul.mubr.bf16.gmra.mrb[0].mxu0 %v216
      %v270 = vpop.f32.mrb[0].mxu0
      %v271 = vadd.f32 %v189, %v270
      %v272 = vpop.f32.mrb[0].mxu0
      %v273 = vpop.f32.mrb[0].mxu0
      %v274 = vadd.f32 %v189, %v273
      %v275 = vpop.f32.mrb[0].mxu0
      %276 = vmatprep.mubr.bf16.mxu0 0
      %277 = vmatmul.mubr.bf16.gmra.mrb[0].mxu0 %v219
      %v278 = vpop.f32.mrb[0].mxu0
      %v279 = vadd.f32 %v189, %v278
      %v280 = vpop.f32.mrb[0].mxu0
      %v281 = vpop.f32.mrb[0].mxu0
      %v282 = vadd.f32 %v189, %v281
      %v283 = vpop.f32.mrb[0].mxu0
      %284 = vmatprep.mubr.bf16.mxu0 0
      %285 = vmatmul.mubr.bf16.gmra.mrb[0].mxu0 %v222
      %v286 = vpop.f32.mrb[0].mxu0
      %v287 = vadd.f32 %v189, %v286
      %v288 = vpop.f32.mrb[0].mxu0
      %v289 = vpop.f32.mrb[0].mxu0
      %v290 = vadd.f32 %v189, %v289
      %v291 = vpop.f32.mrb[0].mxu0
      %292 = vdwg.mxu0
      %vm293 = vcmask 31744
      %294 = vst.msk [vmem:[%s172] sm:$0xff] %vm293, %v263
      %295 = vst.msk [vmem:[%s172 + $0x8] sm:$0xff] %vm293, %v266
      %296 = vst.msk [vmem:[%s172 + $0x10] sm:$0xff] %vm293, %v271
      %297 = vst.msk [vmem:[%s172 + $0x18] sm:$0xff] %vm293, %v274
      %298 = vst.msk [vmem:[%s172 + $0x20] sm:$0xff] %vm293, %v279
      %299 = vst.msk [vmem:[%s172 + $0x28] sm:$0xff] %vm293, %v282
      %300 = vst.msk [vmem:[%s172 + $0x30] sm:$0xff] %vm293, %v287
      %301 = vst.msk [vmem:[%s172 + $0x38] sm:$0xff] %vm293, %v290
      %s302 = smul.u32 8, %s14
      %p303 = scmp.lt.s32.totalorder %s302, 15
      %s304 = scalar_select %p303, %s302, 15
      %s305 = smul.addr %s304, 8
      %s306 = scalar_lea.vmem %s3, %s305
      // Predicated region
      $region33: #{_lambda_.68} parent=31 // pred_check
        %p307 = pneg %p100
      $region34: #{_lambda_.68} parent=31 // pred_check_branch
        %309 = sbr.rel (%p307) target = $region36
      $region35: #{_lambda_.68} parent=31 // pred_region
        %s310 = smul.u32 8, %s14
      $region36: #{_lambda_.68} parent=31 // pred_fallthru
        _
    $region32: #{_lambda_.68} parent=5 // pred_fallthru
      _
    %p311 = scmp.le.s32.totalorder 2, %s9
    // Predicated region
    $region37: #{_lambda_.68} parent=5 // pred_check
      %p312 = pneg %p311
    $region38: #{_lambda_.68} parent=5 // pred_check_branch
      %314 = sbr.rel (%p312) target = $region40
    $region39: #{_lambda_.68} parent=5 // pred_region
      %s315 = ssub.s32 %s9, 2
      // Predicated region
      $region41: #{_lambda_.68} parent=39 // pred_check
        %p316 = pneg %p106
      $region42: #{_lambda_.68} parent=39 // pred_check_branch
        %318 = sbr.rel (%p316) target = $region44
      $region43: #{_lambda_.68} parent=39 // pred_region
        %s319 = smul.u32 8, %s15
        %p320 = scmp.lt.s32.totalorder %s319, 15
        %s321 = scalar_select %p320, %s319, 15
        %s322 = smul.addr %s321, 8
        %s323 = scalar_lea.vmem %s3, %s322
      $region44: #{_lambda_.68} parent=39 // pred_fallthru
        _
    $region40: #{_lambda_.68} parent=5 // pred_fallthru
      _
  $region6: #{_lambda_.68} parent=0 // loop_footer
    %s13 = sadd.s32 1, %s9
  $region7: #{_lambda_.68} parent=0 // loop_footer_branch
    %8 = sbr.rel target = $region3
  $region8: #{_lambda_.68} parent=0 // loop_exit
    _

// kernel: _lambda_.102
$region0: #{_lambda_.102}
  #allocation0 [shape = 'u32[]', space=smem, size = 0x4, offset = 0x4, fixed_abs, tag = 'smem constant byte address 0x4 - core index']
  #allocation1 [shape = 'u32[144,128]{1,0:T(1,128)}', space=vmem, size = 0x12000, scoped, tag = 'internal scratch']
  %s0 = inlined_call_operand.vmem [shape: bf16[128,8], index: 0, kind: input, shape index: {}]
  %s1 = inlined_call_operand.vmem [shape: bf16[8,16], index: 1, kind: input, shape index: {}]
  %s2 = inlined_call_operand.vmem [shape: f32[1,16], index: 2, kind: input, shape index: {}]
  %s3 = inlined_call_operand.vmem [shape: f32[128,16], index: 3, kind: input, shape index: {}]
  %s4 = inlined_call_operand.vmem [shape: f32[128,16], index: 4, kind: output, shape index: {}]
  %s5 = sld [smem:[#allocation0]]
  $region49: #{_lambda_.102} parent=0
    _
  %s7 = ssub.s32 1, %s5
  %s8 = scalar_select 0, %s7, %s5
  loop: start=0, step=1, limit=4
  $region2: #{_lambda_.102} parent=0 // loop_pre_header
    _
  $region3: #{_lambda_.102} parent=0 // loop_header
    %s10 = sphi 0, %s14
    %p11 = scmp.ge.s32.totalorder %s10, 4
    %s20 = sphi 0, %s22
    %s23 = sphi 0, %s20
    %s24 = sphi 0, %s23
    %s40 = sphi 0, %s24
    %s44 = sphi 0, %s44
    %s46 = sphi 0, %s44
    %s47 = sphi 0, %s46
    %s61 = sphi 0, %s47
    %s65 = sphi 0, %s65
    %s67 = sphi 0, %s65
    %s68 = sphi 0, %s67
    %s82 = sphi 0, %s68
    %s88 = sphi 0, %s90
    %s91 = sphi 0, %s88
    %s92 = sphi 0, %s91
    %s108 = sphi 0, %s92
    %s114 = sphi 0, %s116
    %s117 = sphi 0, %s114
    %s118 = sphi 0, %s117
    %s134 = sphi 0, %s118
  $region4: #{_lambda_.102} parent=0 // loop_header_branch
    %13 = sbr.rel (%p11) target = $region8
  $region5: #{_lambda_.102} parent=0 // loop_body
    %s15 = ssub.s32 %s10, 1
    %s16 = ssub.s32 %s10, 2
    %s17 = sadd.s32 %s10, 1
    %s18 = ssub.s32 %s10, %s17
    %p19 = scmp.eq.s32.totalorder %s18, 0
    %s21 = sadd.s32 %s20, 1
    %s22 = scalar_select %p19, %s20, %s21
    %p25 = pneg %p19
    %p26 = scmp.eq.s32.totalorder %s10, 1
    %p27 = por %p25, %p26
    %p28 = scmp.ne.s32.totalorder %s20, %s23
    %p29 = scmp.eq.s32.totalorder %s10, 0
    %p30 = por %p28, %p29
    %p31 = scmp.ne.s32.totalorder %s20, %s23
    %p32 = scmp.eq.s32.totalorder %s15, 1
    %p33 = por %p31, %p32
    %p34 = scmp.ne.s32.totalorder %s23, %s24
    %p35 = scmp.eq.s32.totalorder %s15, 0
    %p36 = por %p34, %p35
    %p37 = scmp.ne.s32.totalorder %s23, %s24
    %p38 = scmp.eq.s32.totalorder %s16, 1
    %p39 = por %p37, %p38
    %p41 = scmp.ne.s32.totalorder %s24, %s40
    %p42 = scmp.eq.s32.totalorder %s16, 0
    %p43 = por %p41, %p42
    %s45 = sadd.s32 %s44, 1
    %p48 = scmp.eq.s32.totalorder %s10, 1
    %p49 = scmp.ne.s32.totalorder %s44, %s46
    %p50 = scmp.eq.s32.totalorder %s10, 0
    %p51 = por %p49, %p50
    %p52 = scmp.ne.s32.totalorder %s44, %s46
    %p53 = scmp.eq.s32.totalorder %s15, 1
    %p54 = por %p52, %p53
    %p55 = scmp.ne.s32.totalorder %s46, %s47
    %p56 = scmp.eq.s32.totalorder %s15, 0
    %p57 = por %p55, %p56
    %p58 = scmp.ne.s32.totalorder %s46, %s47
    %p59 = scmp.eq.s32.totalorder %s16, 1
    %p60 = por %p58, %p59
    %p62 = scmp.ne.s32.totalorder %s47, %s61
    %p63 = scmp.eq.s32.totalorder %s16, 0
    %p64 = por %p62, %p63
    %s66 = sadd.s32 %s65, 1
    %p69 = scmp.eq.s32.totalorder %s10, 1
    %p70 = scmp.ne.s32.totalorder %s65, %s67
    %p71 = scmp.eq.s32.totalorder %s10, 0
    %p72 = por %p70, %p71
    %p73 = scmp.ne.s32.totalorder %s65, %s67
    %p74 = scmp.eq.s32.totalorder %s15, 1
    %p75 = por %p73, %p74
    %p76 = scmp.ne.s32.totalorder %s67, %s68
    %p77 = scmp.eq.s32.totalorder %s15, 0
    %p78 = por %p76, %p77
    %p79 = scmp.ne.s32.totalorder %s67, %s68
    %p80 = scmp.eq.s32.totalorder %s16, 1
    %p81 = por %p79, %p80
    %p83 = scmp.ne.s32.totalorder %s68, %s82
    %p84 = scmp.eq.s32.totalorder %s16, 0
    %p85 = por %p83, %p84
    %s86 = ssub.s32 %s10, %s17
    %p87 = scmp.eq.s32.totalorder %s86, 0
    %s89 = sadd.s32 %s88, 1
    %s90 = scalar_select %p87, %s88, %s89
    %p93 = pneg %p87
    %p94 = scmp.eq.s32.totalorder %s10, 1
    %p95 = por %p93, %p94
    %p96 = scmp.ne.s32.totalorder %s88, %s91
    %p97 = scmp.eq.s32.totalorder %s10, 0
    %p98 = por %p96, %p97
    %p99 = scmp.ne.s32.totalorder %s88, %s91
    %p100 = scmp.eq.s32.totalorder %s15, 1
    %p101 = por %p99, %p100
    %p102 = scmp.ne.s32.totalorder %s91, %s92
    %p103 = scmp.eq.s32.totalorder %s15, 0
    %p104 = por %p102, %p103
    %p105 = scmp.ne.s32.totalorder %s91, %s92
    %p106 = scmp.eq.s32.totalorder %s16, 1
    %p107 = por %p105, %p106
    %p109 = scmp.ne.s32.totalorder %s92, %s108
    %p110 = scmp.eq.s32.totalorder %s16, 0
    %p111 = por %p109, %p110
    %s112 = ssub.s32 %s10, %s17
    %p113 = scmp.eq.s32.totalorder %s112, 0
    %s115 = sadd.s32 %s114, 1
    %s116 = scalar_select %p113, %s114, %s115
    %p119 = pneg %p113
    %p120 = scmp.eq.s32.totalorder %s10, 1
    %p121 = por %p119, %p120
    %p122 = scmp.ne.s32.totalorder %s114, %s117
    %p123 = scmp.eq.s32.totalorder %s10, 0
    %p124 = por %p122, %p123
    %p125 = scmp.ne.s32.totalorder %s114, %s117
    %p126 = scmp.eq.s32.totalorder %s15, 1
    %p127 = por %p125, %p126
    %p128 = scmp.ne.s32.totalorder %s117, %s118
    %p129 = scmp.eq.s32.totalorder %s15, 0
    %p130 = por %p128, %p129
    %p131 = scmp.ne.s32.totalorder %s117, %s118
    %p132 = scmp.eq.s32.totalorder %s16, 1
    %p133 = por %p131, %p132
    %p135 = scmp.ne.s32.totalorder %s118, %s134
    %p136 = scmp.eq.s32.totalorder %s16, 0
    %p137 = por %p135, %p136
    %p138 = scmp.le.s32.totalorder 1, %s10
    %p139 = scmp.lt.s32.totalorder %s10, 3
    %p140 = pnand %p138, %p139
    %p141 = pneg %p140
    // Predicated region
    $region9: #{_lambda_.102} parent=5 // pred_check
      _
    $region10: #{_lambda_.102} parent=5 // pred_check_branch
      %143 = sbr.rel (%p140) target = $region12
    $region11: #{_lambda_.102} parent=5 // pred_region
      %s144 = ssub.s32 %s10, 1
      // Predicated region
      $region13: #{_lambda_.102} parent=11 // pred_check
        %p145 = pneg %p57
      $region14: #{_lambda_.102} parent=11 // pred_check_branch
        %147 = sbr.rel (%p145) target = $region16
      $region15: #{_lambda_.102} parent=11 // pred_region
        _
      $region16: #{_lambda_.102} parent=11 // pred_fallthru
        _
      // Predicated region
      $region17: #{_lambda_.102} parent=11 // pred_check
        %p148 = pneg %p78
      $region18: #{_lambda_.102} parent=11 // pred_check_branch
        %150 = sbr.rel (%p148) target = $region20
      $region19: #{_lambda_.102} parent=11 // pred_region
        _
      $region20: #{_lambda_.102} parent=11 // pred_fallthru
        _
    $region12: #{_lambda_.102} parent=5 // pred_fallthru
      _
    %p151 = scmp.lt.s32.totalorder %s10, 2
    // Predicated region
    $region21: #{_lambda_.102} parent=5 // pred_check
      %p152 = pneg %p151
    $region22: #{_lambda_.102} parent=5 // pred_check_branch
      %154 = sbr.rel (%p152) target = $region24
    $region23: #{_lambda_.102} parent=5 // pred_region
      // Predicated region
      $region25: #{_lambda_.102} parent=23 // pred_check
        %p155 = pneg %p30
      $region26: #{_lambda_.102} parent=23 // pred_check_branch
        %157 = sbr.rel (%p155) target = $region28
      $region27: #{_lambda_.102} parent=23 // pred_region
        %s158 = smul.u32 8, %s10
        %p159 = scmp.lt.s32.totalorder %s158, 15
        %s160 = scalar_select %p159, %s158, 15
        %s161 = smul.addr %s160, 4
        %s162 = scalar_lea.vmem %s0, %s161
        %s163 = smul.u32 8, %s10
      $region28: #{_lambda_.102} parent=23 // pred_fallthru
        _
      // Predicated region
      $region29: #{_lambda_.102} parent=23 // pred_check
        %p164 = pneg %p98
      $region30: #{_lambda_.102} parent=23 // pred_check_branch
        %166 = sbr.rel (%p164) target = $region32
      $region31: #{_lambda_.102} parent=23 // pred_region
        %s167 = smul.u32 8, %s10
        %p168 = scmp.lt.s32.totalorder %s167, 15
        %s169 = scalar_select %p168, %s167, 15
        %s170 = smul.addr %s169, 8
        %s171 = scalar_lea.vmem %s3, %s170
        %s172 = smul.u32 8, %s10
      $region32: #{_lambda_.102} parent=23 // pred_fallthru
        _
    $region24: #{_lambda_.102} parent=5 // pred_fallthru
      _
    %p173 = scmp.le.s32.totalorder 1, %s10
    %p174 = scmp.lt.s32.totalorder %s10, 3
    %p175 = pnand %p173, %p174
    %p176 = pneg %p175
    // Predicated region
    $region33: #{_lambda_.102} parent=5 // pred_check
      _
    $region34: #{_lambda_.102} parent=5 // pred_check_branch
      %178 = sbr.rel (%p175) target = $region36
    $region35: #{_lambda_.102} parent=5 // pred_region
      %s179 = ssub.s32 %s10, 1
      %s180 = smul.u32 8, %s15
      %p181 = scmp.lt.s32.totalorder %s180, 15
      %s182 = scalar_select %p181, %s180, 15
      %s183 = smul.addr %s182, 4
      %s184 = scalar_lea.vmem %s0, %s183
      %p185 = pneg %p36
      %p186 = pneg %p33
      %p187 = pneg %p57
      %p188 = pneg %p54
      %p189 = pneg %p78
      %p190 = pneg %p75
      %s191 = smul.u32 8, %s15
      %p192 = scmp.lt.s32.totalorder %s191, 15
      %s193 = scalar_select %p192, %s191, 15
      %s194 = smul.addr %s193, 8
      %s195 = scalar_lea.vmem %s3, %s194
      %p196 = pneg %p104
      %p197 = pneg %p101
      %p198 = pneg %p130
      %p199 = pneg %p127
      %s200 = smul.u32 8, %s15
      %p201 = scmp.lt.s32.totalorder %s200, 15
      %s202 = scalar_select %p201, %s200, 15
      %s203 = smul.addr %s202, 8
      %s204 = scalar_lea.vmem %s4, %s203
      %s205 = smul.u32 8, %s15
      %p206 = scmp.lt.s32.totalorder %s205, 15
      %s207 = scalar_select %p206, %s205, 15
      %s208 = smul.addr %s207, 4
      %s209 = scalar_lea.vmem %s0, %s208
      %s210 = smul.u32 8, %s15
      %s211 = smul.u32 8, %s15
      %p212 = scmp.lt.s32.totalorder %s211, 15
      %s213 = scalar_select %p212, %s211, 15
      %s214 = smul.addr %s213, 8
      %s215 = scalar_lea.vmem %s3, %s214
      %s216 = smul.u32 8, %s15
      %s217 = smul.u32 8, %s15
      %p218 = scmp.lt.s32.totalorder %s217, 15
      %s219 = scalar_select %p218, %s217, 15
      %s220 = smul.addr %s219, 8
      %s221 = scalar_lea.vmem %s4, %s220
      %s222 = smul.u32 8, %s15
      %v224 = vld [vmem:[%s209] sm:$0xf]
      %v225 = vld [vmem:[%s209 + $0x4] sm:$0xf]
      %v226 = vld [vmem:[%s209 + $0x8] sm:$0xf]
      %v227 = vld [vmem:[%s209 + $0xc] sm:$0xf]
      %v228 = vld [vmem:[%s209 + $0x10] sm:$0xf]
      %v229 = vld [vmem:[%s209 + $0x14] sm:$0xf]
      %v230 = vld [vmem:[%s209 + $0x18] sm:$0xf]
      %v231 = vld [vmem:[%s209 + $0x1c] sm:$0xf]
      %v232 = vld [vmem:[%s1] sm:$0xf]
      %v233 = vld [vmem:[%s2] sm:$0x1]
      %v235 = vlaneseq
      %v236 = vshrl.u32 %v235, 7
      %v237 = vsub.s32 0, %v236
      %v238 = vrot.slane %v233, %v237
      %v248 = vunpack.c.l.b16 %v224
      %v249 = vunpack.c.l.b16 %v225
      %v250 = vunpack.c.l.b16 %v226
      %v251 = vunpack.c.l.b16 %v227
      %v252 = vunpack.c.l.b16 %v228
      %v253 = vunpack.c.l.b16 %v229
      %v254 = vunpack.c.l.b16 %v230
      %v255 = vunpack.c.l.b16 %v231
      %v256 = vpack.c.b16 %v249, %v248
      %v257 = vpack.c.b16 %v251, %v250
      %v258 = vpack.c.b16 %v253, %v252
      %v259 = vpack.c.b16 %v255, %v254
      %vm260 = vcmask 64512
      %v262 = vsel %vm260, %v256, 0
      %v265 = vsel %vm260, %v257, 0
      %v268 = vsel %vm260, %v258, 0
      %v271 = vsel %vm260, %v259, 0
      %vm273 = vcmask 1043456
      %v275 = vsel %vm273, %v232, 0
      %277 = vmatprep.subr.bf16.mxu0 0
      %278 = vmatpush1.bf16.msra.mxu0 %v275
      %279 = vmatprep.subr.bf16.mxu0 0
      %280 = vmatpush1.bf16.msra.mxu0 0
      %281 = vmatprep.subr.bf16.mxu0 0
      %282 = vmatpush1.bf16.msra.mxu0 0
      %283 = vmatprep.subr.bf16.mxu0 0
      %284 = vmatpush1.bf16.msra.mxu0 0
      %285 = vmatprep.subr.bf16.mxu0 0
      %286 = vmatpush1.bf16.msra.mxu0 0
      %287 = vmatprep.subr.bf16.mxu0 0
      %288 = vmatpush1.bf16.msra.mxu0 0
      %289 = vmatprep.subr.bf16.mxu0 0
      %290 = vmatpush1.bf16.msra.mxu0 0
      %291 = vmatprep.subr.bf16.mxu0 0
      %292 = vmatpush1.bf16.msra.mxu0 0
      %293 = vmatprep.subr.bf16.mxu0 0
      %294 = vmatpush1.bf16.msra.mxu0 0
      %295 = vmatprep.subr.bf16.mxu0 0
      %296 = vmatpush1.bf16.msra.mxu0 0
      %297 = vmatprep.subr.bf16.mxu0 0
      %298 = vmatpush1.bf16.msra.mxu0 0
      %299 = vmatprep.subr.bf16.mxu0 0
      %300 = vmatpush1.bf16.msra.mxu0 0
      %301 = vmatprep.subr.bf16.mxu0 0
      %302 = vmatpush1.bf16.msra.mxu0 0
      %303 = vmatprep.subr.bf16.mxu0 0
      %304 = vmatpush1.bf16.msra.mxu0 0
      %305 = vmatprep.subr.bf16.mxu0 0
      %306 = vmatpush1.bf16.msra.mxu0 0
      %307 = vmatprep.subr.bf16.mxu0 0
      %308 = vmatpush1.bf16.msra.mxu0 0
      %309 = vmatprep.mubr.bf16.mxu0 0
      %310 = vmatmul.mubr.bf16.gmra.mrb[0].mxu0 %v262
      %v311 = vpop.f32.mrb[0].mxu0
      %v312 = vadd.f32 %v238, %v311
      %v313 = vpop.f32.mrb[0].mxu0
      %v314 = vpop.f32.mrb[0].mxu0
      %v315 = vadd.f32 %v238, %v314
      %v316 = vpop.f32.mrb[0].mxu0
      %317 = vmatprep.mubr.bf16.mxu0 0
      %318 = vmatmul.mubr.bf16.gmra.mrb[0].mxu0 %v265
      %v319 = vpop.f32.mrb[0].mxu0
      %v320 = vadd.f32 %v238, %v319
      %v321 = vpop.f32.mrb[0].mxu0
      %v322 = vpop.f32.mrb[0].mxu0
      %v323 = vadd.f32 %v238, %v322
      %v324 = vpop.f32.mrb[0].mxu0
      %325 = vmatprep.mubr.bf16.mxu0 0
      %326 = vmatmul.mubr.bf16.gmra.mrb[0].mxu0 %v268
      %v327 = vpop.f32.mrb[0].mxu0
      %v328 = vadd.f32 %v238, %v327
      %v329 = vpop.f32.mrb[0].mxu0
      %v330 = vpop.f32.mrb[0].mxu0
      %v331 = vadd.f32 %v238, %v330
      %v332 = vpop.f32.mrb[0].mxu0
      %333 = vmatprep.mubr.bf16.mxu0 0
      %334 = vmatmul.mubr.bf16.gmra.mrb[0].mxu0 %v271
      %v335 = vpop.f32.mrb[0].mxu0
      %v336 = vadd.f32 %v238, %v335
      %v337 = vpop.f32.mrb[0].mxu0
      %v338 = vpop.f32.mrb[0].mxu0
      %v339 = vadd.f32 %v238, %v338
      %v340 = vpop.f32.mrb[0].mxu0
      %341 = vdwg.mxu0
      %v342 = vld [vmem:[%s215] sm:$0xff]
      %v343 = vld [vmem:[%s215 + $0x8] sm:$0xff]
      %v344 = vld [vmem:[%s215 + $0x10] sm:$0xff]
      %v345 = vld [vmem:[%s215 + $0x18] sm:$0xff]
      %v346 = vld [vmem:[%s215 + $0x20] sm:$0xff]
      %v347 = vld [vmem:[%s215 + $0x28] sm:$0xff]
      %v348 = vld [vmem:[%s215 + $0x30] sm:$0xff]
      %v349 = vld [vmem:[%s215 + $0x38] sm:$0xff]
      %v350 = vadd.f32 %v312, %v342
      %v351 = vadd.f32 %v315, %v343
      %v352 = vadd.f32 %v320, %v344
      %v353 = vadd.f32 %v323, %v345
      %v354 = vadd.f32 %v328, %v346
      %v355 = vadd.f32 %v331, %v347
      %v356 = vadd.f32 %v336, %v348
      %v357 = vadd.f32 %v339, %v349
      %v358 = vmax.f32 %v350, 0.0
      %v359 = vmax.f32 %v351, 0.0
      %v360 = vmax.f32 %v352, 0.0
      %v361 = vmax.f32 %v353, 0.0
      %v362 = vmax.f32 %v354, 0.0
      %v363 = vmax.f32 %v355, 0.0
      %v364 = vmax.f32 %v356, 0.0
      %v365 = vmax.f32 %v357, 0.0
      %vm366 = vcmask 130048
      %367 = vst.msk [vmem:[%s221] sm:$0xff] %vm366, %v358
      %368 = vst.msk [vmem:[%s221 + $0x8] sm:$0xff] %vm366, %v359
      %369 = vst.msk [vmem:[%s221 + $0x10] sm:$0xff] %vm366, %v360
      %370 = vst.msk [vmem:[%s221 + $0x18] sm:$0xff] %vm366, %v361
      %371 = vst.msk [vmem:[%s221 + $0x20] sm:$0xff] %vm366, %v362
      %372 = vst.msk [vmem:[%s221 + $0x28] sm:$0xff] %vm366, %v363
      %373 = vst.msk [vmem:[%s221 + $0x30] sm:$0xff] %vm366, %v364
      %374 = vst.msk [vmem:[%s221 + $0x38] sm:$0xff] %vm366, %v365
      %s375 = smul.u32 8, %s15
      %p376 = scmp.lt.s32.totalorder %s375, 15
      %s377 = scalar_select %p376, %s375, 15
      %s378 = smul.addr %s377, 8
      %s379 = scalar_lea.vmem %s4, %s378
      // Predicated region
      $region37: #{_lambda_.102} parent=35 // pred_check
        %p380 = pneg %p127
      $region38: #{_lambda_.102} parent=35 // pred_check_branch
        %382 = sbr.rel (%p380) target = $region40
      $region39: #{_lambda_.102} parent=35 // pred_region
        %s383 = smul.u32 8, %s15
      $region40: #{_lambda_.102} parent=35 // pred_fallthru
        _
    $region36: #{_lambda_.102} parent=5 // pred_fallthru
      _
    %p384 = scmp.le.s32.totalorder 2, %s10
    // Predicated region
    $region41: #{_lambda_.102} parent=5 // pred_check
      %p385 = pneg %p384
    $region42: #{_lambda_.102} parent=5 // pred_check_branch
      %387 = sbr.rel (%p385) target = $region44
    $region43: #{_lambda_.102} parent=5 // pred_region
      %s388 = ssub.s32 %s10, 2
      // Predicated region
      $region45: #{_lambda_.102} parent=43 // pred_check
        %p389 = pneg %p133
      $region46: #{_lambda_.102} parent=43 // pred_check_branch
        %391 = sbr.rel (%p389) target = $region48
      $region47: #{_lambda_.102} parent=43 // pred_region
        %s392 = smul.u32 8, %s16
        %p393 = scmp.lt.s32.totalorder %s392, 15
        %s394 = scalar_select %p393, %s392, 15
        %s395 = smul.addr %s394, 8
        %s396 = scalar_lea.vmem %s4, %s395
      $region48: #{_lambda_.102} parent=43 // pred_fallthru
        _
    $region44: #{_lambda_.102} parent=5 // pred_fallthru
      _
  $region6: #{_lambda_.102} parent=0 // loop_footer
    %s14 = sadd.s32 1, %s10
  $region7: #{_lambda_.102} parent=0 // loop_footer_branch
    %9 = sbr.rel target = $region3
  $region8: #{_lambda_.102} parent=0 // loop_exit
    _

// kernel: _lambda_.100
$region0: #{_lambda_.100}
  #allocation0 [shape = 'u32[]', space=smem, size = 0x4, offset = 0x4, fixed_abs, tag = 'smem constant byte address 0x4 - core index']
  #allocation1 [shape = 'u32[144,128]{1,0:T(1,128)}', space=vmem, size = 0x12000, scoped, tag = 'internal scratch']
  %s0 = inlined_call_operand.vmem [shape: bf16[128,8], index: 0, kind: input, shape index: {}]
  %s1 = inlined_call_operand.vmem [shape: bf16[8,8], index: 1, kind: input, shape index: {}]
  %s2 = inlined_call_operand.vmem [shape: f32[1,8], index: 2, kind: input, shape index: {}]
  %s3 = inlined_call_operand.vmem [shape: f32[128,8], index: 3, kind: output, shape index: {}]
  %s4 = sld [smem:[#allocation0]]
  $region45: #{_lambda_.100} parent=0
    _
  %s6 = ssub.s32 1, %s4
  %s7 = scalar_select 0, %s6, %s4
  loop: start=0, step=1, limit=4
  $region2: #{_lambda_.100} parent=0 // loop_pre_header
    _
  $region3: #{_lambda_.100} parent=0 // loop_header
    %s9 = sphi 0, %s13
    %p10 = scmp.ge.s32.totalorder %s9, 4
    %s19 = sphi 0, %s21
    %s22 = sphi 0, %s19
    %s23 = sphi 0, %s22
    %s39 = sphi 0, %s23
    %s43 = sphi 0, %s43
    %s45 = sphi 0, %s43
    %s46 = sphi 0, %s45
    %s60 = sphi 0, %s46
    %s64 = sphi 0, %s64
    %s66 = sphi 0, %s64
    %s67 = sphi 0, %s66
    %s81 = sphi 0, %s67
    %s87 = sphi 0, %s89
    %s90 = sphi 0, %s87
    %s91 = sphi 0, %s90
    %s107 = sphi 0, %s91
  $region4: #{_lambda_.100} parent=0 // loop_header_branch
    %12 = sbr.rel (%p10) target = $region8
  $region5: #{_lambda_.100} parent=0 // loop_body
    %s14 = ssub.s32 %s9, 1
    %s15 = ssub.s32 %s9, 2
    %s16 = sadd.s32 %s9, 1
    %s17 = ssub.s32 %s9, %s16
    %p18 = scmp.eq.s32.totalorder %s17, 0
    %s20 = sadd.s32 %s19, 1
    %s21 = scalar_select %p18, %s19, %s20
    %p24 = pneg %p18
    %p25 = scmp.eq.s32.totalorder %s9, 1
    %p26 = por %p24, %p25
    %p27 = scmp.ne.s32.totalorder %s19, %s22
    %p28 = scmp.eq.s32.totalorder %s9, 0
    %p29 = por %p27, %p28
    %p30 = scmp.ne.s32.totalorder %s19, %s22
    %p31 = scmp.eq.s32.totalorder %s14, 1
    %p32 = por %p30, %p31
    %p33 = scmp.ne.s32.totalorder %s22, %s23
    %p34 = scmp.eq.s32.totalorder %s14, 0
    %p35 = por %p33, %p34
    %p36 = scmp.ne.s32.totalorder %s22, %s23
    %p37 = scmp.eq.s32.totalorder %s15, 1
    %p38 = por %p36, %p37
    %p40 = scmp.ne.s32.totalorder %s23, %s39
    %p41 = scmp.eq.s32.totalorder %s15, 0
    %p42 = por %p40, %p41
    %s44 = sadd.s32 %s43, 1
    %p47 = scmp.eq.s32.totalorder %s9, 1
    %p48 = scmp.ne.s32.totalorder %s43, %s45
    %p49 = scmp.eq.s32.totalorder %s9, 0
    %p50 = por %p48, %p49
    %p51 = scmp.ne.s32.totalorder %s43, %s45
    %p52 = scmp.eq.s32.totalorder %s14, 1
    %p53 = por %p51, %p52
    %p54 = scmp.ne.s32.totalorder %s45, %s46
    %p55 = scmp.eq.s32.totalorder %s14, 0
    %p56 = por %p54, %p55
    %p57 = scmp.ne.s32.totalorder %s45, %s46
    %p58 = scmp.eq.s32.totalorder %s15, 1
    %p59 = por %p57, %p58
    %p61 = scmp.ne.s32.totalorder %s46, %s60
    %p62 = scmp.eq.s32.totalorder %s15, 0
    %p63 = por %p61, %p62
    %s65 = sadd.s32 %s64, 1
    %p68 = scmp.eq.s32.totalorder %s9, 1
    %p69 = scmp.ne.s32.totalorder %s64, %s66
    %p70 = scmp.eq.s32.totalorder %s9, 0
    %p71 = por %p69, %p70
    %p72 = scmp.ne.s32.totalorder %s64, %s66
    %p73 = scmp.eq.s32.totalorder %s14, 1
    %p74 = por %p72, %p73
    %p75 = scmp.ne.s32.totalorder %s66, %s67
    %p76 = scmp.eq.s32.totalorder %s14, 0
    %p77 = por %p75, %p76
    %p78 = scmp.ne.s32.totalorder %s66, %s67
    %p79 = scmp.eq.s32.totalorder %s15, 1
    %p80 = por %p78, %p79
    %p82 = scmp.ne.s32.totalorder %s67, %s81
    %p83 = scmp.eq.s32.totalorder %s15, 0
    %p84 = por %p82, %p83
    %s85 = ssub.s32 %s9, %s16
    %p86 = scmp.eq.s32.totalorder %s85, 0
    %s88 = sadd.s32 %s87, 1
    %s89 = scalar_select %p86, %s87, %s88
    %p92 = pneg %p86
    %p93 = scmp.eq.s32.totalorder %s9, 1
    %p94 = por %p92, %p93
    %p95 = scmp.ne.s32.totalorder %s87, %s90
    %p96 = scmp.eq.s32.totalorder %s9, 0
    %p97 = por %p95, %p96
    %p98 = scmp.ne.s32.totalorder %s87, %s90
    %p99 = scmp.eq.s32.totalorder %s14, 1
    %p100 = por %p98, %p99
    %p101 = scmp.ne.s32.totalorder %s90, %s91
    %p102 = scmp.eq.s32.totalorder %s14, 0
    %p103 = por %p101, %p102
    %p104 = scmp.ne.s32.totalorder %s90, %s91
    %p105 = scmp.eq.s32.totalorder %s15, 1
    %p106 = por %p104, %p105
    %p108 = scmp.ne.s32.totalorder %s91, %s107
    %p109 = scmp.eq.s32.totalorder %s15, 0
    %p110 = por %p108, %p109
    %p111 = scmp.le.s32.totalorder 1, %s9
    %p112 = scmp.lt.s32.totalorder %s9, 3
    %p113 = pnand %p111, %p112
    %p114 = pneg %p113
    // Predicated region
    $region9: #{_lambda_.100} parent=5 // pred_check
      _
    $region10: #{_lambda_.100} parent=5 // pred_check_branch
      %116 = sbr.rel (%p113) target = $region12
    $region11: #{_lambda_.100} parent=5 // pred_region
      %s117 = ssub.s32 %s9, 1
      // Predicated region
      $region13: #{_lambda_.100} parent=11 // pred_check
        %p118 = pneg %p56
      $region14: #{_lambda_.100} parent=11 // pred_check_branch
        %120 = sbr.rel (%p118) target = $region16
      $region15: #{_lambda_.100} parent=11 // pred_region
        _
      $region16: #{_lambda_.100} parent=11 // pred_fallthru
        _
      // Predicated region
      $region17: #{_lambda_.100} parent=11 // pred_check
        %p121 = pneg %p77
      $region18: #{_lambda_.100} parent=11 // pred_check_branch
        %123 = sbr.rel (%p121) target = $region20
      $region19: #{_lambda_.100} parent=11 // pred_region
        _
      $region20: #{_lambda_.100} parent=11 // pred_fallthru
        _
    $region12: #{_lambda_.100} parent=5 // pred_fallthru
      _
    %p124 = scmp.lt.s32.totalorder %s9, 2
    // Predicated region
    $region21: #{_lambda_.100} parent=5 // pred_check
      %p125 = pneg %p124
    $region22: #{_lambda_.100} parent=5 // pred_check_branch
      %127 = sbr.rel (%p125) target = $region24
    $region23: #{_lambda_.100} parent=5 // pred_region
      // Predicated region
      $region25: #{_lambda_.100} parent=23 // pred_check
        %p128 = pneg %p29
      $region26: #{_lambda_.100} parent=23 // pred_check_branch
        %130 = sbr.rel (%p128) target = $region28
      $region27: #{_lambda_.100} parent=23 // pred_region
        %s131 = smul.u32 8, %s9
        %p132 = scmp.lt.s32.totalorder %s131, 15
        %s133 = scalar_select %p132, %s131, 15
        %s134 = smul.addr %s133, 4
        %s135 = scalar_lea.vmem %s0, %s134
        %s136 = smul.u32 8, %s9
      $region28: #{_lambda_.100} parent=23 // pred_fallthru
        _
    $region24: #{_lambda_.100} parent=5 // pred_fallthru
      _
    %p137 = scmp.le.s32.totalorder 1, %s9
    %p138 = scmp.lt.s32.totalorder %s9, 3
    %p139 = pnand %p137, %p138
    %p140 = pneg %p139
    // Predicated region
    $region29: #{_lambda_.100} parent=5 // pred_check
      _
    $region30: #{_lambda_.100} parent=5 // pred_check_branch
      %142 = sbr.rel (%p139) target = $region32
    $region31: #{_lambda_.100} parent=5 // pred_region
      %s143 = ssub.s32 %s9, 1
      %s144 = smul.u32 8, %s14
      %p145 = scmp.lt.s32.totalorder %s144, 15
      %s146 = scalar_select %p145, %s144, 15
      %s147 = smul.addr %s146, 4
      %s148 = scalar_lea.vmem %s0, %s147
      %p149 = pneg %p35
      %p150 = pneg %p32
      %p151 = pneg %p56
      %p152 = pneg %p53
      %p153 = pneg %p77
      %p154 = pneg %p74
      %p155 = pneg %p103
      %p156 = pneg %p100
      %s157 = smul.u32 8, %s14
      %p158 = scmp.lt.s32.totalorder %s157, 15
      %s159 = scalar_select %p158, %s157, 15
      %s160 = smul.addr %s159, 8
      %s161 = scalar_lea.vmem %s3, %s160
      %s162 = smul.u32 8, %s14
      %p163 = scmp.lt.s32.totalorder %s162, 15
      %s164 = scalar_select %p163, %s162, 15
      %s165 = smul.addr %s164, 4
      %s166 = scalar_lea.vmem %s0, %s165
      %s167 = smul.u32 8, %s14
      %s168 = smul.u32 8, %s14
      %p169 = scmp.lt.s32.totalorder %s168, 15
      %s170 = scalar_select %p169, %s168, 15
      %s171 = smul.addr %s170, 8
      %s172 = scalar_lea.vmem %s3, %s171
      %s173 = smul.u32 8, %s14
      %v175 = vld [vmem:[%s166] sm:$0xf]
      %v176 = vld [vmem:[%s166 + $0x4] sm:$0xf]
      %v177 = vld [vmem:[%s166 + $0x8] sm:$0xf]
      %v178 = vld [vmem:[%s166 + $0xc] sm:$0xf]
      %v179 = vld [vmem:[%s166 + $0x10] sm:$0xf]
      %v180 = vld [vmem:[%s166 + $0x14] sm:$0xf]
      %v181 = vld [vmem:[%s166 + $0x18] sm:$0xf]
      %v182 = vld [vmem:[%s166 + $0x1c] sm:$0xf]
      %v183 = vld [vmem:[%s1] sm:$0xf]
      %v184 = vld [vmem:[%s2] sm:$0x1]
      %v186 = vlaneseq
      %v187 = vshrl.u32 %v186, 7
      %v188 = vsub.s32 0, %v187
      %v189 = vrot.slane %v184, %v188
      %v199 = vunpack.c.l.b16 %v175
      %v200 = vunpack.c.l.b16 %v176
      %v201 = vunpack.c.l.b16 %v177
      %v202 = vunpack.c.l.b16 %v178
      %v203 = vunpack.c.l.b16 %v179
      %v204 = vunpack.c.l.b16 %v180
      %v205 = vunpack.c.l.b16 %v181
      %v206 = vunpack.c.l.b16 %v182
      %v207 = vpack.c.b16 %v200, %v199
      %v208 = vpack.c.b16 %v202, %v201
      %v209 = vpack.c.b16 %v204, %v203
      %v210 = vpack.c.b16 %v206, %v205
      %vm211 = vcmask 64512
      %v213 = vsel %vm211, %v207, 0
      %v216 = vsel %vm211, %v208, 0
      %v219 = vsel %vm211, %v209, 0
      %v222 = vsel %vm211, %v210, 0
      %vm224 = vcmask 1043456
      %v226 = vsel %vm224, %v183, 0
      %228 = vmatprep.subr.bf16.mxu0 0
      %229 = vmatpush1.bf16.msra.mxu0 %v226
      %230 = vmatprep.subr.bf16.mxu0 0
      %231 = vmatpush1.bf16.msra.mxu0 0
      %232 = vmatprep.subr.bf16.mxu0 0
      %233 = vmatpush1.bf16.msra.mxu0 0
      %234 = vmatprep.subr.bf16.mxu0 0
      %235 = vmatpush1.bf16.msra.mxu0 0
      %236 = vmatprep.subr.bf16.mxu0 0
      %237 = vmatpush1.bf16.msra.mxu0 0
      %238 = vmatprep.subr.bf16.mxu0 0
      %239 = vmatpush1.bf16.msra.mxu0 0
      %240 = vmatprep.subr.bf16.mxu0 0
      %241 = vmatpush1.bf16.msra.mxu0 0
      %242 = vmatprep.subr.bf16.mxu0 0
      %243 = vmatpush1.bf16.msra.mxu0 0
      %244 = vmatprep.subr.bf16.mxu0 0
      %245 = vmatpush1.bf16.msra.mxu0 0
      %246 = vmatprep.subr.bf16.mxu0 0
      %247 = vmatpush1.bf16.msra.mxu0 0
      %248 = vmatprep.subr.bf16.mxu0 0
      %249 = vmatpush1.bf16.msra.mxu0 0
      %250 = vmatprep.subr.bf16.mxu0 0
      %251 = vmatpush1.bf16.msra.mxu0 0
      %252 = vmatprep.subr.bf16.mxu0 0
      %253 = vmatpush1.bf16.msra.mxu0 0
      %254 = vmatprep.subr.bf16.mxu0 0
      %255 = vmatpush1.bf16.msra.mxu0 0
      %256 = vmatprep.subr.bf16.mxu0 0
      %257 = vmatpush1.bf16.msra.mxu0 0
      %258 = vmatprep.subr.bf16.mxu0 0
      %259 = vmatpush1.bf16.msra.mxu0 0
      %260 = vmatprep.mubr.bf16.mxu0 0
      %261 = vmatmul.mubr.bf16.gmra.mrb[0].mxu0 %v213
      %v262 = vpop.f32.mrb[0].mxu0
      %v263 = vadd.f32 %v189, %v262
      %v264 = vpop.f32.mrb[0].mxu0
      %v265 = vpop.f32.mrb[0].mxu0
      %v266 = vadd.f32 %v189, %v265
      %v267 = vpop.f32.mrb[0].mxu0
      %268 = vmatprep.mubr.bf16.mxu0 0
      %269 = vmatmul.mubr.bf16.gmra.mrb[0].mxu0 %v216
      %v270 = vpop.f32.mrb[0].mxu0
      %v271 = vadd.f32 %v189, %v270
      %v272 = vpop.f32.mrb[0].mxu0
      %v273 = vpop.f32.mrb[0].mxu0
      %v274 = vadd.f32 %v189, %v273
      %v275 = vpop.f32.mrb[0].mxu0
      %276 = vmatprep.mubr.bf16.mxu0 0
      %277 = vmatmul.mubr.bf16.gmra.mrb[0].mxu0 %v219
      %v278 = vpop.f32.mrb[0].mxu0
      %v279 = vadd.f32 %v189, %v278
      %v280 = vpop.f32.mrb[0].mxu0
      %v281 = vpop.f32.mrb[0].mxu0
      %v282 = vadd.f32 %v189, %v281
      %v283 = vpop.f32.mrb[0].mxu0
      %284 = vmatprep.mubr.bf16.mxu0 0
      %285 = vmatmul.mubr.bf16.gmra.mrb[0].mxu0 %v222
      %v286 = vpop.f32.mrb[0].mxu0
      %v287 = vadd.f32 %v189, %v286
      %v288 = vpop.f32.mrb[0].mxu0
      %v289 = vpop.f32.mrb[0].mxu0
      %v290 = vadd.f32 %v189, %v289
      %v291 = vpop.f32.mrb[0].mxu0
      %292 = vdwg.mxu0
      %v293 = vmax.f32 %v263, 0.0
      %v294 = vmax.f32 %v266, 0.0
      %v295 = vmax.f32 %v271, 0.0
      %v296 = vmax.f32 %v274, 0.0
      %v297 = vmax.f32 %v279, 0.0
      %v298 = vmax.f32 %v282, 0.0
      %v299 = vmax.f32 %v287, 0.0
      %v300 = vmax.f32 %v290, 0.0
      %301 = vst.msk [vmem:[%s172] sm:$0xff] %vm211, %v293
      %302 = vst.msk [vmem:[%s172 + $0x8] sm:$0xff] %vm211, %v294
      %303 = vst.msk [vmem:[%s172 + $0x10] sm:$0xff] %vm211, %v295
      %304 = vst.msk [vmem:[%s172 + $0x18] sm:$0xff] %vm211, %v296
      %305 = vst.msk [vmem:[%s172 + $0x20] sm:$0xff] %vm211, %v297
      %306 = vst.msk [vmem:[%s172 + $0x28] sm:$0xff] %vm211, %v298
      %307 = vst.msk [vmem:[%s172 + $0x30] sm:$0xff] %vm211, %v299
      %308 = vst.msk [vmem:[%s172 + $0x38] sm:$0xff] %vm211, %v300
      %s309 = smul.u32 8, %s14
      %p310 = scmp.lt.s32.totalorder %s309, 15
      %s311 = scalar_select %p310, %s309, 15
      %s312 = smul.addr %s311, 8
      %s313 = scalar_lea.vmem %s3, %s312
      // Predicated region
      $region33: #{_lambda_.100} parent=31 // pred_check
        %p314 = pneg %p100
      $region34: #{_lambda_.100} parent=31 // pred_check_branch
        %316 = sbr.rel (%p314) target = $region36
      $region35: #{_lambda_.100} parent=31 // pred_region
        %s317 = smul.u32 8, %s14
      $region36: #{_lambda_.100} parent=31 // pred_fallthru
        _
    $region32: #{_lambda_.100} parent=5 // pred_fallthru
      _
    %p318 = scmp.le.s32.totalorder 2, %s9
    // Predicated region
    $region37: #{_lambda_.100} parent=5 // pred_check
      %p319 = pneg %p318
    $region38: #{_lambda_.100} parent=5 // pred_check_branch
      %321 = sbr.rel (%p319) target = $region40
    $region39: #{_lambda_.100} parent=5 // pred_region
      %s322 = ssub.s32 %s9, 2
      // Predicated region
      $region41: #{_lambda_.100} parent=39 // pred_check
        %p323 = pneg %p106
      $region42: #{_lambda_.100} parent=39 // pred_check_branch
        %325 = sbr.rel (%p323) target = $region44
      $region43: #{_lambda_.100} parent=39 // pred_region
        %s326 = smul.u32 8, %s15
        %p327 = scmp.lt.s32.totalorder %s326, 15
        %s328 = scalar_select %p327, %s326, 15
        %s329 = smul.addr %s328, 8
        %s330 = scalar_lea.vmem %s3, %s329
      $region44: #{_lambda_.100} parent=39 // pred_fallthru
        _
    $region40: #{_lambda_.100} parent=5 // pred_fallthru
      _
  $region6: #{_lambda_.100} parent=0 // loop_footer
    %s13 = sadd.s32 1, %s9
  $region7: #{_lambda_.100} parent=0 // loop_footer_branch
    %8 = sbr.rel target = $region3
  $region8: #{_lambda_.100} parent=0 // loop_exit
    _

// kernel: _lambda_.99
$region0: #{_lambda_.99}
  #allocation0 [shape = 'u32[]', space=smem, size = 0x4, offset = 0x4, fixed_abs, tag = 'smem constant byte address 0x4 - core index']
  #allocation1 [shape = 'u32[144,128]{1,0:T(1,128)}', space=vmem, size = 0x12000, scoped, tag = 'internal scratch']
  %s0 = inlined_call_operand.vmem [shape: bf16[128,8], index: 0, kind: input, shape index: {}]
  %s1 = inlined_call_operand.vmem [shape: bf16[8,16], index: 1, kind: input, shape index: {}]
  %s2 = inlined_call_operand.vmem [shape: f32[1,16], index: 2, kind: input, shape index: {}]
  %s3 = inlined_call_operand.vmem [shape: f32[128,16], index: 3, kind: output, shape index: {}]
  %s4 = sld [smem:[#allocation0]]
  $region45: #{_lambda_.99} parent=0
    _
  %s6 = ssub.s32 1, %s4
  %s7 = scalar_select 0, %s6, %s4
  loop: start=0, step=1, limit=4
  $region2: #{_lambda_.99} parent=0 // loop_pre_header
    _
  $region3: #{_lambda_.99} parent=0 // loop_header
    %s9 = sphi 0, %s13
    %p10 = scmp.ge.s32.totalorder %s9, 4
    %s19 = sphi 0, %s21
    %s22 = sphi 0, %s19
    %s23 = sphi 0, %s22
    %s39 = sphi 0, %s23
    %s43 = sphi 0, %s43
    %s45 = sphi 0, %s43
    %s46 = sphi 0, %s45
    %s60 = sphi 0, %s46
    %s64 = sphi 0, %s64
    %s66 = sphi 0, %s64
    %s67 = sphi 0, %s66
    %s81 = sphi 0, %s67
    %s87 = sphi 0, %s89
    %s90 = sphi 0, %s87
    %s91 = sphi 0, %s90
    %s107 = sphi 0, %s91
  $region4: #{_lambda_.99} parent=0 // loop_header_branch
    %12 = sbr.rel (%p10) target = $region8
  $region5: #{_lambda_.99} parent=0 // loop_body
    %s14 = ssub.s32 %s9, 1
    %s15 = ssub.s32 %s9, 2
    %s16 = sadd.s32 %s9, 1
    %s17 = ssub.s32 %s9, %s16
    %p18 = scmp.eq.s32.totalorder %s17, 0
    %s20 = sadd.s32 %s19, 1
    %s21 = scalar_select %p18, %s19, %s20
    %p24 = pneg %p18
    %p25 = scmp.eq.s32.totalorder %s9, 1
    %p26 = por %p24, %p25
    %p27 = scmp.ne.s32.totalorder %s19, %s22
    %p28 = scmp.eq.s32.totalorder %s9, 0
    %p29 = por %p27, %p28
    %p30 = scmp.ne.s32.totalorder %s19, %s22
    %p31 = scmp.eq.s32.totalorder %s14, 1
    %p32 = por %p30, %p31
    %p33 = scmp.ne.s32.totalorder %s22, %s23
    %p34 = scmp.eq.s32.totalorder %s14, 0
    %p35 = por %p33, %p34
    %p36 = scmp.ne.s32.totalorder %s22, %s23
    %p37 = scmp.eq.s32.totalorder %s15, 1
    %p38 = por %p36, %p37
    %p40 = scmp.ne.s32.totalorder %s23, %s39
    %p41 = scmp.eq.s32.totalorder %s15, 0
    %p42 = por %p40, %p41
    %s44 = sadd.s32 %s43, 1
    %p47 = scmp.eq.s32.totalorder %s9, 1
    %p48 = scmp.ne.s32.totalorder %s43, %s45
    %p49 = scmp.eq.s32.totalorder %s9, 0
    %p50 = por %p48, %p49
    %p51 = scmp.ne.s32.totalorder %s43, %s45
    %p52 = scmp.eq.s32.totalorder %s14, 1
    %p53 = por %p51, %p52
    %p54 = scmp.ne.s32.totalorder %s45, %s46
    %p55 = scmp.eq.s32.totalorder %s14, 0
    %p56 = por %p54, %p55
    %p57 = scmp.ne.s32.totalorder %s45, %s46
    %p58 = scmp.eq.s32.totalorder %s15, 1
    %p59 = por %p57, %p58
    %p61 = scmp.ne.s32.totalorder %s46, %s60
    %p62 = scmp.eq.s32.totalorder %s15, 0
    %p63 = por %p61, %p62
    %s65 = sadd.s32 %s64, 1
    %p68 = scmp.eq.s32.totalorder %s9, 1
    %p69 = scmp.ne.s32.totalorder %s64, %s66
    %p70 = scmp.eq.s32.totalorder %s9, 0
    %p71 = por %p69, %p70
    %p72 = scmp.ne.s32.totalorder %s64, %s66
    %p73 = scmp.eq.s32.totalorder %s14, 1
    %p74 = por %p72, %p73
    %p75 = scmp.ne.s32.totalorder %s66, %s67
    %p76 = scmp.eq.s32.totalorder %s14, 0
    %p77 = por %p75, %p76
    %p78 = scmp.ne.s32.totalorder %s66, %s67
    %p79 = scmp.eq.s32.totalorder %s15, 1
    %p80 = por %p78, %p79
    %p82 = scmp.ne.s32.totalorder %s67, %s81
    %p83 = scmp.eq.s32.totalorder %s15, 0
    %p84 = por %p82, %p83
    %s85 = ssub.s32 %s9, %s16
    %p86 = scmp.eq.s32.totalorder %s85, 0
    %s88 = sadd.s32 %s87, 1
    %s89 = scalar_select %p86, %s87, %s88
    %p92 = pneg %p86
    %p93 = scmp.eq.s32.totalorder %s9, 1
    %p94 = por %p92, %p93
    %p95 = scmp.ne.s32.totalorder %s87, %s90
    %p96 = scmp.eq.s32.totalorder %s9, 0
    %p97 = por %p95, %p96
    %p98 = scmp.ne.s32.totalorder %s87, %s90
    %p99 = scmp.eq.s32.totalorder %s14, 1
    %p100 = por %p98, %p99
    %p101 = scmp.ne.s32.totalorder %s90, %s91
    %p102 = scmp.eq.s32.totalorder %s14, 0
    %p103 = por %p101, %p102
    %p104 = scmp.ne.s32.totalorder %s90, %s91
    %p105 = scmp.eq.s32.totalorder %s15, 1
    %p106 = por %p104, %p105
    %p108 = scmp.ne.s32.totalorder %s91, %s107
    %p109 = scmp.eq.s32.totalorder %s15, 0
    %p110 = por %p108, %p109
    %p111 = scmp.le.s32.totalorder 1, %s9
    %p112 = scmp.lt.s32.totalorder %s9, 3
    %p113 = pnand %p111, %p112
    %p114 = pneg %p113
    // Predicated region
    $region9: #{_lambda_.99} parent=5 // pred_check
      _
    $region10: #{_lambda_.99} parent=5 // pred_check_branch
      %116 = sbr.rel (%p113) target = $region12
    $region11: #{_lambda_.99} parent=5 // pred_region
      %s117 = ssub.s32 %s9, 1
      // Predicated region
      $region13: #{_lambda_.99} parent=11 // pred_check
        %p118 = pneg %p56
      $region14: #{_lambda_.99} parent=11 // pred_check_branch
        %120 = sbr.rel (%p118) target = $region16
      $region15: #{_lambda_.99} parent=11 // pred_region
        _
      $region16: #{_lambda_.99} parent=11 // pred_fallthru
        _
      // Predicated region
      $region17: #{_lambda_.99} parent=11 // pred_check
        %p121 = pneg %p77
      $region18: #{_lambda_.99} parent=11 // pred_check_branch
        %123 = sbr.rel (%p121) target = $region20
      $region19: #{_lambda_.99} parent=11 // pred_region
        _
      $region20: #{_lambda_.99} parent=11 // pred_fallthru
        _
    $region12: #{_lambda_.99} parent=5 // pred_fallthru
      _
    %p124 = scmp.lt.s32.totalorder %s9, 2
    // Predicated region
    $region21: #{_lambda_.99} parent=5 // pred_check
      %p125 = pneg %p124
    $region22: #{_lambda_.99} parent=5 // pred_check_branch
      %127 = sbr.rel (%p125) target = $region24
    $region23: #{_lambda_.99} parent=5 // pred_region
      // Predicated region
      $region25: #{_lambda_.99} parent=23 // pred_check
        %p128 = pneg %p29
      $region26: #{_lambda_.99} parent=23 // pred_check_branch
        %130 = sbr.rel (%p128) target = $region28
      $region27: #{_lambda_.99} parent=23 // pred_region
        %s131 = smul.u32 8, %s9
        %p132 = scmp.lt.s32.totalorder %s131, 15
        %s133 = scalar_select %p132, %s131, 15
        %s134 = smul.addr %s133, 4
        %s135 = scalar_lea.vmem %s0, %s134
        %s136 = smul.u32 8, %s9
      $region28: #{_lambda_.99} parent=23 // pred_fallthru
        _
    $region24: #{_lambda_.99} parent=5 // pred_fallthru
      _
    %p137 = scmp.le.s32.totalorder 1, %s9
    %p138 = scmp.lt.s32.totalorder %s9, 3
    %p139 = pnand %p137, %p138
    %p140 = pneg %p139
    // Predicated region
    $region29: #{_lambda_.99} parent=5 // pred_check
      _
    $region30: #{_lambda_.99} parent=5 // pred_check_branch
      %142 = sbr.rel (%p139) target = $region32
    $region31: #{_lambda_.99} parent=5 // pred_region
      %s143 = ssub.s32 %s9, 1
      %s144 = smul.u32 8, %s14
      %p145 = scmp.lt.s32.totalorder %s144, 15
      %s146 = scalar_select %p145, %s144, 15
      %s147 = smul.addr %s146, 4
      %s148 = scalar_lea.vmem %s0, %s147
      %p149 = pneg %p35
      %p150 = pneg %p32
      %p151 = pneg %p56
      %p152 = pneg %p53
      %p153 = pneg %p77
      %p154 = pneg %p74
      %p155 = pneg %p103
      %p156 = pneg %p100
      %s157 = smul.u32 8, %s14
      %p158 = scmp.lt.s32.totalorder %s157, 15
      %s159 = scalar_select %p158, %s157, 15
      %s160 = smul.addr %s159, 8
      %s161 = scalar_lea.vmem %s3, %s160
      %s162 = smul.u32 8, %s14
      %p163 = scmp.lt.s32.totalorder %s162, 15
      %s164 = scalar_select %p163, %s162, 15
      %s165 = smul.addr %s164, 4
      %s166 = scalar_lea.vmem %s0, %s165
      %s167 = smul.u32 8, %s14
      %s168 = smul.u32 8, %s14
      %p169 = scmp.lt.s32.totalorder %s168, 15
      %s170 = scalar_select %p169, %s168, 15
      %s171 = smul.addr %s170, 8
      %s172 = scalar_lea.vmem %s3, %s171
      %s173 = smul.u32 8, %s14
      %v175 = vld [vmem:[%s166] sm:$0xf]
      %v176 = vld [vmem:[%s166 + $0x4] sm:$0xf]
      %v177 = vld [vmem:[%s166 + $0x8] sm:$0xf]
      %v178 = vld [vmem:[%s166 + $0xc] sm:$0xf]
      %v179 = vld [vmem:[%s166 + $0x10] sm:$0xf]
      %v180 = vld [vmem:[%s166 + $0x14] sm:$0xf]
      %v181 = vld [vmem:[%s166 + $0x18] sm:$0xf]
      %v182 = vld [vmem:[%s166 + $0x1c] sm:$0xf]
      %v183 = vld [vmem:[%s1] sm:$0xf]
      %v184 = vld [vmem:[%s2] sm:$0x1]
      %v186 = vlaneseq
      %v187 = vshrl.u32 %v186, 7
      %v188 = vsub.s32 0, %v187
      %v189 = vrot.slane %v184, %v188
      %v199 = vunpack.c.l.b16 %v175
      %v200 = vunpack.c.l.b16 %v176
      %v201 = vunpack.c.l.b16 %v177
      %v202 = vunpack.c.l.b16 %v178
      %v203 = vunpack.c.l.b16 %v179
      %v204 = vunpack.c.l.b16 %v180
      %v205 = vunpack.c.l.b16 %v181
      %v206 = vunpack.c.l.b16 %v182
      %v207 = vpack.c.b16 %v200, %v199
      %v208 = vpack.c.b16 %v202, %v201
      %v209 = vpack.c.b16 %v204, %v203
      %v210 = vpack.c.b16 %v206, %v205
      %vm211 = vcmask 64512
      %v213 = vsel %vm211, %v207, 0
      %v216 = vsel %vm211, %v208, 0
      %v219 = vsel %vm211, %v209, 0
      %v222 = vsel %vm211, %v210, 0
      %vm224 = vcmask 1043456
      %v226 = vsel %vm224, %v183, 0
      %228 = vmatprep.subr.bf16.mxu0 0
      %229 = vmatpush1.bf16.msra.mxu0 %v226
      %230 = vmatprep.subr.bf16.mxu0 0
      %231 = vmatpush1.bf16.msra.mxu0 0
      %232 = vmatprep.subr.bf16.mxu0 0
      %233 = vmatpush1.bf16.msra.mxu0 0
      %234 = vmatprep.subr.bf16.mxu0 0
      %235 = vmatpush1.bf16.msra.mxu0 0
      %236 = vmatprep.subr.bf16.mxu0 0
      %237 = vmatpush1.bf16.msra.mxu0 0
      %238 = vmatprep.subr.bf16.mxu0 0
      %239 = vmatpush1.bf16.msra.mxu0 0
      %240 = vmatprep.subr.bf16.mxu0 0
      %241 = vmatpush1.bf16.msra.mxu0 0
      %242 = vmatprep.subr.bf16.mxu0 0
      %243 = vmatpush1.bf16.msra.mxu0 0
      %244 = vmatprep.subr.bf16.mxu0 0
      %245 = vmatpush1.bf16.msra.mxu0 0
      %246 = vmatprep.subr.bf16.mxu0 0
      %247 = vmatpush1.bf16.msra.mxu0 0
      %248 = vmatprep.subr.bf16.mxu0 0
      %249 = vmatpush1.bf16.msra.mxu0 0
      %250 = vmatprep.subr.bf16.mxu0 0
      %251 = vmatpush1.bf16.msra.mxu0 0
      %252 = vmatprep.subr.bf16.mxu0 0
      %253 = vmatpush1.bf16.msra.mxu0 0
      %254 = vmatprep.subr.bf16.mxu0 0
      %255 = vmatpush1.bf16.msra.mxu0 0
      %256 = vmatprep.subr.bf16.mxu0 0
      %257 = vmatpush1.bf16.msra.mxu0 0
      %258 = vmatprep.subr.bf16.mxu0 0
      %259 = vmatpush1.bf16.msra.mxu0 0
      %260 = vmatprep.mubr.bf16.mxu0 0
      %261 = vmatmul.mubr.bf16.gmra.mrb[0].mxu0 %v213
      %v262 = vpop.f32.mrb[0].mxu0
      %v263 = vadd.f32 %v189, %v262
      %v264 = vpop.f32.mrb[0].mxu0
      %v265 = vpop.f32.mrb[0].mxu0
      %v266 = vadd.f32 %v189, %v265
      %v267 = vpop.f32.mrb[0].mxu0
      %268 = vmatprep.mubr.bf16.mxu0 0
      %269 = vmatmul.mubr.bf16.gmra.mrb[0].mxu0 %v216
      %v270 = vpop.f32.mrb[0].mxu0
      %v271 = vadd.f32 %v189, %v270
      %v272 = vpop.f32.mrb[0].mxu0
      %v273 = vpop.f32.mrb[0].mxu0
      %v274 = vadd.f32 %v189, %v273
      %v275 = vpop.f32.mrb[0].mxu0
      %276 = vmatprep.mubr.bf16.mxu0 0
      %277 = vmatmul.mubr.bf16.gmra.mrb[0].mxu0 %v219
      %v278 = vpop.f32.mrb[0].mxu0
      %v279 = vadd.f32 %v189, %v278
      %v280 = vpop.f32.mrb[0].mxu0
      %v281 = vpop.f32.mrb[0].mxu0
      %v282 = vadd.f32 %v189, %v281
      %v283 = vpop.f32.mrb[0].mxu0
      %284 = vmatprep.mubr.bf16.mxu0 0
      %285 = vmatmul.mubr.bf16.gmra.mrb[0].mxu0 %v222
      %v286 = vpop.f32.mrb[0].mxu0
      %v287 = vadd.f32 %v189, %v286
      %v288 = vpop.f32.mrb[0].mxu0
      %v289 = vpop.f32.mrb[0].mxu0
      %v290 = vadd.f32 %v189, %v289
      %v291 = vpop.f32.mrb[0].mxu0
      %292 = vdwg.mxu0
      %vm293 = vcmask 130048
      %294 = vst.msk [vmem:[%s172] sm:$0xff] %vm293, %v263
      %295 = vst.msk [vmem:[%s172 + $0x8] sm:$0xff] %vm293, %v266
      %296 = vst.msk [vmem:[%s172 + $0x10] sm:$0xff] %vm293, %v271
      %297 = vst.msk [vmem:[%s172 + $0x18] sm:$0xff] %vm293, %v274
      %298 = vst.msk [vmem:[%s172 + $0x20] sm:$0xff] %vm293, %v279
      %299 = vst.msk [vmem:[%s172 + $0x28] sm:$0xff] %vm293, %v282
      %300 = vst.msk [vmem:[%s172 + $0x30] sm:$0xff] %vm293, %v287
      %301 = vst.msk [vmem:[%s172 + $0x38] sm:$0xff] %vm293, %v290
      %s302 = smul.u32 8, %s14
      %p303 = scmp.lt.s32.totalorder %s302, 15
      %s304 = scalar_select %p303, %s302, 15
      %s305 = smul.addr %s304, 8
      %s306 = scalar_lea.vmem %s3, %s305
      // Predicated region
      $region33: #{_lambda_.99} parent=31 // pred_check
        %p307 = pneg %p100
      $region34: #{_lambda_.99} parent=31 // pred_check_branch
        %309 = sbr.rel (%p307) target = $region36
      $region35: #{_lambda_.99} parent=31 // pred_region
        %s310 = smul.u32 8, %s14
      $region36: #{_lambda_.99} parent=31 // pred_fallthru
        _
    $region32: #{_lambda_.99} parent=5 // pred_fallthru
      _
    %p311 = scmp.le.s32.totalorder 2, %s9
    // Predicated region
    $region37: #{_lambda_.99} parent=5 // pred_check
      %p312 = pneg %p311
    $region38: #{_lambda_.99} parent=5 // pred_check_branch
      %314 = sbr.rel (%p312) target = $region40
    $region39: #{_lambda_.99} parent=5 // pred_region
      %s315 = ssub.s32 %s9, 2
      // Predicated region
      $region41: #{_lambda_.99} parent=39 // pred_check
        %p316 = pneg %p106
      $region42: #{_lambda_.99} parent=39 // pred_check_branch
        %318 = sbr.rel (%p316) target = $region44
      $region43: #{_lambda_.99} parent=39 // pred_region
        %s319 = smul.u32 8, %s15
        %p320 = scmp.lt.s32.totalorder %s319, 15
        %s321 = scalar_select %p320, %s319, 15
        %s322 = smul.addr %s321, 8
        %s323 = scalar_lea.vmem %s3, %s322
      $region44: #{_lambda_.99} parent=39 // pred_fallthru
        _
    $region40: #{_lambda_.99} parent=5 // pred_fallthru
      _
  $region6: #{_lambda_.99} parent=0 // loop_footer
    %s13 = sadd.s32 1, %s9
  $region7: #{_lambda_.99} parent=0 // loop_footer_branch
    %8 = sbr.rel target = $region3
  $region8: #{_lambda_.99} parent=0 // loop_exit
    _

// kernel: _lambda_.103
$region0: #{_lambda_.103}
  #allocation0 [shape = 'u32[]', space=smem, size = 0x4, offset = 0x4, fixed_abs, tag = 'smem constant byte address 0x4 - core index']
  #allocation1 [shape = 'u32[144,128]{1,0:T(1,128)}', space=vmem, size = 0x12000, scoped, tag = 'internal scratch']
  %s0 = inlined_call_operand.vmem [shape: bf16[128,16], index: 0, kind: input, shape index: {}]
  %s1 = inlined_call_operand.vmem [shape: bf16[16,12], index: 1, kind: input, shape index: {}]
  %s2 = inlined_call_operand.vmem [shape: f32[1,12], index: 2, kind: input, shape index: {}]
  %s3 = inlined_call_operand.vmem [shape: f32[128,12], index: 3, kind: output, shape index: {}]
  %s4 = sld [smem:[#allocation0]]
  $region45: #{_lambda_.103} parent=0
    _
  %s6 = ssub.s32 1, %s4
  %s7 = scalar_select 0, %s6, %s4
  loop: start=0, step=1, limit=4
  $region2: #{_lambda_.103} parent=0 // loop_pre_header
    _
  $region3: #{_lambda_.103} parent=0 // loop_header
    %s9 = sphi 0, %s13
    %p10 = scmp.ge.s32.totalorder %s9, 4
    %s19 = sphi 0, %s21
    %s22 = sphi 0, %s19
    %s23 = sphi 0, %s22
    %s39 = sphi 0, %s23
    %s43 = sphi 0, %s43
    %s45 = sphi 0, %s43
    %s46 = sphi 0, %s45
    %s60 = sphi 0, %s46
    %s64 = sphi 0, %s64
    %s66 = sphi 0, %s64
    %s67 = sphi 0, %s66
    %s81 = sphi 0, %s67
    %s87 = sphi 0, %s89
    %s90 = sphi 0, %s87
    %s91 = sphi 0, %s90
    %s107 = sphi 0, %s91
  $region4: #{_lambda_.103} parent=0 // loop_header_branch
    %12 = sbr.rel (%p10) target = $region8
  $region5: #{_lambda_.103} parent=0 // loop_body
    %s14 = ssub.s32 %s9, 1
    %s15 = ssub.s32 %s9, 2
    %s16 = sadd.s32 %s9, 1
    %s17 = ssub.s32 %s9, %s16
    %p18 = scmp.eq.s32.totalorder %s17, 0
    %s20 = sadd.s32 %s19, 1
    %s21 = scalar_select %p18, %s19, %s20
    %p24 = pneg %p18
    %p25 = scmp.eq.s32.totalorder %s9, 1
    %p26 = por %p24, %p25
    %p27 = scmp.ne.s32.totalorder %s19, %s22
    %p28 = scmp.eq.s32.totalorder %s9, 0
    %p29 = por %p27, %p28
    %p30 = scmp.ne.s32.totalorder %s19, %s22
    %p31 = scmp.eq.s32.totalorder %s14, 1
    %p32 = por %p30, %p31
    %p33 = scmp.ne.s32.totalorder %s22, %s23
    %p34 = scmp.eq.s32.totalorder %s14, 0
    %p35 = por %p33, %p34
    %p36 = scmp.ne.s32.totalorder %s22, %s23
    %p37 = scmp.eq.s32.totalorder %s15, 1
    %p38 = por %p36, %p37
    %p40 = scmp.ne.s32.totalorder %s23, %s39
    %p41 = scmp.eq.s32.totalorder %s15, 0
    %p42 = por %p40, %p41
    %s44 = sadd.s32 %s43, 1
    %p47 = scmp.eq.s32.totalorder %s9, 1
    %p48 = scmp.ne.s32.totalorder %s43, %s45
    %p49 = scmp.eq.s32.totalorder %s9, 0
    %p50 = por %p48, %p49
    %p51 = scmp.ne.s32.totalorder %s43, %s45
    %p52 = scmp.eq.s32.totalorder %s14, 1
    %p53 = por %p51, %p52
    %p54 = scmp.ne.s32.totalorder %s45, %s46
    %p55 = scmp.eq.s32.totalorder %s14, 0
    %p56 = por %p54, %p55
    %p57 = scmp.ne.s32.totalorder %s45, %s46
    %p58 = scmp.eq.s32.totalorder %s15, 1
    %p59 = por %p57, %p58
    %p61 = scmp.ne.s32.totalorder %s46, %s60
    %p62 = scmp.eq.s32.totalorder %s15, 0
    %p63 = por %p61, %p62
    %s65 = sadd.s32 %s64, 1
    %p68 = scmp.eq.s32.totalorder %s9, 1
    %p69 = scmp.ne.s32.totalorder %s64, %s66
    %p70 = scmp.eq.s32.totalorder %s9, 0
    %p71 = por %p69, %p70
    %p72 = scmp.ne.s32.totalorder %s64, %s66
    %p73 = scmp.eq.s32.totalorder %s14, 1
    %p74 = por %p72, %p73
    %p75 = scmp.ne.s32.totalorder %s66, %s67
    %p76 = scmp.eq.s32.totalorder %s14, 0
    %p77 = por %p75, %p76
    %p78 = scmp.ne.s32.totalorder %s66, %s67
    %p79 = scmp.eq.s32.totalorder %s15, 1
    %p80 = por %p78, %p79
    %p82 = scmp.ne.s32.totalorder %s67, %s81
    %p83 = scmp.eq.s32.totalorder %s15, 0
    %p84 = por %p82, %p83
    %s85 = ssub.s32 %s9, %s16
    %p86 = scmp.eq.s32.totalorder %s85, 0
    %s88 = sadd.s32 %s87, 1
    %s89 = scalar_select %p86, %s87, %s88
    %p92 = pneg %p86
    %p93 = scmp.eq.s32.totalorder %s9, 1
    %p94 = por %p92, %p93
    %p95 = scmp.ne.s32.totalorder %s87, %s90
    %p96 = scmp.eq.s32.totalorder %s9, 0
    %p97 = por %p95, %p96
    %p98 = scmp.ne.s32.totalorder %s87, %s90
    %p99 = scmp.eq.s32.totalorder %s14, 1
    %p100 = por %p98, %p99
    %p101 = scmp.ne.s32.totalorder %s90, %s91
    %p102 = scmp.eq.s32.totalorder %s14, 0
    %p103 = por %p101, %p102
    %p104 = scmp.ne.s32.totalorder %s90, %s91
    %p105 = scmp.eq.s32.totalorder %s15, 1
    %p106 = por %p104, %p105
    %p108 = scmp.ne.s32.totalorder %s91, %s107
    %p109 = scmp.eq.s32.totalorder %s15, 0
    %p110 = por %p108, %p109
    %p111 = scmp.le.s32.totalorder 1, %s9
    %p112 = scmp.lt.s32.totalorder %s9, 3
    %p113 = pnand %p111, %p112
    %p114 = pneg %p113
    // Predicated region
    $region9: #{_lambda_.103} parent=5 // pred_check
      _
    $region10: #{_lambda_.103} parent=5 // pred_check_branch
      %116 = sbr.rel (%p113) target = $region12
    $region11: #{_lambda_.103} parent=5 // pred_region
      %s117 = ssub.s32 %s9, 1
      // Predicated region
      $region13: #{_lambda_.103} parent=11 // pred_check
        %p118 = pneg %p56
      $region14: #{_lambda_.103} parent=11 // pred_check_branch
        %120 = sbr.rel (%p118) target = $region16
      $region15: #{_lambda_.103} parent=11 // pred_region
        _
      $region16: #{_lambda_.103} parent=11 // pred_fallthru
        _
      // Predicated region
      $region17: #{_lambda_.103} parent=11 // pred_check
        %p121 = pneg %p77
      $region18: #{_lambda_.103} parent=11 // pred_check_branch
        %123 = sbr.rel (%p121) target = $region20
      $region19: #{_lambda_.103} parent=11 // pred_region
        _
      $region20: #{_lambda_.103} parent=11 // pred_fallthru
        _
    $region12: #{_lambda_.103} parent=5 // pred_fallthru
      _
    %p124 = scmp.lt.s32.totalorder %s9, 2
    // Predicated region
    $region21: #{_lambda_.103} parent=5 // pred_check
      %p125 = pneg %p124
    $region22: #{_lambda_.103} parent=5 // pred_check_branch
      %127 = sbr.rel (%p125) target = $region24
    $region23: #{_lambda_.103} parent=5 // pred_region
      // Predicated region
      $region25: #{_lambda_.103} parent=23 // pred_check
        %p128 = pneg %p29
      $region26: #{_lambda_.103} parent=23 // pred_check_branch
        %130 = sbr.rel (%p128) target = $region28
      $region27: #{_lambda_.103} parent=23 // pred_region
        %s131 = smul.u32 8, %s9
        %p132 = scmp.lt.s32.totalorder %s131, 15
        %s133 = scalar_select %p132, %s131, 15
        %s134 = smul.addr %s133, 4
        %s135 = scalar_lea.vmem %s0, %s134
        %s136 = smul.u32 8, %s9
      $region28: #{_lambda_.103} parent=23 // pred_fallthru
        _
    $region24: #{_lambda_.103} parent=5 // pred_fallthru
      _
    %p137 = scmp.le.s32.totalorder 1, %s9
    %p138 = scmp.lt.s32.totalorder %s9, 3
    %p139 = pnand %p137, %p138
    %p140 = pneg %p139
    // Predicated region
    $region29: #{_lambda_.103} parent=5 // pred_check
      _
    $region30: #{_lambda_.103} parent=5 // pred_check_branch
      %142 = sbr.rel (%p139) target = $region32
    $region31: #{_lambda_.103} parent=5 // pred_region
      %s143 = ssub.s32 %s9, 1
      %s144 = smul.u32 8, %s14
      %p145 = scmp.lt.s32.totalorder %s144, 15
      %s146 = scalar_select %p145, %s144, 15
      %s147 = smul.addr %s146, 4
      %s148 = scalar_lea.vmem %s0, %s147
      %p149 = pneg %p35
      %p150 = pneg %p32
      %p151 = pneg %p56
      %p152 = pneg %p53
      %p153 = pneg %p77
      %p154 = pneg %p74
      %p155 = pneg %p103
      %p156 = pneg %p100
      %s157 = smul.u32 8, %s14
      %p158 = scmp.lt.s32.totalorder %s157, 15
      %s159 = scalar_select %p158, %s157, 15
      %s160 = smul.addr %s159, 8
      %s161 = scalar_lea.vmem %s3, %s160
      %s162 = smul.u32 8, %s14
      %p163 = scmp.lt.s32.totalorder %s162, 15
      %s164 = scalar_select %p163, %s162, 15
      %s165 = smul.addr %s164, 4
      %s166 = scalar_lea.vmem %s0, %s165
      %s167 = smul.u32 8, %s14
      %s168 = smul.u32 8, %s14
      %p169 = scmp.lt.s32.totalorder %s168, 15
      %s170 = scalar_select %p169, %s168, 15
      %s171 = smul.addr %s170, 8
      %s172 = scalar_lea.vmem %s3, %s171
      %s173 = smul.u32 8, %s14
      %v175 = vld [vmem:[%s166] sm:$0xf]
      %v176 = vld [vmem:[%s166 + $0x4] sm:$0xf]
      %v177 = vld [vmem:[%s166 + $0x8] sm:$0xf]
      %v178 = vld [vmem:[%s166 + $0xc] sm:$0xf]
      %v179 = vld [vmem:[%s166 + $0x10] sm:$0xf]
      %v180 = vld [vmem:[%s166 + $0x14] sm:$0xf]
      %v181 = vld [vmem:[%s166 + $0x18] sm:$0xf]
      %v182 = vld [vmem:[%s166 + $0x1c] sm:$0xf]
      %v183 = vld [vmem:[%s1] sm:$0xf]
      %v184 = vld [vmem:[%s1 + $0x4] sm:$0xf]
      %v185 = vld [vmem:[%s2] sm:$0x1]
      %v187 = vlaneseq
      %v188 = vshrl.u32 %v187, 7
      %v189 = vsub.s32 0, %v188
      %v190 = vrot.slane %v185, %v189
      %v200 = vunpack.c.l.b16 %v175
      %v201 = vunpack.c.l.b16 %v176
      %v202 = vunpack.c.l.b16 %v177
      %v203 = vunpack.c.l.b16 %v178
      %v204 = vunpack.c.l.b16 %v179
      %v205 = vunpack.c.l.b16 %v180
      %v206 = vunpack.c.l.b16 %v181
      %v207 = vunpack.c.l.b16 %v182
      %v208 = vpack.c.b16 %v201, %v200
      %v209 = vpack.c.b16 %v203, %v202
      %v210 = vpack.c.b16 %v205, %v204
      %v211 = vpack.c.b16 %v207, %v206
      %v214 = vunpack.c.l.b16 %v183
      %v215 = vunpack.c.l.b16 %v184
      %v216 = vpack.c.b16 %v215, %v214
      %vm218 = vcmask 130048
      %v220 = vsel %vm218, %v208, 0
      %v223 = vsel %vm218, %v209, 0
      %v226 = vsel %vm218, %v210, 0
      %v229 = vsel %vm218, %v211, 0
      %231 = vmatprep.subr.bf16.mxu0 0
      %232 = vmatpush1.bf16.msra.mxu0 %v216
      %233 = vmatprep.subr.bf16.mxu0 0
      %234 = vmatpush1.bf16.msra.mxu0 0
      %235 = vmatprep.subr.bf16.mxu0 0
      %236 = vmatpush1.bf16.msra.mxu0 0
      %237 = vmatprep.subr.bf16.mxu0 0
      %238 = vmatpush1.bf16.msra.mxu0 0
      %239 = vmatprep.subr.bf16.mxu0 0
      %240 = vmatpush1.bf16.msra.mxu0 0
      %241 = vmatprep.subr.bf16.mxu0 0
      %242 = vmatpush1.bf16.msra.mxu0 0
      %243 = vmatprep.subr.bf16.mxu0 0
      %244 = vmatpush1.bf16.msra.mxu0 0
      %245 = vmatprep.subr.bf16.mxu0 0
      %246 = vmatpush1.bf16.msra.mxu0 0
      %247 = vmatprep.subr.bf16.mxu0 0
      %248 = vmatpush1.bf16.msra.mxu0 0
      %249 = vmatprep.subr.bf16.mxu0 0
      %250 = vmatpush1.bf16.msra.mxu0 0
      %251 = vmatprep.subr.bf16.mxu0 0
      %252 = vmatpush1.bf16.msra.mxu0 0
      %253 = vmatprep.subr.bf16.mxu0 0
      %254 = vmatpush1.bf16.msra.mxu0 0
      %255 = vmatprep.subr.bf16.mxu0 0
      %256 = vmatpush1.bf16.msra.mxu0 0
      %257 = vmatprep.subr.bf16.mxu0 0
      %258 = vmatpush1.bf16.msra.mxu0 0
      %259 = vmatprep.subr.bf16.mxu0 0
      %260 = vmatpush1.bf16.msra.mxu0 0
      %261 = vmatprep.subr.bf16.mxu0 0
      %262 = vmatpush1.bf16.msra.mxu0 0
      %263 = vmatprep.mubr.bf16.mxu0 0
      %264 = vmatmul.mubr.bf16.gmra.mrb[0].mxu0 %v220
      %v265 = vpop.f32.mrb[0].mxu0
      %v266 = vadd.f32 %v190, %v265
      %v267 = vpop.f32.mrb[0].mxu0
      %v268 = vpop.f32.mrb[0].mxu0
      %v269 = vadd.f32 %v190, %v268
      %v270 = vpop.f32.mrb[0].mxu0
      %271 = vmatprep.mubr.bf16.mxu0 0
      %272 = vmatmul.mubr.bf16.gmra.mrb[0].mxu0 %v223
      %v273 = vpop.f32.mrb[0].mxu0
      %v274 = vadd.f32 %v190, %v273
      %v275 = vpop.f32.mrb[0].mxu0
      %v276 = vpop.f32.mrb[0].mxu0
      %v277 = vadd.f32 %v190, %v276
      %v278 = vpop.f32.mrb[0].mxu0
      %279 = vmatprep.mubr.bf16.mxu0 0
      %280 = vmatmul.mubr.bf16.gmra.mrb[0].mxu0 %v226
      %v281 = vpop.f32.mrb[0].mxu0
      %v282 = vadd.f32 %v190, %v281
      %v283 = vpop.f32.mrb[0].mxu0
      %v284 = vpop.f32.mrb[0].mxu0
      %v285 = vadd.f32 %v190, %v284
      %v286 = vpop.f32.mrb[0].mxu0
      %287 = vmatprep.mubr.bf16.mxu0 0
      %288 = vmatmul.mubr.bf16.gmra.mrb[0].mxu0 %v229
      %v289 = vpop.f32.mrb[0].mxu0
      %v290 = vadd.f32 %v190, %v289
      %v291 = vpop.f32.mrb[0].mxu0
      %v292 = vpop.f32.mrb[0].mxu0
      %v293 = vadd.f32 %v190, %v292
      %v294 = vpop.f32.mrb[0].mxu0
      %295 = vdwg.mxu0
      %vm296 = vcmask 97280
      %297 = vst.msk [vmem:[%s172] sm:$0xff] %vm296, %v266
      %298 = vst.msk [vmem:[%s172 + $0x8] sm:$0xff] %vm296, %v269
      %299 = vst.msk [vmem:[%s172 + $0x10] sm:$0xff] %vm296, %v274
      %300 = vst.msk [vmem:[%s172 + $0x18] sm:$0xff] %vm296, %v277
      %301 = vst.msk [vmem:[%s172 + $0x20] sm:$0xff] %vm296, %v282
      %302 = vst.msk [vmem:[%s172 + $0x28] sm:$0xff] %vm296, %v285
      %303 = vst.msk [vmem:[%s172 + $0x30] sm:$0xff] %vm296, %v290
      %304 = vst.msk [vmem:[%s172 + $0x38] sm:$0xff] %vm296, %v293
      %s305 = smul.u32 8, %s14
      %p306 = scmp.lt.s32.totalorder %s305, 15
      %s307 = scalar_select %p306, %s305, 15
      %s308 = smul.addr %s307, 8
      %s309 = scalar_lea.vmem %s3, %s308
      // Predicated region
      $region33: #{_lambda_.103} parent=31 // pred_check
        %p310 = pneg %p100
      $region34: #{_lambda_.103} parent=31 // pred_check_branch
        %312 = sbr.rel (%p310) target = $region36
      $region35: #{_lambda_.103} parent=31 // pred_region
        %s313 = smul.u32 8, %s14
      $region36: #{_lambda_.103} parent=31 // pred_fallthru
        _
    $region32: #{_lambda_.103} parent=5 // pred_fallthru
      _
    %p314 = scmp.le.s32.totalorder 2, %s9
    // Predicated region
    $region37: #{_lambda_.103} parent=5 // pred_check
      %p315 = pneg %p314
    $region38: #{_lambda_.103} parent=5 // pred_check_branch
      %317 = sbr.rel (%p315) target = $region40
    $region39: #{_lambda_.103} parent=5 // pred_region
      %s318 = ssub.s32 %s9, 2
      // Predicated region
      $region41: #{_lambda_.103} parent=39 // pred_check
        %p319 = pneg %p106
      $region42: #{_lambda_.103} parent=39 // pred_check_branch
        %321 = sbr.rel (%p319) target = $region44
      $region43: #{_lambda_.103} parent=39 // pred_region
        %s322 = smul.u32 8, %s15
        %p323 = scmp.lt.s32.totalorder %s322, 15
        %s324 = scalar_select %p323, %s322, 15
        %s325 = smul.addr %s324, 8
        %s326 = scalar_lea.vmem %s3, %s325
      $region44: #{_lambda_.103} parent=39 // pred_fallthru
        _
    $region40: #{_lambda_.103} parent=5 // pred_fallthru
      _
  $region6: #{_lambda_.103} parent=0 // loop_footer
    %s13 = sadd.s32 1, %s9
  $region7: #{_lambda_.103} parent=0 // loop_footer_branch
    %8 = sbr.rel target = $region3
  $region8: #{_lambda_.103} parent=0 // loop_exit
    _

// kernel: _lambda_.104
$region0: #{_lambda_.104}
  #allocation0 [shape = 'u32[]', space=smem, size = 0x4, offset = 0x4, fixed_abs, tag = 'smem constant byte address 0x4 - core index']
  #allocation1 [shape = 'u32[144,128]{1,0:T(1,128)}', space=vmem, size = 0x12000, scoped, tag = 'internal scratch']
  %s0 = inlined_call_operand.vmem [shape: bf16[32,16], index: 0, kind: input, shape index: {}]
  %s1 = inlined_call_operand.vmem [shape: bf16[16,4], index: 1, kind: input, shape index: {}]
  %s2 = inlined_call_operand.vmem [shape: f32[1,4], index: 2, kind: input, shape index: {}]
  %s3 = inlined_call_operand.vmem [shape: f32[32,4], index: 3, kind: output, shape index: {}]
  %s4 = sld [smem:[#allocation0]]
  $region45: #{_lambda_.104} parent=0
    _
  %s6 = ssub.s32 1, %s4
  %s7 = scalar_select 0, %s6, %s4
  loop: start=0, step=1, limit=4
  $region2: #{_lambda_.104} parent=0 // loop_pre_header
    _
  $region3: #{_lambda_.104} parent=0 // loop_header
    %s9 = sphi 0, %s13
    %p10 = scmp.ge.s32.totalorder %s9, 4
    %s19 = sphi 0, %s21
    %s22 = sphi 0, %s19
    %s23 = sphi 0, %s22
    %s39 = sphi 0, %s23
    %s43 = sphi 0, %s43
    %s45 = sphi 0, %s43
    %s46 = sphi 0, %s45
    %s60 = sphi 0, %s46
    %s64 = sphi 0, %s64
    %s66 = sphi 0, %s64
    %s67 = sphi 0, %s66
    %s81 = sphi 0, %s67
    %s87 = sphi 0, %s89
    %s90 = sphi 0, %s87
    %s91 = sphi 0, %s90
    %s107 = sphi 0, %s91
  $region4: #{_lambda_.104} parent=0 // loop_header_branch
    %12 = sbr.rel (%p10) target = $region8
  $region5: #{_lambda_.104} parent=0 // loop_body
    %s14 = ssub.s32 %s9, 1
    %s15 = ssub.s32 %s9, 2
    %s16 = sadd.s32 %s9, 1
    %s17 = ssub.s32 %s9, %s16
    %p18 = scmp.eq.s32.totalorder %s17, 0
    %s20 = sadd.s32 %s19, 1
    %s21 = scalar_select %p18, %s19, %s20
    %p24 = pneg %p18
    %p25 = scmp.eq.s32.totalorder %s9, 1
    %p26 = por %p24, %p25
    %p27 = scmp.ne.s32.totalorder %s19, %s22
    %p28 = scmp.eq.s32.totalorder %s9, 0
    %p29 = por %p27, %p28
    %p30 = scmp.ne.s32.totalorder %s19, %s22
    %p31 = scmp.eq.s32.totalorder %s14, 1
    %p32 = por %p30, %p31
    %p33 = scmp.ne.s32.totalorder %s22, %s23
    %p34 = scmp.eq.s32.totalorder %s14, 0
    %p35 = por %p33, %p34
    %p36 = scmp.ne.s32.totalorder %s22, %s23
    %p37 = scmp.eq.s32.totalorder %s15, 1
    %p38 = por %p36, %p37
    %p40 = scmp.ne.s32.totalorder %s23, %s39
    %p41 = scmp.eq.s32.totalorder %s15, 0
    %p42 = por %p40, %p41
    %s44 = sadd.s32 %s43, 1
    %p47 = scmp.eq.s32.totalorder %s9, 1
    %p48 = scmp.ne.s32.totalorder %s43, %s45
    %p49 = scmp.eq.s32.totalorder %s9, 0
    %p50 = por %p48, %p49
    %p51 = scmp.ne.s32.totalorder %s43, %s45
    %p52 = scmp.eq.s32.totalorder %s14, 1
    %p53 = por %p51, %p52
    %p54 = scmp.ne.s32.totalorder %s45, %s46
    %p55 = scmp.eq.s32.totalorder %s14, 0
    %p56 = por %p54, %p55
    %p57 = scmp.ne.s32.totalorder %s45, %s46
    %p58 = scmp.eq.s32.totalorder %s15, 1
    %p59 = por %p57, %p58
    %p61 = scmp.ne.s32.totalorder %s46, %s60
    %p62 = scmp.eq.s32.totalorder %s15, 0
    %p63 = por %p61, %p62
    %s65 = sadd.s32 %s64, 1
    %p68 = scmp.eq.s32.totalorder %s9, 1
    %p69 = scmp.ne.s32.totalorder %s64, %s66
    %p70 = scmp.eq.s32.totalorder %s9, 0
    %p71 = por %p69, %p70
    %p72 = scmp.ne.s32.totalorder %s64, %s66
    %p73 = scmp.eq.s32.totalorder %s14, 1
    %p74 = por %p72, %p73
    %p75 = scmp.ne.s32.totalorder %s66, %s67
    %p76 = scmp.eq.s32.totalorder %s14, 0
    %p77 = por %p75, %p76
    %p78 = scmp.ne.s32.totalorder %s66, %s67
    %p79 = scmp.eq.s32.totalorder %s15, 1
    %p80 = por %p78, %p79
    %p82 = scmp.ne.s32.totalorder %s67, %s81
    %p83 = scmp.eq.s32.totalorder %s15, 0
    %p84 = por %p82, %p83
    %s85 = ssub.s32 %s9, %s16
    %p86 = scmp.eq.s32.totalorder %s85, 0
    %s88 = sadd.s32 %s87, 1
    %s89 = scalar_select %p86, %s87, %s88
    %p92 = pneg %p86
    %p93 = scmp.eq.s32.totalorder %s9, 1
    %p94 = por %p92, %p93
    %p95 = scmp.ne.s32.totalorder %s87, %s90
    %p96 = scmp.eq.s32.totalorder %s9, 0
    %p97 = por %p95, %p96
    %p98 = scmp.ne.s32.totalorder %s87, %s90
    %p99 = scmp.eq.s32.totalorder %s14, 1
    %p100 = por %p98, %p99
    %p101 = scmp.ne.s32.totalorder %s90, %s91
    %p102 = scmp.eq.s32.totalorder %s14, 0
    %p103 = por %p101, %p102
    %p104 = scmp.ne.s32.totalorder %s90, %s91
    %p105 = scmp.eq.s32.totalorder %s15, 1
    %p106 = por %p104, %p105
    %p108 = scmp.ne.s32.totalorder %s91, %s107
    %p109 = scmp.eq.s32.totalorder %s15, 0
    %p110 = por %p108, %p109
    %p111 = scmp.le.s32.totalorder 1, %s9
    %p112 = scmp.lt.s32.totalorder %s9, 3
    %p113 = pnand %p111, %p112
    %p114 = pneg %p113
    // Predicated region
    $region9: #{_lambda_.104} parent=5 // pred_check
      _
    $region10: #{_lambda_.104} parent=5 // pred_check_branch
      %116 = sbr.rel (%p113) target = $region12
    $region11: #{_lambda_.104} parent=5 // pred_region
      %s117 = ssub.s32 %s9, 1
      // Predicated region
      $region13: #{_lambda_.104} parent=11 // pred_check
        %p118 = pneg %p56
      $region14: #{_lambda_.104} parent=11 // pred_check_branch
        %120 = sbr.rel (%p118) target = $region16
      $region15: #{_lambda_.104} parent=11 // pred_region
        _
      $region16: #{_lambda_.104} parent=11 // pred_fallthru
        _
      // Predicated region
      $region17: #{_lambda_.104} parent=11 // pred_check
        %p121 = pneg %p77
      $region18: #{_lambda_.104} parent=11 // pred_check_branch
        %123 = sbr.rel (%p121) target = $region20
      $region19: #{_lambda_.104} parent=11 // pred_region
        _
      $region20: #{_lambda_.104} parent=11 // pred_fallthru
        _
    $region12: #{_lambda_.104} parent=5 // pred_fallthru
      _
    %p124 = scmp.lt.s32.totalorder %s9, 2
    // Predicated region
    $region21: #{_lambda_.104} parent=5 // pred_check
      %p125 = pneg %p124
    $region22: #{_lambda_.104} parent=5 // pred_check_branch
      %127 = sbr.rel (%p125) target = $region24
    $region23: #{_lambda_.104} parent=5 // pred_region
      // Predicated region
      $region25: #{_lambda_.104} parent=23 // pred_check
        %p128 = pneg %p29
      $region26: #{_lambda_.104} parent=23 // pred_check_branch
        %130 = sbr.rel (%p128) target = $region28
      $region27: #{_lambda_.104} parent=23 // pred_region
        %s131 = smul.u32 2, %s9
        %p132 = scmp.lt.s32.totalorder %s131, 3
        %s133 = scalar_select %p132, %s131, 3
        %s134 = smul.addr %s133, 4
        %s135 = scalar_lea.vmem %s0, %s134
        %s136 = smul.u32 2, %s9
      $region28: #{_lambda_.104} parent=23 // pred_fallthru
        _
    $region24: #{_lambda_.104} parent=5 // pred_fallthru
      _
    %p137 = scmp.le.s32.totalorder 1, %s9
    %p138 = scmp.lt.s32.totalorder %s9, 3
    %p139 = pnand %p137, %p138
    %p140 = pneg %p139
    // Predicated region
    $region29: #{_lambda_.104} parent=5 // pred_check
      _
    $region30: #{_lambda_.104} parent=5 // pred_check_branch
      %142 = sbr.rel (%p139) target = $region32
    $region31: #{_lambda_.104} parent=5 // pred_region
      %s143 = ssub.s32 %s9, 1
      %s144 = smul.u32 2, %s14
      %p145 = scmp.lt.s32.totalorder %s144, 3
      %s146 = scalar_select %p145, %s144, 3
      %s147 = smul.addr %s146, 4
      %s148 = scalar_lea.vmem %s0, %s147
      %p149 = pneg %p35
      %p150 = pneg %p32
      %p151 = pneg %p56
      %p152 = pneg %p53
      %p153 = pneg %p77
      %p154 = pneg %p74
      %p155 = pneg %p103
      %p156 = pneg %p100
      %s157 = smul.u32 2, %s14
      %p158 = scmp.lt.s32.totalorder %s157, 3
      %s159 = scalar_select %p158, %s157, 3
      %s160 = smul.addr %s159, 8
      %s161 = scalar_lea.vmem %s3, %s160
      %s162 = smul.u32 2, %s14
      %p163 = scmp.lt.s32.totalorder %s162, 3
      %s164 = scalar_select %p163, %s162, 3
      %s165 = smul.addr %s164, 4
      %s166 = scalar_lea.vmem %s0, %s165
      %s167 = smul.u32 2, %s14
      %s168 = smul.u32 2, %s14
      %p169 = scmp.lt.s32.totalorder %s168, 3
      %s170 = scalar_select %p169, %s168, 3
      %s171 = smul.addr %s170, 8
      %s172 = scalar_lea.vmem %s3, %s171
      %s173 = smul.u32 2, %s14
      %v175 = vld [vmem:[%s166] sm:$0xf]
      %v176 = vld [vmem:[%s166 + $0x4] sm:$0xf]
      %v177 = vld [vmem:[%s1] sm:$0xf]
      %v178 = vld [vmem:[%s1 + $0x4] sm:$0xf]
      %v179 = vld [vmem:[%s2] sm:$0x1]
      %v181 = vlaneseq
      %v182 = vshrl.u32 %v181, 7
      %v183 = vsub.s32 0, %v182
      %v184 = vrot.slane %v179, %v183
      %v188 = vunpack.c.l.b16 %v175
      %v189 = vunpack.c.l.b16 %v176
      %v190 = vpack.c.b16 %v189, %v188
      %v193 = vunpack.c.l.b16 %v177
      %v194 = vunpack.c.l.b16 %v178
      %v195 = vpack.c.b16 %v194, %v193
      %vm197 = vcmask 130048
      %v199 = vsel %vm197, %v190, 0
      %201 = vmatprep.subr.bf16.mxu0 0
      %202 = vmatpush1.bf16.msra.mxu0 %v195
      %203 = vmatprep.subr.bf16.mxu0 0
      %204 = vmatpush1.bf16.msra.mxu0 0
      %205 = vmatprep.subr.bf16.mxu0 0
      %206 = vmatpush1.bf16.msra.mxu0 0
      %207 = vmatprep.subr.bf16.mxu0 0
      %208 = vmatpush1.bf16.msra.mxu0 0
      %209 = vmatprep.subr.bf16.mxu0 0
      %210 = vmatpush1.bf16.msra.mxu0 0
      %211 = vmatprep.subr.bf16.mxu0 0
      %212 = vmatpush1.bf16.msra.mxu0 0
      %213 = vmatprep.subr.bf16.mxu0 0
      %214 = vmatpush1.bf16.msra.mxu0 0
      %215 = vmatprep.subr.bf16.mxu0 0
      %216 = vmatpush1.bf16.msra.mxu0 0
      %217 = vmatprep.subr.bf16.mxu0 0
      %218 = vmatpush1.bf16.msra.mxu0 0
      %219 = vmatprep.subr.bf16.mxu0 0
      %220 = vmatpush1.bf16.msra.mxu0 0
      %221 = vmatprep.subr.bf16.mxu0 0
      %222 = vmatpush1.bf16.msra.mxu0 0
      %223 = vmatprep.subr.bf16.mxu0 0
      %224 = vmatpush1.bf16.msra.mxu0 0
      %225 = vmatprep.subr.bf16.mxu0 0
      %226 = vmatpush1.bf16.msra.mxu0 0
      %227 = vmatprep.subr.bf16.mxu0 0
      %228 = vmatpush1.bf16.msra.mxu0 0
      %229 = vmatprep.subr.bf16.mxu0 0
      %230 = vmatpush1.bf16.msra.mxu0 0
      %231 = vmatprep.subr.bf16.mxu0 0
      %232 = vmatpush1.bf16.msra.mxu0 0
      %233 = vmatprep.mubr.bf16.mxu0 0
      %234 = vmatmul.mubr.bf16.gmra.mrb[0].mxu0 %v199
      %v235 = vpop.f32.mrb[0].mxu0
      %v236 = vadd.f32 %v184, %v235
      %v237 = vpop.f32.mrb[0].mxu0
      %v238 = vpop.f32.mrb[0].mxu0
      %v239 = vadd.f32 %v184, %v238
      %v240 = vpop.f32.mrb[0].mxu0
      %241 = vdwg.mxu0
      %vm242 = vcmask 31744
      %243 = vst.msk [vmem:[%s172] sm:$0xff] %vm242, %v236
      %244 = vst.msk [vmem:[%s172 + $0x8] sm:$0xff] %vm242, %v239
      %s245 = smul.u32 2, %s14
      %p246 = scmp.lt.s32.totalorder %s245, 3
      %s247 = scalar_select %p246, %s245, 3
      %s248 = smul.addr %s247, 8
      %s249 = scalar_lea.vmem %s3, %s248
      // Predicated region
      $region33: #{_lambda_.104} parent=31 // pred_check
        %p250 = pneg %p100
      $region34: #{_lambda_.104} parent=31 // pred_check_branch
        %252 = sbr.rel (%p250) target = $region36
      $region35: #{_lambda_.104} parent=31 // pred_region
        %s253 = smul.u32 2, %s14
      $region36: #{_lambda_.104} parent=31 // pred_fallthru
        _
    $region32: #{_lambda_.104} parent=5 // pred_fallthru
      _
    %p254 = scmp.le.s32.totalorder 2, %s9
    // Predicated region
    $region37: #{_lambda_.104} parent=5 // pred_check
      %p255 = pneg %p254
    $region38: #{_lambda_.104} parent=5 // pred_check_branch
      %257 = sbr.rel (%p255) target = $region40
    $region39: #{_lambda_.104} parent=5 // pred_region
      %s258 = ssub.s32 %s9, 2
      // Predicated region
      $region41: #{_lambda_.104} parent=39 // pred_check
        %p259 = pneg %p106
      $region42: #{_lambda_.104} parent=39 // pred_check_branch
        %261 = sbr.rel (%p259) target = $region44
      $region43: #{_lambda_.104} parent=39 // pred_region
        %s262 = smul.u32 2, %s15
        %p263 = scmp.lt.s32.totalorder %s262, 3
        %s264 = scalar_select %p263, %s262, 3
        %s265 = smul.addr %s264, 8
        %s266 = scalar_lea.vmem %s3, %s265
      $region44: #{_lambda_.104} parent=39 // pred_fallthru
        _
    $region40: #{_lambda_.104} parent=5 // pred_fallthru
      _
  $region6: #{_lambda_.104} parent=0 // loop_footer
    %s13 = sadd.s32 1, %s9
  $region7: #{_lambda_.104} parent=0 // loop_footer_branch
    %8 = sbr.rel target = $region3
  $region8: #{_lambda_.104} parent=0 // loop_exit
    _

// kernel: _lambda_.105
$region0: #{_lambda_.105}
  #allocation0 [shape = 'u32[]', space=smem, size = 0x4, offset = 0x4, fixed_abs, tag = 'smem constant byte address 0x4 - core index']
  #allocation1 [shape = 'u32[144,128]{1,0:T(1,128)}', space=vmem, size = 0x12000, scoped, tag = 'internal scratch']
  %s0 = inlined_call_operand.vmem [shape: bf16[128,36], index: 0, kind: input, shape index: {}]
  %s1 = inlined_call_operand.vmem [shape: bf16[36,4], index: 1, kind: input, shape index: {}]
  %s2 = inlined_call_operand.vmem [shape: f32[1,4], index: 2, kind: input, shape index: {}]
  %s3 = inlined_call_operand.vmem [shape: f32[128,4], index: 3, kind: output, shape index: {}]
  %s4 = sld [smem:[#allocation0]]
  $region45: #{_lambda_.105} parent=0
    _
  %s6 = ssub.s32 1, %s4
  %s7 = scalar_select 0, %s6, %s4
  loop: start=0, step=1, limit=4
  $region2: #{_lambda_.105} parent=0 // loop_pre_header
    _
  $region3: #{_lambda_.105} parent=0 // loop_header
    %s9 = sphi 0, %s13
    %p10 = scmp.ge.s32.totalorder %s9, 4
    %s19 = sphi 0, %s21
    %s22 = sphi 0, %s19
    %s23 = sphi 0, %s22
    %s39 = sphi 0, %s23
    %s43 = sphi 0, %s43
    %s45 = sphi 0, %s43
    %s46 = sphi 0, %s45
    %s60 = sphi 0, %s46
    %s64 = sphi 0, %s64
    %s66 = sphi 0, %s64
    %s67 = sphi 0, %s66
    %s81 = sphi 0, %s67
    %s87 = sphi 0, %s89
    %s90 = sphi 0, %s87
    %s91 = sphi 0, %s90
    %s107 = sphi 0, %s91
  $region4: #{_lambda_.105} parent=0 // loop_header_branch
    %12 = sbr.rel (%p10) target = $region8
  $region5: #{_lambda_.105} parent=0 // loop_body
    %s14 = ssub.s32 %s9, 1
    %s15 = ssub.s32 %s9, 2
    %s16 = sadd.s32 %s9, 1
    %s17 = ssub.s32 %s9, %s16
    %p18 = scmp.eq.s32.totalorder %s17, 0
    %s20 = sadd.s32 %s19, 1
    %s21 = scalar_select %p18, %s19, %s20
    %p24 = pneg %p18
    %p25 = scmp.eq.s32.totalorder %s9, 1
    %p26 = por %p24, %p25
    %p27 = scmp.ne.s32.totalorder %s19, %s22
    %p28 = scmp.eq.s32.totalorder %s9, 0
    %p29 = por %p27, %p28
    %p30 = scmp.ne.s32.totalorder %s19, %s22
    %p31 = scmp.eq.s32.totalorder %s14, 1
    %p32 = por %p30, %p31
    %p33 = scmp.ne.s32.totalorder %s22, %s23
    %p34 = scmp.eq.s32.totalorder %s14, 0
    %p35 = por %p33, %p34
    %p36 = scmp.ne.s32.totalorder %s22, %s23
    %p37 = scmp.eq.s32.totalorder %s15, 1
    %p38 = por %p36, %p37
    %p40 = scmp.ne.s32.totalorder %s23, %s39
    %p41 = scmp.eq.s32.totalorder %s15, 0
    %p42 = por %p40, %p41
    %s44 = sadd.s32 %s43, 1
    %p47 = scmp.eq.s32.totalorder %s9, 1
    %p48 = scmp.ne.s32.totalorder %s43, %s45
    %p49 = scmp.eq.s32.totalorder %s9, 0
    %p50 = por %p48, %p49
    %p51 = scmp.ne.s32.totalorder %s43, %s45
    %p52 = scmp.eq.s32.totalorder %s14, 1
    %p53 = por %p51, %p52
    %p54 = scmp.ne.s32.totalorder %s45, %s46
    %p55 = scmp.eq.s32.totalorder %s14, 0
    %p56 = por %p54, %p55
    %p57 = scmp.ne.s32.totalorder %s45, %s46
    %p58 = scmp.eq.s32.totalorder %s15, 1
    %p59 = por %p57, %p58
    %p61 = scmp.ne.s32.totalorder %s46, %s60
    %p62 = scmp.eq.s32.totalorder %s15, 0
    %p63 = por %p61, %p62
    %s65 = sadd.s32 %s64, 1
    %p68 = scmp.eq.s32.totalorder %s9, 1
    %p69 = scmp.ne.s32.totalorder %s64, %s66
    %p70 = scmp.eq.s32.totalorder %s9, 0
    %p71 = por %p69, %p70
    %p72 = scmp.ne.s32.totalorder %s64, %s66
    %p73 = scmp.eq.s32.totalorder %s14, 1
    %p74 = por %p72, %p73
    %p75 = scmp.ne.s32.totalorder %s66, %s67
    %p76 = scmp.eq.s32.totalorder %s14, 0
    %p77 = por %p75, %p76
    %p78 = scmp.ne.s32.totalorder %s66, %s67
    %p79 = scmp.eq.s32.totalorder %s15, 1
    %p80 = por %p78, %p79
    %p82 = scmp.ne.s32.totalorder %s67, %s81
    %p83 = scmp.eq.s32.totalorder %s15, 0
    %p84 = por %p82, %p83
    %s85 = ssub.s32 %s9, %s16
    %p86 = scmp.eq.s32.totalorder %s85, 0
    %s88 = sadd.s32 %s87, 1
    %s89 = scalar_select %p86, %s87, %s88
    %p92 = pneg %p86
    %p93 = scmp.eq.s32.totalorder %s9, 1
    %p94 = por %p92, %p93
    %p95 = scmp.ne.s32.totalorder %s87, %s90
    %p96 = scmp.eq.s32.totalorder %s9, 0
    %p97 = por %p95, %p96
    %p98 = scmp.ne.s32.totalorder %s87, %s90
    %p99 = scmp.eq.s32.totalorder %s14, 1
    %p100 = por %p98, %p99
    %p101 = scmp.ne.s32.totalorder %s90, %s91
    %p102 = scmp.eq.s32.totalorder %s14, 0
    %p103 = por %p101, %p102
    %p104 = scmp.ne.s32.totalorder %s90, %s91
    %p105 = scmp.eq.s32.totalorder %s15, 1
    %p106 = por %p104, %p105
    %p108 = scmp.ne.s32.totalorder %s91, %s107
    %p109 = scmp.eq.s32.totalorder %s15, 0
    %p110 = por %p108, %p109
    %p111 = scmp.le.s32.totalorder 1, %s9
    %p112 = scmp.lt.s32.totalorder %s9, 3
    %p113 = pnand %p111, %p112
    %p114 = pneg %p113
    // Predicated region
    $region9: #{_lambda_.105} parent=5 // pred_check
      _
    $region10: #{_lambda_.105} parent=5 // pred_check_branch
      %116 = sbr.rel (%p113) target = $region12
    $region11: #{_lambda_.105} parent=5 // pred_region
      %s117 = ssub.s32 %s9, 1
      // Predicated region
      $region13: #{_lambda_.105} parent=11 // pred_check
        %p118 = pneg %p56
      $region14: #{_lambda_.105} parent=11 // pred_check_branch
        %120 = sbr.rel (%p118) target = $region16
      $region15: #{_lambda_.105} parent=11 // pred_region
        _
      $region16: #{_lambda_.105} parent=11 // pred_fallthru
        _
      // Predicated region
      $region17: #{_lambda_.105} parent=11 // pred_check
        %p121 = pneg %p77
      $region18: #{_lambda_.105} parent=11 // pred_check_branch
        %123 = sbr.rel (%p121) target = $region20
      $region19: #{_lambda_.105} parent=11 // pred_region
        _
      $region20: #{_lambda_.105} parent=11 // pred_fallthru
        _
    $region12: #{_lambda_.105} parent=5 // pred_fallthru
      _
    %p124 = scmp.lt.s32.totalorder %s9, 2
    // Predicated region
    $region21: #{_lambda_.105} parent=5 // pred_check
      %p125 = pneg %p124
    $region22: #{_lambda_.105} parent=5 // pred_check_branch
      %127 = sbr.rel (%p125) target = $region24
    $region23: #{_lambda_.105} parent=5 // pred_region
      // Predicated region
      $region25: #{_lambda_.105} parent=23 // pred_check
        %p128 = pneg %p29
      $region26: #{_lambda_.105} parent=23 // pred_check_branch
        %130 = sbr.rel (%p128) target = $region28
      $region27: #{_lambda_.105} parent=23 // pred_region
        %s131 = smul.u32 8, %s9
        %p132 = scmp.lt.s32.totalorder %s131, 15
        %s133 = scalar_select %p132, %s131, 15
        %s134 = smul.addr %s133, 4
        %s135 = scalar_lea.vmem %s0, %s134
        %s136 = smul.u32 8, %s9
      $region28: #{_lambda_.105} parent=23 // pred_fallthru
        _
    $region24: #{_lambda_.105} parent=5 // pred_fallthru
      _
    %p137 = scmp.le.s32.totalorder 1, %s9
    %p138 = scmp.lt.s32.totalorder %s9, 3
    %p139 = pnand %p137, %p138
    %p140 = pneg %p139
    // Predicated region
    $region29: #{_lambda_.105} parent=5 // pred_check
      _
    $region30: #{_lambda_.105} parent=5 // pred_check_branch
      %142 = sbr.rel (%p139) target = $region32
    $region31: #{_lambda_.105} parent=5 // pred_region
      %s143 = ssub.s32 %s9, 1
      %s144 = smul.u32 8, %s14
      %p145 = scmp.lt.s32.totalorder %s144, 15
      %s146 = scalar_select %p145, %s144, 15
      %s147 = smul.addr %s146, 4
      %s148 = scalar_lea.vmem %s0, %s147
      %p149 = pneg %p35
      %p150 = pneg %p32
      %p151 = pneg %p56
      %p152 = pneg %p53
      %p153 = pneg %p77
      %p154 = pneg %p74
      %p155 = pneg %p103
      %p156 = pneg %p100
      %s157 = smul.u32 8, %s14
      %p158 = scmp.lt.s32.totalorder %s157, 15
      %s159 = scalar_select %p158, %s157, 15
      %s160 = smul.addr %s159, 8
      %s161 = scalar_lea.vmem %s3, %s160
      %s162 = smul.u32 8, %s14
      %p163 = scmp.lt.s32.totalorder %s162, 15
      %s164 = scalar_select %p163, %s162, 15
      %s165 = smul.addr %s164, 4
      %s166 = scalar_lea.vmem %s0, %s165
      %s167 = smul.u32 8, %s14
      %s168 = smul.u32 8, %s14
      %p169 = scmp.lt.s32.totalorder %s168, 15
      %s170 = scalar_select %p169, %s168, 15
      %s171 = smul.addr %s170, 8
      %s172 = scalar_lea.vmem %s3, %s171
      %s173 = smul.u32 8, %s14
      %v175 = vld [vmem:[%s166] sm:$0xf]
      %v176 = vld [vmem:[%s166 + $0x4] sm:$0xf]
      %v177 = vld [vmem:[%s166 + $0x8] sm:$0xf]
      %v178 = vld [vmem:[%s166 + $0xc] sm:$0xf]
      %v179 = vld [vmem:[%s166 + $0x10] sm:$0xf]
      %v180 = vld [vmem:[%s166 + $0x14] sm:$0xf]
      %v181 = vld [vmem:[%s166 + $0x18] sm:$0xf]
      %v182 = vld [vmem:[%s166 + $0x1c] sm:$0xf]
      %v183 = vld [vmem:[%s1] sm:$0xf]
      %v184 = vld [vmem:[%s1 + $0x4] sm:$0xf]
      %v185 = vld [vmem:[%s1 + $0x8] sm:$0xf]
      %v186 = vld [vmem:[%s1 + $0xc] sm:$0xf]
      %v187 = vld [vmem:[%s1 + $0x10] sm:$0x3]
      %v188 = vld [vmem:[%s2] sm:$0x1]
      %v190 = vlaneseq
      %v191 = vshrl.u32 %v190, 7
      %v192 = vsub.s32 0, %v191
      %v193 = vrot.slane %v188, %v192
      %v203 = vunpack.c.l.b16 %v175
      %v204 = vunpack.c.l.b16 %v176
      %v205 = vunpack.c.l.b16 %v177
      %v206 = vunpack.c.l.b16 %v178
      %v207 = vunpack.c.l.b16 %v179
      %v208 = vunpack.c.l.b16 %v180
      %v209 = vunpack.c.l.b16 %v181
      %v210 = vunpack.c.l.b16 %v182
      %v211 = vpack.c.b16 %v204, %v203
      %v212 = vpack.c.b16 %v206, %v205
      %v213 = vpack.c.b16 %v208, %v207
      %v214 = vpack.c.b16 %v210, %v209
      %v220 = vunpack.c.l.b16 %v183
      %v221 = vunpack.c.l.b16 %v184
      %v222 = vunpack.c.l.b16 %v185
      %v223 = vunpack.c.l.b16 %v186
      %v224 = vunpack.c.l.b16 %v187
      %v225 = vpack.c.b16 %v221, %v220
      %v226 = vpack.c.b16 %v223, %v222
      %v227 = vpack.c.b16 %v224, %v224
      %vm230 = vcmask 293888
      %v232 = vsel %vm230, %v211, 0
      %v235 = vsel %vm230, %v212, 0
      %v238 = vsel %vm230, %v213, 0
      %v241 = vsel %vm230, %v214, 0
      %vm243 = vcmask 1041408
      %v245 = vsel %vm243, %v227, 0
      %247 = vmatprep.subr.bf16.mxu0 0
      %248 = vmatpush1.bf16.msra.mxu0 %v225
      %249 = vmatprep.subr.bf16.mxu0 0
      %250 = vmatpush1.bf16.msra.mxu0 %v226
      %251 = vmatprep.subr.bf16.mxu0 0
      %252 = vmatpush1.bf16.msra.mxu0 %v245
      %253 = vmatprep.subr.bf16.mxu0 0
      %254 = vmatpush1.bf16.msra.mxu0 0
      %255 = vmatprep.subr.bf16.mxu0 0
      %256 = vmatpush1.bf16.msra.mxu0 0
      %257 = vmatprep.subr.bf16.mxu0 0
      %258 = vmatpush1.bf16.msra.mxu0 0
      %259 = vmatprep.subr.bf16.mxu0 0
      %260 = vmatpush1.bf16.msra.mxu0 0
      %261 = vmatprep.subr.bf16.mxu0 0
      %262 = vmatpush1.bf16.msra.mxu0 0
      %263 = vmatprep.subr.bf16.mxu0 0
      %264 = vmatpush1.bf16.msra.mxu0 0
      %265 = vmatprep.subr.bf16.mxu0 0
      %266 = vmatpush1.bf16.msra.mxu0 0
      %267 = vmatprep.subr.bf16.mxu0 0
      %268 = vmatpush1.bf16.msra.mxu0 0
      %269 = vmatprep.subr.bf16.mxu0 0
      %270 = vmatpush1.bf16.msra.mxu0 0
      %271 = vmatprep.subr.bf16.mxu0 0
      %272 = vmatpush1.bf16.msra.mxu0 0
      %273 = vmatprep.subr.bf16.mxu0 0
      %274 = vmatpush1.bf16.msra.mxu0 0
      %275 = vmatprep.subr.bf16.mxu0 0
      %276 = vmatpush1.bf16.msra.mxu0 0
      %277 = vmatprep.subr.bf16.mxu0 0
      %278 = vmatpush1.bf16.msra.mxu0 0
      %279 = vmatprep.mubr.bf16.mxu0 0
      %280 = vmatmul.mubr.bf16.gmra.mrb[0].mxu0 %v232
      %v281 = vpop.f32.mrb[0].mxu0
      %v282 = vadd.f32 %v193, %v281
      %v283 = vpop.f32.mrb[0].mxu0
      %v284 = vpop.f32.mrb[0].mxu0
      %v285 = vadd.f32 %v193, %v284
      %v286 = vpop.f32.mrb[0].mxu0
      %287 = vmatprep.mubr.bf16.mxu0 0
      %288 = vmatmul.mubr.bf16.gmra.mrb[0].mxu0 %v235
      %v289 = vpop.f32.mrb[0].mxu0
      %v290 = vadd.f32 %v193, %v289
      %v291 = vpop.f32.mrb[0].mxu0
      %v292 = vpop.f32.mrb[0].mxu0
      %v293 = vadd.f32 %v193, %v292
      %v294 = vpop.f32.mrb[0].mxu0
      %295 = vmatprep.mubr.bf16.mxu0 0
      %296 = vmatmul.mubr.bf16.gmra.mrb[0].mxu0 %v238
      %v297 = vpop.f32.mrb[0].mxu0
      %v298 = vadd.f32 %v193, %v297
      %v299 = vpop.f32.mrb[0].mxu0
      %v300 = vpop.f32.mrb[0].mxu0
      %v301 = vadd.f32 %v193, %v300
      %v302 = vpop.f32.mrb[0].mxu0
      %303 = vmatprep.mubr.bf16.mxu0 0
      %304 = vmatmul.mubr.bf16.gmra.mrb[0].mxu0 %v241
      %v305 = vpop.f32.mrb[0].mxu0
      %v306 = vadd.f32 %v193, %v305
      %v307 = vpop.f32.mrb[0].mxu0
      %v308 = vpop.f32.mrb[0].mxu0
      %v309 = vadd.f32 %v193, %v308
      %v310 = vpop.f32.mrb[0].mxu0
      %311 = vdwg.mxu0
      %vm312 = vcmask 31744
      %313 = vst.msk [vmem:[%s172] sm:$0xff] %vm312, %v282
      %314 = vst.msk [vmem:[%s172 + $0x8] sm:$0xff] %vm312, %v285
      %315 = vst.msk [vmem:[%s172 + $0x10] sm:$0xff] %vm312, %v290
      %316 = vst.msk [vmem:[%s172 + $0x18] sm:$0xff] %vm312, %v293
      %317 = vst.msk [vmem:[%s172 + $0x20] sm:$0xff] %vm312, %v298
      %318 = vst.msk [vmem:[%s172 + $0x28] sm:$0xff] %vm312, %v301
      %319 = vst.msk [vmem:[%s172 + $0x30] sm:$0xff] %vm312, %v306
      %320 = vst.msk [vmem:[%s172 + $0x38] sm:$0xff] %vm312, %v309
      %s321 = smul.u32 8, %s14
      %p322 = scmp.lt.s32.totalorder %s321, 15
      %s323 = scalar_select %p322, %s321, 15
      %s324 = smul.addr %s323, 8
      %s325 = scalar_lea.vmem %s3, %s324
      // Predicated region
      $region33: #{_lambda_.105} parent=31 // pred_check
        %p326 = pneg %p100
      $region34: #{_lambda_.105} parent=31 // pred_check_branch
        %328 = sbr.rel (%p326) target = $region36
      $region35: #{_lambda_.105} parent=31 // pred_region
        %s329 = smul.u32 8, %s14
      $region36: #{_lambda_.105} parent=31 // pred_fallthru
        _
    $region32: #{_lambda_.105} parent=5 // pred_fallthru
      _
    %p330 = scmp.le.s32.totalorder 2, %s9
    // Predicated region
    $region37: #{_lambda_.105} parent=5 // pred_check
      %p331 = pneg %p330
    $region38: #{_lambda_.105} parent=5 // pred_check_branch
      %333 = sbr.rel (%p331) target = $region40
    $region39: #{_lambda_.105} parent=5 // pred_region
      %s334 = ssub.s32 %s9, 2
      // Predicated region
      $region41: #{_lambda_.105} parent=39 // pred_check
        %p335 = pneg %p106
      $region42: #{_lambda_.105} parent=39 // pred_check_branch
        %337 = sbr.rel (%p335) target = $region44
      $region43: #{_lambda_.105} parent=39 // pred_region
        %s338 = smul.u32 8, %s15
        %p339 = scmp.lt.s32.totalorder %s338, 15
        %s340 = scalar_select %p339, %s338, 15
        %s341 = smul.addr %s340, 8
        %s342 = scalar_lea.vmem %s3, %s341
      $region44: #{_lambda_.105} parent=39 // pred_fallthru
        _
    $region40: #{_lambda_.105} parent=5 // pred_fallthru
      _
  $region6: #{_lambda_.105} parent=0 // loop_footer
    %s13 = sadd.s32 1, %s9
  $region7: #{_lambda_.105} parent=0 // loop_footer_branch
    %8 = sbr.rel target = $region3
  $region8: #{_lambda_.105} parent=0 // loop_exit
    _

// kernel: _lambda_.106
$region0: #{_lambda_.106}
  #allocation0 [shape = 'u32[]', space=smem, size = 0x4, offset = 0x4, fixed_abs, tag = 'smem constant byte address 0x4 - core index']
  #allocation1 [shape = 'u32[144,128]{1,0:T(1,128)}', space=vmem, size = 0x12000, scoped, tag = 'internal scratch']
  %s0 = inlined_call_operand.vmem [shape: bf16[8,16], index: 0, kind: input, shape index: {}]
  %s1 = inlined_call_operand.vmem [shape: bf16[16,4], index: 1, kind: input, shape index: {}]
  %s2 = inlined_call_operand.vmem [shape: f32[1,4], index: 2, kind: input, shape index: {}]
  %s3 = inlined_call_operand.vmem [shape: f32[8,4], index: 3, kind: output, shape index: {}]
  %s4 = sld [smem:[#allocation0]]
  $region22: #{_lambda_.106} parent=0
    _
  %s6 = ssub.s32 1, %s4
  %s7 = scalar_select 0, %s6, %s4
  // Predicated region
  $region2: #{_lambda_.106} parent=0 // pred_check
    _
  $region3: #{_lambda_.106} parent=0 // pred_check_branch
    %9 = sbr.rel (0) target = $region5
  $region4: #{_lambda_.106} parent=0 // pred_region
    _
  $region5: #{_lambda_.106} parent=0 // pred_fallthru
    _
  // Predicated region
  $region6: #{_lambda_.106} parent=0 // pred_check
    _
  $region7: #{_lambda_.106} parent=0 // pred_check_branch
    %11 = sbr.rel (0) target = $region9
  $region8: #{_lambda_.106} parent=0 // pred_region
    _
  $region9: #{_lambda_.106} parent=0 // pred_fallthru
    _
  // Predicated region
  $region10: #{_lambda_.106} parent=0 // pred_check
    _
  $region11: #{_lambda_.106} parent=0 // pred_check_branch
    %13 = sbr.rel (0) target = $region13
  $region12: #{_lambda_.106} parent=0 // pred_region
    _
  $region13: #{_lambda_.106} parent=0 // pred_fallthru
    _
  %v15 = vld [vmem:[%s0] sm:$0xf]
  %v16 = vld [vmem:[%s1] sm:$0xf]
  %v17 = vld [vmem:[%s1 + $0x4] sm:$0xf]
  %v18 = vld [vmem:[%s2] sm:$0x1]
  %v20 = vlaneseq
  %v21 = vshrl.u32 %v20, 7
  %v22 = vsub.s32 0, %v21
  %v23 = vrot.slane %v18, %v22
  %v27 = vunpack.c.l.b16 %v16
  %v28 = vunpack.c.l.b16 %v17
  %v29 = vpack.c.b16 %v28, %v27
  %vm31 = vcmask 130048
  %v33 = vsel %vm31, %v15, 0
  %35 = vmatprep.subr.bf16.mxu0 0
  %36 = vmatpush1.bf16.msra.mxu0 %v29
  %37 = vmatprep.subr.bf16.mxu0 0
  %38 = vmatpush1.bf16.msra.mxu0 0
  %39 = vmatprep.subr.bf16.mxu0 0
  %40 = vmatpush1.bf16.msra.mxu0 0
  %41 = vmatprep.subr.bf16.mxu0 0
  %42 = vmatpush1.bf16.msra.mxu0 0
  %43 = vmatprep.subr.bf16.mxu0 0
  %44 = vmatpush1.bf16.msra.mxu0 0
  %45 = vmatprep.subr.bf16.mxu0 0
  %46 = vmatpush1.bf16.msra.mxu0 0
  %47 = vmatprep.subr.bf16.mxu0 0
  %48 = vmatpush1.bf16.msra.mxu0 0
  %49 = vmatprep.subr.bf16.mxu0 0
  %50 = vmatpush1.bf16.msra.mxu0 0
  %51 = vmatprep.subr.bf16.mxu0 0
  %52 = vmatpush1.bf16.msra.mxu0 0
  %53 = vmatprep.subr.bf16.mxu0 0
  %54 = vmatpush1.bf16.msra.mxu0 0
  %55 = vmatprep.subr.bf16.mxu0 0
  %56 = vmatpush1.bf16.msra.mxu0 0
  %57 = vmatprep.subr.bf16.mxu0 0
  %58 = vmatpush1.bf16.msra.mxu0 0
  %59 = vmatprep.subr.bf16.mxu0 0
  %60 = vmatpush1.bf16.msra.mxu0 0
  %61 = vmatprep.subr.bf16.mxu0 0
  %62 = vmatpush1.bf16.msra.mxu0 0
  %63 = vmatprep.subr.bf16.mxu0 0
  %64 = vmatpush1.bf16.msra.mxu0 0
  %65 = vmatprep.subr.bf16.mxu0 0
  %66 = vmatpush1.bf16.msra.mxu0 0
  %67 = vmatprep.mubr.bf16.mxu0 0
  %68 = vmatmul.mubr.bf16.gmra.mrb[0].mxu0 %v33
  %v69 = vpop.f32.mrb[0].mxu0
  %v70 = vadd.f32 %v23, %v69
  %v71 = vpop.f32.mrb[0].mxu0
  %v72 = vpop.f32.mrb[0].mxu0
  %v73 = vpop.f32.mrb[0].mxu0
  %74 = vdwg.mxu0
  %vm75 = vcmask 31744
  %76 = vst.msk [vmem:[%s3] sm:$0xff] %vm75, %v70
  // Predicated region
  $region14: #{_lambda_.106} parent=0 // pred_check
    _
  $region15: #{_lambda_.106} parent=0 // pred_check_branch
    %78 = sbr.rel (0) target = $region17
  $region16: #{_lambda_.106} parent=0 // pred_region
    _
  $region17: #{_lambda_.106} parent=0 // pred_fallthru
    _
  // Predicated region
  $region18: #{_lambda_.106} parent=0 // pred_check
    _
  $region19: #{_lambda_.106} parent=0 // pred_check_branch
    %80 = sbr.rel (0) target = $region21
  $region20: #{_lambda_.106} parent=0 // pred_region
    _
  $region21: #{_lambda_.106} parent=0 // pred_fallthru
    _

// kernel: _lambda_.112
$region0: #{_lambda_.112}
  #allocation0 [shape = 'u32[]', space=smem, size = 0x4, offset = 0x4, fixed_abs, tag = 'smem constant byte address 0x4 - core index']
  #allocation1 [shape = 'u32[144,128]{1,0:T(1,128)}', space=vmem, size = 0x12000, scoped, tag = 'internal scratch']
  %s0 = inlined_call_operand.vmem [shape: bf16[128,20], index: 0, kind: input, shape index: {}]
  %s1 = inlined_call_operand.vmem [shape: bf16[20,8], index: 1, kind: input, shape index: {}]
  %s2 = inlined_call_operand.vmem [shape: f32[1,8], index: 2, kind: input, shape index: {}]
  %s3 = inlined_call_operand.vmem [shape: f32[128,8], index: 3, kind: output, shape index: {}]
  %s4 = sld [smem:[#allocation0]]
  $region45: #{_lambda_.112} parent=0
    _
  %s6 = ssub.s32 1, %s4
  %s7 = scalar_select 0, %s6, %s4
  loop: start=0, step=1, limit=4
  $region2: #{_lambda_.112} parent=0 // loop_pre_header
    _
  $region3: #{_lambda_.112} parent=0 // loop_header
    %s9 = sphi 0, %s13
    %p10 = scmp.ge.s32.totalorder %s9, 4
    %s19 = sphi 0, %s21
    %s22 = sphi 0, %s19
    %s23 = sphi 0, %s22
    %s39 = sphi 0, %s23
    %s43 = sphi 0, %s43
    %s45 = sphi 0, %s43
    %s46 = sphi 0, %s45
    %s60 = sphi 0, %s46
    %s64 = sphi 0, %s64
    %s66 = sphi 0, %s64
    %s67 = sphi 0, %s66
    %s81 = sphi 0, %s67
    %s87 = sphi 0, %s89
    %s90 = sphi 0, %s87
    %s91 = sphi 0, %s90
    %s107 = sphi 0, %s91
  $region4: #{_lambda_.112} parent=0 // loop_header_branch
    %12 = sbr.rel (%p10) target = $region8
  $region5: #{_lambda_.112} parent=0 // loop_body
    %s14 = ssub.s32 %s9, 1
    %s15 = ssub.s32 %s9, 2
    %s16 = sadd.s32 %s9, 1
    %s17 = ssub.s32 %s9, %s16
    %p18 = scmp.eq.s32.totalorder %s17, 0
    %s20 = sadd.s32 %s19, 1
    %s21 = scalar_select %p18, %s19, %s20
    %p24 = pneg %p18
    %p25 = scmp.eq.s32.totalorder %s9, 1
    %p26 = por %p24, %p25
    %p27 = scmp.ne.s32.totalorder %s19, %s22
    %p28 = scmp.eq.s32.totalorder %s9, 0
    %p29 = por %p27, %p28
    %p30 = scmp.ne.s32.totalorder %s19, %s22
    %p31 = scmp.eq.s32.totalorder %s14, 1
    %p32 = por %p30, %p31
    %p33 = scmp.ne.s32.totalorder %s22, %s23
    %p34 = scmp.eq.s32.totalorder %s14, 0
    %p35 = por %p33, %p34
    %p36 = scmp.ne.s32.totalorder %s22, %s23
    %p37 = scmp.eq.s32.totalorder %s15, 1
    %p38 = por %p36, %p37
    %p40 = scmp.ne.s32.totalorder %s23, %s39
    %p41 = scmp.eq.s32.totalorder %s15, 0
    %p42 = por %p40, %p41
    %s44 = sadd.s32 %s43, 1
    %p47 = scmp.eq.s32.totalorder %s9, 1
    %p48 = scmp.ne.s32.totalorder %s43, %s45
    %p49 = scmp.eq.s32.totalorder %s9, 0
    %p50 = por %p48, %p49
    %p51 = scmp.ne.s32.totalorder %s43, %s45
    %p52 = scmp.eq.s32.totalorder %s14, 1
    %p53 = por %p51, %p52
    %p54 = scmp.ne.s32.totalorder %s45, %s46
    %p55 = scmp.eq.s32.totalorder %s14, 0
    %p56 = por %p54, %p55
    %p57 = scmp.ne.s32.totalorder %s45, %s46
    %p58 = scmp.eq.s32.totalorder %s15, 1
    %p59 = por %p57, %p58
    %p61 = scmp.ne.s32.totalorder %s46, %s60
    %p62 = scmp.eq.s32.totalorder %s15, 0
    %p63 = por %p61, %p62
    %s65 = sadd.s32 %s64, 1
    %p68 = scmp.eq.s32.totalorder %s9, 1
    %p69 = scmp.ne.s32.totalorder %s64, %s66
    %p70 = scmp.eq.s32.totalorder %s9, 0
    %p71 = por %p69, %p70
    %p72 = scmp.ne.s32.totalorder %s64, %s66
    %p73 = scmp.eq.s32.totalorder %s14, 1
    %p74 = por %p72, %p73
    %p75 = scmp.ne.s32.totalorder %s66, %s67
    %p76 = scmp.eq.s32.totalorder %s14, 0
    %p77 = por %p75, %p76
    %p78 = scmp.ne.s32.totalorder %s66, %s67
    %p79 = scmp.eq.s32.totalorder %s15, 1
    %p80 = por %p78, %p79
    %p82 = scmp.ne.s32.totalorder %s67, %s81
    %p83 = scmp.eq.s32.totalorder %s15, 0
    %p84 = por %p82, %p83
    %s85 = ssub.s32 %s9, %s16
    %p86 = scmp.eq.s32.totalorder %s85, 0
    %s88 = sadd.s32 %s87, 1
    %s89 = scalar_select %p86, %s87, %s88
    %p92 = pneg %p86
    %p93 = scmp.eq.s32.totalorder %s9, 1
    %p94 = por %p92, %p93
    %p95 = scmp.ne.s32.totalorder %s87, %s90
    %p96 = scmp.eq.s32.totalorder %s9, 0
    %p97 = por %p95, %p96
    %p98 = scmp.ne.s32.totalorder %s87, %s90
    %p99 = scmp.eq.s32.totalorder %s14, 1
    %p100 = por %p98, %p99
    %p101 = scmp.ne.s32.totalorder %s90, %s91
    %p102 = scmp.eq.s32.totalorder %s14, 0
    %p103 = por %p101, %p102
    %p104 = scmp.ne.s32.totalorder %s90, %s91
    %p105 = scmp.eq.s32.totalorder %s15, 1
    %p106 = por %p104, %p105
    %p108 = scmp.ne.s32.totalorder %s91, %s107
    %p109 = scmp.eq.s32.totalorder %s15, 0
    %p110 = por %p108, %p109
    %p111 = scmp.le.s32.totalorder 1, %s9
    %p112 = scmp.lt.s32.totalorder %s9, 3
    %p113 = pnand %p111, %p112
    %p114 = pneg %p113
    // Predicated region
    $region9: #{_lambda_.112} parent=5 // pred_check
      _
    $region10: #{_lambda_.112} parent=5 // pred_check_branch
      %116 = sbr.rel (%p113) target = $region12
    $region11: #{_lambda_.112} parent=5 // pred_region
      %s117 = ssub.s32 %s9, 1
      // Predicated region
      $region13: #{_lambda_.112} parent=11 // pred_check
        %p118 = pneg %p56
      $region14: #{_lambda_.112} parent=11 // pred_check_branch
        %120 = sbr.rel (%p118) target = $region16
      $region15: #{_lambda_.112} parent=11 // pred_region
        _
      $region16: #{_lambda_.112} parent=11 // pred_fallthru
        _
      // Predicated region
      $region17: #{_lambda_.112} parent=11 // pred_check
        %p121 = pneg %p77
      $region18: #{_lambda_.112} parent=11 // pred_check_branch
        %123 = sbr.rel (%p121) target = $region20
      $region19: #{_lambda_.112} parent=11 // pred_region
        _
      $region20: #{_lambda_.112} parent=11 // pred_fallthru
        _
    $region12: #{_lambda_.112} parent=5 // pred_fallthru
      _
    %p124 = scmp.lt.s32.totalorder %s9, 2
    // Predicated region
    $region21: #{_lambda_.112} parent=5 // pred_check
      %p125 = pneg %p124
    $region22: #{_lambda_.112} parent=5 // pred_check_branch
      %127 = sbr.rel (%p125) target = $region24
    $region23: #{_lambda_.112} parent=5 // pred_region
      // Predicated region
      $region25: #{_lambda_.112} parent=23 // pred_check
        %p128 = pneg %p29
      $region26: #{_lambda_.112} parent=23 // pred_check_branch
        %130 = sbr.rel (%p128) target = $region28
      $region27: #{_lambda_.112} parent=23 // pred_region
        %s131 = smul.u32 8, %s9
        %p132 = scmp.lt.s32.totalorder %s131, 15
        %s133 = scalar_select %p132, %s131, 15
        %s134 = smul.addr %s133, 4
        %s135 = scalar_lea.vmem %s0, %s134
        %s136 = smul.u32 8, %s9
      $region28: #{_lambda_.112} parent=23 // pred_fallthru
        _
    $region24: #{_lambda_.112} parent=5 // pred_fallthru
      _
    %p137 = scmp.le.s32.totalorder 1, %s9
    %p138 = scmp.lt.s32.totalorder %s9, 3
    %p139 = pnand %p137, %p138
    %p140 = pneg %p139
    // Predicated region
    $region29: #{_lambda_.112} parent=5 // pred_check
      _
    $region30: #{_lambda_.112} parent=5 // pred_check_branch
      %142 = sbr.rel (%p139) target = $region32
    $region31: #{_lambda_.112} parent=5 // pred_region
      %s143 = ssub.s32 %s9, 1
      %s144 = smul.u32 8, %s14
      %p145 = scmp.lt.s32.totalorder %s144, 15
      %s146 = scalar_select %p145, %s144, 15
      %s147 = smul.addr %s146, 4
      %s148 = scalar_lea.vmem %s0, %s147
      %p149 = pneg %p35
      %p150 = pneg %p32
      %p151 = pneg %p56
      %p152 = pneg %p53
      %p153 = pneg %p77
      %p154 = pneg %p74
      %p155 = pneg %p103
      %p156 = pneg %p100
      %s157 = smul.u32 8, %s14
      %p158 = scmp.lt.s32.totalorder %s157, 15
      %s159 = scalar_select %p158, %s157, 15
      %s160 = smul.addr %s159, 8
      %s161 = scalar_lea.vmem %s3, %s160
      %s162 = smul.u32 8, %s14
      %p163 = scmp.lt.s32.totalorder %s162, 15
      %s164 = scalar_select %p163, %s162, 15
      %s165 = smul.addr %s164, 4
      %s166 = scalar_lea.vmem %s0, %s165
      %s167 = smul.u32 8, %s14
      %s168 = smul.u32 8, %s14
      %p169 = scmp.lt.s32.totalorder %s168, 15
      %s170 = scalar_select %p169, %s168, 15
      %s171 = smul.addr %s170, 8
      %s172 = scalar_lea.vmem %s3, %s171
      %s173 = smul.u32 8, %s14
      %v175 = vld [vmem:[%s166] sm:$0xf]
      %v176 = vld [vmem:[%s166 + $0x4] sm:$0xf]
      %v177 = vld [vmem:[%s166 + $0x8] sm:$0xf]
      %v178 = vld [vmem:[%s166 + $0xc] sm:$0xf]
      %v179 = vld [vmem:[%s166 + $0x10] sm:$0xf]
      %v180 = vld [vmem:[%s166 + $0x14] sm:$0xf]
      %v181 = vld [vmem:[%s166 + $0x18] sm:$0xf]
      %v182 = vld [vmem:[%s166 + $0x1c] sm:$0xf]
      %v183 = vld [vmem:[%s1] sm:$0xf]
      %v184 = vld [vmem:[%s1 + $0x4] sm:$0xf]
      %v185 = vld [vmem:[%s1 + $0x8] sm:$0x3]
      %v186 = vld [vmem:[%s2] sm:$0x1]
      %v188 = vlaneseq
      %v189 = vshrl.u32 %v188, 7
      %v190 = vsub.s32 0, %v189
      %v191 = vrot.slane %v186, %v190
      %v201 = vunpack.c.l.b16 %v175
      %v202 = vunpack.c.l.b16 %v176
      %v203 = vunpack.c.l.b16 %v177
      %v204 = vunpack.c.l.b16 %v178
      %v205 = vunpack.c.l.b16 %v179
      %v206 = vunpack.c.l.b16 %v180
      %v207 = vunpack.c.l.b16 %v181
      %v208 = vunpack.c.l.b16 %v182
      %v209 = vpack.c.b16 %v202, %v201
      %v210 = vpack.c.b16 %v204, %v203
      %v211 = vpack.c.b16 %v206, %v205
      %v212 = vpack.c.b16 %v208, %v207
      %v216 = vunpack.c.l.b16 %v183
      %v217 = vunpack.c.l.b16 %v184
      %v218 = vunpack.c.l.b16 %v185
      %v219 = vpack.c.b16 %v217, %v216
      %v220 = vpack.c.b16 %v218, %v218
      %vm222 = vcmask 162816
      %v224 = vsel %vm222, %v209, 0
      %v227 = vsel %vm222, %v210, 0
      %v230 = vsel %vm222, %v211, 0
      %v233 = vsel %vm222, %v212, 0
      %vm235 = vcmask 1041408
      %v237 = vsel %vm235, %v220, 0
      %239 = vmatprep.subr.bf16.mxu0 0
      %240 = vmatpush1.bf16.msra.mxu0 %v219
      %241 = vmatprep.subr.bf16.mxu0 0
      %242 = vmatpush1.bf16.msra.mxu0 %v237
      %243 = vmatprep.subr.bf16.mxu0 0
      %244 = vmatpush1.bf16.msra.mxu0 0
      %245 = vmatprep.subr.bf16.mxu0 0
      %246 = vmatpush1.bf16.msra.mxu0 0
      %247 = vmatprep.subr.bf16.mxu0 0
      %248 = vmatpush1.bf16.msra.mxu0 0
      %249 = vmatprep.subr.bf16.mxu0 0
      %250 = vmatpush1.bf16.msra.mxu0 0
      %251 = vmatprep.subr.bf16.mxu0 0
      %252 = vmatpush1.bf16.msra.mxu0 0
      %253 = vmatprep.subr.bf16.mxu0 0
      %254 = vmatpush1.bf16.msra.mxu0 0
      %255 = vmatprep.subr.bf16.mxu0 0
      %256 = vmatpush1.bf16.msra.mxu0 0
      %257 = vmatprep.subr.bf16.mxu0 0
      %258 = vmatpush1.bf16.msra.mxu0 0
      %259 = vmatprep.subr.bf16.mxu0 0
      %260 = vmatpush1.bf16.msra.mxu0 0
      %261 = vmatprep.subr.bf16.mxu0 0
      %262 = vmatpush1.bf16.msra.mxu0 0
      %263 = vmatprep.subr.bf16.mxu0 0
      %264 = vmatpush1.bf16.msra.mxu0 0
      %265 = vmatprep.subr.bf16.mxu0 0
      %266 = vmatpush1.bf16.msra.mxu0 0
      %267 = vmatprep.subr.bf16.mxu0 0
      %268 = vmatpush1.bf16.msra.mxu0 0
      %269 = vmatprep.subr.bf16.mxu0 0
      %270 = vmatpush1.bf16.msra.mxu0 0
      %271 = vmatprep.mubr.bf16.mxu0 0
      %272 = vmatmul.mubr.bf16.gmra.mrb[0].mxu0 %v224
      %v273 = vpop.f32.mrb[0].mxu0
      %v274 = vadd.f32 %v191, %v273
      %v275 = vpop.f32.mrb[0].mxu0
      %v276 = vpop.f32.mrb[0].mxu0
      %v277 = vadd.f32 %v191, %v276
      %v278 = vpop.f32.mrb[0].mxu0
      %279 = vmatprep.mubr.bf16.mxu0 0
      %280 = vmatmul.mubr.bf16.gmra.mrb[0].mxu0 %v227
      %v281 = vpop.f32.mrb[0].mxu0
      %v282 = vadd.f32 %v191, %v281
      %v283 = vpop.f32.mrb[0].mxu0
      %v284 = vpop.f32.mrb[0].mxu0
      %v285 = vadd.f32 %v191, %v284
      %v286 = vpop.f32.mrb[0].mxu0
      %287 = vmatprep.mubr.bf16.mxu0 0
      %288 = vmatmul.mubr.bf16.gmra.mrb[0].mxu0 %v230
      %v289 = vpop.f32.mrb[0].mxu0
      %v290 = vadd.f32 %v191, %v289
      %v291 = vpop.f32.mrb[0].mxu0
      %v292 = vpop.f32.mrb[0].mxu0
      %v293 = vadd.f32 %v191, %v292
      %v294 = vpop.f32.mrb[0].mxu0
      %295 = vmatprep.mubr.bf16.mxu0 0
      %296 = vmatmul.mubr.bf16.gmra.mrb[0].mxu0 %v233
      %v297 = vpop.f32.mrb[0].mxu0
      %v298 = vadd.f32 %v191, %v297
      %v299 = vpop.f32.mrb[0].mxu0
      %v300 = vpop.f32.mrb[0].mxu0
      %v301 = vadd.f32 %v191, %v300
      %v302 = vpop.f32.mrb[0].mxu0
      %303 = vdwg.mxu0
      %vm304 = vcmask 64512
      %305 = vst.msk [vmem:[%s172] sm:$0xff] %vm304, %v274
      %306 = vst.msk [vmem:[%s172 + $0x8] sm:$0xff] %vm304, %v277
      %307 = vst.msk [vmem:[%s172 + $0x10] sm:$0xff] %vm304, %v282
      %308 = vst.msk [vmem:[%s172 + $0x18] sm:$0xff] %vm304, %v285
      %309 = vst.msk [vmem:[%s172 + $0x20] sm:$0xff] %vm304, %v290
      %310 = vst.msk [vmem:[%s172 + $0x28] sm:$0xff] %vm304, %v293
      %311 = vst.msk [vmem:[%s172 + $0x30] sm:$0xff] %vm304, %v298
      %312 = vst.msk [vmem:[%s172 + $0x38] sm:$0xff] %vm304, %v301
      %s313 = smul.u32 8, %s14
      %p314 = scmp.lt.s32.totalorder %s313, 15
      %s315 = scalar_select %p314, %s313, 15
      %s316 = smul.addr %s315, 8
      %s317 = scalar_lea.vmem %s3, %s316
      // Predicated region
      $region33: #{_lambda_.112} parent=31 // pred_check
        %p318 = pneg %p100
      $region34: #{_lambda_.112} parent=31 // pred_check_branch
        %320 = sbr.rel (%p318) target = $region36
      $region35: #{_lambda_.112} parent=31 // pred_region
        %s321 = smul.u32 8, %s14
      $region36: #{_lambda_.112} parent=31 // pred_fallthru
        _
    $region32: #{_lambda_.112} parent=5 // pred_fallthru
      _
    %p322 = scmp.le.s32.totalorder 2, %s9
    // Predicated region
    $region37: #{_lambda_.112} parent=5 // pred_check
      %p323 = pneg %p322
    $region38: #{_lambda_.112} parent=5 // pred_check_branch
      %325 = sbr.rel (%p323) target = $region40
    $region39: #{_lambda_.112} parent=5 // pred_region
      %s326 = ssub.s32 %s9, 2
      // Predicated region
      $region41: #{_lambda_.112} parent=39 // pred_check
        %p327 = pneg %p106
      $region42: #{_lambda_.112} parent=39 // pred_check_branch
        %329 = sbr.rel (%p327) target = $region44
      $region43: #{_lambda_.112} parent=39 // pred_region
        %s330 = smul.u32 8, %s15
        %p331 = scmp.lt.s32.totalorder %s330, 15
        %s332 = scalar_select %p331, %s330, 15
        %s333 = smul.addr %s332, 8
        %s334 = scalar_lea.vmem %s3, %s333
      $region44: #{_lambda_.112} parent=39 // pred_fallthru
        _
    $region40: #{_lambda_.112} parent=5 // pred_fallthru
      _
  $region6: #{_lambda_.112} parent=0 // loop_footer
    %s13 = sadd.s32 1, %s9
  $region7: #{_lambda_.112} parent=0 // loop_footer_branch
    %8 = sbr.rel target = $region3
  $region8: #{_lambda_.112} parent=0 // loop_exit
    _

// kernel: _lambda_.108
$region0: #{_lambda_.108}
  #allocation0 [shape = 'u32[]', space=smem, size = 0x4, offset = 0x4, fixed_abs, tag = 'smem constant byte address 0x4 - core index']
  #allocation1 [shape = 'u32[144,128]{1,0:T(1,128)}', space=vmem, size = 0x12000, scoped, tag = 'internal scratch']
  %s0 = inlined_call_operand.vmem [shape: bf16[2,16], index: 0, kind: input, shape index: {}]
  %s1 = inlined_call_operand.vmem [shape: bf16[16,4], index: 1, kind: input, shape index: {}]
  %s2 = inlined_call_operand.vmem [shape: f32[1,4], index: 2, kind: input, shape index: {}]
  %s3 = inlined_call_operand.vmem [shape: f32[2,4], index: 3, kind: output, shape index: {}]
  %s4 = sld [smem:[#allocation0]]
  $region52: #{_lambda_.108} parent=0
    _
  %s6 = ssub.s32 1, %s4
  %s7 = scalar_select 0, %s6, %s4
  $region1: #{_lambda_.108} parent=0
    #allocation2 [shape = 'u8[4096]{0}', space=vmem, size = 0x1000, scoped, tag = 'output window, operand 0, single buffered']
    // Predicated region
    $region2: #{_lambda_.108} parent=1 // pred_check
      _
    $region3: #{_lambda_.108} parent=1 // pred_check_branch
      %9 = sbr.rel (0) target = $region5
    $region4: #{_lambda_.108} parent=1 // pred_region
      _
    $region5: #{_lambda_.108} parent=1 // pred_fallthru
      _
    // Predicated region
    $region6: #{_lambda_.108} parent=1 // pred_check
      _
    $region7: #{_lambda_.108} parent=1 // pred_check_branch
      %11 = sbr.rel (0) target = $region9
    $region8: #{_lambda_.108} parent=1 // pred_region
      _
    $region9: #{_lambda_.108} parent=1 // pred_fallthru
      _
    // Predicated region
    $region10: #{_lambda_.108} parent=1 // pred_check
      _
    $region11: #{_lambda_.108} parent=1 // pred_check_branch
      %13 = sbr.rel (0) target = $region13
    $region12: #{_lambda_.108} parent=1 // pred_region
      _
    $region13: #{_lambda_.108} parent=1 // pred_fallthru
      _
    %v15 = vld [vmem:[%s0] sm:$0x1]
    %v16 = vld [vmem:[%s0 + $0x1] sm:$0x1]
    %v17 = vld [vmem:[%s0 + $0x2] sm:$0x1]
    %v18 = vld [vmem:[%s0 + $0x3] sm:$0x1]
    %v19 = vld [vmem:[%s1] sm:$0xf]
    %v20 = vld [vmem:[%s1 + $0x4] sm:$0xf]
    %v21 = vld [vmem:[%s2] sm:$0x1]
    %v23 = vlaneseq
    %v24 = vshrl.u32 %v23, 7
    %v25 = vsub.s32 0, %v24
    %v26 = vrot.slane %v21, %v25
    %v32 = vcombine.low %v15, %v16
    %v33 = vcombine.low %v17, %v18
    %v35 = vunpack.c.l.s4 1966171168
    %v36 = vunpack.c.0.s8 %v35
    %v37 = vlaneseq
    %v38 = vshrl.u32 %v37, 7
    %v39 = vsub.s32 %v36, %v38
    %v40 = vrot.slane %v32, %v39
    %v42 = vunpack.c.l.s4 1966171168
    %v43 = vunpack.c.0.s8 %v42
    %v44 = vlaneseq
    %v45 = vshrl.u32 %v44, 7
    %v46 = vsub.s32 %v43, %v45
    %v47 = vrot.slane %v33, %v46
    %v48 = vcombine.low %v40, %v47
    %v50 = vunpack.c.l.s4 1966171168
    %v51 = vunpack.c.0.s8 %v50
    %v52 = vlaneseq
    %v53 = vshrl.u32 %v52, 7
    %v54 = vsub.s32 %v51, %v53
    %v55 = vrot.slane %v48, %v54
    %v58 = vunpack.c.l.b16 %v19
    %v59 = vunpack.c.l.b16 %v20
    %v60 = vpack.c.b16 %v59, %v58
    %vm62 = vcmask 130048
    %v64 = vsel %vm62, %v55, 0
    %66 = vmatprep.subr.bf16.mxu0 0
    %67 = vmatpush1.bf16.msra.mxu0 %v60
    %68 = vmatprep.subr.bf16.mxu0 0
    %69 = vmatpush1.bf16.msra.mxu0 0
    %70 = vmatprep.subr.bf16.mxu0 0
    %71 = vmatpush1.bf16.msra.mxu0 0
    %72 = vmatprep.subr.bf16.mxu0 0
    %73 = vmatpush1.bf16.msra.mxu0 0
    %74 = vmatprep.subr.bf16.mxu0 0
    %75 = vmatpush1.bf16.msra.mxu0 0
    %76 = vmatprep.subr.bf16.mxu0 0
    %77 = vmatpush1.bf16.msra.mxu0 0
    %78 = vmatprep.subr.bf16.mxu0 0
    %79 = vmatpush1.bf16.msra.mxu0 0
    %80 = vmatprep.subr.bf16.mxu0 0
    %81 = vmatpush1.bf16.msra.mxu0 0
    %82 = vmatprep.subr.bf16.mxu0 0
    %83 = vmatpush1.bf16.msra.mxu0 0
    %84 = vmatprep.subr.bf16.mxu0 0
    %85 = vmatpush1.bf16.msra.mxu0 0
    %86 = vmatprep.subr.bf16.mxu0 0
    %87 = vmatpush1.bf16.msra.mxu0 0
    %88 = vmatprep.subr.bf16.mxu0 0
    %89 = vmatpush1.bf16.msra.mxu0 0
    %90 = vmatprep.subr.bf16.mxu0 0
    %91 = vmatpush1.bf16.msra.mxu0 0
    %92 = vmatprep.subr.bf16.mxu0 0
    %93 = vmatpush1.bf16.msra.mxu0 0
    %94 = vmatprep.subr.bf16.mxu0 0
    %95 = vmatpush1.bf16.msra.mxu0 0
    %96 = vmatprep.subr.bf16.mxu0 0
    %97 = vmatpush1.bf16.msra.mxu0 0
    %98 = vmatprep.mubr.bf16.mxu0 0
    %99 = vmatmul.mubr.bf16.gmra.mrb[0].mxu0 %v64
    %v100 = vpop.f32.mrb[0].mxu0
    %v101 = vadd.f32 %v26, %v100
    %v102 = vpop.f32.mrb[0].mxu0
    %v103 = vpop.f32.mrb[0].mxu0
    %v104 = vpop.f32.mrb[0].mxu0
    %105 = vdwg.mxu0
    %vm106 = vcmask 31744
    %107 = vst.msk [vmem:[#allocation2] sm:$0xff] %vm106, %v101
    // Predicated region
    $region14: #{_lambda_.108} parent=1 // pred_check
      _
    $region15: #{_lambda_.108} parent=1 // pred_check_branch
      %109 = sbr.rel (0) target = $region17
    $region16: #{_lambda_.108} parent=1 // pred_region
      // Predicated region
      $region18: #{_lambda_.108} parent=16 // pred_check
        _
      $region19: #{_lambda_.108} parent=16 // pred_check_branch
        %111 = sbr.rel (0) target = $region21
      $region20: #{_lambda_.108} parent=16 // pred_region
        // Predicated region
        $region22: #{_lambda_.108} parent=20 // pred_check
          _
        $region23: #{_lambda_.108} parent=20 // pred_check_branch
          %113 = sbr.rel target = $region25
        $region24: #{_lambda_.108} parent=20 // pred_region
          // Predicated region
          $region37: #{_lambda_.108} parent=24 // pred_check
            _
          $region38: #{_lambda_.108} parent=24 // pred_check_branch
            %128 = sbr.rel (0) target = $region40
          $region39: #{_lambda_.108} parent=24 // pred_region
            loop: start=0, step=1, limit=1
            $region41: #{_lambda_.108} parent=39 // loop_pre_header
              _
            $region42: #{_lambda_.108} parent=39 // loop_header
              %s131 = sphi 0, %s135
              %p132 = scmp.ge.s32.totalorder %s131, 1
              %s136 = sphi [#allocation2], [#allocation2]
              %s137 = sphi %s3, %s3
            $region43: #{_lambda_.108} parent=39 // loop_header_branch
              %134 = sbr.rel (%p132) target = $region47
            $region44: #{_lambda_.108} parent=39 // loop_body
              %v138 = vld [vmem:[%s136] sm:$0x3]
              %139 = vst [vmem:[%s137] sm:$0x3] %v138
            $region45: #{_lambda_.108} parent=39 // loop_footer
              %s135 = sadd.s32 1, %s131
            $region46: #{_lambda_.108} parent=39 // loop_footer_branch
              %130 = sbr.rel target = $region42
            $region47: #{_lambda_.108} parent=39 // loop_exit
              _
          $region40: #{_lambda_.108} parent=24 // pred_fallthru
            _
        $region25: #{_lambda_.108} parent=20 // pred_fallthru
          _
        // Predicated region
        $region26: #{_lambda_.108} parent=20 // pred_check
          _
        $region27: #{_lambda_.108} parent=20 // pred_check_branch
          %115 = sbr.rel (0) target = $region29
        $region28: #{_lambda_.108} parent=20 // pred_region
          loop: start=0, step=1, limit=1
          $region30: #{_lambda_.108} parent=28 // loop_pre_header
            _
          $region31: #{_lambda_.108} parent=28 // loop_header
            %s118 = sphi 0, %s122
            %p119 = scmp.ge.s32.totalorder %s118, 1
            %s123 = sphi [#allocation2], [#allocation2]
            %s124 = sphi %s3, %s3
          $region32: #{_lambda_.108} parent=28 // loop_header_branch
            %121 = sbr.rel (%p119) target = $region36
          $region33: #{_lambda_.108} parent=28 // loop_body
            %v125 = vld [vmem:[%s123] sm:$0x3]
            %126 = vst [vmem:[%s124] sm:$0x3] %v125
          $region34: #{_lambda_.108} parent=28 // loop_footer
            %s122 = sadd.s32 1, %s118
          $region35: #{_lambda_.108} parent=28 // loop_footer_branch
            %117 = sbr.rel target = $region31
          $region36: #{_lambda_.108} parent=28 // loop_exit
            _
        $region29: #{_lambda_.108} parent=20 // pred_fallthru
          _
      $region21: #{_lambda_.108} parent=16 // pred_fallthru
        _
      %140 = vnop
    $region17: #{_lambda_.108} parent=1 // pred_fallthru
      _
    // Predicated region
    $region48: #{_lambda_.108} parent=1 // pred_check
      _
    $region49: #{_lambda_.108} parent=1 // pred_check_branch
      %142 = sbr.rel (0) target = $region51
    $region50: #{_lambda_.108} parent=1 // pred_region
      _
    $region51: #{_lambda_.108} parent=1 // pred_fallthru
      _

// kernel: _lambda_.114
$region0: #{_lambda_.114}
  #allocation0 [shape = 'u32[]', space=smem, size = 0x4, offset = 0x4, fixed_abs, tag = 'smem constant byte address 0x4 - core index']
  #allocation1 [shape = 'u32[144,128]{1,0:T(1,128)}', space=vmem, size = 0x12000, scoped, tag = 'internal scratch']
  %s0 = inlined_call_operand.vmem [shape: bf16[512,4], index: 0, kind: input, shape index: {}]
  %s1 = inlined_call_operand.vmem [shape: bf16[4,4], index: 1, kind: input, shape index: {}]
  %s2 = inlined_call_operand.vmem [shape: f32[1,4], index: 2, kind: input, shape index: {}]
  %s3 = inlined_call_operand.vmem [shape: f32[512,4], index: 3, kind: output, shape index: {}]
  %s4 = sld [smem:[#allocation0]]
  $region45: #{_lambda_.114} parent=0
    _
  %s6 = ssub.s32 1, %s4
  %s7 = scalar_select 0, %s6, %s4
  loop: start=0, step=1, limit=4
  $region2: #{_lambda_.114} parent=0 // loop_pre_header
    _
  $region3: #{_lambda_.114} parent=0 // loop_header
    %s9 = sphi 0, %s13
    %p10 = scmp.ge.s32.totalorder %s9, 4
    %s19 = sphi 0, %s21
    %s22 = sphi 0, %s19
    %s23 = sphi 0, %s22
    %s39 = sphi 0, %s23
    %s43 = sphi 0, %s43
    %s45 = sphi 0, %s43
    %s46 = sphi 0, %s45
    %s60 = sphi 0, %s46
    %s64 = sphi 0, %s64
    %s66 = sphi 0, %s64
    %s67 = sphi 0, %s66
    %s81 = sphi 0, %s67
    %s87 = sphi 0, %s89
    %s90 = sphi 0, %s87
    %s91 = sphi 0, %s90
    %s107 = sphi 0, %s91
  $region4: #{_lambda_.114} parent=0 // loop_header_branch
    %12 = sbr.rel (%p10) target = $region8
  $region5: #{_lambda_.114} parent=0 // loop_body
    %s14 = ssub.s32 %s9, 1
    %s15 = ssub.s32 %s9, 2
    %s16 = sadd.s32 %s9, 1
    %s17 = ssub.s32 %s9, %s16
    %p18 = scmp.eq.s32.totalorder %s17, 0
    %s20 = sadd.s32 %s19, 1
    %s21 = scalar_select %p18, %s19, %s20
    %p24 = pneg %p18
    %p25 = scmp.eq.s32.totalorder %s9, 1
    %p26 = por %p24, %p25
    %p27 = scmp.ne.s32.totalorder %s19, %s22
    %p28 = scmp.eq.s32.totalorder %s9, 0
    %p29 = por %p27, %p28
    %p30 = scmp.ne.s32.totalorder %s19, %s22
    %p31 = scmp.eq.s32.totalorder %s14, 1
    %p32 = por %p30, %p31
    %p33 = scmp.ne.s32.totalorder %s22, %s23
    %p34 = scmp.eq.s32.totalorder %s14, 0
    %p35 = por %p33, %p34
    %p36 = scmp.ne.s32.totalorder %s22, %s23
    %p37 = scmp.eq.s32.totalorder %s15, 1
    %p38 = por %p36, %p37
    %p40 = scmp.ne.s32.totalorder %s23, %s39
    %p41 = scmp.eq.s32.totalorder %s15, 0
    %p42 = por %p40, %p41
    %s44 = sadd.s32 %s43, 1
    %p47 = scmp.eq.s32.totalorder %s9, 1
    %p48 = scmp.ne.s32.totalorder %s43, %s45
    %p49 = scmp.eq.s32.totalorder %s9, 0
    %p50 = por %p48, %p49
    %p51 = scmp.ne.s32.totalorder %s43, %s45
    %p52 = scmp.eq.s32.totalorder %s14, 1
    %p53 = por %p51, %p52
    %p54 = scmp.ne.s32.totalorder %s45, %s46
    %p55 = scmp.eq.s32.totalorder %s14, 0
    %p56 = por %p54, %p55
    %p57 = scmp.ne.s32.totalorder %s45, %s46
    %p58 = scmp.eq.s32.totalorder %s15, 1
    %p59 = por %p57, %p58
    %p61 = scmp.ne.s32.totalorder %s46, %s60
    %p62 = scmp.eq.s32.totalorder %s15, 0
    %p63 = por %p61, %p62
    %s65 = sadd.s32 %s64, 1
    %p68 = scmp.eq.s32.totalorder %s9, 1
    %p69 = scmp.ne.s32.totalorder %s64, %s66
    %p70 = scmp.eq.s32.totalorder %s9, 0
    %p71 = por %p69, %p70
    %p72 = scmp.ne.s32.totalorder %s64, %s66
    %p73 = scmp.eq.s32.totalorder %s14, 1
    %p74 = por %p72, %p73
    %p75 = scmp.ne.s32.totalorder %s66, %s67
    %p76 = scmp.eq.s32.totalorder %s14, 0
    %p77 = por %p75, %p76
    %p78 = scmp.ne.s32.totalorder %s66, %s67
    %p79 = scmp.eq.s32.totalorder %s15, 1
    %p80 = por %p78, %p79
    %p82 = scmp.ne.s32.totalorder %s67, %s81
    %p83 = scmp.eq.s32.totalorder %s15, 0
    %p84 = por %p82, %p83
    %s85 = ssub.s32 %s9, %s16
    %p86 = scmp.eq.s32.totalorder %s85, 0
    %s88 = sadd.s32 %s87, 1
    %s89 = scalar_select %p86, %s87, %s88
    %p92 = pneg %p86
    %p93 = scmp.eq.s32.totalorder %s9, 1
    %p94 = por %p92, %p93
    %p95 = scmp.ne.s32.totalorder %s87, %s90
    %p96 = scmp.eq.s32.totalorder %s9, 0
    %p97 = por %p95, %p96
    %p98 = scmp.ne.s32.totalorder %s87, %s90
    %p99 = scmp.eq.s32.totalorder %s14, 1
    %p100 = por %p98, %p99
    %p101 = scmp.ne.s32.totalorder %s90, %s91
    %p102 = scmp.eq.s32.totalorder %s14, 0
    %p103 = por %p101, %p102
    %p104 = scmp.ne.s32.totalorder %s90, %s91
    %p105 = scmp.eq.s32.totalorder %s15, 1
    %p106 = por %p104, %p105
    %p108 = scmp.ne.s32.totalorder %s91, %s107
    %p109 = scmp.eq.s32.totalorder %s15, 0
    %p110 = por %p108, %p109
    %p111 = scmp.le.s32.totalorder 1, %s9
    %p112 = scmp.lt.s32.totalorder %s9, 3
    %p113 = pnand %p111, %p112
    %p114 = pneg %p113
    // Predicated region
    $region9: #{_lambda_.114} parent=5 // pred_check
      _
    $region10: #{_lambda_.114} parent=5 // pred_check_branch
      %116 = sbr.rel (%p113) target = $region12
    $region11: #{_lambda_.114} parent=5 // pred_region
      %s117 = ssub.s32 %s9, 1
      // Predicated region
      $region13: #{_lambda_.114} parent=11 // pred_check
        %p118 = pneg %p56
      $region14: #{_lambda_.114} parent=11 // pred_check_branch
        %120 = sbr.rel (%p118) target = $region16
      $region15: #{_lambda_.114} parent=11 // pred_region
        _
      $region16: #{_lambda_.114} parent=11 // pred_fallthru
        _
      // Predicated region
      $region17: #{_lambda_.114} parent=11 // pred_check
        %p121 = pneg %p77
      $region18: #{_lambda_.114} parent=11 // pred_check_branch
        %123 = sbr.rel (%p121) target = $region20
      $region19: #{_lambda_.114} parent=11 // pred_region
        _
      $region20: #{_lambda_.114} parent=11 // pred_fallthru
        _
    $region12: #{_lambda_.114} parent=5 // pred_fallthru
      _
    %p124 = scmp.lt.s32.totalorder %s9, 2
    // Predicated region
    $region21: #{_lambda_.114} parent=5 // pred_check
      %p125 = pneg %p124
    $region22: #{_lambda_.114} parent=5 // pred_check_branch
      %127 = sbr.rel (%p125) target = $region24
    $region23: #{_lambda_.114} parent=5 // pred_region
      // Predicated region
      $region25: #{_lambda_.114} parent=23 // pred_check
        %p128 = pneg %p29
      $region26: #{_lambda_.114} parent=23 // pred_check_branch
        %130 = sbr.rel (%p128) target = $region28
      $region27: #{_lambda_.114} parent=23 // pred_region
        %s131 = smul.u32 32, %s9
        %p132 = scmp.lt.s32.totalorder %s131, 63
        %s133 = scalar_select %p132, %s131, 63
        %s134 = smul.addr %s133, 4
        %s135 = scalar_lea.vmem %s0, %s134
        %s136 = smul.u32 32, %s9
      $region28: #{_lambda_.114} parent=23 // pred_fallthru
        _
    $region24: #{_lambda_.114} parent=5 // pred_fallthru
      _
    %p137 = scmp.le.s32.totalorder 1, %s9
    %p138 = scmp.lt.s32.totalorder %s9, 3
    %p139 = pnand %p137, %p138
    %p140 = pneg %p139
    // Predicated region
    $region29: #{_lambda_.114} parent=5 // pred_check
      _
    $region30: #{_lambda_.114} parent=5 // pred_check_branch
      %142 = sbr.rel (%p139) target = $region32
    $region31: #{_lambda_.114} parent=5 // pred_region
      %s143 = ssub.s32 %s9, 1
      %s144 = smul.u32 32, %s14
      %p145 = scmp.lt.s32.totalorder %s144, 63
      %s146 = scalar_select %p145, %s144, 63
      %s147 = smul.addr %s146, 4
      %s148 = scalar_lea.vmem %s0, %s147
      %p149 = pneg %p35
      %p150 = pneg %p32
      %p151 = pneg %p56
      %p152 = pneg %p53
      %p153 = pneg %p77
      %p154 = pneg %p74
      %p155 = pneg %p103
      %p156 = pneg %p100
      %s157 = smul.u32 32, %s14
      %p158 = scmp.lt.s32.totalorder %s157, 63
      %s159 = scalar_select %p158, %s157, 63
      %s160 = smul.addr %s159, 8
      %s161 = scalar_lea.vmem %s3, %s160
      %s162 = smul.u32 32, %s14
      %p163 = scmp.lt.s32.totalorder %s162, 63
      %s164 = scalar_select %p163, %s162, 63
      %s165 = smul.addr %s164, 4
      %s166 = scalar_lea.vmem %s0, %s165
      %s167 = smul.u32 32, %s14
      %s168 = smul.u32 32, %s14
      %p169 = scmp.lt.s32.totalorder %s168, 63
      %s170 = scalar_select %p169, %s168, 63
      %s171 = smul.addr %s170, 8
      %s172 = scalar_lea.vmem %s3, %s171
      %s173 = smul.u32 32, %s14
      %v175 = vld [vmem:[%s166] sm:$0xf]
      %v176 = vld [vmem:[%s166 + $0x4] sm:$0xf]
      %v177 = vld [vmem:[%s166 + $0x8] sm:$0xf]
      %v178 = vld [vmem:[%s166 + $0xc] sm:$0xf]
      %v179 = vld [vmem:[%s166 + $0x10] sm:$0xf]
      %v180 = vld [vmem:[%s166 + $0x14] sm:$0xf]
      %v181 = vld [vmem:[%s166 + $0x18] sm:$0xf]
      %v182 = vld [vmem:[%s166 + $0x1c] sm:$0xf]
      %v183 = vld [vmem:[%s166 + $0x20] sm:$0xf]
      %v184 = vld [vmem:[%s166 + $0x24] sm:$0xf]
      %v185 = vld [vmem:[%s166 + $0x28] sm:$0xf]
      %v186 = vld [vmem:[%s166 + $0x2c] sm:$0xf]
      %v187 = vld [vmem:[%s166 + $0x30] sm:$0xf]
      %v188 = vld [vmem:[%s166 + $0x34] sm:$0xf]
      %v189 = vld [vmem:[%s166 + $0x38] sm:$0xf]
      %v190 = vld [vmem:[%s166 + $0x3c] sm:$0xf]
      %v191 = vld [vmem:[%s166 + $0x40] sm:$0xf]
      %v192 = vld [vmem:[%s166 + $0x44] sm:$0xf]
      %v193 = vld [vmem:[%s166 + $0x48] sm:$0xf]
      %v194 = vld [vmem:[%s166 + $0x4c] sm:$0xf]
      %v195 = vld [vmem:[%s166 + $0x50] sm:$0xf]
      %v196 = vld [vmem:[%s166 + $0x54] sm:$0xf]
      %v197 = vld [vmem:[%s166 + $0x58] sm:$0xf]
      %v198 = vld [vmem:[%s166 + $0x5c] sm:$0xf]
      %v199 = vld [vmem:[%s166 + $0x60] sm:$0xf]
      %v200 = vld [vmem:[%s166 + $0x64] sm:$0xf]
      %v201 = vld [vmem:[%s166 + $0x68] sm:$0xf]
      %v202 = vld [vmem:[%s166 + $0x6c] sm:$0xf]
      %v203 = vld [vmem:[%s166 + $0x70] sm:$0xf]
      %v204 = vld [vmem:[%s166 + $0x74] sm:$0xf]
      %v205 = vld [vmem:[%s166 + $0x78] sm:$0xf]
      %v206 = vld [vmem:[%s166 + $0x7c] sm:$0xf]
      %v207 = vld [vmem:[%s1] sm:$0x3]
      %v208 = vld [vmem:[%s2] sm:$0x1]
      %v210 = vlaneseq
      %v211 = vshrl.u32 %v210, 7
      %v212 = vsub.s32 0, %v211
      %v213 = vrot.slane %v208, %v212
      %v247 = vunpack.c.l.b16 %v175
      %v248 = vunpack.c.l.b16 %v176
      %v249 = vunpack.c.l.b16 %v177
      %v250 = vunpack.c.l.b16 %v178
      %v251 = vunpack.c.l.b16 %v179
      %v252 = vunpack.c.l.b16 %v180
      %v253 = vunpack.c.l.b16 %v181
      %v254 = vunpack.c.l.b16 %v182
      %v255 = vunpack.c.l.b16 %v183
      %v256 = vunpack.c.l.b16 %v184
      %v257 = vunpack.c.l.b16 %v185
      %v258 = vunpack.c.l.b16 %v186
      %v259 = vunpack.c.l.b16 %v187
      %v260 = vunpack.c.l.b16 %v188
      %v261 = vunpack.c.l.b16 %v189
      %v262 = vunpack.c.l.b16 %v190
      %v263 = vunpack.c.l.b16 %v191
      %v264 = vunpack.c.l.b16 %v192
      %v265 = vunpack.c.l.b16 %v193
      %v266 = vunpack.c.l.b16 %v194
      %v267 = vunpack.c.l.b16 %v195
      %v268 = vunpack.c.l.b16 %v196
      %v269 = vunpack.c.l.b16 %v197
      %v270 = vunpack.c.l.b16 %v198
      %v271 = vunpack.c.l.b16 %v199
      %v272 = vunpack.c.l.b16 %v200
      %v273 = vunpack.c.l.b16 %v201
      %v274 = vunpack.c.l.b16 %v202
      %v275 = vunpack.c.l.b16 %v203
      %v276 = vunpack.c.l.b16 %v204
      %v277 = vunpack.c.l.b16 %v205
      %v278 = vunpack.c.l.b16 %v206
      %v279 = vpack.c.b16 %v248, %v247
      %v280 = vpack.c.b16 %v250, %v249
      %v281 = vpack.c.b16 %v252, %v251
      %v282 = vpack.c.b16 %v254, %v253
      %v283 = vpack.c.b16 %v256, %v255
      %v284 = vpack.c.b16 %v258, %v257
      %v285 = vpack.c.b16 %v260, %v259
      %v286 = vpack.c.b16 %v262, %v261
      %v287 = vpack.c.b16 %v264, %v263
      %v288 = vpack.c.b16 %v266, %v265
      %v289 = vpack.c.b16 %v268, %v267
      %v290 = vpack.c.b16 %v270, %v269
      %v291 = vpack.c.b16 %v272, %v271
      %v292 = vpack.c.b16 %v274, %v273
      %v293 = vpack.c.b16 %v276, %v275
      %v294 = vpack.c.b16 %v278, %v277
      %vm295 = vcmask 31744
      %v297 = vsel %vm295, %v279, 0
      %v300 = vsel %vm295, %v280, 0
      %v303 = vsel %vm295, %v281, 0
      %v306 = vsel %vm295, %v282, 0
      %v309 = vsel %vm295, %v283, 0
      %v312 = vsel %vm295, %v284, 0
      %v315 = vsel %vm295, %v285, 0
      %v318 = vsel %vm295, %v286, 0
      %v321 = vsel %vm295, %v287, 0
      %v324 = vsel %vm295, %v288, 0
      %v327 = vsel %vm295, %v289, 0
      %v330 = vsel %vm295, %v290, 0
      %v333 = vsel %vm295, %v291, 0
      %v336 = vsel %vm295, %v292, 0
      %v339 = vsel %vm295, %v293, 0
      %v342 = vsel %vm295, %v294, 0
      %vm344 = vcmask 1041408
      %v346 = vsel %vm344, %v207, 0
      %348 = vmatprep.subr.bf16.mxu0 0
      %349 = vmatpush1.bf16.msra.mxu0 %v346
      %350 = vmatprep.subr.bf16.mxu0 0
      %351 = vmatpush1.bf16.msra.mxu0 0
      %352 = vmatprep.subr.bf16.mxu0 0
      %353 = vmatpush1.bf16.msra.mxu0 0
      %354 = vmatprep.subr.bf16.mxu0 0
      %355 = vmatpush1.bf16.msra.mxu0 0
      %356 = vmatprep.subr.bf16.mxu0 0
      %357 = vmatpush1.bf16.msra.mxu0 0
      %358 = vmatprep.subr.bf16.mxu0 0
      %359 = vmatpush1.bf16.msra.mxu0 0
      %360 = vmatprep.subr.bf16.mxu0 0
      %361 = vmatpush1.bf16.msra.mxu0 0
      %362 = vmatprep.subr.bf16.mxu0 0
      %363 = vmatpush1.bf16.msra.mxu0 0
      %364 = vmatprep.subr.bf16.mxu0 0
      %365 = vmatpush1.bf16.msra.mxu0 0
      %366 = vmatprep.subr.bf16.mxu0 0
      %367 = vmatpush1.bf16.msra.mxu0 0
      %368 = vmatprep.subr.bf16.mxu0 0
      %369 = vmatpush1.bf16.msra.mxu0 0
      %370 = vmatprep.subr.bf16.mxu0 0
      %371 = vmatpush1.bf16.msra.mxu0 0
      %372 = vmatprep.subr.bf16.mxu0 0
      %373 = vmatpush1.bf16.msra.mxu0 0
      %374 = vmatprep.subr.bf16.mxu0 0
      %375 = vmatpush1.bf16.msra.mxu0 0
      %376 = vmatprep.subr.bf16.mxu0 0
      %377 = vmatpush1.bf16.msra.mxu0 0
      %378 = vmatprep.subr.bf16.mxu0 0
      %379 = vmatpush1.bf16.msra.mxu0 0
      %380 = vmatprep.mubr.bf16.mxu0 0
      %381 = vmatmul.mubr.bf16.gmra.mrb[0].mxu0 %v297
      %v382 = vpop.f32.mrb[0].mxu0
      %v383 = vadd.f32 %v213, %v382
      %v384 = vpop.f32.mrb[0].mxu0
      %v385 = vpop.f32.mrb[0].mxu0
      %v386 = vadd.f32 %v213, %v385
      %v387 = vpop.f32.mrb[0].mxu0
      %388 = vmatprep.mubr.bf16.mxu0 0
      %389 = vmatmul.mubr.bf16.gmra.mrb[0].mxu0 %v300
      %v390 = vpop.f32.mrb[0].mxu0
      %v391 = vadd.f32 %v213, %v390
      %v392 = vpop.f32.mrb[0].mxu0
      %v393 = vpop.f32.mrb[0].mxu0
      %v394 = vadd.f32 %v213, %v393
      %v395 = vpop.f32.mrb[0].mxu0
      %396 = vmatprep.mubr.bf16.mxu0 0
      %397 = vmatmul.mubr.bf16.gmra.mrb[0].mxu0 %v303
      %v398 = vpop.f32.mrb[0].mxu0
      %v399 = vadd.f32 %v213, %v398
      %v400 = vpop.f32.mrb[0].mxu0
      %v401 = vpop.f32.mrb[0].mxu0
      %v402 = vadd.f32 %v213, %v401
      %v403 = vpop.f32.mrb[0].mxu0
      %404 = vmatprep.mubr.bf16.mxu0 0
      %405 = vmatmul.mubr.bf16.gmra.mrb[0].mxu0 %v306
      %v406 = vpop.f32.mrb[0].mxu0
      %v407 = vadd.f32 %v213, %v406
      %v408 = vpop.f32.mrb[0].mxu0
      %v409 = vpop.f32.mrb[0].mxu0
      %v410 = vadd.f32 %v213, %v409
      %v411 = vpop.f32.mrb[0].mxu0
      %412 = vmatprep.mubr.bf16.mxu0 0
      %413 = vmatmul.mubr.bf16.gmra.mrb[0].mxu0 %v309
      %v414 = vpop.f32.mrb[0].mxu0
      %v415 = vadd.f32 %v213, %v414
      %v416 = vpop.f32.mrb[0].mxu0
      %v417 = vpop.f32.mrb[0].mxu0
      %v418 = vadd.f32 %v213, %v417
      %v419 = vpop.f32.mrb[0].mxu0
      %420 = vmatprep.mubr.bf16.mxu0 0
      %421 = vmatmul.mubr.bf16.gmra.mrb[0].mxu0 %v312
      %v422 = vpop.f32.mrb[0].mxu0
      %v423 = vadd.f32 %v213, %v422
      %v424 = vpop.f32.mrb[0].mxu0
      %v425 = vpop.f32.mrb[0].mxu0
      %v426 = vadd.f32 %v213, %v425
      %v427 = vpop.f32.mrb[0].mxu0
      %428 = vmatprep.mubr.bf16.mxu0 0
      %429 = vmatmul.mubr.bf16.gmra.mrb[0].mxu0 %v315
      %v430 = vpop.f32.mrb[0].mxu0
      %v431 = vadd.f32 %v213, %v430
      %v432 = vpop.f32.mrb[0].mxu0
      %v433 = vpop.f32.mrb[0].mxu0
      %v434 = vadd.f32 %v213, %v433
      %v435 = vpop.f32.mrb[0].mxu0
      %436 = vmatprep.mubr.bf16.mxu0 0
      %437 = vmatmul.mubr.bf16.gmra.mrb[0].mxu0 %v318
      %v438 = vpop.f32.mrb[0].mxu0
      %v439 = vadd.f32 %v213, %v438
      %v440 = vpop.f32.mrb[0].mxu0
      %v441 = vpop.f32.mrb[0].mxu0
      %v442 = vadd.f32 %v213, %v441
      %v443 = vpop.f32.mrb[0].mxu0
      %444 = vmatprep.mubr.bf16.mxu0 0
      %445 = vmatmul.mubr.bf16.gmra.mrb[0].mxu0 %v321
      %v446 = vpop.f32.mrb[0].mxu0
      %v447 = vadd.f32 %v213, %v446
      %v448 = vpop.f32.mrb[0].mxu0
      %v449 = vpop.f32.mrb[0].mxu0
      %v450 = vadd.f32 %v213, %v449
      %v451 = vpop.f32.mrb[0].mxu0
      %452 = vmatprep.mubr.bf16.mxu0 0
      %453 = vmatmul.mubr.bf16.gmra.mrb[0].mxu0 %v324
      %v454 = vpop.f32.mrb[0].mxu0
      %v455 = vadd.f32 %v213, %v454
      %v456 = vpop.f32.mrb[0].mxu0
      %v457 = vpop.f32.mrb[0].mxu0
      %v458 = vadd.f32 %v213, %v457
      %v459 = vpop.f32.mrb[0].mxu0
      %460 = vmatprep.mubr.bf16.mxu0 0
      %461 = vmatmul.mubr.bf16.gmra.mrb[0].mxu0 %v327
      %v462 = vpop.f32.mrb[0].mxu0
      %v463 = vadd.f32 %v213, %v462
      %v464 = vpop.f32.mrb[0].mxu0
      %v465 = vpop.f32.mrb[0].mxu0
      %v466 = vadd.f32 %v213, %v465
      %v467 = vpop.f32.mrb[0].mxu0
      %468 = vmatprep.mubr.bf16.mxu0 0
      %469 = vmatmul.mubr.bf16.gmra.mrb[0].mxu0 %v330
      %v470 = vpop.f32.mrb[0].mxu0
      %v471 = vadd.f32 %v213, %v470
      %v472 = vpop.f32.mrb[0].mxu0
      %v473 = vpop.f32.mrb[0].mxu0
      %v474 = vadd.f32 %v213, %v473
      %v475 = vpop.f32.mrb[0].mxu0
      %476 = vmatprep.mubr.bf16.mxu0 0
      %477 = vmatmul.mubr.bf16.gmra.mrb[0].mxu0 %v333
      %v478 = vpop.f32.mrb[0].mxu0
      %v479 = vadd.f32 %v213, %v478
      %v480 = vpop.f32.mrb[0].mxu0
      %v481 = vpop.f32.mrb[0].mxu0
      %v482 = vadd.f32 %v213, %v481
      %v483 = vpop.f32.mrb[0].mxu0
      %484 = vmatprep.mubr.bf16.mxu0 0
      %485 = vmatmul.mubr.bf16.gmra.mrb[0].mxu0 %v336
      %v486 = vpop.f32.mrb[0].mxu0
      %v487 = vadd.f32 %v213, %v486
      %v488 = vpop.f32.mrb[0].mxu0
      %v489 = vpop.f32.mrb[0].mxu0
      %v490 = vadd.f32 %v213, %v489
      %v491 = vpop.f32.mrb[0].mxu0
      %492 = vmatprep.mubr.bf16.mxu0 0
      %493 = vmatmul.mubr.bf16.gmra.mrb[0].mxu0 %v339
      %v494 = vpop.f32.mrb[0].mxu0
      %v495 = vadd.f32 %v213, %v494
      %v496 = vpop.f32.mrb[0].mxu0
      %v497 = vpop.f32.mrb[0].mxu0
      %v498 = vadd.f32 %v213, %v497
      %v499 = vpop.f32.mrb[0].mxu0
      %500 = vmatprep.mubr.bf16.mxu0 0
      %501 = vmatmul.mubr.bf16.gmra.mrb[0].mxu0 %v342
      %v502 = vpop.f32.mrb[0].mxu0
      %v503 = vadd.f32 %v213, %v502
      %v504 = vpop.f32.mrb[0].mxu0
      %v505 = vpop.f32.mrb[0].mxu0
      %v506 = vadd.f32 %v213, %v505
      %v507 = vpop.f32.mrb[0].mxu0
      %508 = vdwg.mxu0
      %v509 = vmax.f32 %v383, 0.0
      %v510 = vmax.f32 %v386, 0.0
      %v511 = vmax.f32 %v391, 0.0
      %v512 = vmax.f32 %v394, 0.0
      %v513 = vmax.f32 %v399, 0.0
      %v514 = vmax.f32 %v402, 0.0
      %v515 = vmax.f32 %v407, 0.0
      %v516 = vmax.f32 %v410, 0.0
      %v517 = vmax.f32 %v415, 0.0
      %v518 = vmax.f32 %v418, 0.0
      %v519 = vmax.f32 %v423, 0.0
      %v520 = vmax.f32 %v426, 0.0
      %v521 = vmax.f32 %v431, 0.0
      %v522 = vmax.f32 %v434, 0.0
      %v523 = vmax.f32 %v439, 0.0
      %v524 = vmax.f32 %v442, 0.0
      %v525 = vmax.f32 %v447, 0.0
      %v526 = vmax.f32 %v450, 0.0
      %v527 = vmax.f32 %v455, 0.0
      %v528 = vmax.f32 %v458, 0.0
      %v529 = vmax.f32 %v463, 0.0
      %v530 = vmax.f32 %v466, 0.0
      %v531 = vmax.f32 %v471, 0.0
      %v532 = vmax.f32 %v474, 0.0
      %v533 = vmax.f32 %v479, 0.0
      %v534 = vmax.f32 %v482, 0.0
      %v535 = vmax.f32 %v487, 0.0
      %v536 = vmax.f32 %v490, 0.0
      %v537 = vmax.f32 %v495, 0.0
      %v538 = vmax.f32 %v498, 0.0
      %v539 = vmax.f32 %v503, 0.0
      %v540 = vmax.f32 %v506, 0.0
      %541 = vst.msk [vmem:[%s172] sm:$0xff] %vm295, %v509
      %542 = vst.msk [vmem:[%s172 + $0x8] sm:$0xff] %vm295, %v510
      %543 = vst.msk [vmem:[%s172 + $0x10] sm:$0xff] %vm295, %v511
      %544 = vst.msk [vmem:[%s172 + $0x18] sm:$0xff] %vm295, %v512
      %545 = vst.msk [vmem:[%s172 + $0x20] sm:$0xff] %vm295, %v513
      %546 = vst.msk [vmem:[%s172 + $0x28] sm:$0xff] %vm295, %v514
      %547 = vst.msk [vmem:[%s172 + $0x30] sm:$0xff] %vm295, %v515
      %548 = vst.msk [vmem:[%s172 + $0x38] sm:$0xff] %vm295, %v516
      %549 = vst.msk [vmem:[%s172 + $0x40] sm:$0xff] %vm295, %v517
      %550 = vst.msk [vmem:[%s172 + $0x48] sm:$0xff] %vm295, %v518
      %551 = vst.msk [vmem:[%s172 + $0x50] sm:$0xff] %vm295, %v519
      %552 = vst.msk [vmem:[%s172 + $0x58] sm:$0xff] %vm295, %v520
      %553 = vst.msk [vmem:[%s172 + $0x60] sm:$0xff] %vm295, %v521
      %554 = vst.msk [vmem:[%s172 + $0x68] sm:$0xff] %vm295, %v522
      %555 = vst.msk [vmem:[%s172 + $0x70] sm:$0xff] %vm295, %v523
      %556 = vst.msk [vmem:[%s172 + $0x78] sm:$0xff] %vm295, %v524
      %557 = vst.msk [vmem:[%s172 + $0x80] sm:$0xff] %vm295, %v525
      %558 = vst.msk [vmem:[%s172 + $0x88] sm:$0xff] %vm295, %v526
      %559 = vst.msk [vmem:[%s172 + $0x90] sm:$0xff] %vm295, %v527
      %560 = vst.msk [vmem:[%s172 + $0x98] sm:$0xff] %vm295, %v528
      %561 = vst.msk [vmem:[%s172 + $0xa0] sm:$0xff] %vm295, %v529
      %562 = vst.msk [vmem:[%s172 + $0xa8] sm:$0xff] %vm295, %v530
      %563 = vst.msk [vmem:[%s172 + $0xb0] sm:$0xff] %vm295, %v531
      %564 = vst.msk [vmem:[%s172 + $0xb8] sm:$0xff] %vm295, %v532
      %565 = vst.msk [vmem:[%s172 + $0xc0] sm:$0xff] %vm295, %v533
      %566 = vst.msk [vmem:[%s172 + $0xc8] sm:$0xff] %vm295, %v534
      %567 = vst.msk [vmem:[%s172 + $0xd0] sm:$0xff] %vm295, %v535
      %568 = vst.msk [vmem:[%s172 + $0xd8] sm:$0xff] %vm295, %v536
      %569 = vst.msk [vmem:[%s172 + $0xe0] sm:$0xff] %vm295, %v537
      %570 = vst.msk [vmem:[%s172 + $0xe8] sm:$0xff] %vm295, %v538
      %571 = vst.msk [vmem:[%s172 + $0xf0] sm:$0xff] %vm295, %v539
      %572 = vst.msk [vmem:[%s172 + $0xf8] sm:$0xff] %vm295, %v540
      %s573 = smul.u32 32, %s14
      %p574 = scmp.lt.s32.totalorder %s573, 63
      %s575 = scalar_select %p574, %s573, 63
      %s576 = smul.addr %s575, 8
      %s577 = scalar_lea.vmem %s3, %s576
      // Predicated region
      $region33: #{_lambda_.114} parent=31 // pred_check
        %p578 = pneg %p100
      $region34: #{_lambda_.114} parent=31 // pred_check_branch
        %580 = sbr.rel (%p578) target = $region36
      $region35: #{_lambda_.114} parent=31 // pred_region
        %s581 = smul.u32 32, %s14
      $region36: #{_lambda_.114} parent=31 // pred_fallthru
        _
    $region32: #{_lambda_.114} parent=5 // pred_fallthru
      _
    %p582 = scmp.le.s32.totalorder 2, %s9
    // Predicated region
    $region37: #{_lambda_.114} parent=5 // pred_check
      %p583 = pneg %p582
    $region38: #{_lambda_.114} parent=5 // pred_check_branch
      %585 = sbr.rel (%p583) target = $region40
    $region39: #{_lambda_.114} parent=5 // pred_region
      %s586 = ssub.s32 %s9, 2
      // Predicated region
      $region41: #{_lambda_.114} parent=39 // pred_check
        %p587 = pneg %p106
      $region42: #{_lambda_.114} parent=39 // pred_check_branch
        %589 = sbr.rel (%p587) target = $region44
      $region43: #{_lambda_.114} parent=39 // pred_region
        %s590 = smul.u32 32, %s15
        %p591 = scmp.lt.s32.totalorder %s590, 63
        %s592 = scalar_select %p591, %s590, 63
        %s593 = smul.addr %s592, 8
        %s594 = scalar_lea.vmem %s3, %s593
      $region44: #{_lambda_.114} parent=39 // pred_fallthru
        _
    $region40: #{_lambda_.114} parent=5 // pred_fallthru
      _
  $region6: #{_lambda_.114} parent=0 // loop_footer
    %s13 = sadd.s32 1, %s9
  $region7: #{_lambda_.114} parent=0 // loop_footer_branch
    %8 = sbr.rel target = $region3
  $region8: #{_lambda_.114} parent=0 // loop_exit
    _

// kernel: _lambda_.113
$region0: #{_lambda_.113}
  #allocation0 [shape = 'u32[]', space=smem, size = 0x4, offset = 0x4, fixed_abs, tag = 'smem constant byte address 0x4 - core index']
  #allocation1 [shape = 'u32[144,128]{1,0:T(1,128)}', space=vmem, size = 0x12000, scoped, tag = 'internal scratch']
  %s0 = inlined_call_operand.vmem [shape: bf16[512,4], index: 0, kind: input, shape index: {}]
  %s1 = inlined_call_operand.vmem [shape: bf16[4,8], index: 1, kind: input, shape index: {}]
  %s2 = inlined_call_operand.vmem [shape: f32[1,8], index: 2, kind: input, shape index: {}]
  %s3 = inlined_call_operand.vmem [shape: f32[512,8], index: 3, kind: output, shape index: {}]
  %s4 = sld [smem:[#allocation0]]
  $region45: #{_lambda_.113} parent=0
    _
  %s6 = ssub.s32 1, %s4
  %s7 = scalar_select 0, %s6, %s4
  loop: start=0, step=1, limit=4
  $region2: #{_lambda_.113} parent=0 // loop_pre_header
    _
  $region3: #{_lambda_.113} parent=0 // loop_header
    %s9 = sphi 0, %s13
    %p10 = scmp.ge.s32.totalorder %s9, 4
    %s19 = sphi 0, %s21
    %s22 = sphi 0, %s19
    %s23 = sphi 0, %s22
    %s39 = sphi 0, %s23
    %s43 = sphi 0, %s43
    %s45 = sphi 0, %s43
    %s46 = sphi 0, %s45
    %s60 = sphi 0, %s46
    %s64 = sphi 0, %s64
    %s66 = sphi 0, %s64
    %s67 = sphi 0, %s66
    %s81 = sphi 0, %s67
    %s87 = sphi 0, %s89
    %s90 = sphi 0, %s87
    %s91 = sphi 0, %s90
    %s107 = sphi 0, %s91
  $region4: #{_lambda_.113} parent=0 // loop_header_branch
    %12 = sbr.rel (%p10) target = $region8
  $region5: #{_lambda_.113} parent=0 // loop_body
    %s14 = ssub.s32 %s9, 1
    %s15 = ssub.s32 %s9, 2
    %s16 = sadd.s32 %s9, 1
    %s17 = ssub.s32 %s9, %s16
    %p18 = scmp.eq.s32.totalorder %s17, 0
    %s20 = sadd.s32 %s19, 1
    %s21 = scalar_select %p18, %s19, %s20
    %p24 = pneg %p18
    %p25 = scmp.eq.s32.totalorder %s9, 1
    %p26 = por %p24, %p25
    %p27 = scmp.ne.s32.totalorder %s19, %s22
    %p28 = scmp.eq.s32.totalorder %s9, 0
    %p29 = por %p27, %p28
    %p30 = scmp.ne.s32.totalorder %s19, %s22
    %p31 = scmp.eq.s32.totalorder %s14, 1
    %p32 = por %p30, %p31
    %p33 = scmp.ne.s32.totalorder %s22, %s23
    %p34 = scmp.eq.s32.totalorder %s14, 0
    %p35 = por %p33, %p34
    %p36 = scmp.ne.s32.totalorder %s22, %s23
    %p37 = scmp.eq.s32.totalorder %s15, 1
    %p38 = por %p36, %p37
    %p40 = scmp.ne.s32.totalorder %s23, %s39
    %p41 = scmp.eq.s32.totalorder %s15, 0
    %p42 = por %p40, %p41
    %s44 = sadd.s32 %s43, 1
    %p47 = scmp.eq.s32.totalorder %s9, 1
    %p48 = scmp.ne.s32.totalorder %s43, %s45
    %p49 = scmp.eq.s32.totalorder %s9, 0
    %p50 = por %p48, %p49
    %p51 = scmp.ne.s32.totalorder %s43, %s45
    %p52 = scmp.eq.s32.totalorder %s14, 1
    %p53 = por %p51, %p52
    %p54 = scmp.ne.s32.totalorder %s45, %s46
    %p55 = scmp.eq.s32.totalorder %s14, 0
    %p56 = por %p54, %p55
    %p57 = scmp.ne.s32.totalorder %s45, %s46
    %p58 = scmp.eq.s32.totalorder %s15, 1
    %p59 = por %p57, %p58
    %p61 = scmp.ne.s32.totalorder %s46, %s60
    %p62 = scmp.eq.s32.totalorder %s15, 0
    %p63 = por %p61, %p62
    %s65 = sadd.s32 %s64, 1
    %p68 = scmp.eq.s32.totalorder %s9, 1
    %p69 = scmp.ne.s32.totalorder %s64, %s66
    %p70 = scmp.eq.s32.totalorder %s9, 0
    %p71 = por %p69, %p70
    %p72 = scmp.ne.s32.totalorder %s64, %s66
    %p73 = scmp.eq.s32.totalorder %s14, 1
    %p74 = por %p72, %p73
    %p75 = scmp.ne.s32.totalorder %s66, %s67
    %p76 = scmp.eq.s32.totalorder %s14, 0
    %p77 = por %p75, %p76
    %p78 = scmp.ne.s32.totalorder %s66, %s67
    %p79 = scmp.eq.s32.totalorder %s15, 1
    %p80 = por %p78, %p79
    %p82 = scmp.ne.s32.totalorder %s67, %s81
    %p83 = scmp.eq.s32.totalorder %s15, 0
    %p84 = por %p82, %p83
    %s85 = ssub.s32 %s9, %s16
    %p86 = scmp.eq.s32.totalorder %s85, 0
    %s88 = sadd.s32 %s87, 1
    %s89 = scalar_select %p86, %s87, %s88
    %p92 = pneg %p86
    %p93 = scmp.eq.s32.totalorder %s9, 1
    %p94 = por %p92, %p93
    %p95 = scmp.ne.s32.totalorder %s87, %s90
    %p96 = scmp.eq.s32.totalorder %s9, 0
    %p97 = por %p95, %p96
    %p98 = scmp.ne.s32.totalorder %s87, %s90
    %p99 = scmp.eq.s32.totalorder %s14, 1
    %p100 = por %p98, %p99
    %p101 = scmp.ne.s32.totalorder %s90, %s91
    %p102 = scmp.eq.s32.totalorder %s14, 0
    %p103 = por %p101, %p102
    %p104 = scmp.ne.s32.totalorder %s90, %s91
    %p105 = scmp.eq.s32.totalorder %s15, 1
    %p106 = por %p104, %p105
    %p108 = scmp.ne.s32.totalorder %s91, %s107
    %p109 = scmp.eq.s32.totalorder %s15, 0
    %p110 = por %p108, %p109
    %p111 = scmp.le.s32.totalorder 1, %s9
    %p112 = scmp.lt.s32.totalorder %s9, 3
    %p113 = pnand %p111, %p112
    %p114 = pneg %p113
    // Predicated region
    $region9: #{_lambda_.113} parent=5 // pred_check
      _
    $region10: #{_lambda_.113} parent=5 // pred_check_branch
      %116 = sbr.rel (%p113) target = $region12
    $region11: #{_lambda_.113} parent=5 // pred_region
      %s117 = ssub.s32 %s9, 1
      // Predicated region
      $region13: #{_lambda_.113} parent=11 // pred_check
        %p118 = pneg %p56
      $region14: #{_lambda_.113} parent=11 // pred_check_branch
        %120 = sbr.rel (%p118) target = $region16
      $region15: #{_lambda_.113} parent=11 // pred_region
        _
      $region16: #{_lambda_.113} parent=11 // pred_fallthru
        _
      // Predicated region
      $region17: #{_lambda_.113} parent=11 // pred_check
        %p121 = pneg %p77
      $region18: #{_lambda_.113} parent=11 // pred_check_branch
        %123 = sbr.rel (%p121) target = $region20
      $region19: #{_lambda_.113} parent=11 // pred_region
        _
      $region20: #{_lambda_.113} parent=11 // pred_fallthru
        _
    $region12: #{_lambda_.113} parent=5 // pred_fallthru
      _
    %p124 = scmp.lt.s32.totalorder %s9, 2
    // Predicated region
    $region21: #{_lambda_.113} parent=5 // pred_check
      %p125 = pneg %p124
    $region22: #{_lambda_.113} parent=5 // pred_check_branch
      %127 = sbr.rel (%p125) target = $region24
    $region23: #{_lambda_.113} parent=5 // pred_region
      // Predicated region
      $region25: #{_lambda_.113} parent=23 // pred_check
        %p128 = pneg %p29
      $region26: #{_lambda_.113} parent=23 // pred_check_branch
        %130 = sbr.rel (%p128) target = $region28
      $region27: #{_lambda_.113} parent=23 // pred_region
        %s131 = smul.u32 32, %s9
        %p132 = scmp.lt.s32.totalorder %s131, 63
        %s133 = scalar_select %p132, %s131, 63
        %s134 = smul.addr %s133, 4
        %s135 = scalar_lea.vmem %s0, %s134
        %s136 = smul.u32 32, %s9
      $region28: #{_lambda_.113} parent=23 // pred_fallthru
        _
    $region24: #{_lambda_.113} parent=5 // pred_fallthru
      _
    %p137 = scmp.le.s32.totalorder 1, %s9
    %p138 = scmp.lt.s32.totalorder %s9, 3
    %p139 = pnand %p137, %p138
    %p140 = pneg %p139
    // Predicated region
    $region29: #{_lambda_.113} parent=5 // pred_check
      _
    $region30: #{_lambda_.113} parent=5 // pred_check_branch
      %142 = sbr.rel (%p139) target = $region32
    $region31: #{_lambda_.113} parent=5 // pred_region
      %s143 = ssub.s32 %s9, 1
      %s144 = smul.u32 32, %s14
      %p145 = scmp.lt.s32.totalorder %s144, 63
      %s146 = scalar_select %p145, %s144, 63
      %s147 = smul.addr %s146, 4
      %s148 = scalar_lea.vmem %s0, %s147
      %p149 = pneg %p35
      %p150 = pneg %p32
      %p151 = pneg %p56
      %p152 = pneg %p53
      %p153 = pneg %p77
      %p154 = pneg %p74
      %p155 = pneg %p103
      %p156 = pneg %p100
      %s157 = smul.u32 32, %s14
      %p158 = scmp.lt.s32.totalorder %s157, 63
      %s159 = scalar_select %p158, %s157, 63
      %s160 = smul.addr %s159, 8
      %s161 = scalar_lea.vmem %s3, %s160
      %s162 = smul.u32 32, %s14
      %p163 = scmp.lt.s32.totalorder %s162, 63
      %s164 = scalar_select %p163, %s162, 63
      %s165 = smul.addr %s164, 4
      %s166 = scalar_lea.vmem %s0, %s165
      %s167 = smul.u32 32, %s14
      %s168 = smul.u32 32, %s14
      %p169 = scmp.lt.s32.totalorder %s168, 63
      %s170 = scalar_select %p169, %s168, 63
      %s171 = smul.addr %s170, 8
      %s172 = scalar_lea.vmem %s3, %s171
      %s173 = smul.u32 32, %s14
      %v175 = vld [vmem:[%s166] sm:$0xf]
      %v176 = vld [vmem:[%s166 + $0x4] sm:$0xf]
      %v177 = vld [vmem:[%s166 + $0x8] sm:$0xf]
      %v178 = vld [vmem:[%s166 + $0xc] sm:$0xf]
      %v179 = vld [vmem:[%s166 + $0x10] sm:$0xf]
      %v180 = vld [vmem:[%s166 + $0x14] sm:$0xf]
      %v181 = vld [vmem:[%s166 + $0x18] sm:$0xf]
      %v182 = vld [vmem:[%s166 + $0x1c] sm:$0xf]
      %v183 = vld [vmem:[%s166 + $0x20] sm:$0xf]
      %v184 = vld [vmem:[%s166 + $0x24] sm:$0xf]
      %v185 = vld [vmem:[%s166 + $0x28] sm:$0xf]
      %v186 = vld [vmem:[%s166 + $0x2c] sm:$0xf]
      %v187 = vld [vmem:[%s166 + $0x30] sm:$0xf]
      %v188 = vld [vmem:[%s166 + $0x34] sm:$0xf]
      %v189 = vld [vmem:[%s166 + $0x38] sm:$0xf]
      %v190 = vld [vmem:[%s166 + $0x3c] sm:$0xf]
      %v191 = vld [vmem:[%s166 + $0x40] sm:$0xf]
      %v192 = vld [vmem:[%s166 + $0x44] sm:$0xf]
      %v193 = vld [vmem:[%s166 + $0x48] sm:$0xf]
      %v194 = vld [vmem:[%s166 + $0x4c] sm:$0xf]
      %v195 = vld [vmem:[%s166 + $0x50] sm:$0xf]
      %v196 = vld [vmem:[%s166 + $0x54] sm:$0xf]
      %v197 = vld [vmem:[%s166 + $0x58] sm:$0xf]
      %v198 = vld [vmem:[%s166 + $0x5c] sm:$0xf]
      %v199 = vld [vmem:[%s166 + $0x60] sm:$0xf]
      %v200 = vld [vmem:[%s166 + $0x64] sm:$0xf]
      %v201 = vld [vmem:[%s166 + $0x68] sm:$0xf]
      %v202 = vld [vmem:[%s166 + $0x6c] sm:$0xf]
      %v203 = vld [vmem:[%s166 + $0x70] sm:$0xf]
      %v204 = vld [vmem:[%s166 + $0x74] sm:$0xf]
      %v205 = vld [vmem:[%s166 + $0x78] sm:$0xf]
      %v206 = vld [vmem:[%s166 + $0x7c] sm:$0xf]
      %v207 = vld [vmem:[%s1] sm:$0x3]
      %v208 = vld [vmem:[%s2] sm:$0x1]
      %v210 = vlaneseq
      %v211 = vshrl.u32 %v210, 7
      %v212 = vsub.s32 0, %v211
      %v213 = vrot.slane %v208, %v212
      %v247 = vunpack.c.l.b16 %v175
      %v248 = vunpack.c.l.b16 %v176
      %v249 = vunpack.c.l.b16 %v177
      %v250 = vunpack.c.l.b16 %v178
      %v251 = vunpack.c.l.b16 %v179
      %v252 = vunpack.c.l.b16 %v180
      %v253 = vunpack.c.l.b16 %v181
      %v254 = vunpack.c.l.b16 %v182
      %v255 = vunpack.c.l.b16 %v183
      %v256 = vunpack.c.l.b16 %v184
      %v257 = vunpack.c.l.b16 %v185
      %v258 = vunpack.c.l.b16 %v186
      %v259 = vunpack.c.l.b16 %v187
      %v260 = vunpack.c.l.b16 %v188
      %v261 = vunpack.c.l.b16 %v189
      %v262 = vunpack.c.l.b16 %v190
      %v263 = vunpack.c.l.b16 %v191
      %v264 = vunpack.c.l.b16 %v192
      %v265 = vunpack.c.l.b16 %v193
      %v266 = vunpack.c.l.b16 %v194
      %v267 = vunpack.c.l.b16 %v195
      %v268 = vunpack.c.l.b16 %v196
      %v269 = vunpack.c.l.b16 %v197
      %v270 = vunpack.c.l.b16 %v198
      %v271 = vunpack.c.l.b16 %v199
      %v272 = vunpack.c.l.b16 %v200
      %v273 = vunpack.c.l.b16 %v201
      %v274 = vunpack.c.l.b16 %v202
      %v275 = vunpack.c.l.b16 %v203
      %v276 = vunpack.c.l.b16 %v204
      %v277 = vunpack.c.l.b16 %v205
      %v278 = vunpack.c.l.b16 %v206
      %v279 = vpack.c.b16 %v248, %v247
      %v280 = vpack.c.b16 %v250, %v249
      %v281 = vpack.c.b16 %v252, %v251
      %v282 = vpack.c.b16 %v254, %v253
      %v283 = vpack.c.b16 %v256, %v255
      %v284 = vpack.c.b16 %v258, %v257
      %v285 = vpack.c.b16 %v260, %v259
      %v286 = vpack.c.b16 %v262, %v261
      %v287 = vpack.c.b16 %v264, %v263
      %v288 = vpack.c.b16 %v266, %v265
      %v289 = vpack.c.b16 %v268, %v267
      %v290 = vpack.c.b16 %v270, %v269
      %v291 = vpack.c.b16 %v272, %v271
      %v292 = vpack.c.b16 %v274, %v273
      %v293 = vpack.c.b16 %v276, %v275
      %v294 = vpack.c.b16 %v278, %v277
      %vm295 = vcmask 31744
      %v297 = vsel %vm295, %v279, 0
      %v300 = vsel %vm295, %v280, 0
      %v303 = vsel %vm295, %v281, 0
      %v306 = vsel %vm295, %v282, 0
      %v309 = vsel %vm295, %v283, 0
      %v312 = vsel %vm295, %v284, 0
      %v315 = vsel %vm295, %v285, 0
      %v318 = vsel %vm295, %v286, 0
      %v321 = vsel %vm295, %v287, 0
      %v324 = vsel %vm295, %v288, 0
      %v327 = vsel %vm295, %v289, 0
      %v330 = vsel %vm295, %v290, 0
      %v333 = vsel %vm295, %v291, 0
      %v336 = vsel %vm295, %v292, 0
      %v339 = vsel %vm295, %v293, 0
      %v342 = vsel %vm295, %v294, 0
      %vm344 = vcmask 1041408
      %v346 = vsel %vm344, %v207, 0
      %348 = vmatprep.subr.bf16.mxu0 0
      %349 = vmatpush1.bf16.msra.mxu0 %v346
      %350 = vmatprep.subr.bf16.mxu0 0
      %351 = vmatpush1.bf16.msra.mxu0 0
      %352 = vmatprep.subr.bf16.mxu0 0
      %353 = vmatpush1.bf16.msra.mxu0 0
      %354 = vmatprep.subr.bf16.mxu0 0
      %355 = vmatpush1.bf16.msra.mxu0 0
      %356 = vmatprep.subr.bf16.mxu0 0
      %357 = vmatpush1.bf16.msra.mxu0 0
      %358 = vmatprep.subr.bf16.mxu0 0
      %359 = vmatpush1.bf16.msra.mxu0 0
      %360 = vmatprep.subr.bf16.mxu0 0
      %361 = vmatpush1.bf16.msra.mxu0 0
      %362 = vmatprep.subr.bf16.mxu0 0
      %363 = vmatpush1.bf16.msra.mxu0 0
      %364 = vmatprep.subr.bf16.mxu0 0
      %365 = vmatpush1.bf16.msra.mxu0 0
      %366 = vmatprep.subr.bf16.mxu0 0
      %367 = vmatpush1.bf16.msra.mxu0 0
      %368 = vmatprep.subr.bf16.mxu0 0
      %369 = vmatpush1.bf16.msra.mxu0 0
      %370 = vmatprep.subr.bf16.mxu0 0
      %371 = vmatpush1.bf16.msra.mxu0 0
      %372 = vmatprep.subr.bf16.mxu0 0
      %373 = vmatpush1.bf16.msra.mxu0 0
      %374 = vmatprep.subr.bf16.mxu0 0
      %375 = vmatpush1.bf16.msra.mxu0 0
      %376 = vmatprep.subr.bf16.mxu0 0
      %377 = vmatpush1.bf16.msra.mxu0 0
      %378 = vmatprep.subr.bf16.mxu0 0
      %379 = vmatpush1.bf16.msra.mxu0 0
      %380 = vmatprep.mubr.bf16.mxu0 0
      %381 = vmatmul.mubr.bf16.gmra.mrb[0].mxu0 %v297
      %v382 = vpop.f32.mrb[0].mxu0
      %v383 = vadd.f32 %v213, %v382
      %v384 = vpop.f32.mrb[0].mxu0
      %v385 = vpop.f32.mrb[0].mxu0
      %v386 = vadd.f32 %v213, %v385
      %v387 = vpop.f32.mrb[0].mxu0
      %388 = vmatprep.mubr.bf16.mxu0 0
      %389 = vmatmul.mubr.bf16.gmra.mrb[0].mxu0 %v300
      %v390 = vpop.f32.mrb[0].mxu0
      %v391 = vadd.f32 %v213, %v390
      %v392 = vpop.f32.mrb[0].mxu0
      %v393 = vpop.f32.mrb[0].mxu0
      %v394 = vadd.f32 %v213, %v393
      %v395 = vpop.f32.mrb[0].mxu0
      %396 = vmatprep.mubr.bf16.mxu0 0
      %397 = vmatmul.mubr.bf16.gmra.mrb[0].mxu0 %v303
      %v398 = vpop.f32.mrb[0].mxu0
      %v399 = vadd.f32 %v213, %v398
      %v400 = vpop.f32.mrb[0].mxu0
      %v401 = vpop.f32.mrb[0].mxu0
      %v402 = vadd.f32 %v213, %v401
      %v403 = vpop.f32.mrb[0].mxu0
      %404 = vmatprep.mubr.bf16.mxu0 0
      %405 = vmatmul.mubr.bf16.gmra.mrb[0].mxu0 %v306
      %v406 = vpop.f32.mrb[0].mxu0
      %v407 = vadd.f32 %v213, %v406
      %v408 = vpop.f32.mrb[0].mxu0
      %v409 = vpop.f32.mrb[0].mxu0
      %v410 = vadd.f32 %v213, %v409
      %v411 = vpop.f32.mrb[0].mxu0
      %412 = vmatprep.mubr.bf16.mxu0 0
      %413 = vmatmul.mubr.bf16.gmra.mrb[0].mxu0 %v309
      %v414 = vpop.f32.mrb[0].mxu0
      %v415 = vadd.f32 %v213, %v414
      %v416 = vpop.f32.mrb[0].mxu0
      %v417 = vpop.f32.mrb[0].mxu0
      %v418 = vadd.f32 %v213, %v417
      %v419 = vpop.f32.mrb[0].mxu0
      %420 = vmatprep.mubr.bf16.mxu0 0
      %421 = vmatmul.mubr.bf16.gmra.mrb[0].mxu0 %v312
      %v422 = vpop.f32.mrb[0].mxu0
      %v423 = vadd.f32 %v213, %v422
      %v424 = vpop.f32.mrb[0].mxu0
      %v425 = vpop.f32.mrb[0].mxu0
      %v426 = vadd.f32 %v213, %v425
      %v427 = vpop.f32.mrb[0].mxu0
      %428 = vmatprep.mubr.bf16.mxu0 0
      %429 = vmatmul.mubr.bf16.gmra.mrb[0].mxu0 %v315
      %v430 = vpop.f32.mrb[0].mxu0
      %v431 = vadd.f32 %v213, %v430
      %v432 = vpop.f32.mrb[0].mxu0
      %v433 = vpop.f32.mrb[0].mxu0
      %v434 = vadd.f32 %v213, %v433
      %v435 = vpop.f32.mrb[0].mxu0
      %436 = vmatprep.mubr.bf16.mxu0 0
      %437 = vmatmul.mubr.bf16.gmra.mrb[0].mxu0 %v318
      %v438 = vpop.f32.mrb[0].mxu0
      %v439 = vadd.f32 %v213, %v438
      %v440 = vpop.f32.mrb[0].mxu0
      %v441 = vpop.f32.mrb[0].mxu0
      %v442 = vadd.f32 %v213, %v441
      %v443 = vpop.f32.mrb[0].mxu0
      %444 = vmatprep.mubr.bf16.mxu0 0
      %445 = vmatmul.mubr.bf16.gmra.mrb[0].mxu0 %v321
      %v446 = vpop.f32.mrb[0].mxu0
      %v447 = vadd.f32 %v213, %v446
      %v448 = vpop.f32.mrb[0].mxu0
      %v449 = vpop.f32.mrb[0].mxu0
      %v450 = vadd.f32 %v213, %v449
      %v451 = vpop.f32.mrb[0].mxu0
      %452 = vmatprep.mubr.bf16.mxu0 0
      %453 = vmatmul.mubr.bf16.gmra.mrb[0].mxu0 %v324
      %v454 = vpop.f32.mrb[0].mxu0
      %v455 = vadd.f32 %v213, %v454
      %v456 = vpop.f32.mrb[0].mxu0
      %v457 = vpop.f32.mrb[0].mxu0
      %v458 = vadd.f32 %v213, %v457
      %v459 = vpop.f32.mrb[0].mxu0
      %460 = vmatprep.mubr.bf16.mxu0 0
      %461 = vmatmul.mubr.bf16.gmra.mrb[0].mxu0 %v327
      %v462 = vpop.f32.mrb[0].mxu0
      %v463 = vadd.f32 %v213, %v462
      %v464 = vpop.f32.mrb[0].mxu0
      %v465 = vpop.f32.mrb[0].mxu0
      %v466 = vadd.f32 %v213, %v465
      %v467 = vpop.f32.mrb[0].mxu0
      %468 = vmatprep.mubr.bf16.mxu0 0
      %469 = vmatmul.mubr.bf16.gmra.mrb[0].mxu0 %v330
      %v470 = vpop.f32.mrb[0].mxu0
      %v471 = vadd.f32 %v213, %v470
      %v472 = vpop.f32.mrb[0].mxu0
      %v473 = vpop.f32.mrb[0].mxu0
      %v474 = vadd.f32 %v213, %v473
      %v475 = vpop.f32.mrb[0].mxu0
      %476 = vmatprep.mubr.bf16.mxu0 0
      %477 = vmatmul.mubr.bf16.gmra.mrb[0].mxu0 %v333
      %v478 = vpop.f32.mrb[0].mxu0
      %v479 = vadd.f32 %v213, %v478
      %v480 = vpop.f32.mrb[0].mxu0
      %v481 = vpop.f32.mrb[0].mxu0
      %v482 = vadd.f32 %v213, %v481
      %v483 = vpop.f32.mrb[0].mxu0
      %484 = vmatprep.mubr.bf16.mxu0 0
      %485 = vmatmul.mubr.bf16.gmra.mrb[0].mxu0 %v336
      %v486 = vpop.f32.mrb[0].mxu0
      %v487 = vadd.f32 %v213, %v486
      %v488 = vpop.f32.mrb[0].mxu0
      %v489 = vpop.f32.mrb[0].mxu0
      %v490 = vadd.f32 %v213, %v489
      %v491 = vpop.f32.mrb[0].mxu0
      %492 = vmatprep.mubr.bf16.mxu0 0
      %493 = vmatmul.mubr.bf16.gmra.mrb[0].mxu0 %v339
      %v494 = vpop.f32.mrb[0].mxu0
      %v495 = vadd.f32 %v213, %v494
      %v496 = vpop.f32.mrb[0].mxu0
      %v497 = vpop.f32.mrb[0].mxu0
      %v498 = vadd.f32 %v213, %v497
      %v499 = vpop.f32.mrb[0].mxu0
      %500 = vmatprep.mubr.bf16.mxu0 0
      %501 = vmatmul.mubr.bf16.gmra.mrb[0].mxu0 %v342
      %v502 = vpop.f32.mrb[0].mxu0
      %v503 = vadd.f32 %v213, %v502
      %v504 = vpop.f32.mrb[0].mxu0
      %v505 = vpop.f32.mrb[0].mxu0
      %v506 = vadd.f32 %v213, %v505
      %v507 = vpop.f32.mrb[0].mxu0
      %508 = vdwg.mxu0
      %vm509 = vcmask 64512
      %510 = vst.msk [vmem:[%s172] sm:$0xff] %vm509, %v383
      %511 = vst.msk [vmem:[%s172 + $0x8] sm:$0xff] %vm509, %v386
      %512 = vst.msk [vmem:[%s172 + $0x10] sm:$0xff] %vm509, %v391
      %513 = vst.msk [vmem:[%s172 + $0x18] sm:$0xff] %vm509, %v394
      %514 = vst.msk [vmem:[%s172 + $0x20] sm:$0xff] %vm509, %v399
      %515 = vst.msk [vmem:[%s172 + $0x28] sm:$0xff] %vm509, %v402
      %516 = vst.msk [vmem:[%s172 + $0x30] sm:$0xff] %vm509, %v407
      %517 = vst.msk [vmem:[%s172 + $0x38] sm:$0xff] %vm509, %v410
      %518 = vst.msk [vmem:[%s172 + $0x40] sm:$0xff] %vm509, %v415
      %519 = vst.msk [vmem:[%s172 + $0x48] sm:$0xff] %vm509, %v418
      %520 = vst.msk [vmem:[%s172 + $0x50] sm:$0xff] %vm509, %v423
      %521 = vst.msk [vmem:[%s172 + $0x58] sm:$0xff] %vm509, %v426
      %522 = vst.msk [vmem:[%s172 + $0x60] sm:$0xff] %vm509, %v431
      %523 = vst.msk [vmem:[%s172 + $0x68] sm:$0xff] %vm509, %v434
      %524 = vst.msk [vmem:[%s172 + $0x70] sm:$0xff] %vm509, %v439
      %525 = vst.msk [vmem:[%s172 + $0x78] sm:$0xff] %vm509, %v442
      %526 = vst.msk [vmem:[%s172 + $0x80] sm:$0xff] %vm509, %v447
      %527 = vst.msk [vmem:[%s172 + $0x88] sm:$0xff] %vm509, %v450
      %528 = vst.msk [vmem:[%s172 + $0x90] sm:$0xff] %vm509, %v455
      %529 = vst.msk [vmem:[%s172 + $0x98] sm:$0xff] %vm509, %v458
      %530 = vst.msk [vmem:[%s172 + $0xa0] sm:$0xff] %vm509, %v463
      %531 = vst.msk [vmem:[%s172 + $0xa8] sm:$0xff] %vm509, %v466
      %532 = vst.msk [vmem:[%s172 + $0xb0] sm:$0xff] %vm509, %v471
      %533 = vst.msk [vmem:[%s172 + $0xb8] sm:$0xff] %vm509, %v474
      %534 = vst.msk [vmem:[%s172 + $0xc0] sm:$0xff] %vm509, %v479
      %535 = vst.msk [vmem:[%s172 + $0xc8] sm:$0xff] %vm509, %v482
      %536 = vst.msk [vmem:[%s172 + $0xd0] sm:$0xff] %vm509, %v487
      %537 = vst.msk [vmem:[%s172 + $0xd8] sm:$0xff] %vm509, %v490
      %538 = vst.msk [vmem:[%s172 + $0xe0] sm:$0xff] %vm509, %v495
      %539 = vst.msk [vmem:[%s172 + $0xe8] sm:$0xff] %vm509, %v498
      %540 = vst.msk [vmem:[%s172 + $0xf0] sm:$0xff] %vm509, %v503
      %541 = vst.msk [vmem:[%s172 + $0xf8] sm:$0xff] %vm509, %v506
      %s542 = smul.u32 32, %s14
      %p543 = scmp.lt.s32.totalorder %s542, 63
      %s544 = scalar_select %p543, %s542, 63
      %s545 = smul.addr %s544, 8
      %s546 = scalar_lea.vmem %s3, %s545
      // Predicated region
      $region33: #{_lambda_.113} parent=31 // pred_check
        %p547 = pneg %p100
      $region34: #{_lambda_.113} parent=31 // pred_check_branch
        %549 = sbr.rel (%p547) target = $region36
      $region35: #{_lambda_.113} parent=31 // pred_region
        %s550 = smul.u32 32, %s14
      $region36: #{_lambda_.113} parent=31 // pred_fallthru
        _
    $region32: #{_lambda_.113} parent=5 // pred_fallthru
      _
    %p551 = scmp.le.s32.totalorder 2, %s9
    // Predicated region
    $region37: #{_lambda_.113} parent=5 // pred_check
      %p552 = pneg %p551
    $region38: #{_lambda_.113} parent=5 // pred_check_branch
      %554 = sbr.rel (%p552) target = $region40
    $region39: #{_lambda_.113} parent=5 // pred_region
      %s555 = ssub.s32 %s9, 2
      // Predicated region
      $region41: #{_lambda_.113} parent=39 // pred_check
        %p556 = pneg %p106
      $region42: #{_lambda_.113} parent=39 // pred_check_branch
        %558 = sbr.rel (%p556) target = $region44
      $region43: #{_lambda_.113} parent=39 // pred_region
        %s559 = smul.u32 32, %s15
        %p560 = scmp.lt.s32.totalorder %s559, 63
        %s561 = scalar_select %p560, %s559, 63
        %s562 = smul.addr %s561, 8
        %s563 = scalar_lea.vmem %s3, %s562
      $region44: #{_lambda_.113} parent=39 // pred_fallthru
        _
    $region40: #{_lambda_.113} parent=5 // pred_fallthru
      _
  $region6: #{_lambda_.113} parent=0 // loop_footer
    %s13 = sadd.s32 1, %s9
  $region7: #{_lambda_.113} parent=0 // loop_footer_branch
    %8 = sbr.rel target = $region3
  $region8: #{_lambda_.113} parent=0 // loop_exit
    _

// kernel: _lambda_.116
$region0: #{_lambda_.116}
  #allocation0 [shape = 'u32[]', space=smem, size = 0x4, offset = 0x4, fixed_abs, tag = 'smem constant byte address 0x4 - core index']
  #allocation1 [shape = 'u32[144,128]{1,0:T(1,128)}', space=vmem, size = 0x12000, scoped, tag = 'internal scratch']
  %s0 = inlined_call_operand.vmem [shape: bf16[512,4], index: 0, kind: input, shape index: {}]
  %s1 = inlined_call_operand.vmem [shape: bf16[4,8], index: 1, kind: input, shape index: {}]
  %s2 = inlined_call_operand.vmem [shape: f32[1,8], index: 2, kind: input, shape index: {}]
  %s3 = inlined_call_operand.vmem [shape: f32[512,8], index: 3, kind: input, shape index: {}]
  %s4 = inlined_call_operand.vmem [shape: f32[512,8], index: 4, kind: output, shape index: {}]
  %s5 = sld [smem:[#allocation0]]
  $region49: #{_lambda_.116} parent=0
    _
  %s7 = ssub.s32 1, %s5
  %s8 = scalar_select 0, %s7, %s5
  loop: start=0, step=1, limit=4
  $region2: #{_lambda_.116} parent=0 // loop_pre_header
    _
  $region3: #{_lambda_.116} parent=0 // loop_header
    %s10 = sphi 0, %s14
    %p11 = scmp.ge.s32.totalorder %s10, 4
    %s20 = sphi 0, %s22
    %s23 = sphi 0, %s20
    %s24 = sphi 0, %s23
    %s40 = sphi 0, %s24
    %s44 = sphi 0, %s44
    %s46 = sphi 0, %s44
    %s47 = sphi 0, %s46
    %s61 = sphi 0, %s47
    %s65 = sphi 0, %s65
    %s67 = sphi 0, %s65
    %s68 = sphi 0, %s67
    %s82 = sphi 0, %s68
    %s88 = sphi 0, %s90
    %s91 = sphi 0, %s88
    %s92 = sphi 0, %s91
    %s108 = sphi 0, %s92
    %s114 = sphi 0, %s116
    %s117 = sphi 0, %s114
    %s118 = sphi 0, %s117
    %s134 = sphi 0, %s118
  $region4: #{_lambda_.116} parent=0 // loop_header_branch
    %13 = sbr.rel (%p11) target = $region8
  $region5: #{_lambda_.116} parent=0 // loop_body
    %s15 = ssub.s32 %s10, 1
    %s16 = ssub.s32 %s10, 2
    %s17 = sadd.s32 %s10, 1
    %s18 = ssub.s32 %s10, %s17
    %p19 = scmp.eq.s32.totalorder %s18, 0
    %s21 = sadd.s32 %s20, 1
    %s22 = scalar_select %p19, %s20, %s21
    %p25 = pneg %p19
    %p26 = scmp.eq.s32.totalorder %s10, 1
    %p27 = por %p25, %p26
    %p28 = scmp.ne.s32.totalorder %s20, %s23
    %p29 = scmp.eq.s32.totalorder %s10, 0
    %p30 = por %p28, %p29
    %p31 = scmp.ne.s32.totalorder %s20, %s23
    %p32 = scmp.eq.s32.totalorder %s15, 1
    %p33 = por %p31, %p32
    %p34 = scmp.ne.s32.totalorder %s23, %s24
    %p35 = scmp.eq.s32.totalorder %s15, 0
    %p36 = por %p34, %p35
    %p37 = scmp.ne.s32.totalorder %s23, %s24
    %p38 = scmp.eq.s32.totalorder %s16, 1
    %p39 = por %p37, %p38
    %p41 = scmp.ne.s32.totalorder %s24, %s40
    %p42 = scmp.eq.s32.totalorder %s16, 0
    %p43 = por %p41, %p42
    %s45 = sadd.s32 %s44, 1
    %p48 = scmp.eq.s32.totalorder %s10, 1
    %p49 = scmp.ne.s32.totalorder %s44, %s46
    %p50 = scmp.eq.s32.totalorder %s10, 0
    %p51 = por %p49, %p50
    %p52 = scmp.ne.s32.totalorder %s44, %s46
    %p53 = scmp.eq.s32.totalorder %s15, 1
    %p54 = por %p52, %p53
    %p55 = scmp.ne.s32.totalorder %s46, %s47
    %p56 = scmp.eq.s32.totalorder %s15, 0
    %p57 = por %p55, %p56
    %p58 = scmp.ne.s32.totalorder %s46, %s47
    %p59 = scmp.eq.s32.totalorder %s16, 1
    %p60 = por %p58, %p59
    %p62 = scmp.ne.s32.totalorder %s47, %s61
    %p63 = scmp.eq.s32.totalorder %s16, 0
    %p64 = por %p62, %p63
    %s66 = sadd.s32 %s65, 1
    %p69 = scmp.eq.s32.totalorder %s10, 1
    %p70 = scmp.ne.s32.totalorder %s65, %s67
    %p71 = scmp.eq.s32.totalorder %s10, 0
    %p72 = por %p70, %p71
    %p73 = scmp.ne.s32.totalorder %s65, %s67
    %p74 = scmp.eq.s32.totalorder %s15, 1
    %p75 = por %p73, %p74
    %p76 = scmp.ne.s32.totalorder %s67, %s68
    %p77 = scmp.eq.s32.totalorder %s15, 0
    %p78 = por %p76, %p77
    %p79 = scmp.ne.s32.totalorder %s67, %s68
    %p80 = scmp.eq.s32.totalorder %s16, 1
    %p81 = por %p79, %p80
    %p83 = scmp.ne.s32.totalorder %s68, %s82
    %p84 = scmp.eq.s32.totalorder %s16, 0
    %p85 = por %p83, %p84
    %s86 = ssub.s32 %s10, %s17
    %p87 = scmp.eq.s32.totalorder %s86, 0
    %s89 = sadd.s32 %s88, 1
    %s90 = scalar_select %p87, %s88, %s89
    %p93 = pneg %p87
    %p94 = scmp.eq.s32.totalorder %s10, 1
    %p95 = por %p93, %p94
    %p96 = scmp.ne.s32.totalorder %s88, %s91
    %p97 = scmp.eq.s32.totalorder %s10, 0
    %p98 = por %p96, %p97
    %p99 = scmp.ne.s32.totalorder %s88, %s91
    %p100 = scmp.eq.s32.totalorder %s15, 1
    %p101 = por %p99, %p100
    %p102 = scmp.ne.s32.totalorder %s91, %s92
    %p103 = scmp.eq.s32.totalorder %s15, 0
    %p104 = por %p102, %p103
    %p105 = scmp.ne.s32.totalorder %s91, %s92
    %p106 = scmp.eq.s32.totalorder %s16, 1
    %p107 = por %p105, %p106
    %p109 = scmp.ne.s32.totalorder %s92, %s108
    %p110 = scmp.eq.s32.totalorder %s16, 0
    %p111 = por %p109, %p110
    %s112 = ssub.s32 %s10, %s17
    %p113 = scmp.eq.s32.totalorder %s112, 0
    %s115 = sadd.s32 %s114, 1
    %s116 = scalar_select %p113, %s114, %s115
    %p119 = pneg %p113
    %p120 = scmp.eq.s32.totalorder %s10, 1
    %p121 = por %p119, %p120
    %p122 = scmp.ne.s32.totalorder %s114, %s117
    %p123 = scmp.eq.s32.totalorder %s10, 0
    %p124 = por %p122, %p123
    %p125 = scmp.ne.s32.totalorder %s114, %s117
    %p126 = scmp.eq.s32.totalorder %s15, 1
    %p127 = por %p125, %p126
    %p128 = scmp.ne.s32.totalorder %s117, %s118
    %p129 = scmp.eq.s32.totalorder %s15, 0
    %p130 = por %p128, %p129
    %p131 = scmp.ne.s32.totalorder %s117, %s118
    %p132 = scmp.eq.s32.totalorder %s16, 1
    %p133 = por %p131, %p132
    %p135 = scmp.ne.s32.totalorder %s118, %s134
    %p136 = scmp.eq.s32.totalorder %s16, 0
    %p137 = por %p135, %p136
    %p138 = scmp.le.s32.totalorder 1, %s10
    %p139 = scmp.lt.s32.totalorder %s10, 3
    %p140 = pnand %p138, %p139
    %p141 = pneg %p140
    // Predicated region
    $region9: #{_lambda_.116} parent=5 // pred_check
      _
    $region10: #{_lambda_.116} parent=5 // pred_check_branch
      %143 = sbr.rel (%p140) target = $region12
    $region11: #{_lambda_.116} parent=5 // pred_region
      %s144 = ssub.s32 %s10, 1
      // Predicated region
      $region13: #{_lambda_.116} parent=11 // pred_check
        %p145 = pneg %p57
      $region14: #{_lambda_.116} parent=11 // pred_check_branch
        %147 = sbr.rel (%p145) target = $region16
      $region15: #{_lambda_.116} parent=11 // pred_region
        _
      $region16: #{_lambda_.116} parent=11 // pred_fallthru
        _
      // Predicated region
      $region17: #{_lambda_.116} parent=11 // pred_check
        %p148 = pneg %p78
      $region18: #{_lambda_.116} parent=11 // pred_check_branch
        %150 = sbr.rel (%p148) target = $region20
      $region19: #{_lambda_.116} parent=11 // pred_region
        _
      $region20: #{_lambda_.116} parent=11 // pred_fallthru
        _
    $region12: #{_lambda_.116} parent=5 // pred_fallthru
      _
    %p151 = scmp.lt.s32.totalorder %s10, 2
    // Predicated region
    $region21: #{_lambda_.116} parent=5 // pred_check
      %p152 = pneg %p151
    $region22: #{_lambda_.116} parent=5 // pred_check_branch
      %154 = sbr.rel (%p152) target = $region24
    $region23: #{_lambda_.116} parent=5 // pred_region
      // Predicated region
      $region25: #{_lambda_.116} parent=23 // pred_check
        %p155 = pneg %p30
      $region26: #{_lambda_.116} parent=23 // pred_check_branch
        %157 = sbr.rel (%p155) target = $region28
      $region27: #{_lambda_.116} parent=23 // pred_region
        %s158 = smul.u32 32, %s10
        %p159 = scmp.lt.s32.totalorder %s158, 63
        %s160 = scalar_select %p159, %s158, 63
        %s161 = smul.addr %s160, 4
        %s162 = scalar_lea.vmem %s0, %s161
        %s163 = smul.u32 32, %s10
      $region28: #{_lambda_.116} parent=23 // pred_fallthru
        _
      // Predicated region
      $region29: #{_lambda_.116} parent=23 // pred_check
        %p164 = pneg %p98
      $region30: #{_lambda_.116} parent=23 // pred_check_branch
        %166 = sbr.rel (%p164) target = $region32
      $region31: #{_lambda_.116} parent=23 // pred_region
        %s167 = smul.u32 32, %s10
        %p168 = scmp.lt.s32.totalorder %s167, 63
        %s169 = scalar_select %p168, %s167, 63
        %s170 = smul.addr %s169, 8
        %s171 = scalar_lea.vmem %s3, %s170
        %s172 = smul.u32 32, %s10
      $region32: #{_lambda_.116} parent=23 // pred_fallthru
        _
    $region24: #{_lambda_.116} parent=5 // pred_fallthru
      _
    %p173 = scmp.le.s32.totalorder 1, %s10
    %p174 = scmp.lt.s32.totalorder %s10, 3
    %p175 = pnand %p173, %p174
    %p176 = pneg %p175
    // Predicated region
    $region33: #{_lambda_.116} parent=5 // pred_check
      _
    $region34: #{_lambda_.116} parent=5 // pred_check_branch
      %178 = sbr.rel (%p175) target = $region36
    $region35: #{_lambda_.116} parent=5 // pred_region
      %s179 = ssub.s32 %s10, 1
      %s180 = smul.u32 32, %s15
      %p181 = scmp.lt.s32.totalorder %s180, 63
      %s182 = scalar_select %p181, %s180, 63
      %s183 = smul.addr %s182, 4
      %s184 = scalar_lea.vmem %s0, %s183
      %p185 = pneg %p36
      %p186 = pneg %p33
      %p187 = pneg %p57
      %p188 = pneg %p54
      %p189 = pneg %p78
      %p190 = pneg %p75
      %s191 = smul.u32 32, %s15
      %p192 = scmp.lt.s32.totalorder %s191, 63
      %s193 = scalar_select %p192, %s191, 63
      %s194 = smul.addr %s193, 8
      %s195 = scalar_lea.vmem %s3, %s194
      %p196 = pneg %p104
      %p197 = pneg %p101
      %p198 = pneg %p130
      %p199 = pneg %p127
      %s200 = smul.u32 32, %s15
      %p201 = scmp.lt.s32.totalorder %s200, 63
      %s202 = scalar_select %p201, %s200, 63
      %s203 = smul.addr %s202, 8
      %s204 = scalar_lea.vmem %s4, %s203
      %s205 = smul.u32 32, %s15
      %p206 = scmp.lt.s32.totalorder %s205, 63
      %s207 = scalar_select %p206, %s205, 63
      %s208 = smul.addr %s207, 4
      %s209 = scalar_lea.vmem %s0, %s208
      %s210 = smul.u32 32, %s15
      %s211 = smul.u32 32, %s15
      %p212 = scmp.lt.s32.totalorder %s211, 63
      %s213 = scalar_select %p212, %s211, 63
      %s214 = smul.addr %s213, 8
      %s215 = scalar_lea.vmem %s3, %s214
      %s216 = smul.u32 32, %s15
      %s217 = smul.u32 32, %s15
      %p218 = scmp.lt.s32.totalorder %s217, 63
      %s219 = scalar_select %p218, %s217, 63
      %s220 = smul.addr %s219, 8
      %s221 = scalar_lea.vmem %s4, %s220
      %s222 = smul.u32 32, %s15
      %v224 = vld [vmem:[%s209] sm:$0xf]
      %v225 = vld [vmem:[%s209 + $0x4] sm:$0xf]
      %v226 = vld [vmem:[%s209 + $0x8] sm:$0xf]
      %v227 = vld [vmem:[%s209 + $0xc] sm:$0xf]
      %v228 = vld [vmem:[%s209 + $0x10] sm:$0xf]
      %v229 = vld [vmem:[%s209 + $0x14] sm:$0xf]
      %v230 = vld [vmem:[%s209 + $0x18] sm:$0xf]
      %v231 = vld [vmem:[%s209 + $0x1c] sm:$0xf]
      %v232 = vld [vmem:[%s209 + $0x20] sm:$0xf]
      %v233 = vld [vmem:[%s209 + $0x24] sm:$0xf]
      %v234 = vld [vmem:[%s209 + $0x28] sm:$0xf]
      %v235 = vld [vmem:[%s209 + $0x2c] sm:$0xf]
      %v236 = vld [vmem:[%s209 + $0x30] sm:$0xf]
      %v237 = vld [vmem:[%s209 + $0x34] sm:$0xf]
      %v238 = vld [vmem:[%s209 + $0x38] sm:$0xf]
      %v239 = vld [vmem:[%s209 + $0x3c] sm:$0xf]
      %v240 = vld [vmem:[%s209 + $0x40] sm:$0xf]
      %v241 = vld [vmem:[%s209 + $0x44] sm:$0xf]
      %v242 = vld [vmem:[%s209 + $0x48] sm:$0xf]
      %v243 = vld [vmem:[%s209 + $0x4c] sm:$0xf]
      %v244 = vld [vmem:[%s209 + $0x50] sm:$0xf]
      %v245 = vld [vmem:[%s209 + $0x54] sm:$0xf]
      %v246 = vld [vmem:[%s209 + $0x58] sm:$0xf]
      %v247 = vld [vmem:[%s209 + $0x5c] sm:$0xf]
      %v248 = vld [vmem:[%s209 + $0x60] sm:$0xf]
      %v249 = vld [vmem:[%s209 + $0x64] sm:$0xf]
      %v250 = vld [vmem:[%s209 + $0x68] sm:$0xf]
      %v251 = vld [vmem:[%s209 + $0x6c] sm:$0xf]
      %v252 = vld [vmem:[%s209 + $0x70] sm:$0xf]
      %v253 = vld [vmem:[%s209 + $0x74] sm:$0xf]
      %v254 = vld [vmem:[%s209 + $0x78] sm:$0xf]
      %v255 = vld [vmem:[%s209 + $0x7c] sm:$0xf]
      %v256 = vld [vmem:[%s1] sm:$0x3]
      %v257 = vld [vmem:[%s2] sm:$0x1]
      %v259 = vlaneseq
      %v260 = vshrl.u32 %v259, 7
      %v261 = vsub.s32 0, %v260
      %v262 = vrot.slane %v257, %v261
      %v296 = vunpack.c.l.b16 %v224
      %v297 = vunpack.c.l.b16 %v225
      %v298 = vunpack.c.l.b16 %v226
      %v299 = vunpack.c.l.b16 %v227
      %v300 = vunpack.c.l.b16 %v228
      %v301 = vunpack.c.l.b16 %v229
      %v302 = vunpack.c.l.b16 %v230
      %v303 = vunpack.c.l.b16 %v231
      %v304 = vunpack.c.l.b16 %v232
      %v305 = vunpack.c.l.b16 %v233
      %v306 = vunpack.c.l.b16 %v234
      %v307 = vunpack.c.l.b16 %v235
      %v308 = vunpack.c.l.b16 %v236
      %v309 = vunpack.c.l.b16 %v237
      %v310 = vunpack.c.l.b16 %v238
      %v311 = vunpack.c.l.b16 %v239
      %v312 = vunpack.c.l.b16 %v240
      %v313 = vunpack.c.l.b16 %v241
      %v314 = vunpack.c.l.b16 %v242
      %v315 = vunpack.c.l.b16 %v243
      %v316 = vunpack.c.l.b16 %v244
      %v317 = vunpack.c.l.b16 %v245
      %v318 = vunpack.c.l.b16 %v246
      %v319 = vunpack.c.l.b16 %v247
      %v320 = vunpack.c.l.b16 %v248
      %v321 = vunpack.c.l.b16 %v249
      %v322 = vunpack.c.l.b16 %v250
      %v323 = vunpack.c.l.b16 %v251
      %v324 = vunpack.c.l.b16 %v252
      %v325 = vunpack.c.l.b16 %v253
      %v326 = vunpack.c.l.b16 %v254
      %v327 = vunpack.c.l.b16 %v255
      %v328 = vpack.c.b16 %v297, %v296
      %v329 = vpack.c.b16 %v299, %v298
      %v330 = vpack.c.b16 %v301, %v300
      %v331 = vpack.c.b16 %v303, %v302
      %v332 = vpack.c.b16 %v305, %v304
      %v333 = vpack.c.b16 %v307, %v306
      %v334 = vpack.c.b16 %v309, %v308
      %v335 = vpack.c.b16 %v311, %v310
      %v336 = vpack.c.b16 %v313, %v312
      %v337 = vpack.c.b16 %v315, %v314
      %v338 = vpack.c.b16 %v317, %v316
      %v339 = vpack.c.b16 %v319, %v318
      %v340 = vpack.c.b16 %v321, %v320
      %v341 = vpack.c.b16 %v323, %v322
      %v342 = vpack.c.b16 %v325, %v324
      %v343 = vpack.c.b16 %v327, %v326
      %vm344 = vcmask 31744
      %v346 = vsel %vm344, %v328, 0
      %v349 = vsel %vm344, %v329, 0
      %v352 = vsel %vm344, %v330, 0
      %v355 = vsel %vm344, %v331, 0
      %v358 = vsel %vm344, %v332, 0
      %v361 = vsel %vm344, %v333, 0
      %v364 = vsel %vm344, %v334, 0
      %v367 = vsel %vm344, %v335, 0
      %v370 = vsel %vm344, %v336, 0
      %v373 = vsel %vm344, %v337, 0
      %v376 = vsel %vm344, %v338, 0
      %v379 = vsel %vm344, %v339, 0
      %v382 = vsel %vm344, %v340, 0
      %v385 = vsel %vm344, %v341, 0
      %v388 = vsel %vm344, %v342, 0
      %v391 = vsel %vm344, %v343, 0
      %vm393 = vcmask 1041408
      %v395 = vsel %vm393, %v256, 0
      %397 = vmatprep.subr.bf16.mxu0 0
      %398 = vmatpush1.bf16.msra.mxu0 %v395
      %399 = vmatprep.subr.bf16.mxu0 0
      %400 = vmatpush1.bf16.msra.mxu0 0
      %401 = vmatprep.subr.bf16.mxu0 0
      %402 = vmatpush1.bf16.msra.mxu0 0
      %403 = vmatprep.subr.bf16.mxu0 0
      %404 = vmatpush1.bf16.msra.mxu0 0
      %405 = vmatprep.subr.bf16.mxu0 0
      %406 = vmatpush1.bf16.msra.mxu0 0
      %407 = vmatprep.subr.bf16.mxu0 0
      %408 = vmatpush1.bf16.msra.mxu0 0
      %409 = vmatprep.subr.bf16.mxu0 0
      %410 = vmatpush1.bf16.msra.mxu0 0
      %411 = vmatprep.subr.bf16.mxu0 0
      %412 = vmatpush1.bf16.msra.mxu0 0
      %413 = vmatprep.subr.bf16.mxu0 0
      %414 = vmatpush1.bf16.msra.mxu0 0
      %415 = vmatprep.subr.bf16.mxu0 0
      %416 = vmatpush1.bf16.msra.mxu0 0
      %417 = vmatprep.subr.bf16.mxu0 0
      %418 = vmatpush1.bf16.msra.mxu0 0
      %419 = vmatprep.subr.bf16.mxu0 0
      %420 = vmatpush1.bf16.msra.mxu0 0
      %421 = vmatprep.subr.bf16.mxu0 0
      %422 = vmatpush1.bf16.msra.mxu0 0
      %423 = vmatprep.subr.bf16.mxu0 0
      %424 = vmatpush1.bf16.msra.mxu0 0
      %425 = vmatprep.subr.bf16.mxu0 0
      %426 = vmatpush1.bf16.msra.mxu0 0
      %427 = vmatprep.subr.bf16.mxu0 0
      %428 = vmatpush1.bf16.msra.mxu0 0
      %429 = vmatprep.mubr.bf16.mxu0 0
      %430 = vmatmul.mubr.bf16.gmra.mrb[0].mxu0 %v346
      %v431 = vpop.f32.mrb[0].mxu0
      %v432 = vadd.f32 %v262, %v431
      %v433 = vpop.f32.mrb[0].mxu0
      %v434 = vpop.f32.mrb[0].mxu0
      %v435 = vadd.f32 %v262, %v434
      %v436 = vpop.f32.mrb[0].mxu0
      %437 = vmatprep.mubr.bf16.mxu0 0
      %438 = vmatmul.mubr.bf16.gmra.mrb[0].mxu0 %v349
      %v439 = vpop.f32.mrb[0].mxu0
      %v440 = vadd.f32 %v262, %v439
      %v441 = vpop.f32.mrb[0].mxu0
      %v442 = vpop.f32.mrb[0].mxu0
      %v443 = vadd.f32 %v262, %v442
      %v444 = vpop.f32.mrb[0].mxu0
      %445 = vmatprep.mubr.bf16.mxu0 0
      %446 = vmatmul.mubr.bf16.gmra.mrb[0].mxu0 %v352
      %v447 = vpop.f32.mrb[0].mxu0
      %v448 = vadd.f32 %v262, %v447
      %v449 = vpop.f32.mrb[0].mxu0
      %v450 = vpop.f32.mrb[0].mxu0
      %v451 = vadd.f32 %v262, %v450
      %v452 = vpop.f32.mrb[0].mxu0
      %453 = vmatprep.mubr.bf16.mxu0 0
      %454 = vmatmul.mubr.bf16.gmra.mrb[0].mxu0 %v355
      %v455 = vpop.f32.mrb[0].mxu0
      %v456 = vadd.f32 %v262, %v455
      %v457 = vpop.f32.mrb[0].mxu0
      %v458 = vpop.f32.mrb[0].mxu0
      %v459 = vadd.f32 %v262, %v458
      %v460 = vpop.f32.mrb[0].mxu0
      %461 = vmatprep.mubr.bf16.mxu0 0
      %462 = vmatmul.mubr.bf16.gmra.mrb[0].mxu0 %v358
      %v463 = vpop.f32.mrb[0].mxu0
      %v464 = vadd.f32 %v262, %v463
      %v465 = vpop.f32.mrb[0].mxu0
      %v466 = vpop.f32.mrb[0].mxu0
      %v467 = vadd.f32 %v262, %v466
      %v468 = vpop.f32.mrb[0].mxu0
      %469 = vmatprep.mubr.bf16.mxu0 0
      %470 = vmatmul.mubr.bf16.gmra.mrb[0].mxu0 %v361
      %v471 = vpop.f32.mrb[0].mxu0
      %v472 = vadd.f32 %v262, %v471
      %v473 = vpop.f32.mrb[0].mxu0
      %v474 = vpop.f32.mrb[0].mxu0
      %v475 = vadd.f32 %v262, %v474
      %v476 = vpop.f32.mrb[0].mxu0
      %477 = vmatprep.mubr.bf16.mxu0 0
      %478 = vmatmul.mubr.bf16.gmra.mrb[0].mxu0 %v364
      %v479 = vpop.f32.mrb[0].mxu0
      %v480 = vadd.f32 %v262, %v479
      %v481 = vpop.f32.mrb[0].mxu0
      %v482 = vpop.f32.mrb[0].mxu0
      %v483 = vadd.f32 %v262, %v482
      %v484 = vpop.f32.mrb[0].mxu0
      %485 = vmatprep.mubr.bf16.mxu0 0
      %486 = vmatmul.mubr.bf16.gmra.mrb[0].mxu0 %v367
      %v487 = vpop.f32.mrb[0].mxu0
      %v488 = vadd.f32 %v262, %v487
      %v489 = vpop.f32.mrb[0].mxu0
      %v490 = vpop.f32.mrb[0].mxu0
      %v491 = vadd.f32 %v262, %v490
      %v492 = vpop.f32.mrb[0].mxu0
      %493 = vmatprep.mubr.bf16.mxu0 0
      %494 = vmatmul.mubr.bf16.gmra.mrb[0].mxu0 %v370
      %v495 = vpop.f32.mrb[0].mxu0
      %v496 = vadd.f32 %v262, %v495
      %v497 = vpop.f32.mrb[0].mxu0
      %v498 = vpop.f32.mrb[0].mxu0
      %v499 = vadd.f32 %v262, %v498
      %v500 = vpop.f32.mrb[0].mxu0
      %501 = vmatprep.mubr.bf16.mxu0 0
      %502 = vmatmul.mubr.bf16.gmra.mrb[0].mxu0 %v373
      %v503 = vpop.f32.mrb[0].mxu0
      %v504 = vadd.f32 %v262, %v503
      %v505 = vpop.f32.mrb[0].mxu0
      %v506 = vpop.f32.mrb[0].mxu0
      %v507 = vadd.f32 %v262, %v506
      %v508 = vpop.f32.mrb[0].mxu0
      %509 = vmatprep.mubr.bf16.mxu0 0
      %510 = vmatmul.mubr.bf16.gmra.mrb[0].mxu0 %v376
      %v511 = vpop.f32.mrb[0].mxu0
      %v512 = vadd.f32 %v262, %v511
      %v513 = vpop.f32.mrb[0].mxu0
      %v514 = vpop.f32.mrb[0].mxu0
      %v515 = vadd.f32 %v262, %v514
      %v516 = vpop.f32.mrb[0].mxu0
      %517 = vmatprep.mubr.bf16.mxu0 0
      %518 = vmatmul.mubr.bf16.gmra.mrb[0].mxu0 %v379
      %v519 = vpop.f32.mrb[0].mxu0
      %v520 = vadd.f32 %v262, %v519
      %v521 = vpop.f32.mrb[0].mxu0
      %v522 = vpop.f32.mrb[0].mxu0
      %v523 = vadd.f32 %v262, %v522
      %v524 = vpop.f32.mrb[0].mxu0
      %525 = vmatprep.mubr.bf16.mxu0 0
      %526 = vmatmul.mubr.bf16.gmra.mrb[0].mxu0 %v382
      %v527 = vpop.f32.mrb[0].mxu0
      %v528 = vadd.f32 %v262, %v527
      %v529 = vpop.f32.mrb[0].mxu0
      %v530 = vpop.f32.mrb[0].mxu0
      %v531 = vadd.f32 %v262, %v530
      %v532 = vpop.f32.mrb[0].mxu0
      %533 = vmatprep.mubr.bf16.mxu0 0
      %534 = vmatmul.mubr.bf16.gmra.mrb[0].mxu0 %v385
      %v535 = vpop.f32.mrb[0].mxu0
      %v536 = vadd.f32 %v262, %v535
      %v537 = vpop.f32.mrb[0].mxu0
      %v538 = vpop.f32.mrb[0].mxu0
      %v539 = vadd.f32 %v262, %v538
      %v540 = vpop.f32.mrb[0].mxu0
      %541 = vmatprep.mubr.bf16.mxu0 0
      %542 = vmatmul.mubr.bf16.gmra.mrb[0].mxu0 %v388
      %v543 = vpop.f32.mrb[0].mxu0
      %v544 = vadd.f32 %v262, %v543
      %v545 = vpop.f32.mrb[0].mxu0
      %v546 = vpop.f32.mrb[0].mxu0
      %v547 = vadd.f32 %v262, %v546
      %v548 = vpop.f32.mrb[0].mxu0
      %549 = vmatprep.mubr.bf16.mxu0 0
      %550 = vmatmul.mubr.bf16.gmra.mrb[0].mxu0 %v391
      %v551 = vpop.f32.mrb[0].mxu0
      %v552 = vadd.f32 %v262, %v551
      %v553 = vpop.f32.mrb[0].mxu0
      %v554 = vpop.f32.mrb[0].mxu0
      %v555 = vadd.f32 %v262, %v554
      %v556 = vpop.f32.mrb[0].mxu0
      %557 = vdwg.mxu0
      %v558 = vld [vmem:[%s215] sm:$0xff]
      %v559 = vld [vmem:[%s215 + $0x8] sm:$0xff]
      %v560 = vld [vmem:[%s215 + $0x10] sm:$0xff]
      %v561 = vld [vmem:[%s215 + $0x18] sm:$0xff]
      %v562 = vld [vmem:[%s215 + $0x20] sm:$0xff]
      %v563 = vld [vmem:[%s215 + $0x28] sm:$0xff]
      %v564 = vld [vmem:[%s215 + $0x30] sm:$0xff]
      %v565 = vld [vmem:[%s215 + $0x38] sm:$0xff]
      %v566 = vld [vmem:[%s215 + $0x40] sm:$0xff]
      %v567 = vld [vmem:[%s215 + $0x48] sm:$0xff]
      %v568 = vld [vmem:[%s215 + $0x50] sm:$0xff]
      %v569 = vld [vmem:[%s215 + $0x58] sm:$0xff]
      %v570 = vld [vmem:[%s215 + $0x60] sm:$0xff]
      %v571 = vld [vmem:[%s215 + $0x68] sm:$0xff]
      %v572 = vld [vmem:[%s215 + $0x70] sm:$0xff]
      %v573 = vld [vmem:[%s215 + $0x78] sm:$0xff]
      %v574 = vld [vmem:[%s215 + $0x80] sm:$0xff]
      %v575 = vld [vmem:[%s215 + $0x88] sm:$0xff]
      %v576 = vld [vmem:[%s215 + $0x90] sm:$0xff]
      %v577 = vld [vmem:[%s215 + $0x98] sm:$0xff]
      %v578 = vld [vmem:[%s215 + $0xa0] sm:$0xff]
      %v579 = vld [vmem:[%s215 + $0xa8] sm:$0xff]
      %v580 = vld [vmem:[%s215 + $0xb0] sm:$0xff]
      %v581 = vld [vmem:[%s215 + $0xb8] sm:$0xff]
      %v582 = vld [vmem:[%s215 + $0xc0] sm:$0xff]
      %v583 = vld [vmem:[%s215 + $0xc8] sm:$0xff]
      %v584 = vld [vmem:[%s215 + $0xd0] sm:$0xff]
      %v585 = vld [vmem:[%s215 + $0xd8] sm:$0xff]
      %v586 = vld [vmem:[%s215 + $0xe0] sm:$0xff]
      %v587 = vld [vmem:[%s215 + $0xe8] sm:$0xff]
      %v588 = vld [vmem:[%s215 + $0xf0] sm:$0xff]
      %v589 = vld [vmem:[%s215 + $0xf8] sm:$0xff]
      %v590 = vadd.f32 %v432, %v558
      %v591 = vadd.f32 %v435, %v559
      %v592 = vadd.f32 %v440, %v560
      %v593 = vadd.f32 %v443, %v561
      %v594 = vadd.f32 %v448, %v562
      %v595 = vadd.f32 %v451, %v563
      %v596 = vadd.f32 %v456, %v564
      %v597 = vadd.f32 %v459, %v565
      %v598 = vadd.f32 %v464, %v566
      %v599 = vadd.f32 %v467, %v567
      %v600 = vadd.f32 %v472, %v568
      %v601 = vadd.f32 %v475, %v569
      %v602 = vadd.f32 %v480, %v570
      %v603 = vadd.f32 %v483, %v571
      %v604 = vadd.f32 %v488, %v572
      %v605 = vadd.f32 %v491, %v573
      %v606 = vadd.f32 %v496, %v574
      %v607 = vadd.f32 %v499, %v575
      %v608 = vadd.f32 %v504, %v576
      %v609 = vadd.f32 %v507, %v577
      %v610 = vadd.f32 %v512, %v578
      %v611 = vadd.f32 %v515, %v579
      %v612 = vadd.f32 %v520, %v580
      %v613 = vadd.f32 %v523, %v581
      %v614 = vadd.f32 %v528, %v582
      %v615 = vadd.f32 %v531, %v583
      %v616 = vadd.f32 %v536, %v584
      %v617 = vadd.f32 %v539, %v585
      %v618 = vadd.f32 %v544, %v586
      %v619 = vadd.f32 %v547, %v587
      %v620 = vadd.f32 %v552, %v588
      %v621 = vadd.f32 %v555, %v589
      %v622 = vmax.f32 %v590, 0.0
      %v623 = vmax.f32 %v591, 0.0
      %v624 = vmax.f32 %v592, 0.0
      %v625 = vmax.f32 %v593, 0.0
      %v626 = vmax.f32 %v594, 0.0
      %v627 = vmax.f32 %v595, 0.0
      %v628 = vmax.f32 %v596, 0.0
      %v629 = vmax.f32 %v597, 0.0
      %v630 = vmax.f32 %v598, 0.0
      %v631 = vmax.f32 %v599, 0.0
      %v632 = vmax.f32 %v600, 0.0
      %v633 = vmax.f32 %v601, 0.0
      %v634 = vmax.f32 %v602, 0.0
      %v635 = vmax.f32 %v603, 0.0
      %v636 = vmax.f32 %v604, 0.0
      %v637 = vmax.f32 %v605, 0.0
      %v638 = vmax.f32 %v606, 0.0
      %v639 = vmax.f32 %v607, 0.0
      %v640 = vmax.f32 %v608, 0.0
      %v641 = vmax.f32 %v609, 0.0
      %v642 = vmax.f32 %v610, 0.0
      %v643 = vmax.f32 %v611, 0.0
      %v644 = vmax.f32 %v612, 0.0
      %v645 = vmax.f32 %v613, 0.0
      %v646 = vmax.f32 %v614, 0.0
      %v647 = vmax.f32 %v615, 0.0
      %v648 = vmax.f32 %v616, 0.0
      %v649 = vmax.f32 %v617, 0.0
      %v650 = vmax.f32 %v618, 0.0
      %v651 = vmax.f32 %v619, 0.0
      %v652 = vmax.f32 %v620, 0.0
      %v653 = vmax.f32 %v621, 0.0
      %vm654 = vcmask 64512
      %655 = vst.msk [vmem:[%s221] sm:$0xff] %vm654, %v622
      %656 = vst.msk [vmem:[%s221 + $0x8] sm:$0xff] %vm654, %v623
      %657 = vst.msk [vmem:[%s221 + $0x10] sm:$0xff] %vm654, %v624
      %658 = vst.msk [vmem:[%s221 + $0x18] sm:$0xff] %vm654, %v625
      %659 = vst.msk [vmem:[%s221 + $0x20] sm:$0xff] %vm654, %v626
      %660 = vst.msk [vmem:[%s221 + $0x28] sm:$0xff] %vm654, %v627
      %661 = vst.msk [vmem:[%s221 + $0x30] sm:$0xff] %vm654, %v628
      %662 = vst.msk [vmem:[%s221 + $0x38] sm:$0xff] %vm654, %v629
      %663 = vst.msk [vmem:[%s221 + $0x40] sm:$0xff] %vm654, %v630
      %664 = vst.msk [vmem:[%s221 + $0x48] sm:$0xff] %vm654, %v631
      %665 = vst.msk [vmem:[%s221 + $0x50] sm:$0xff] %vm654, %v632
      %666 = vst.msk [vmem:[%s221 + $0x58] sm:$0xff] %vm654, %v633
      %667 = vst.msk [vmem:[%s221 + $0x60] sm:$0xff] %vm654, %v634
      %668 = vst.msk [vmem:[%s221 + $0x68] sm:$0xff] %vm654, %v635
      %669 = vst.msk [vmem:[%s221 + $0x70] sm:$0xff] %vm654, %v636
      %670 = vst.msk [vmem:[%s221 + $0x78] sm:$0xff] %vm654, %v637
      %671 = vst.msk [vmem:[%s221 + $0x80] sm:$0xff] %vm654, %v638
      %672 = vst.msk [vmem:[%s221 + $0x88] sm:$0xff] %vm654, %v639
      %673 = vst.msk [vmem:[%s221 + $0x90] sm:$0xff] %vm654, %v640
      %674 = vst.msk [vmem:[%s221 + $0x98] sm:$0xff] %vm654, %v641
      %675 = vst.msk [vmem:[%s221 + $0xa0] sm:$0xff] %vm654, %v642
      %676 = vst.msk [vmem:[%s221 + $0xa8] sm:$0xff] %vm654, %v643
      %677 = vst.msk [vmem:[%s221 + $0xb0] sm:$0xff] %vm654, %v644
      %678 = vst.msk [vmem:[%s221 + $0xb8] sm:$0xff] %vm654, %v645
      %679 = vst.msk [vmem:[%s221 + $0xc0] sm:$0xff] %vm654, %v646
      %680 = vst.msk [vmem:[%s221 + $0xc8] sm:$0xff] %vm654, %v647
      %681 = vst.msk [vmem:[%s221 + $0xd0] sm:$0xff] %vm654, %v648
      %682 = vst.msk [vmem:[%s221 + $0xd8] sm:$0xff] %vm654, %v649
      %683 = vst.msk [vmem:[%s221 + $0xe0] sm:$0xff] %vm654, %v650
      %684 = vst.msk [vmem:[%s221 + $0xe8] sm:$0xff] %vm654, %v651
      %685 = vst.msk [vmem:[%s221 + $0xf0] sm:$0xff] %vm654, %v652
      %686 = vst.msk [vmem:[%s221 + $0xf8] sm:$0xff] %vm654, %v653
      %s687 = smul.u32 32, %s15
      %p688 = scmp.lt.s32.totalorder %s687, 63
      %s689 = scalar_select %p688, %s687, 63
      %s690 = smul.addr %s689, 8
      %s691 = scalar_lea.vmem %s4, %s690
      // Predicated region
      $region37: #{_lambda_.116} parent=35 // pred_check
        %p692 = pneg %p127
      $region38: #{_lambda_.116} parent=35 // pred_check_branch
        %694 = sbr.rel (%p692) target = $region40
      $region39: #{_lambda_.116} parent=35 // pred_region
        %s695 = smul.u32 32, %s15
      $region40: #{_lambda_.116} parent=35 // pred_fallthru
        _
    $region36: #{_lambda_.116} parent=5 // pred_fallthru
      _
    %p696 = scmp.le.s32.totalorder 2, %s10
    // Predicated region
    $region41: #{_lambda_.116} parent=5 // pred_check
      %p697 = pneg %p696
    $region42: #{_lambda_.116} parent=5 // pred_check_branch
      %699 = sbr.rel (%p697) target = $region44
    $region43: #{_lambda_.116} parent=5 // pred_region
      %s700 = ssub.s32 %s10, 2
      // Predicated region
      $region45: #{_lambda_.116} parent=43 // pred_check
        %p701 = pneg %p133
      $region46: #{_lambda_.116} parent=43 // pred_check_branch
        %703 = sbr.rel (%p701) target = $region48
      $region47: #{_lambda_.116} parent=43 // pred_region
        %s704 = smul.u32 32, %s16
        %p705 = scmp.lt.s32.totalorder %s704, 63
        %s706 = scalar_select %p705, %s704, 63
        %s707 = smul.addr %s706, 8
        %s708 = scalar_lea.vmem %s4, %s707
      $region48: #{_lambda_.116} parent=43 // pred_fallthru
        _
    $region44: #{_lambda_.116} parent=5 // pred_fallthru
      _
  $region6: #{_lambda_.116} parent=0 // loop_footer
    %s14 = sadd.s32 1, %s10
  $region7: #{_lambda_.116} parent=0 // loop_footer_branch
    %9 = sbr.rel target = $region3
  $region8: #{_lambda_.116} parent=0 // loop_exit
    _

// kernel: _lambda_.117
$region0: #{_lambda_.117}
  #allocation0 [shape = 'u32[]', space=smem, size = 0x4, offset = 0x4, fixed_abs, tag = 'smem constant byte address 0x4 - core index']
  #allocation1 [shape = 'u32[144,128]{1,0:T(1,128)}', space=vmem, size = 0x12000, scoped, tag = 'internal scratch']
  %s0 = inlined_call_operand.vmem [shape: bf16[512,72], index: 0, kind: input, shape index: {}]
  %s1 = inlined_call_operand.vmem [shape: bf16[72,256], index: 1, kind: input, shape index: {}]
  %s2 = inlined_call_operand.vmem [shape: f32[1,256], index: 2, kind: input, shape index: {}]
  %s3 = inlined_call_operand.hbm [shape: f32[512,256], index: 3, kind: output, shape index: {}]
  %s4 = sld [smem:[#allocation0]]
  $region45: #{_lambda_.117} parent=0
    _
  %s6 = ssub.s32 1, %s4
  %s7 = scalar_select 0, %s6, %s4
  $region1: #{_lambda_.117} parent=0
    #allocation2 [shape = 'u8[524288]{0}', space=vmem, size = 0x80000, scoped, tag = 'output window, operand 0']
    #allocation3 [shape = 's32[2]{0}', space=sflag, size = 0x8, scoped, tag = 'scoped memory for _lambda_.117']
    %8 = vsyncpa [#allocation3], 0
    %s9 = scalar_lea.sflag [#allocation3], 1
    %10 = vsyncpa %s9, 0
    loop: start=0, step=1, limit=4
    $region2: #{_lambda_.117} parent=1 // loop_pre_header
      _
    $region3: #{_lambda_.117} parent=1 // loop_header
      %s12 = sphi 0, %s16
      %p13 = scmp.ge.s32.totalorder %s12, 4
      %s22 = sphi 0, %s24
      %s25 = sphi 0, %s22
      %s26 = sphi 0, %s25
      %s42 = sphi 0, %s26
      %s46 = sphi 0, %s46
      %s48 = sphi 0, %s46
      %s49 = sphi 0, %s48
      %s63 = sphi 0, %s49
      %s67 = sphi 0, %s67
      %s69 = sphi 0, %s67
      %s70 = sphi 0, %s69
      %s84 = sphi 0, %s70
      %s90 = sphi 0, %s92
      %s93 = sphi 0, %s90
      %s94 = sphi 0, %s93
      %s110 = sphi 0, %s94
    $region4: #{_lambda_.117} parent=1 // loop_header_branch
      %15 = sbr.rel (%p13) target = $region8
    $region5: #{_lambda_.117} parent=1 // loop_body
      %s17 = ssub.s32 %s12, 1
      %s18 = ssub.s32 %s12, 2
      %s19 = sadd.s32 %s12, 1
      %s20 = ssub.s32 %s12, %s19
      %p21 = scmp.eq.s32.totalorder %s20, 0
      %s23 = sadd.s32 %s22, 1
      %s24 = scalar_select %p21, %s22, %s23
      %p27 = pneg %p21
      %p28 = scmp.eq.s32.totalorder %s12, 1
      %p29 = por %p27, %p28
      %p30 = scmp.ne.s32.totalorder %s22, %s25
      %p31 = scmp.eq.s32.totalorder %s12, 0
      %p32 = por %p30, %p31
      %p33 = scmp.ne.s32.totalorder %s22, %s25
      %p34 = scmp.eq.s32.totalorder %s17, 1
      %p35 = por %p33, %p34
      %p36 = scmp.ne.s32.totalorder %s25, %s26
      %p37 = scmp.eq.s32.totalorder %s17, 0
      %p38 = por %p36, %p37
      %p39 = scmp.ne.s32.totalorder %s25, %s26
      %p40 = scmp.eq.s32.totalorder %s18, 1
      %p41 = por %p39, %p40
      %p43 = scmp.ne.s32.totalorder %s26, %s42
      %p44 = scmp.eq.s32.totalorder %s18, 0
      %p45 = por %p43, %p44
      %s47 = sadd.s32 %s46, 1
      %p50 = scmp.eq.s32.totalorder %s12, 1
      %p51 = scmp.ne.s32.totalorder %s46, %s48
      %p52 = scmp.eq.s32.totalorder %s12, 0
      %p53 = por %p51, %p52
      %p54 = scmp.ne.s32.totalorder %s46, %s48
      %p55 = scmp.eq.s32.totalorder %s17, 1
      %p56 = por %p54, %p55
      %p57 = scmp.ne.s32.totalorder %s48, %s49
      %p58 = scmp.eq.s32.totalorder %s17, 0
      %p59 = por %p57, %p58
      %p60 = scmp.ne.s32.totalorder %s48, %s49
      %p61 = scmp.eq.s32.totalorder %s18, 1
      %p62 = por %p60, %p61
      %p64 = scmp.ne.s32.totalorder %s49, %s63
      %p65 = scmp.eq.s32.totalorder %s18, 0
      %p66 = por %p64, %p65
      %s68 = sadd.s32 %s67, 1
      %p71 = scmp.eq.s32.totalorder %s12, 1
      %p72 = scmp.ne.s32.totalorder %s67, %s69
      %p73 = scmp.eq.s32.totalorder %s12, 0
      %p74 = por %p72, %p73
      %p75 = scmp.ne.s32.totalorder %s67, %s69
      %p76 = scmp.eq.s32.totalorder %s17, 1
      %p77 = por %p75, %p76
      %p78 = scmp.ne.s32.totalorder %s69, %s70
      %p79 = scmp.eq.s32.totalorder %s17, 0
      %p80 = por %p78, %p79
      %p81 = scmp.ne.s32.totalorder %s69, %s70
      %p82 = scmp.eq.s32.totalorder %s18, 1
      %p83 = por %p81, %p82
      %p85 = scmp.ne.s32.totalorder %s70, %s84
      %p86 = scmp.eq.s32.totalorder %s18, 0
      %p87 = por %p85, %p86
      %s88 = ssub.s32 %s12, %s19
      %p89 = scmp.eq.s32.totalorder %s88, 0
      %s91 = sadd.s32 %s90, 1
      %s92 = scalar_select %p89, %s90, %s91
      %p95 = pneg %p89
      %p96 = scmp.eq.s32.totalorder %s12, 1
      %p97 = por %p95, %p96
      %p98 = scmp.ne.s32.totalorder %s90, %s93
      %p99 = scmp.eq.s32.totalorder %s12, 0
      %p100 = por %p98, %p99
      %p101 = scmp.ne.s32.totalorder %s90, %s93
      %p102 = scmp.eq.s32.totalorder %s17, 1
      %p103 = por %p101, %p102
      %p104 = scmp.ne.s32.totalorder %s93, %s94
      %p105 = scmp.eq.s32.totalorder %s17, 0
      %p106 = por %p104, %p105
      %p107 = scmp.ne.s32.totalorder %s93, %s94
      %p108 = scmp.eq.s32.totalorder %s18, 1
      %p109 = por %p107, %p108
      %p111 = scmp.ne.s32.totalorder %s94, %s110
      %p112 = scmp.eq.s32.totalorder %s18, 0
      %p113 = por %p111, %p112
      %p114 = scmp.le.s32.totalorder 1, %s12
      %p115 = scmp.lt.s32.totalorder %s12, 3
      %p116 = pnand %p114, %p115
      %p117 = pneg %p116
      // Predicated region
      $region9: #{_lambda_.117} parent=5 // pred_check
        _
      $region10: #{_lambda_.117} parent=5 // pred_check_branch
        %119 = sbr.rel (%p116) target = $region12
      $region11: #{_lambda_.117} parent=5 // pred_region
        %s120 = ssub.s32 %s12, 1
        // Predicated region
        $region13: #{_lambda_.117} parent=11 // pred_check
          %p121 = pneg %p59
        $region14: #{_lambda_.117} parent=11 // pred_check_branch
          %123 = sbr.rel (%p121) target = $region16
        $region15: #{_lambda_.117} parent=11 // pred_region
          _
        $region16: #{_lambda_.117} parent=11 // pred_fallthru
          _
        // Predicated region
        $region17: #{_lambda_.117} parent=11 // pred_check
          %p124 = pneg %p80
        $region18: #{_lambda_.117} parent=11 // pred_check_branch
          %126 = sbr.rel (%p124) target = $region20
        $region19: #{_lambda_.117} parent=11 // pred_region
          _
        $region20: #{_lambda_.117} parent=11 // pred_fallthru
          _
      $region12: #{_lambda_.117} parent=5 // pred_fallthru
        _
      %p127 = scmp.lt.s32.totalorder %s12, 2
      // Predicated region
      $region21: #{_lambda_.117} parent=5 // pred_check
        %p128 = pneg %p127
      $region22: #{_lambda_.117} parent=5 // pred_check_branch
        %130 = sbr.rel (%p128) target = $region24
      $region23: #{_lambda_.117} parent=5 // pred_region
        // Predicated region
        $region25: #{_lambda_.117} parent=23 // pred_check
          %p131 = pneg %p32
        $region26: #{_lambda_.117} parent=23 // pred_check_branch
          %133 = sbr.rel (%p131) target = $region28
        $region27: #{_lambda_.117} parent=23 // pred_region
          %s134 = smul.u32 32, %s12
          %p135 = scmp.lt.s32.totalorder %s134, 63
          %s136 = scalar_select %p135, %s134, 63
          %s137 = smul.addr %s136, 4
          %s138 = scalar_lea.vmem %s0, %s137
          %s139 = smul.u32 32, %s12
        $region28: #{_lambda_.117} parent=23 // pred_fallthru
          _
      $region24: #{_lambda_.117} parent=5 // pred_fallthru
        _
      %p140 = scmp.le.s32.totalorder 1, %s12
      %p141 = scmp.lt.s32.totalorder %s12, 3
      %p142 = pnand %p140, %p141
      %p143 = pneg %p142
      // Predicated region
      $region29: #{_lambda_.117} parent=5 // pred_check
        _
      $region30: #{_lambda_.117} parent=5 // pred_check_branch
        %145 = sbr.rel (%p142) target = $region32
      $region31: #{_lambda_.117} parent=5 // pred_region
        %s146 = ssub.s32 %s12, 1
        %s147 = smul.u32 32, %s17
        %p148 = scmp.lt.s32.totalorder %s147, 63
        %s149 = scalar_select %p148, %s147, 63
        %s150 = smul.addr %s149, 4
        %s151 = scalar_lea.vmem %s0, %s150
        %p152 = pneg %p38
        %p153 = pneg %p35
        %p154 = pneg %p59
        %p155 = pneg %p56
        %p156 = pneg %p80
        %p157 = pneg %p77
        %p158 = pneg %p106
        %p159 = pneg %p103
        %s160 = sand.u32 %s93, 1
        %s161 = scalar_lea.sflag [#allocation3], %s160
        %s162 = sand.u32 %s93, 1
        %s163 = smul.addr %s162, 512
        %s164 = scalar_lea.vmem [#allocation2], %s163
        %s165 = smul.u32 32, %s17
        %p166 = scmp.lt.s32.totalorder %s165, 63
        %s167 = scalar_select %p166, %s165, 63
        %s168 = smul.addr %s167, 4
        %s169 = scalar_lea.vmem %s0, %s168
        %s170 = smul.u32 32, %s17
        %s171 = smul.u32 32, %s17
        %v173 = vld [vmem:[%s169] sm:$0xf]
        %v174 = vld [vmem:[%s169 + $0x4] sm:$0xf]
        %v175 = vld [vmem:[%s169 + $0x8] sm:$0xf]
        %v176 = vld [vmem:[%s169 + $0xc] sm:$0xf]
        %v177 = vld [vmem:[%s169 + $0x10] sm:$0xf]
        %v178 = vld [vmem:[%s169 + $0x14] sm:$0xf]
        %v179 = vld [vmem:[%s169 + $0x18] sm:$0xf]
        %v180 = vld [vmem:[%s169 + $0x1c] sm:$0xf]
        %v181 = vld [vmem:[%s169 + $0x20] sm:$0xf]
        %v182 = vld [vmem:[%s169 + $0x24] sm:$0xf]
        %v183 = vld [vmem:[%s169 + $0x28] sm:$0xf]
        %v184 = vld [vmem:[%s169 + $0x2c] sm:$0xf]
        %v185 = vld [vmem:[%s169 + $0x30] sm:$0xf]
        %v186 = vld [vmem:[%s169 + $0x34] sm:$0xf]
        %v187 = vld [vmem:[%s169 + $0x38] sm:$0xf]
        %v188 = vld [vmem:[%s169 + $0x3c] sm:$0xf]
        %v189 = vld [vmem:[%s169 + $0x40] sm:$0xf]
        %v190 = vld [vmem:[%s169 + $0x44] sm:$0xf]
        %v191 = vld [vmem:[%s169 + $0x48] sm:$0xf]
        %v192 = vld [vmem:[%s169 + $0x4c] sm:$0xf]
        %v193 = vld [vmem:[%s169 + $0x50] sm:$0xf]
        %v194 = vld [vmem:[%s169 + $0x54] sm:$0xf]
        %v195 = vld [vmem:[%s169 + $0x58] sm:$0xf]
        %v196 = vld [vmem:[%s169 + $0x5c] sm:$0xf]
        %v197 = vld [vmem:[%s169 + $0x60] sm:$0xf]
        %v198 = vld [vmem:[%s169 + $0x64] sm:$0xf]
        %v199 = vld [vmem:[%s169 + $0x68] sm:$0xf]
        %v200 = vld [vmem:[%s169 + $0x6c] sm:$0xf]
        %v201 = vld [vmem:[%s169 + $0x70] sm:$0xf]
        %v202 = vld [vmem:[%s169 + $0x74] sm:$0xf]
        %v203 = vld [vmem:[%s169 + $0x78] sm:$0xf]
        %v204 = vld [vmem:[%s169 + $0x7c] sm:$0xf]
        %v205 = vld [vmem:[%s1] sm:$0xff]
        %v206 = vld [vmem:[%s1 + $0x8] sm:$0xff]
        %v207 = vld [vmem:[%s1 + $0x10] sm:$0xff]
        %v208 = vld [vmem:[%s1 + $0x18] sm:$0xff]
        %v209 = vld [vmem:[%s1 + $0x20] sm:$0xff]
        %v210 = vld [vmem:[%s1 + $0x28] sm:$0xff]
        %v211 = vld [vmem:[%s1 + $0x30] sm:$0xff]
        %v212 = vld [vmem:[%s1 + $0x38] sm:$0xff]
        %v213 = vld [vmem:[%s1 + $0x40] sm:$0xff]
        %v214 = vld [vmem:[%s2] sm:$0x3]
        %v216 = vlaneseq
        %v217 = vshrl.u32 %v216, 7
        %v218 = vsub.s32 0, %v217
        %v219 = vrot.slane %v214, %v218
        %v220 = vlaneseq
        %v221 = vshrl.u32 %v220, 7
        %v222 = vsub.s32 1, %v221
        %v223 = vrot.slane %v214, %v222
        %v258 = vunpack.c.l.b16 %v173
        %v259 = vunpack.c.l.b16 %v174
        %v260 = vunpack.c.l.b16 %v175
        %v261 = vunpack.c.l.b16 %v176
        %v262 = vunpack.c.l.b16 %v177
        %v263 = vunpack.c.l.b16 %v178
        %v264 = vunpack.c.l.b16 %v179
        %v265 = vunpack.c.l.b16 %v180
        %v266 = vunpack.c.l.b16 %v181
        %v267 = vunpack.c.l.b16 %v182
        %v268 = vunpack.c.l.b16 %v183
        %v269 = vunpack.c.l.b16 %v184
        %v270 = vunpack.c.l.b16 %v185
        %v271 = vunpack.c.l.b16 %v186
        %v272 = vunpack.c.l.b16 %v187
        %v273 = vunpack.c.l.b16 %v188
        %v274 = vunpack.c.l.b16 %v189
        %v275 = vunpack.c.l.b16 %v190
        %v276 = vunpack.c.l.b16 %v191
        %v277 = vunpack.c.l.b16 %v192
        %v278 = vunpack.c.l.b16 %v193
        %v279 = vunpack.c.l.b16 %v194
        %v280 = vunpack.c.l.b16 %v195
        %v281 = vunpack.c.l.b16 %v196
        %v282 = vunpack.c.l.b16 %v197
        %v283 = vunpack.c.l.b16 %v198
        %v284 = vunpack.c.l.b16 %v199
        %v285 = vunpack.c.l.b16 %v200
        %v286 = vunpack.c.l.b16 %v201
        %v287 = vunpack.c.l.b16 %v202
        %v288 = vunpack.c.l.b16 %v203
        %v289 = vunpack.c.l.b16 %v204
        %v290 = vpack.c.b16 %v259, %v258
        %v291 = vpack.c.b16 %v261, %v260
        %v292 = vpack.c.b16 %v263, %v262
        %v293 = vpack.c.b16 %v265, %v264
        %v294 = vpack.c.b16 %v267, %v266
        %v295 = vpack.c.b16 %v269, %v268
        %v296 = vpack.c.b16 %v271, %v270
        %v297 = vpack.c.b16 %v273, %v272
        %v298 = vpack.c.b16 %v275, %v274
        %v299 = vpack.c.b16 %v277, %v276
        %v300 = vpack.c.b16 %v279, %v278
        %v301 = vpack.c.b16 %v281, %v280
        %v302 = vpack.c.b16 %v283, %v282
        %v303 = vpack.c.b16 %v285, %v284
        %v304 = vpack.c.b16 %v287, %v286
        %v305 = vpack.c.b16 %v289, %v288
        %v315 = vunpack.c.l.b16 %v205
        %v316 = vunpack.c.h.b16 %v205
        %v317 = vunpack.c.l.b16 %v206
        %v318 = vunpack.c.h.b16 %v206
        %v319 = vunpack.c.l.b16 %v207
        %v320 = vunpack.c.h.b16 %v207
        %v321 = vunpack.c.l.b16 %v208
        %v322 = vunpack.c.h.b16 %v208
        %v323 = vunpack.c.l.b16 %v209
        %v324 = vunpack.c.h.b16 %v209
        %v325 = vunpack.c.l.b16 %v210
        %v326 = vunpack.c.h.b16 %v210
        %v327 = vunpack.c.l.b16 %v211
        %v328 = vunpack.c.h.b16 %v211
        %v329 = vunpack.c.l.b16 %v212
        %v330 = vunpack.c.h.b16 %v212
        %v331 = vunpack.c.l.b16 %v213
        %v332 = vunpack.c.h.b16 %v213
        %v333 = vpack.c.b16 %v317, %v315
        %v334 = vpack.c.b16 %v318, %v316
        %v335 = vpack.c.b16 %v321, %v319
        %v336 = vpack.c.b16 %v322, %v320
        %v337 = vpack.c.b16 %v325, %v323
        %v338 = vpack.c.b16 %v326, %v324
        %v339 = vpack.c.b16 %v329, %v327
        %v340 = vpack.c.b16 %v330, %v328
        %v341 = vpack.c.b16 %v331, %v331
        %v342 = vpack.c.b16 %v332, %v332
        %vm351 = vcmask 588800
        %v353 = vsel %vm351, %v290, 0
        %v356 = vsel %vm351, %v291, 0
        %v359 = vsel %vm351, %v292, 0
        %v362 = vsel %vm351, %v293, 0
        %v365 = vsel %vm351, %v294, 0
        %v368 = vsel %vm351, %v295, 0
        %v371 = vsel %vm351, %v296, 0
        %v374 = vsel %vm351, %v297, 0
        %v377 = vsel %vm351, %v298, 0
        %v380 = vsel %vm351, %v299, 0
        %v383 = vsel %vm351, %v300, 0
        %v386 = vsel %vm351, %v301, 0
        %v389 = vsel %vm351, %v302, 0
        %v392 = vsel %vm351, %v303, 0
        %v395 = vsel %vm351, %v304, 0
        %v398 = vsel %vm351, %v305, 0
        %vm400 = vcmask 1043456
        %v402 = vsel %vm400, %v341, 0
        %v405 = vsel %vm400, %v342, 0
        %407 = vmatprep.subr.bf16.mxu0 %v334
        %408 = vmatpush1.bf16.msra.mxu0 %v333
        %409 = vmatprep.subr.bf16.mxu0 %v336
        %410 = vmatpush1.bf16.msra.mxu0 %v335
        %411 = vmatprep.subr.bf16.mxu0 %v338
        %412 = vmatpush1.bf16.msra.mxu0 %v337
        %413 = vmatprep.subr.bf16.mxu0 %v340
        %414 = vmatpush1.bf16.msra.mxu0 %v339
        %415 = vmatprep.subr.bf16.mxu0 %v405
        %416 = vmatpush1.bf16.msra.mxu0 %v402
        %417 = vmatprep.subr.bf16.mxu0 0
        %418 = vmatpush1.bf16.msra.mxu0 0
        %419 = vmatprep.subr.bf16.mxu0 0
        %420 = vmatpush1.bf16.msra.mxu0 0
        %421 = vmatprep.subr.bf16.mxu0 0
        %422 = vmatpush1.bf16.msra.mxu0 0
        %423 = vmatprep.subr.bf16.mxu0 0
        %424 = vmatpush1.bf16.msra.mxu0 0
        %425 = vmatprep.subr.bf16.mxu0 0
        %426 = vmatpush1.bf16.msra.mxu0 0
        %427 = vmatprep.subr.bf16.mxu0 0
        %428 = vmatpush1.bf16.msra.mxu0 0
        %429 = vmatprep.subr.bf16.mxu0 0
        %430 = vmatpush1.bf16.msra.mxu0 0
        %431 = vmatprep.subr.bf16.mxu0 0
        %432 = vmatpush1.bf16.msra.mxu0 0
        %433 = vmatprep.subr.bf16.mxu0 0
        %434 = vmatpush1.bf16.msra.mxu0 0
        %435 = vmatprep.subr.bf16.mxu0 0
        %436 = vmatpush1.bf16.msra.mxu0 0
        %437 = vmatprep.subr.bf16.mxu0 0
        %438 = vmatpush1.bf16.msra.mxu0 0
        %439 = vmatprep.mubr.bf16.mxu0 0
        %440 = vmatmul.mubr.bf16.gmra.mrb[0].mxu0 %v353
        %v441 = vpop.f32.mrb[0].mxu0
        %v442 = vadd.f32 %v219, %v441
        %v443 = vpop.f32.mrb[0].mxu0
        %v444 = vadd.f32 %v223, %v443
        %v445 = vpop.f32.mrb[0].mxu0
        %v446 = vadd.f32 %v219, %v445
        %v447 = vpop.f32.mrb[0].mxu0
        %v448 = vadd.f32 %v223, %v447
        %449 = vmatprep.mubr.bf16.mxu0 0
        %450 = vmatmul.mubr.bf16.gmra.mrb[0].mxu0 %v356
        %v451 = vpop.f32.mrb[0].mxu0
        %v452 = vadd.f32 %v219, %v451
        %v453 = vpop.f32.mrb[0].mxu0
        %v454 = vadd.f32 %v223, %v453
        %v455 = vpop.f32.mrb[0].mxu0
        %v456 = vadd.f32 %v219, %v455
        %v457 = vpop.f32.mrb[0].mxu0
        %v458 = vadd.f32 %v223, %v457
        %459 = vmatprep.mubr.bf16.mxu0 0
        %460 = vmatmul.mubr.bf16.gmra.mrb[0].mxu0 %v359
        %v461 = vpop.f32.mrb[0].mxu0
        %v462 = vadd.f32 %v219, %v461
        %v463 = vpop.f32.mrb[0].mxu0
        %v464 = vadd.f32 %v223, %v463
        %v465 = vpop.f32.mrb[0].mxu0
        %v466 = vadd.f32 %v219, %v465
        %v467 = vpop.f32.mrb[0].mxu0
        %v468 = vadd.f32 %v223, %v467
        %469 = vmatprep.mubr.bf16.mxu0 0
        %470 = vmatmul.mubr.bf16.gmra.mrb[0].mxu0 %v362
        %v471 = vpop.f32.mrb[0].mxu0
        %v472 = vadd.f32 %v219, %v471
        %v473 = vpop.f32.mrb[0].mxu0
        %v474 = vadd.f32 %v223, %v473
        %v475 = vpop.f32.mrb[0].mxu0
        %v476 = vadd.f32 %v219, %v475
        %v477 = vpop.f32.mrb[0].mxu0
        %v478 = vadd.f32 %v223, %v477
        %479 = vmatprep.mubr.bf16.mxu0 0
        %480 = vmatmul.mubr.bf16.gmra.mrb[0].mxu0 %v365
        %v481 = vpop.f32.mrb[0].mxu0
        %v482 = vadd.f32 %v219, %v481
        %v483 = vpop.f32.mrb[0].mxu0
        %v484 = vadd.f32 %v223, %v483
        %v485 = vpop.f32.mrb[0].mxu0
        %v486 = vadd.f32 %v219, %v485
        %v487 = vpop.f32.mrb[0].mxu0
        %v488 = vadd.f32 %v223, %v487
        %489 = vmatprep.mubr.bf16.mxu0 0
        %490 = vmatmul.mubr.bf16.gmra.mrb[0].mxu0 %v368
        %v491 = vpop.f32.mrb[0].mxu0
        %v492 = vadd.f32 %v219, %v491
        %v493 = vpop.f32.mrb[0].mxu0
        %v494 = vadd.f32 %v223, %v493
        %v495 = vpop.f32.mrb[0].mxu0
        %v496 = vadd.f32 %v219, %v495
        %v497 = vpop.f32.mrb[0].mxu0
        %v498 = vadd.f32 %v223, %v497
        %499 = vmatprep.mubr.bf16.mxu0 0
        %500 = vmatmul.mubr.bf16.gmra.mrb[0].mxu0 %v371
        %v501 = vpop.f32.mrb[0].mxu0
        %v502 = vadd.f32 %v219, %v501
        %v503 = vpop.f32.mrb[0].mxu0
        %v504 = vadd.f32 %v223, %v503
        %v505 = vpop.f32.mrb[0].mxu0
        %v506 = vadd.f32 %v219, %v505
        %v507 = vpop.f32.mrb[0].mxu0
        %v508 = vadd.f32 %v223, %v507
        %509 = vmatprep.mubr.bf16.mxu0 0
        %510 = vmatmul.mubr.bf16.gmra.mrb[0].mxu0 %v374
        %v511 = vpop.f32.mrb[0].mxu0
        %v512 = vadd.f32 %v219, %v511
        %v513 = vpop.f32.mrb[0].mxu0
        %v514 = vadd.f32 %v223, %v513
        %v515 = vpop.f32.mrb[0].mxu0
        %v516 = vadd.f32 %v219, %v515
        %v517 = vpop.f32.mrb[0].mxu0
        %v518 = vadd.f32 %v223, %v517
        %519 = vmatprep.mubr.bf16.mxu0 0
        %520 = vmatmul.mubr.bf16.gmra.mrb[0].mxu0 %v377
        %v521 = vpop.f32.mrb[0].mxu0
        %v522 = vadd.f32 %v219, %v521
        %v523 = vpop.f32.mrb[0].mxu0
        %v524 = vadd.f32 %v223, %v523
        %v525 = vpop.f32.mrb[0].mxu0
        %v526 = vadd.f32 %v219, %v525
        %v527 = vpop.f32.mrb[0].mxu0
        %v528 = vadd.f32 %v223, %v527
        %529 = vmatprep.mubr.bf16.mxu0 0
        %530 = vmatmul.mubr.bf16.gmra.mrb[0].mxu0 %v380
        %v531 = vpop.f32.mrb[0].mxu0
        %v532 = vadd.f32 %v219, %v531
        %v533 = vpop.f32.mrb[0].mxu0
        %v534 = vadd.f32 %v223, %v533
        %v535 = vpop.f32.mrb[0].mxu0
        %v536 = vadd.f32 %v219, %v535
        %v537 = vpop.f32.mrb[0].mxu0
        %v538 = vadd.f32 %v223, %v537
        %539 = vmatprep.mubr.bf16.mxu0 0
        %540 = vmatmul.mubr.bf16.gmra.mrb[0].mxu0 %v383
        %v541 = vpop.f32.mrb[0].mxu0
        %v542 = vadd.f32 %v219, %v541
        %v543 = vpop.f32.mrb[0].mxu0
        %v544 = vadd.f32 %v223, %v543
        %v545 = vpop.f32.mrb[0].mxu0
        %v546 = vadd.f32 %v219, %v545
        %v547 = vpop.f32.mrb[0].mxu0
        %v548 = vadd.f32 %v223, %v547
        %549 = vmatprep.mubr.bf16.mxu0 0
        %550 = vmatmul.mubr.bf16.gmra.mrb[0].mxu0 %v386
        %v551 = vpop.f32.mrb[0].mxu0
        %v552 = vadd.f32 %v219, %v551
        %v553 = vpop.f32.mrb[0].mxu0
        %v554 = vadd.f32 %v223, %v553
        %v555 = vpop.f32.mrb[0].mxu0
        %v556 = vadd.f32 %v219, %v555
        %v557 = vpop.f32.mrb[0].mxu0
        %v558 = vadd.f32 %v223, %v557
        %559 = vmatprep.mubr.bf16.mxu0 0
        %560 = vmatmul.mubr.bf16.gmra.mrb[0].mxu0 %v389
        %v561 = vpop.f32.mrb[0].mxu0
        %v562 = vadd.f32 %v219, %v561
        %v563 = vpop.f32.mrb[0].mxu0
        %v564 = vadd.f32 %v223, %v563
        %v565 = vpop.f32.mrb[0].mxu0
        %v566 = vadd.f32 %v219, %v565
        %v567 = vpop.f32.mrb[0].mxu0
        %v568 = vadd.f32 %v223, %v567
        %569 = vmatprep.mubr.bf16.mxu0 0
        %570 = vmatmul.mubr.bf16.gmra.mrb[0].mxu0 %v392
        %v571 = vpop.f32.mrb[0].mxu0
        %v572 = vadd.f32 %v219, %v571
        %v573 = vpop.f32.mrb[0].mxu0
        %v574 = vadd.f32 %v223, %v573
        %v575 = vpop.f32.mrb[0].mxu0
        %v576 = vadd.f32 %v219, %v575
        %v577 = vpop.f32.mrb[0].mxu0
        %v578 = vadd.f32 %v223, %v577
        %579 = vmatprep.mubr.bf16.mxu0 0
        %580 = vmatmul.mubr.bf16.gmra.mrb[0].mxu0 %v395
        %v581 = vpop.f32.mrb[0].mxu0
        %v582 = vadd.f32 %v219, %v581
        %v583 = vpop.f32.mrb[0].mxu0
        %v584 = vadd.f32 %v223, %v583
        %v585 = vpop.f32.mrb[0].mxu0
        %v586 = vadd.f32 %v219, %v585
        %v587 = vpop.f32.mrb[0].mxu0
        %v588 = vadd.f32 %v223, %v587
        %589 = vmatprep.mubr.bf16.mxu0 0
        %590 = vmatmul.mubr.bf16.gmra.mrb[0].mxu0 %v398
        %v591 = vpop.f32.mrb[0].mxu0
        %v592 = vadd.f32 %v219, %v591
        %v593 = vpop.f32.mrb[0].mxu0
        %v594 = vadd.f32 %v223, %v593
        %v595 = vpop.f32.mrb[0].mxu0
        %v596 = vadd.f32 %v219, %v595
        %v597 = vpop.f32.mrb[0].mxu0
        %v598 = vadd.f32 %v223, %v597
        %599 = vdwg.mxu0
        %vm600 = vcmp.ge.f32.partialorder %v442, 0.0
        %vm601 = vcmp.ge.f32.partialorder %v444, 0.0
        %vm602 = vcmp.ge.f32.partialorder %v446, 0.0
        %vm603 = vcmp.ge.f32.partialorder %v448, 0.0
        %vm604 = vcmp.ge.f32.partialorder %v452, 0.0
        %vm605 = vcmp.ge.f32.partialorder %v454, 0.0
        %vm606 = vcmp.ge.f32.partialorder %v456, 0.0
        %vm607 = vcmp.ge.f32.partialorder %v458, 0.0
        %vm608 = vcmp.ge.f32.partialorder %v462, 0.0
        %vm609 = vcmp.ge.f32.partialorder %v464, 0.0
        %vm610 = vcmp.ge.f32.partialorder %v466, 0.0
        %vm611 = vcmp.ge.f32.partialorder %v468, 0.0
        %vm612 = vcmp.ge.f32.partialorder %v472, 0.0
        %vm613 = vcmp.ge.f32.partialorder %v474, 0.0
        %vm614 = vcmp.ge.f32.partialorder %v476, 0.0
        %vm615 = vcmp.ge.f32.partialorder %v478, 0.0
        %vm616 = vcmp.ge.f32.partialorder %v482, 0.0
        %vm617 = vcmp.ge.f32.partialorder %v484, 0.0
        %vm618 = vcmp.ge.f32.partialorder %v486, 0.0
        %vm619 = vcmp.ge.f32.partialorder %v488, 0.0
        %vm620 = vcmp.ge.f32.partialorder %v492, 0.0
        %vm621 = vcmp.ge.f32.partialorder %v494, 0.0
        %vm622 = vcmp.ge.f32.partialorder %v496, 0.0
        %vm623 = vcmp.ge.f32.partialorder %v498, 0.0
        %vm624 = vcmp.ge.f32.partialorder %v502, 0.0
        %vm625 = vcmp.ge.f32.partialorder %v504, 0.0
        %vm626 = vcmp.ge.f32.partialorder %v506, 0.0
        %vm627 = vcmp.ge.f32.partialorder %v508, 0.0
        %vm628 = vcmp.ge.f32.partialorder %v512, 0.0
        %vm629 = vcmp.ge.f32.partialorder %v514, 0.0
        %vm630 = vcmp.ge.f32.partialorder %v516, 0.0
        %vm631 = vcmp.ge.f32.partialorder %v518, 0.0
        %vm632 = vcmp.ge.f32.partialorder %v522, 0.0
        %vm633 = vcmp.ge.f32.partialorder %v524, 0.0
        %vm634 = vcmp.ge.f32.partialorder %v526, 0.0
        %vm635 = vcmp.ge.f32.partialorder %v528, 0.0
        %vm636 = vcmp.ge.f32.partialorder %v532, 0.0
        %vm637 = vcmp.ge.f32.partialorder %v534, 0.0
        %vm638 = vcmp.ge.f32.partialorder %v536, 0.0
        %vm639 = vcmp.ge.f32.partialorder %v538, 0.0
        %vm640 = vcmp.ge.f32.partialorder %v542, 0.0
        %vm641 = vcmp.ge.f32.partialorder %v544, 0.0
        %vm642 = vcmp.ge.f32.partialorder %v546, 0.0
        %vm643 = vcmp.ge.f32.partialorder %v548, 0.0
        %vm644 = vcmp.ge.f32.partialorder %v552, 0.0
        %vm645 = vcmp.ge.f32.partialorder %v554, 0.0
        %vm646 = vcmp.ge.f32.partialorder %v556, 0.0
        %vm647 = vcmp.ge.f32.partialorder %v558, 0.0
        %vm648 = vcmp.ge.f32.partialorder %v562, 0.0
        %vm649 = vcmp.ge.f32.partialorder %v564, 0.0
        %vm650 = vcmp.ge.f32.partialorder %v566, 0.0
        %vm651 = vcmp.ge.f32.partialorder %v568, 0.0
        %vm652 = vcmp.ge.f32.partialorder %v572, 0.0
        %vm653 = vcmp.ge.f32.partialorder %v574, 0.0
        %vm654 = vcmp.ge.f32.partialorder %v576, 0.0
        %vm655 = vcmp.ge.f32.partialorder %v578, 0.0
        %vm656 = vcmp.ge.f32.partialorder %v582, 0.0
        %vm657 = vcmp.ge.f32.partialorder %v584, 0.0
        %vm658 = vcmp.ge.f32.partialorder %v586, 0.0
        %vm659 = vcmp.ge.f32.partialorder %v588, 0.0
        %vm660 = vcmp.ge.f32.partialorder %v592, 0.0
        %vm661 = vcmp.ge.f32.partialorder %v594, 0.0
        %vm662 = vcmp.ge.f32.partialorder %v596, 0.0
        %vm663 = vcmp.ge.f32.partialorder %v598, 0.0
        %v664 = vmul.f32 %v442, 0.25
        %v665 = vmul.f32 %v444, 0.25
        %v666 = vmul.f32 %v446, 0.25
        %v667 = vmul.f32 %v448, 0.25
        %v668 = vmul.f32 %v452, 0.25
        %v669 = vmul.f32 %v454, 0.25
        %v670 = vmul.f32 %v456, 0.25
        %v671 = vmul.f32 %v458, 0.25
        %v672 = vmul.f32 %v462, 0.25
        %v673 = vmul.f32 %v464, 0.25
        %v674 = vmul.f32 %v466, 0.25
        %v675 = vmul.f32 %v468, 0.25
        %v676 = vmul.f32 %v472, 0.25
        %v677 = vmul.f32 %v474, 0.25
        %v678 = vmul.f32 %v476, 0.25
        %v679 = vmul.f32 %v478, 0.25
        %v680 = vmul.f32 %v482, 0.25
        %v681 = vmul.f32 %v484, 0.25
        %v682 = vmul.f32 %v486, 0.25
        %v683 = vmul.f32 %v488, 0.25
        %v684 = vmul.f32 %v492, 0.25
        %v685 = vmul.f32 %v494, 0.25
        %v686 = vmul.f32 %v496, 0.25
        %v687 = vmul.f32 %v498, 0.25
        %v688 = vmul.f32 %v502, 0.25
        %v689 = vmul.f32 %v504, 0.25
        %v690 = vmul.f32 %v506, 0.25
        %v691 = vmul.f32 %v508, 0.25
        %v692 = vmul.f32 %v512, 0.25
        %v693 = vmul.f32 %v514, 0.25
        %v694 = vmul.f32 %v516, 0.25
        %v695 = vmul.f32 %v518, 0.25
        %v696 = vmul.f32 %v522, 0.25
        %v697 = vmul.f32 %v524, 0.25
        %v698 = vmul.f32 %v526, 0.25
        %v699 = vmul.f32 %v528, 0.25
        %v700 = vmul.f32 %v532, 0.25
        %v701 = vmul.f32 %v534, 0.25
        %v702 = vmul.f32 %v536, 0.25
        %v703 = vmul.f32 %v538, 0.25
        %v704 = vmul.f32 %v542, 0.25
        %v705 = vmul.f32 %v544, 0.25
        %v706 = vmul.f32 %v546, 0.25
        %v707 = vmul.f32 %v548, 0.25
        %v708 = vmul.f32 %v552, 0.25
        %v709 = vmul.f32 %v554, 0.25
        %v710 = vmul.f32 %v556, 0.25
        %v711 = vmul.f32 %v558, 0.25
        %v712 = vmul.f32 %v562, 0.25
        %v713 = vmul.f32 %v564, 0.25
        %v714 = vmul.f32 %v566, 0.25
        %v715 = vmul.f32 %v568, 0.25
        %v716 = vmul.f32 %v572, 0.25
        %v717 = vmul.f32 %v574, 0.25
        %v718 = vmul.f32 %v576, 0.25
        %v719 = vmul.f32 %v578, 0.25
        %v720 = vmul.f32 %v582, 0.25
        %v721 = vmul.f32 %v584, 0.25
        %v722 = vmul.f32 %v586, 0.25
        %v723 = vmul.f32 %v588, 0.25
        %v724 = vmul.f32 %v592, 0.25
        %v725 = vmul.f32 %v594, 0.25
        %v726 = vmul.f32 %v596, 0.25
        %v727 = vmul.f32 %v598, 0.25
        %v728 = vsel %vm600, %v442, %v664
        %v729 = vsel %vm601, %v444, %v665
        %v730 = vsel %vm602, %v446, %v666
        %v731 = vsel %vm603, %v448, %v667
        %v732 = vsel %vm604, %v452, %v668
        %v733 = vsel %vm605, %v454, %v669
        %v734 = vsel %vm606, %v456, %v670
        %v735 = vsel %vm607, %v458, %v671
        %v736 = vsel %vm608, %v462, %v672
        %v737 = vsel %vm609, %v464, %v673
        %v738 = vsel %vm610, %v466, %v674
        %v739 = vsel %vm611, %v468, %v675
        %v740 = vsel %vm612, %v472, %v676
        %v741 = vsel %vm613, %v474, %v677
        %v742 = vsel %vm614, %v476, %v678
        %v743 = vsel %vm615, %v478, %v679
        %v744 = vsel %vm616, %v482, %v680
        %v745 = vsel %vm617, %v484, %v681
        %v746 = vsel %vm618, %v486, %v682
        %v747 = vsel %vm619, %v488, %v683
        %v748 = vsel %vm620, %v492, %v684
        %v749 = vsel %vm621, %v494, %v685
        %v750 = vsel %vm622, %v496, %v686
        %v751 = vsel %vm623, %v498, %v687
        %v752 = vsel %vm624, %v502, %v688
        %v753 = vsel %vm625, %v504, %v689
        %v754 = vsel %vm626, %v506, %v690
        %v755 = vsel %vm627, %v508, %v691
        %v756 = vsel %vm628, %v512, %v692
        %v757 = vsel %vm629, %v514, %v693
        %v758 = vsel %vm630, %v516, %v694
        %v759 = vsel %vm631, %v518, %v695
        %v760 = vsel %vm632, %v522, %v696
        %v761 = vsel %vm633, %v524, %v697
        %v762 = vsel %vm634, %v526, %v698
        %v763 = vsel %vm635, %v528, %v699
        %v764 = vsel %vm636, %v532, %v700
        %v765 = vsel %vm637, %v534, %v701
        %v766 = vsel %vm638, %v536, %v702
        %v767 = vsel %vm639, %v538, %v703
        %v768 = vsel %vm640, %v542, %v704
        %v769 = vsel %vm641, %v544, %v705
        %v770 = vsel %vm642, %v546, %v706
        %v771 = vsel %vm643, %v548, %v707
        %v772 = vsel %vm644, %v552, %v708
        %v773 = vsel %vm645, %v554, %v709
        %v774 = vsel %vm646, %v556, %v710
        %v775 = vsel %vm647, %v558, %v711
        %v776 = vsel %vm648, %v562, %v712
        %v777 = vsel %vm649, %v564, %v713
        %v778 = vsel %vm650, %v566, %v714
        %v779 = vsel %vm651, %v568, %v715
        %v780 = vsel %vm652, %v572, %v716
        %v781 = vsel %vm653, %v574, %v717
        %v782 = vsel %vm654, %v576, %v718
        %v783 = vsel %vm655, %v578, %v719
        %v784 = vsel %vm656, %v582, %v720
        %v785 = vsel %vm657, %v584, %v721
        %v786 = vsel %vm658, %v586, %v722
        %v787 = vsel %vm659, %v588, %v723
        %v788 = vsel %vm660, %v592, %v724
        %v789 = vsel %vm661, %v594, %v725
        %v790 = vsel %vm662, %v596, %v726
        %v791 = vsel %vm663, %v598, %v727
        %792 = vst [vmem:[%s164] sm:$0xff] %v728
        %793 = vst [vmem:[%s164 + $0x8] sm:$0xff] %v729
        %794 = vst [vmem:[%s164 + $0x10] sm:$0xff] %v730
        %795 = vst [vmem:[%s164 + $0x18] sm:$0xff] %v731
        %796 = vst [vmem:[%s164 + $0x20] sm:$0xff] %v732
        %797 = vst [vmem:[%s164 + $0x28] sm:$0xff] %v733
        %798 = vst [vmem:[%s164 + $0x30] sm:$0xff] %v734
        %799 = vst [vmem:[%s164 + $0x38] sm:$0xff] %v735
        %800 = vst [vmem:[%s164 + $0x40] sm:$0xff] %v736
        %801 = vst [vmem:[%s164 + $0x48] sm:$0xff] %v737
        %802 = vst [vmem:[%s164 + $0x50] sm:$0xff] %v738
        %803 = vst [vmem:[%s164 + $0x58] sm:$0xff] %v739
        %804 = vst [vmem:[%s164 + $0x60] sm:$0xff] %v740
        %805 = vst [vmem:[%s164 + $0x68] sm:$0xff] %v741
        %806 = vst [vmem:[%s164 + $0x70] sm:$0xff] %v742
        %807 = vst [vmem:[%s164 + $0x78] sm:$0xff] %v743
        %808 = vst [vmem:[%s164 + $0x80] sm:$0xff] %v744
        %809 = vst [vmem:[%s164 + $0x88] sm:$0xff] %v745
        %810 = vst [vmem:[%s164 + $0x90] sm:$0xff] %v746
        %811 = vst [vmem:[%s164 + $0x98] sm:$0xff] %v747
        %812 = vst [vmem:[%s164 + $0xa0] sm:$0xff] %v748
        %813 = vst [vmem:[%s164 + $0xa8] sm:$0xff] %v749
        %814 = vst [vmem:[%s164 + $0xb0] sm:$0xff] %v750
        %815 = vst [vmem:[%s164 + $0xb8] sm:$0xff] %v751
        %816 = vst [vmem:[%s164 + $0xc0] sm:$0xff] %v752
        %817 = vst [vmem:[%s164 + $0xc8] sm:$0xff] %v753
        %818 = vst [vmem:[%s164 + $0xd0] sm:$0xff] %v754
        %819 = vst [vmem:[%s164 + $0xd8] sm:$0xff] %v755
        %820 = vst [vmem:[%s164 + $0xe0] sm:$0xff] %v756
        %821 = vst [vmem:[%s164 + $0xe8] sm:$0xff] %v757
        %822 = vst [vmem:[%s164 + $0xf0] sm:$0xff] %v758
        %823 = vst [vmem:[%s164 + $0xf8] sm:$0xff] %v759
        %824 = vst [vmem:[%s164 + $0x100] sm:$0xff] %v760
        %825 = vst [vmem:[%s164 + $0x108] sm:$0xff] %v761
        %826 = vst [vmem:[%s164 + $0x110] sm:$0xff] %v762
        %827 = vst [vmem:[%s164 + $0x118] sm:$0xff] %v763
        %828 = vst [vmem:[%s164 + $0x120] sm:$0xff] %v764
        %829 = vst [vmem:[%s164 + $0x128] sm:$0xff] %v765
        %830 = vst [vmem:[%s164 + $0x130] sm:$0xff] %v766
        %831 = vst [vmem:[%s164 + $0x138] sm:$0xff] %v767
        %832 = vst [vmem:[%s164 + $0x140] sm:$0xff] %v768
        %833 = vst [vmem:[%s164 + $0x148] sm:$0xff] %v769
        %834 = vst [vmem:[%s164 + $0x150] sm:$0xff] %v770
        %835 = vst [vmem:[%s164 + $0x158] sm:$0xff] %v771
        %836 = vst [vmem:[%s164 + $0x160] sm:$0xff] %v772
        %837 = vst [vmem:[%s164 + $0x168] sm:$0xff] %v773
        %838 = vst [vmem:[%s164 + $0x170] sm:$0xff] %v774
        %839 = vst [vmem:[%s164 + $0x178] sm:$0xff] %v775
        %840 = vst [vmem:[%s164 + $0x180] sm:$0xff] %v776
        %841 = vst [vmem:[%s164 + $0x188] sm:$0xff] %v777
        %842 = vst [vmem:[%s164 + $0x190] sm:$0xff] %v778
        %843 = vst [vmem:[%s164 + $0x198] sm:$0xff] %v779
        %844 = vst [vmem:[%s164 + $0x1a0] sm:$0xff] %v780
        %845 = vst [vmem:[%s164 + $0x1a8] sm:$0xff] %v781
        %846 = vst [vmem:[%s164 + $0x1b0] sm:$0xff] %v782
        %847 = vst [vmem:[%s164 + $0x1b8] sm:$0xff] %v783
        %848 = vst [vmem:[%s164 + $0x1c0] sm:$0xff] %v784
        %849 = vst [vmem:[%s164 + $0x1c8] sm:$0xff] %v785
        %850 = vst [vmem:[%s164 + $0x1d0] sm:$0xff] %v786
        %851 = vst [vmem:[%s164 + $0x1d8] sm:$0xff] %v787
        %852 = vst [vmem:[%s164 + $0x1e0] sm:$0xff] %v788
        %853 = vst [vmem:[%s164 + $0x1e8] sm:$0xff] %v789
        %854 = vst [vmem:[%s164 + $0x1f0] sm:$0xff] %v790
        %855 = vst [vmem:[%s164 + $0x1f8] sm:$0xff] %v791
        %s856 = sand.u32 %s93, 1
        %s857 = scalar_lea.sflag [#allocation3], %s856
        %s858 = sand.u32 %s93, 1
        %s859 = smul.addr %s858, 512
        %s860 = scalar_lea.vmem [#allocation2], %s859
        // Predicated region
        $region33: #{_lambda_.117} parent=31 // pred_check
          %p861 = pneg %p103
        $region34: #{_lambda_.117} parent=31 // pred_check_branch
          %863 = sbr.rel (%p861) target = $region36
        $region35: #{_lambda_.117} parent=31 // pred_region
          %s864 = smul.u32 32, %s17
          %s866 = ssub.s32 8192, 8192
          %867 = vsyncadd %s857, %s866
          %s868 = smul.addr %s864, 2
          %s869 = smul.addr %s868, 128
          %s870 = scalar_lea.hbm %s3, %s869
          %s871 = sshll.u32 %s860, 4
          %s872 = int_to_ptr.vmem [resolvable:$true] %s871
          %877 = dma.vmem_to_hbm [thread:$0]  %s872, 8192, %s870, %s857, 256, 256, 16
        $region36: #{_lambda_.117} parent=31 // pred_fallthru
          _
      $region32: #{_lambda_.117} parent=5 // pred_fallthru
        _
      %p878 = scmp.le.s32.totalorder 2, %s12
      // Predicated region
      $region37: #{_lambda_.117} parent=5 // pred_check
        %p879 = pneg %p878
      $region38: #{_lambda_.117} parent=5 // pred_check_branch
        %881 = sbr.rel (%p879) target = $region40
      $region39: #{_lambda_.117} parent=5 // pred_region
        %s882 = ssub.s32 %s12, 2
        // Predicated region
        $region41: #{_lambda_.117} parent=39 // pred_check
          %p883 = pneg %p109
        $region42: #{_lambda_.117} parent=39 // pred_check_branch
          %885 = sbr.rel (%p883) target = $region44
        $region43: #{_lambda_.117} parent=39 // pred_region
          %s886 = sand.u32 %s94, 1
          %s887 = scalar_lea.sflag [#allocation3], %s886
          %s888 = sand.u32 %s94, 1
          %s889 = smul.addr %s888, 512
          %s890 = scalar_lea.vmem [#allocation2], %s889
          %891 = dma.done %s887, 8192
        $region44: #{_lambda_.117} parent=39 // pred_fallthru
          _
      $region40: #{_lambda_.117} parent=5 // pred_fallthru
        _
    $region6: #{_lambda_.117} parent=1 // loop_footer
      %s16 = sadd.s32 1, %s12
    $region7: #{_lambda_.117} parent=1 // loop_footer_branch
      %11 = sbr.rel target = $region3
    $region8: #{_lambda_.117} parent=1 // loop_exit
      _
    %892 = vsyncpa [#allocation3], 1
    %s893 = scalar_lea.sflag [#allocation3], 1
    %894 = vsyncpa %s893, 1

</llo_original>
